<compile_context>
chip_gen: v7x
topology: tpu7x:2x2x1
jax: 0.10.0
libtpu: 0.0.40
codegen_flags: <defaults>
</compile_context>

<pallas_src>
import functools
import math

import jax
import jax.numpy as jnp
from jax.experimental import pallas as pl
from jax.experimental.pallas import tpu as pltpu


# ----------------------------------------------------------------------------
# Kernel 1: adaLN modulation (SiLU -> Linear(dim, 6*dim)) + MoE language gating
# ----------------------------------------------------------------------------
def _adaln_gate_kernel(ada_ref, w6_ref, b6_ref, lemb_ref, wg_ref, bg_ref,
                       ada_out_ref, lg_out_ref):
    f32 = jnp.float32
    h = jax.nn.silu(ada_ref[...]).astype(jnp.bfloat16)
    ada_out_ref[...] = (
        jnp.dot(h, w6_ref[...], preferred_element_type=f32) + b6_ref[...]
    )
    lg_out_ref[...] = (
        jnp.dot(lemb_ref[...], wg_ref[...], preferred_element_type=f32)
        + bg_ref[...]
    )


def adaln_and_lang_gating(adaln_input, lang_emb, prep):
    b = adaln_input.shape[0]
    six_c = prep["adaLN_w"].shape[-1]
    n_exp = prep["lang_gate_b"].shape[-1]
    return pl.pallas_call(
        _adaln_gate_kernel,
        out_shape=(
            jax.ShapeDtypeStruct((b, six_c), jnp.float32),
            jax.ShapeDtypeStruct((b, n_exp), jnp.float32),
        ),
    )(adaln_input, prep["adaLN_w"], prep["adaLN_b"], lang_emb,
      prep["lang_gate_w"], prep["lang_gate_b"])


# ----------------------------------------------------------------------------
# Kernel 2: fused attention block (norm+modulate, fused QKV, full-width
#           qk-norm + RoPE, self-attn, tanh-gated cross-attn to y, out-proj,
#           gated residual)
# ----------------------------------------------------------------------------
def _attn_block_kernel(
    x_ref, anw_ref, shift_ref, scl_ref, gres_ref, xb_ref,
    wqkv_ref, qn_ref, kn_ref, cos_ref, sin_ref, psw_ref, blk_ref,
    y_ref, ynw_ref, yb_ref, wkvy_ref, kyn_ref, gatet_ref, wo_ref,
    out_ref,
    q_scr, k_scr, v_scr, ky_scr, vy_scr, o_scr,
    *, n_heads, head_dim, eps,
):
    f32 = jnp.float32
    bf16 = jnp.bfloat16
    c = q_scr.shape[-1]
    inv_sqrt_d = 1.0 / math.sqrt(head_dim)

    # ---- RMSNorm + adaLN modulate + fused QKV projection (one wide matmul) --
    x = x_ref[0]                                                    # (T, C)
    inv = jax.lax.rsqrt(jnp.mean(x * x, axis=-1, keepdims=True) + eps)
    xm = (x * inv * anw_ref[...]) * (1.0 + scl_ref[0]) + shift_ref[0]
    qkv = jnp.dot(xm.astype(bf16), wqkv_ref[...],
                  preferred_element_type=f32)                       # (T, 3C)
    q = qkv[:, :c]
    k = qkv[:, c:2 * c]
    v = qkv[:, 2 * c:]

    blk = blk_ref[...]                                              # (C, C)
    psw = psw_ref[...]                                              # (C, C)
    cos = cos_ref[...]                                              # (T, C)
    sin = sin_ref[...]                                              # (T, C)

    # ---- per-head q/k RMSNorm hoisted to full (T, C) width ------------------
    q = q * jax.lax.rsqrt(
        jnp.dot(q * q, blk, preferred_element_type=f32) + eps) * qn_ref[...]
    k = k * jax.lax.rsqrt(
        jnp.dot(k * k, blk, preferred_element_type=f32) + eps) * kn_ref[...]

    # ---- RoPE (pair-interleaved) at full width ------------------------------
    # TODO(synk): the pair swap could run on the XLU (pltpu.roll even/odd
    #             swizzle) instead of this (C,C) permutation matmul.
    q_scr[...] = (
        q * cos + jnp.dot(q, psw, preferred_element_type=f32) * sin
    ).astype(bf16)
    k_scr[...] = (
        k * cos + jnp.dot(k, psw, preferred_element_type=f32) * sin
    ).astype(bf16)
    v_scr[...] = v.astype(bf16)

    # ---- y RMSNorm + fused k_y / v_y projection (cross attention) -----------
    yv = y_ref[0]                                                   # (S, Cy)
    yinv = jax.lax.rsqrt(jnp.mean(yv * yv, axis=-1, keepdims=True) + eps)
    ynb = (yv * yinv * ynw_ref[...]).astype(bf16)
    kvy = jnp.dot(ynb, wkvy_ref[...], preferred_element_type=f32)   # (S, 2C)
    ky = kvy[:, :c]
    ky = ky * jax.lax.rsqrt(
        jnp.dot(ky * ky, blk, preferred_element_type=f32) + eps) * kyn_ref[...]
    ky_scr[...] = ky.astype(bf16)
    vy_scr[...] = kvy[:, c:].astype(bf16)

    xbias = xb_ref[0]                                               # (1, T)
    ybias = yb_ref[0]                                               # (1, S)
    gate_t = gatet_ref[...]                                         # (1, C)

    # ---- per-head attention (static lane slices of the (T,C) scratch) -------
    # TODO(synk): for production T/C use lax.fori_loop or a head grid axis and
    #             flash-style (Tq, Tk) tiling to bound live ranges / fit v7x.
    for h in range(n_heads):
        sl = slice(h * head_dim, (h + 1) * head_dim)
        qh = q_scr[:, sl]
        kh = k_scr[:, sl]
        vh = v_scr[:, sl]

        s = jax.lax.dot_general(
            qh, kh, (((1,), (1,)), ((), ())),
            preferred_element_type=f32) * inv_sqrt_d + xbias
        s = s - jnp.max(s, axis=-1, keepdims=True)
        p = jnp.exp(s)
        p = p / jnp.sum(p, axis=-1, keepdims=True)
        oh = jnp.dot(p.astype(bf16), vh, preferred_element_type=f32)

        # TODO(synk): the RoPE-rotated q is reused for the y branch, matching
        #             the previously accepted version of this block.
        kyh = ky_scr[:, sl]
        vyh = vy_scr[:, sl]
        sy = jax.lax.dot_general(
            qh, kyh, (((1,), (1,)), ((), ())),
            preferred_element_type=f32) * inv_sqrt_d + ybias
        sy = sy - jnp.max(sy, axis=-1, keepdims=True)
        py = jnp.exp(sy)
        py = py / jnp.sum(py, axis=-1, keepdims=True)
        oyh = jnp.dot(py.astype(bf16), vyh, preferred_element_type=f32)

        o_scr[:, sl] = oh + gate_t[:, sl] * oyh

    # ---- output projection + gated residual add ------------------------------
    proj = jnp.dot(o_scr[...].astype(bf16), wo_ref[...],
                   preferred_element_type=f32)
    out_ref[0] = x + gres_ref[0] * proj


def fused_attention_block(x, xbias, y, ybias, shift, scale, gate_res,
                          cos_full, sin_full, prep, *, n_heads, eps):
    b, t, c = x.shape
    s = y.shape[1]
    dh = c // n_heads
    kern = functools.partial(
        _attn_block_kernel, n_heads=n_heads, head_dim=dh, eps=eps)

    def const2(a):                       # whole 2-D constant, broadcast on b
        return pl.BlockSpec(a.shape, lambda bi: (0, 0))

    def batch3(a):                       # (B, ., .) -> one batch slice
        return pl.BlockSpec((1,) + a.shape[1:], lambda bi: (bi, 0, 0))

    operands = (x, prep["attn_norm_w"], shift, scale, gate_res, xbias,
                prep["wqkv"], prep["q_norm"], prep["k_norm"],
                cos_full, sin_full, prep["pair_swap"], prep["head_mean"],
                y, prep["attn_y_norm_w"], ybias, prep["wkvy"],
                prep["ky_norm"], prep["gate_tanh"], prep["wo"])
    in_specs = [batch3(x), const2(prep["attn_norm_w"]), batch3(shift),
                batch3(scale), batch3(gate_res), batch3(xbias),
                const2(prep["wqkv"]), const2(prep["q_norm"]),
                const2(prep["k_norm"]), const2(cos_full), const2(sin_full),
                const2(prep["pair_swap"]), const2(prep["head_mean"]),
                batch3(y), const2(prep["attn_y_norm_w"]), batch3(ybias),
                const2(prep["wkvy"]), const2(prep["ky_norm"]),
                const2(prep["gate_tanh"]), const2(prep["wo"])]
    return pl.pallas_call(
        kern,
        out_shape=jax.ShapeDtypeStruct((b, t, c), jnp.float32),
        grid=(b,),
        in_specs=in_specs,
        out_specs=pl.BlockSpec((1, t, c), lambda bi: (bi, 0, 0)),
        scratch_shapes=[
            pltpu.VMEM((t, c), jnp.bfloat16),   # q (post qk-norm + RoPE)
            pltpu.VMEM((t, c), jnp.bfloat16),   # k
            pltpu.VMEM((t, c), jnp.bfloat16),   # v
            pltpu.VMEM((s, c), jnp.bfloat16),   # k_y
            pltpu.VMEM((s, c), jnp.bfloat16),   # v_y
            pltpu.VMEM((t, c), jnp.float32),    # per-head outputs (concat)
        ],
        compiler_params=pltpu.CompilerParams(dimension_semantics=("parallel",)),
    )(*operands)


# ----------------------------------------------------------------------------
# Kernel 3: MoE language-expert bank. ffn_norm + modulate computed once per
#           batch element (e==0) and cached; out_ref is the expert accumulator.
# ----------------------------------------------------------------------------
def _moe_bank1_kernel(h_ref, nw_ref, shift_ref, scl_ref, p_ref,
                      w1_ref, w3_ref, w2_ref, out_ref, xb_scr, *, eps):
    f32 = jnp.float32
    bf16 = jnp.bfloat16
    bi = pl.program_id(0)
    e = pl.program_id(1)

    @pl.when(e == 0)
    def _():
        x = h_ref[0]                                                # (T, C)
        inv = jax.lax.rsqrt(jnp.mean(x * x, axis=-1, keepdims=True) + eps)
        xm = (x * inv * nw_ref[...]) * (1.0 + scl_ref[0]) + shift_ref[0]
        xb_scr[...] = xm.astype(bf16)

    xb = xb_scr[...]
    h1 = jnp.dot(xb, w1_ref[0], preferred_element_type=f32)
    h3 = jnp.dot(xb, w3_ref[0], preferred_element_type=f32)
    hid = (jax.nn.silu(h1) * h3).astype(bf16)
    contrib = (jnp.dot(hid, w2_ref[0], preferred_element_type=f32)
               * p_ref[bi, e])

    @pl.when(e == 0)
    def _():
        out_ref[0] = contrib

    @pl.when(e > 0)
    def _():
        out_ref[0] = out_ref[0] + contrib


def moe_expert_bank1(h, shift, scale, lang_probs, prep, *, eps):
    b, t, c = h.shape
    n_exp = lang_probs.shape[1]
    hd = prep["lang_w1"].shape[-1]
    kern = functools.partial(_moe_bank1_kernel, eps=eps)
    # TODO(synk): with e innermost the expert weight panels are re-DMA'd per
    #             batch element; production sizes need an hd-tiled weight axis
    #             or an HBM-resident accumulator to keep weights resident.
    in_specs = [
        pl.BlockSpec((1, t, c), lambda bi, ei: (bi, 0, 0)),          # h
        pl.BlockSpec((1, c), lambda bi, ei: (0, 0)),                 # ffn_norm_w
        pl.BlockSpec((1, 1, c), lambda bi, ei: (bi, 0, 0)),          # shift_mlp
        pl.BlockSpec((1, 1, c), lambda bi, ei: (bi, 0, 0)),          # scale_mlp
        pl.BlockSpec(memory_space=pltpu.MemorySpace.SMEM),           # lang probs
        pl.BlockSpec((1, c, hd), lambda bi, ei: (ei, 0, 0)),         # w1
        pl.BlockSpec((1, c, hd), lambda bi, ei: (ei, 0, 0)),         # w3
        pl.BlockSpec((1, hd, c), lambda bi, ei: (ei, 0, 0)),         # w2
    ]
    return pl.pallas_call(
        kern,
        out_shape=jax.ShapeDtypeStruct((b, t, c), jnp.float32),
        grid=(b, n_exp),
        in_specs=in_specs,
        out_specs=pl.BlockSpec((1, t, c), lambda bi, ei: (bi, 0, 0)),
        scratch_shapes=[pltpu.VMEM((t, c), jnp.bfloat16)],
        compiler_params=pltpu.CompilerParams(
            dimension_semantics=("parallel", "arbitrary")),
    )(h, prep["ffn_norm_w"], shift, scale, lang_probs,
      prep["lang_w1"], prep["lang_w3"], prep["lang_w2"])


# ----------------------------------------------------------------------------
# Kernel 4: cross attention (nn.MultiheadAttention, 8 heads) with fused k/v
#           projection and the output projection folded into the caption gate.
# ----------------------------------------------------------------------------
def _cross_attn_gate_kernel(q_in_ref, kv_ref, wq_ref, bq_ref, wkv_ref,
                            bkv_ref, wg_ref, bg_ref, logit_ref,
                            q_scr, k_scr, v_scr, o_scr, *, num_heads):
    f32 = jnp.float32
    bf16 = jnp.bfloat16
    c = q_scr.shape[-1]
    dh = c // num_heads
    inv_sqrt_d = 1.0 / math.sqrt(dh)

    xq = q_in_ref[0].astype(bf16)                                   # (T, C)
    xc = kv_ref[0].astype(bf16)                                     # (Tc, C)
    q_scr[...] = (jnp.dot(xq, wq_ref[...], preferred_element_type=f32)
                  + bq_ref[...]).astype(bf16)
    kv = jnp.dot(xc, wkv_ref[...], preferred_element_type=f32) + bkv_ref[...]
    k_scr[...] = kv[:, :c].astype(bf16)
    v_scr[...] = kv[:, c:].astype(bf16)

    for h in range(num_heads):
        sl = slice(h * dh, (h + 1) * dh)
        qh = q_scr[:, sl]
        kh = k_scr[:, sl]
        vh = v_scr[:, sl]
        s = jax.lax.dot_general(
            qh, kh, (((1,), (1,)), ((), ())),
            preferred_element_type=f32) * inv_sqrt_d
        s = s - jnp.max(s, axis=-1, keepdims=True)
        p = jnp.exp(s)
        p = p / jnp.sum(p, axis=-1, keepdims=True)
        o_scr[:, sl] = jnp.dot(p.astype(bf16), vh, preferred_element_type=f32)

    # MHA out-proj folded into the caption gate: wg_fold = wo^T @ wg^T.
    logit_ref[0] = (jnp.dot(o_scr[...].astype(bf16), wg_ref[...],
                            preferred_element_type=f32) + bg_ref[...])


def cross_attention_gating(first_out, caption, prep, *, num_heads):
    b, t, c = first_out.shape
    tc = caption.shape[1]
    n_exp = prep["cap_gate_b_fold"].shape[-1]
    kern = functools.partial(_cross_attn_gate_kernel, num_heads=num_heads)

    def const2(a):
        return pl.BlockSpec(a.shape, lambda bi: (0, 0))

    in_specs = [
        pl.BlockSpec((1, t, c), lambda bi: (bi, 0, 0)),
        pl.BlockSpec((1, tc, c), lambda bi: (bi, 0, 0)),
        const2(prep["mha_wq"]), const2(prep["mha_bq"]),
        const2(prep["mha_wkv"]), const2(prep["mha_bkv"]),
        const2(prep["cap_gate_w_fold"]), const2(prep["cap_gate_b_fold"]),
    ]
    return pl.pallas_call(
        kern,
        out_shape=jax.ShapeDtypeStruct((b, t, n_exp), jnp.float32),
        grid=(b,),
        in_specs=in_specs,
        out_specs=pl.BlockSpec((1, t, n_exp), lambda bi: (bi, 0, 0)),
        scratch_shapes=[
            pltpu.VMEM((t, c), jnp.bfloat16),
            pltpu.VMEM((tc, c), jnp.bfloat16),
            pltpu.VMEM((tc, c), jnp.bfloat16),
            pltpu.VMEM((t, c), jnp.float32),
        ],
        compiler_params=pltpu.CompilerParams(dimension_semantics=("parallel",)),
    )(first_out, caption, prep["mha_wq"], prep["mha_bq"], prep["mha_wkv"],
      prep["mha_bkv"], prep["cap_gate_w_fold"], prep["cap_gate_b_fold"])


# ----------------------------------------------------------------------------
# Kernel 5: MoE caption-expert bank. out_ref is the accumulator; finalize
#           out = h + gate_mlp * (first + sum_e p_e FFN_e(first)) on last step.
# ----------------------------------------------------------------------------
def _moe_bank2_kernel(f_ref, h_ref, gate_ref, p_ref, w1_ref, w3_ref, w2_ref,
                      out_ref, fb_scr):
    f32 = jnp.float32
    bf16 = jnp.bfloat16
    e = pl.program_id(1)
    n_e = pl.num_programs(1)

    @pl.when(e == 0)
    def _():
        fb_scr[...] = f_ref[0].astype(bf16)

    fb = fb_scr[...]
    h1 = jnp.dot(fb, w1_ref[0], preferred_element_type=f32)
    h3 = jnp.dot(fb, w3_ref[0], preferred_element_type=f32)
    hid = (jax.nn.silu(h1) * h3).astype(bf16)
    contrib = (jnp.dot(hid, w2_ref[0], preferred_element_type=f32)
               * p_ref[0, 0])

    @pl.when(e == 0)
    def _():
        out_ref[0] = contrib

    @pl.when(e > 0)
    def _():
        out_ref[0] = out_ref[0] + contrib

    @pl.when(e == n_e - 1)
    def _():
        out_ref[0] = h_ref[0] + gate_ref[0] * (f_ref[0] + out_ref[0])


def moe_expert_bank2(first_out, h, gate_mlp, cap_probs_k, prep):
    b, t, c = first_out.shape
    n_exp = cap_probs_k.shape[1]
    hd = prep["cap_w1"].shape[-1]
    # TODO(synk): (B,E,T,1) lane-width-1 probability blocks; a lane-dense
    #             layout would avoid padded strided DMAs at production T.
    in_specs = [
        pl.BlockSpec((1, t, c), lambda bi, ei: (bi, 0, 0)),          # first_out
        pl.BlockSpec((1, t, c), lambda bi, ei: (bi, 0, 0)),          # h
        pl.BlockSpec((1, 1, c), lambda bi, ei: (bi, 0, 0)),          # gate_mlp
        pl.BlockSpec((1, 1, t, 1), lambda bi, ei: (bi, ei, 0, 0)),   # cap probs
        pl.BlockSpec((1, c, hd), lambda bi, ei: (ei, 0, 0)),         # w1
        pl.BlockSpec((1, c, hd), lambda bi, ei: (ei, 0, 0)),         # w3
        pl.BlockSpec((1, hd, c), lambda bi, ei: (ei, 0, 0)),         # w2
    ]
    return pl.pallas_call(
        _moe_bank2_kernel,
        out_shape=jax.ShapeDtypeStruct((b, t, c), jnp.float32),
        grid=(b, n_exp),
        in_specs=in_specs,
        out_specs=pl.BlockSpec((1, t, c), lambda bi, ei: (bi, 0, 0)),
        scratch_shapes=[pltpu.VMEM((t, c), jnp.bfloat16)],
        compiler_params=pltpu.CompilerParams(
            dimension_semantics=("parallel", "arbitrary")),
    )(first_out, h, gate_mlp, cap_probs_k,
      prep["cap_w1"], prep["cap_w3"], prep["cap_w2"])


# ----------------------------------------------------------------------------
# Glue (tiny, kept in plain JAX)
# ----------------------------------------------------------------------------
def gumbel_softmax(logits, temperature, rng):
    # TODO(synk): training-mode (soft) gumbel softmax only; no hard/ST path.
    g = jax.random.gumbel(rng, logits.shape, dtype=logits.dtype)
    return jax.nn.softmax((logits + g) / temperature, axis=-1)


@functools.partial(
    jax.jit, static_argnames=("n_heads", "num_experts", "eps", "temperature"))
def transformer_block_forward(prep, x, x_mask, y, y_mask, freqs_cos, freqs_sin,
                              adaln_input, caption, language, rng, *,
                              n_heads, num_experts, eps, temperature=2.0):
    b, t, c = x.shape
    dh = c // n_heads

    # RoPE tables (pair-interleaved), sign folded into sin, tiled to (T, C).
    cos_d = jnp.repeat(freqs_cos, 2, axis=1)                         # (T, Dh)
    sign = jnp.tile(jnp.array([-1.0, 1.0], jnp.float32), dh // 2)
    sin_d = jnp.repeat(freqs_sin, 2, axis=1) * sign[None, :]         # (T, Dh)
    cos_full = jnp.tile(cos_d, (1, n_heads))                         # (T, C)
    sin_full = jnp.tile(sin_d, (1, n_heads))                         # (T, C)

    # Small additive mask biases (no (B,1,T,T) broadcast materialised).
    xbias = jnp.where(x_mask, 0.0, -1e9).astype(jnp.float32)[:, None, :]
    ybias = jnp.where(y_mask, 0.0, -1e9).astype(jnp.float32)[:, None, :]

    lang_emb = prep["lang_emb"][language]                            # (B, C)

    # adaLN + language gating (one kernel, two outputs)
    ada, lang_logits = adaln_and_lang_gating(adaln_input, lang_emb, prep)
    shift_msa, scale_msa, gate_msa, shift_mlp, scale_mlp, gate_mlp = [
        a[:, None, :] for a in jnp.split(ada, 6, axis=1)]

    # Attention block (norm/modulate/QKV/RoPE/self+cross attn/proj/residual).
    h = fused_attention_block(x, xbias, y, ybias, shift_msa, scale_msa,
                              gate_msa, cos_full, sin_full, prep,
                              n_heads=n_heads, eps=eps)

    rng1, rng2 = jax.random.split(rng)
    lang_probs = gumbel_softmax(lang_logits, temperature, rng1)      # (B, E)

    # First expert bank (ffn_norm + modulate fused, in-kernel expert sum).
    first_out = moe_expert_bank1(h, shift_mlp, scale_mlp, lang_probs, prep,
                                 eps=eps)                            # (B, T, C)

    # Cross attention to caption + folded caption gating logits (one kernel).
    cap_logits = cross_attention_gating(first_out, caption, prep, num_heads=8)
    cap_probs = gumbel_softmax(cap_logits.reshape(-1, num_experts),
                               temperature, rng2)                    # (BT, E)
    cap_probs_k = jnp.transpose(
        cap_probs.reshape(b, t, num_experts), (0, 2, 1))[..., None]  # (B,E,T,1)

    # Second expert bank + (first + second) + final gated residual (fused).
    out = moe_expert_bank2(first_out, h, gate_mlp, cap_probs_k, prep)

    # Load-balancing loss (scalar, plain JAX)
    lang_probs_rep = jnp.repeat(lang_probs, t, axis=0)               # (BT, E)
    all_probs = jnp.concatenate([lang_probs_rep, cap_probs], axis=1)
    usage = jnp.mean(all_probs, axis=0)
    loss = jnp.sum(usage * jnp.log(usage + 1e-10))
    return out, loss


# ----------------------------------------------------------------------------
# Parameters: PyTorch-convention init + one-time kernel-ready preparation
# (fused/pre-transposed (in,out) bf16 weight panels, folded caption gate,
#  tiled per-head norm vectors, block-mean and pair-swap matrices).
# ----------------------------------------------------------------------------
def _ffn_hidden_dim(dim, hidden_dim, multiple_of, ffn_dim_multiplier):
    hd = int(2 * hidden_dim / 3)
    if ffn_dim_multiplier is not None:
        hd = int(ffn_dim_multiplier * hd)
    hd = multiple_of * ((hd + multiple_of - 1) // multiple_of)
    return hd


def init_params(key, *, dim, n_heads, n_kv_heads, y_dim, num_experts,
                multiple_of, ffn_dim_multiplier):
    head_dim = dim // n_heads
    keys = iter(jax.random.split(key, 128))

    def nrm(shape, scale=0.05):
        return jax.random.normal(next(keys), shape, jnp.float32) * scale

    hd = _ffn_hidden_dim(dim, dim, multiple_of, ffn_dim_multiplier)

    def ffn_params():
        return dict(w1=nrm((hd, dim)), w2=nrm((dim, hd)), w3=nrm((hd, dim)))

    return dict(
        attn=dict(
            wq=nrm((n_heads * head_dim, dim)),
            wk=nrm((n_kv_heads * head_dim, dim)),
            wv=nrm((n_kv_heads * head_dim, dim)),
            wo=nrm((dim, n_heads * head_dim)),
            wk_y=nrm((n_kv_heads * head_dim, y_dim)),
            wv_y=nrm((n_kv_heads * head_dim, y_dim)),
            q_norm=jnp.ones((head_dim,), jnp.float32),
            k_norm=jnp.ones((head_dim,), jnp.float32),
            ky_norm=jnp.ones((head_dim,), jnp.float32),
            gate=nrm((n_heads,), scale=0.5),
        ),
        attn_norm_w=jnp.ones((dim,), jnp.float32),
        ffn_norm_w=jnp.ones((dim,), jnp.float32),
        attn_y_norm_w=jnp.ones((y_dim,), jnp.float32),
        adaLN_w=nrm((6 * dim, dim)),
        adaLN_b=nrm((6 * dim,)),
        moe=dict(
            lang_emb=nrm((9, dim), scale=1.0),
            lang_gate_w=nrm((num_experts, dim)),
            lang_gate_b=nrm((num_experts,)),
            cap_gate_w=nrm((num_experts, dim)),
            cap_gate_b=nrm((num_experts,)),
            lang_experts=[ffn_params() for _ in range(num_experts)],
            cap_experts=[ffn_params() for _ in range(num_experts)],
            mha=dict(
                in_proj_w=nrm((3 * dim, dim)),
                in_proj_b=nrm((3 * dim,)),
                out_proj_w=nrm((dim, dim)),
                out_proj_b=nrm((dim,)),
            ),
        ),
    )


def prepare_params(params, *, dim, n_heads, y_dim):
    """One-time param prep: fuse QKV / k_y-v_y / MHA-kv panels, fold the MHA
    output projection into the caption gate, transpose (out,in)->(in,out),
    cast matmul weights to bf16, tile per-head vectors lane-dense."""
    head_dim = dim // n_heads
    bf = jnp.bfloat16
    a = params["attn"]
    m = params["moe"]

    def tw(w, dtype=bf):
        return jnp.asarray(w.T, dtype)

    def stack_expert(experts, name):
        return jnp.stack([jnp.asarray(e[name].T, bf) for e in experts], axis=0)

    def tile_head(v):
        return jnp.tile(v, n_heads).reshape(1, dim)

    # per-head block-mean matrix: (x*x) @ head_mean = per-head mean of squares
    head_id = jnp.arange(dim) // head_dim
    head_mean = (head_id[:, None] == head_id[None, :]).astype(jnp.float32)
    head_mean = head_mean / head_dim
    # x @ pair_swap swaps the (even, odd) RoPE pairs (full channel width).
    pair_swap = jax.nn.one_hot(jnp.arange(dim) ^ 1, dim, dtype=jnp.float32)

    # Folded caption gate: logits = attn_out @ (wo^T @ wg^T) + (bo @ wg^T + bg)
    wo_t = m["mha"]["out_proj_w"].T.astype(jnp.float32)
    wg_t = m["cap_gate_w"].T.astype(jnp.float32)
    cap_w_fold = (wo_t @ wg_t).astype(bf)
    cap_b_fold = (m["mha"]["out_proj_b"] @ wg_t
                  + m["cap_gate_b"]).reshape(1, -1)

    return dict(
        # transformer block
        adaLN_w=tw(params["adaLN_w"]),
        adaLN_b=params["adaLN_b"].reshape(1, -1),
        attn_norm_w=params["attn_norm_w"].reshape(1, dim),
        ffn_norm_w=params["ffn_norm_w"].reshape(1, dim),
        attn_y_norm_w=params["attn_y_norm_w"].reshape(1, y_dim),
        # attention (TODO(synk): assumes n_kv_heads == n_heads, as configured)
        wqkv=jnp.concatenate(
            [a["wq"].T, a["wk"].T, a["wv"].T], axis=1).astype(bf),
        wkvy=jnp.concatenate([a["wk_y"].T, a["wv_y"].T], axis=1).astype(bf),
        wo=tw(a["wo"]),
        q_norm=tile_head(a["q_norm"]),
        k_norm=tile_head(a["k_norm"]),
        ky_norm=tile_head(a["ky_norm"]),
        gate_tanh=jnp.repeat(jnp.tanh(a["gate"]), head_dim).reshape(1, dim),
        head_mean=head_mean,
        pair_swap=pair_swap,
        # MoE
        lang_emb=m["lang_emb"],
        lang_gate_w=tw(m["lang_gate_w"], jnp.float32),
        lang_gate_b=m["lang_gate_b"].reshape(1, -1),
        lang_w1=stack_expert(m["lang_experts"], "w1"),
        lang_w3=stack_expert(m["lang_experts"], "w3"),
        lang_w2=stack_expert(m["lang_experts"], "w2"),
        cap_w1=stack_expert(m["cap_experts"], "w1"),
        cap_w3=stack_expert(m["cap_experts"], "w3"),
        cap_w2=stack_expert(m["cap_experts"], "w2"),
        # nn.MultiheadAttention (8 heads): fused k/v panel + folded gate
        mha_wq=tw(m["mha"]["in_proj_w"][:dim]),
        mha_bq=m["mha"]["in_proj_b"][:dim].reshape(1, dim),
        mha_wkv=jnp.concatenate(
            [m["mha"]["in_proj_w"][dim:2 * dim].T,
             m["mha"]["in_proj_w"][2 * dim:].T], axis=1).astype(bf),
        mha_bkv=jnp.concatenate(
            [m["mha"]["in_proj_b"][dim:2 * dim],
             m["mha"]["in_proj_b"][2 * dim:]]).reshape(1, 2 * dim),
        cap_gate_w_fold=cap_w_fold,
        cap_gate_b_fold=cap_b_fold,
    )


# ----------------------------------------------------------------------------
# main
# ----------------------------------------------------------------------------
if __name__ == "__main__":
    B, T, C = 2, 8, 32
    n_heads, n_kv_heads = 4, 4
    y_dim, Sy = 16, 5
    Tc = 6                      # caption length for the MoE cross-attention
    num_experts = 2
    multiple_of = 8
    ffn_dim_multiplier = 1.0
    norm_eps = 1e-5
    head_dim = C // n_heads
    assert n_kv_heads == n_heads

    key = jax.random.PRNGKey(0)
    k_par, k_x, k_y, k_cap, k_ada, k_gumbel = jax.random.split(key, 6)

    params = init_params(
        k_par, dim=C, n_heads=n_heads, n_kv_heads=n_kv_heads, y_dim=y_dim,
        num_experts=num_experts, multiple_of=multiple_of,
        ffn_dim_multiplier=ffn_dim_multiplier,
    )
    prep = prepare_params(params, dim=C, n_heads=n_heads, y_dim=y_dim)

    x = jax.random.normal(k_x, (B, T, C), jnp.float32)
    y = jax.random.normal(k_y, (B, Sy, y_dim), jnp.float32)
    caption = jax.random.normal(k_cap, (B, Tc, C), jnp.float32)
    adaln_input = jax.random.normal(k_ada, (B, C), jnp.float32)
    x_mask = jnp.ones((B, T), dtype=bool)
    y_mask = jnp.array([[1, 1, 1, 1, 1], [1, 1, 1, 0, 0]], dtype=bool)
    language = jnp.array([1, 3], dtype=jnp.int32)

    pos = jnp.arange(T, dtype=jnp.float32)[:, None]
    inv_freq = 1.0 / (
        10000.0 ** (jnp.arange(0, head_dim, 2, dtype=jnp.float32) / head_dim)
    )
    angles = pos * inv_freq[None, :]          # freqs_cis split into cos / sin
    freqs_cos, freqs_sin = jnp.cos(angles), jnp.sin(angles)

    out, loss = transformer_block_forward(
        prep, x, x_mask, y, y_mask, freqs_cos, freqs_sin, adaln_input,
        caption, language, k_gumbel,
        n_heads=n_heads, num_experts=num_experts, eps=norm_eps,
        temperature=2.0,
    )
    jax.block_until_ready((out, loss))
    assert out.shape == (B, T, C) and loss.shape == ()
    print("KERNEL_OK")
</pallas_src>

<mosaic_0001>
module attributes {stable_mosaic.version = 11 : i64} {
  func.func @_adaln_gate_kernel(%arg0: memref<2x32xf32, #tpu.memory_space<vmem>>, %arg1: memref<32x192xbf16, #tpu.memory_space<vmem>>, %arg2: memref<1x192xf32, #tpu.memory_space<vmem>>, %arg3: memref<2x32xf32, #tpu.memory_space<vmem>>, %arg4: memref<32x2xf32, #tpu.memory_space<vmem>>, %arg5: memref<1x2xf32, #tpu.memory_space<vmem>>, %arg6: memref<2x192xf32, #tpu.memory_space<vmem>>, %arg7: memref<2x2xf32, #tpu.memory_space<vmem>>) attributes {dimension_semantics = [], scalar_prefetch = 0 : i64, scratch_operands = 0 : i64, tpu.core_type = #tpu.core_type<tc>} {
    %c0 = arith.constant 0 : index
    %c0_0 = arith.constant 0 : index
    %0 = vector.load %arg0[%c0, %c0_0] : memref<2x32xf32, #tpu.memory_space<vmem>>, vector<2x32xf32>
    %1 = arith.negf %0 : vector<2x32xf32>
    %2 = math.exp %1 : vector<2x32xf32>
    %cst = arith.constant 1.000000e+00 : f32
    %3 = vector.broadcast %cst : f32 to vector<2x32xf32>
    %4 = arith.addf %3, %2 : vector<2x32xf32>
    %5 = arith.divf %3, %4 : vector<2x32xf32>
    %6 = arith.mulf %0, %5 : vector<2x32xf32>
    %7 = arith.truncf %6 : vector<2x32xf32> to vector<2x32xbf16>
    %c0_1 = arith.constant 0 : index
    %c0_2 = arith.constant 0 : index
    %8 = vector.load %arg1[%c0_1, %c0_2] : memref<32x192xbf16, #tpu.memory_space<vmem>>, vector<32x192xbf16>
    %cst_3 = arith.constant dense<0.000000e+00> : vector<2x192xf32>
    %9 = tpu.matmul %7, %8, %cst_3 {dimension_numbers = #tpu.dot_dimension_numbers<[1], [0], [0], [1], [0, 0, 1, 1], [], []>} : vector<2x32xbf16>, vector<32x192xbf16>, vector<2x192xf32> -> vector<2x192xf32>
    %c0_4 = arith.constant 0 : index
    %c0_5 = arith.constant 0 : index
    %10 = vector.load %arg2[%c0_4, %c0_5] : memref<1x192xf32, #tpu.memory_space<vmem>>, vector<1x192xf32>
    %11 = vector.broadcast %10 : vector<1x192xf32> to vector<2x192xf32>
    %12 = arith.addf %9, %11 : vector<2x192xf32>
    %c0_6 = arith.constant 0 : index
    %c0_7 = arith.constant 0 : index
    %13 = vector.load %arg6[%c0_6, %c0_7] : memref<2x192xf32, #tpu.memory_space<vmem>>, vector<2x192xf32>
    tpu.vector_store %arg6[%c0_6, %c0_7], %12 {strides = array<i32>} : memref<2x192xf32, #tpu.memory_space<vmem>>, vector<2x192xf32>,
    %c0_8 = arith.constant 0 : index
    %c0_9 = arith.constant 0 : index
    %14 = vector.load %arg3[%c0_8, %c0_9] : memref<2x32xf32, #tpu.memory_space<vmem>>, vector<2x32xf32>
    %c0_10 = arith.constant 0 : index
    %c0_11 = arith.constant 0 : index
    %15 = vector.load %arg4[%c0_10, %c0_11] : memref<32x2xf32, #tpu.memory_space<vmem>>, vector<32x2xf32>
    %cst_12 = arith.constant dense<0.000000e+00> : vector<2x2xf32>
    %16 = tpu.matmul %14, %15, %cst_12 {dimension_numbers = #tpu.dot_dimension_numbers<[1], [0], [0], [1], [0, 0, 1, 1], [], []>} : vector<2x32xf32>, vector<32x2xf32>, vector<2x2xf32> -> vector<2x2xf32>
    %c0_13 = arith.constant 0 : index
    %c0_14 = arith.constant 0 : index
    %17 = vector.load %arg5[%c0_13, %c0_14] : memref<1x2xf32, #tpu.memory_space<vmem>>, vector<1x2xf32>
    %18 = vector.broadcast %17 : vector<1x2xf32> to vector<2x2xf32>
    %19 = arith.addf %16, %18 : vector<2x2xf32>
    %c0_15 = arith.constant 0 : index
    %c0_16 = arith.constant 0 : index
    %20 = vector.load %arg7[%c0_15, %c0_16] : memref<2x2xf32, #tpu.memory_space<vmem>>, vector<2x2xf32>
    tpu.vector_store %arg7[%c0_15, %c0_16], %19 {strides = array<i32>} : memref<2x2xf32, #tpu.memory_space<vmem>>, vector<2x2xf32>,
    return
  }
}

module attributes {stable_mosaic.version = 11 : i64} {
  func.func @_moe_bank1_kernel(%arg0: i32, %arg1: i32, %arg2: memref<1x8x32xf32, #tpu.memory_space<vmem>>, %arg3: memref<1x32xf32, #tpu.memory_space<vmem>>, %arg4: memref<1x1x32xf32, #tpu.memory_space<vmem>>, %arg5: memref<1x1x32xf32, #tpu.memory_space<vmem>>, %arg6: memref<2x2xf32, #tpu.memory_space<smem>>, %arg7: memref<1x32x24xbf16, #tpu.memory_space<vmem>>, %arg8: memref<1x32x24xbf16, #tpu.memory_space<vmem>>, %arg9: memref<1x24x32xbf16, #tpu.memory_space<vmem>>, %arg10: memref<1x8x32xf32, #tpu.memory_space<vmem>>, %arg11: memref<8x32xbf16, #tpu.memory_space<vmem>>) attributes {dimension_semantics = [#tpu.dimension_semantics<parallel>, #tpu.dimension_semantics<arbitrary>], iteration_bounds = array<i64: 2, 2>, scalar_prefetch = 0 : i64, scratch_operands = 1 : i64, tpu.core_type = #tpu.core_type<tc>, window_params = [{transform_indices = @transform_0, window_bounds = array<i64: 1, 8, 32>}, {pipeline_mode = #tpu.pipeline_mode<synchronous>, transform_indices = @transform_1, window_bounds = array<i64: 1, 32>}, {transform_indices = @transform_2, window_bounds = array<i64: 1, 1, 32>}, {transform_indices = @transform_3, window_bounds = array<i64: 1, 1, 32>}, {transform_indices = @transform_4, window_bounds = array<i64: 2, 2>}, {transform_indices = @transform_5, window_bounds = array<i64: 1, 32, 24>}, {transform_indices = @transform_6, window_bounds = array<i64: 1, 32, 24>}, {transform_indices = @transform_7, window_bounds = array<i64: 1, 24, 32>}, {transform_indices = @transform_8, window_bounds = array<i64: 1, 8, 32>}]} {
    %c0_i32 = arith.constant 0 : i32
    %0 = arith.cmpi eq, %arg1, %c0_i32 : i32
    %1 = arith.extui %0 : i1 to i32
    %c0_i32_0 = arith.constant 0 : i32
    %2 = arith.cmpi ne, %1, %c0_i32_0 : i32
    scf.if %2 {
      %c0_18 = arith.constant 0 : index
      %c0_19 = arith.constant 0 : index
      %c0_20 = arith.constant 0 : index
      %32 = vector.load %arg2[%c0_18, %c0_19, %c0_20] : memref<1x8x32xf32, #tpu.memory_space<vmem>>, vector<1x8x32xf32>
      %33 = vector.shape_cast %32 : vector<1x8x32xf32> to vector<8x32xf32>
      %34 = arith.mulf %33, %33 : vector<8x32xf32>
      %cst_21 = arith.constant dense<0.000000e+00> : vector<8xf32>
      %35 = vector.multi_reduction <add>, %34, %cst_21 [1] : vector<8x32xf32> to vector<8xf32>
      %36 = vector.shape_cast %35 : vector<8xf32> to vector<8x1xf32>
      %cst_22 = arith.constant 3.200000e+01 : f32
      %37 = vector.broadcast %cst_22 : f32 to vector<8x1xf32>
      %38 = arith.divf %36, %37 : vector<8x1xf32>
      %cst_23 = arith.constant 9.99999974E-6 : f32
      %39 = vector.broadcast %cst_23 : f32 to vector<8x1xf32>
      %40 = arith.addf %38, %39 : vector<8x1xf32>
      %41 = math.rsqrt %40 : vector<8x1xf32>
      %42 = vector.broadcast %41 : vector<8x1xf32> to vector<8x32xf32>
      %43 = arith.mulf %33, %42 : vector<8x32xf32>
      %c0_24 = arith.constant 0 : index
      %c0_25 = arith.constant 0 : index
      %44 = vector.load %arg3[%c0_24, %c0_25] : memref<1x32xf32, #tpu.memory_space<vmem>>, vector<1x32xf32>
      %45 = vector.broadcast %44 : vector<1x32xf32> to vector<8x32xf32>
      %46 = arith.mulf %43, %45 : vector<8x32xf32>
      %c0_26 = arith.constant 0 : index
      %c0_27 = arith.constant 0 : index
      %c0_28 = arith.constant 0 : index
      %47 = vector.load %arg5[%c0_26, %c0_27, %c0_28] : memref<1x1x32xf32, #tpu.memory_space<vmem>>, vector<1x1x32xf32>
      %48 = vector.shape_cast %47 : vector<1x1x32xf32> to vector<1x32xf32>
      %cst_29 = arith.constant 1.000000e+00 : f32
      %49 = vector.broadcast %cst_29 : f32 to vector<1x32xf32>
      %50 = arith.addf %49, %48 : vector<1x32xf32>
      %51 = vector.broadcast %50 : vector<1x32xf32> to vector<8x32xf32>
      %52 = arith.mulf %46, %51 : vector<8x32xf32>
      %c0_30 = arith.constant 0 : index
      %c0_31 = arith.constant 0 : index
      %c0_32 = arith.constant 0 : index
      %53 = vector.load %arg4[%c0_30, %c0_31, %c0_32] : memref<1x1x32xf32, #tpu.memory_space<vmem>>, vector<1x1x32xf32>
      %54 = vector.shape_cast %53 : vector<1x1x32xf32> to vector<1x32xf32>
      %55 = vector.broadcast %54 : vector<1x32xf32> to vector<8x32xf32>
      %56 = arith.addf %52, %55 : vector<8x32xf32>
      %57 = arith.truncf %56 : vector<8x32xf32> to vector<8x32xbf16>
      %c0_33 = arith.constant 0 : index
      %c0_34 = arith.constant 0 : index
      %58 = vector.load %arg11[%c0_33, %c0_34] : memref<8x32xbf16, #tpu.memory_space<vmem>>, vector<8x32xbf16>
      tpu.vector_store %arg11[%c0_33, %c0_34], %57 {strides = array<i32>} : memref<8x32xbf16, #tpu.memory_space<vmem>>, vector<8x32xbf16>,
    } else {
    }
    %c0 = arith.constant 0 : index
    %c0_1 = arith.constant 0 : index
    %3 = vector.load %arg11[%c0, %c0_1] : memref<8x32xbf16, #tpu.memory_space<vmem>>, vector<8x32xbf16>
    %c0_2 = arith.constant 0 : index
    %c0_3 = arith.constant 0 : index
    %c0_4 = arith.constant 0 : index
    %4 = vector.load %arg7[%c0_2, %c0_3, %c0_4] : memref<1x32x24xbf16, #tpu.memory_space<vmem>>, vector<1x32x24xbf16>
    %5 = vector.shape_cast %4 : vector<1x32x24xbf16> to vector<32x24xbf16>
    %cst = arith.constant dense<0.000000e+00> : vector<8x24xf32>
    %6 = tpu.matmul %3, %5, %cst {dimension_numbers = #tpu.dot_dimension_numbers<[1], [0], [0], [1], [0, 0, 1, 1], [], []>} : vector<8x32xbf16>, vector<32x24xbf16>, vector<8x24xf32> -> vector<8x24xf32>
    %c0_5 = arith.constant 0 : index
    %c0_6 = arith.constant 0 : index
    %c0_7 = arith.constant 0 : index
    %7 = vector.load %arg8[%c0_5, %c0_6, %c0_7] : memref<1x32x24xbf16, #tpu.memory_space<vmem>>, vector<1x32x24xbf16>
    %8 = vector.shape_cast %7 : vector<1x32x24xbf16> to vector<32x24xbf16>
    %cst_8 = arith.constant dense<0.000000e+00> : vector<8x24xf32>
    %9 = tpu.matmul %3, %8, %cst_8 {dimension_numbers = #tpu.dot_dimension_numbers<[1], [0], [0], [1], [0, 0, 1, 1], [], []>} : vector<8x32xbf16>, vector<32x24xbf16>, vector<8x24xf32> -> vector<8x24xf32>
    %10 = arith.negf %6 : vector<8x24xf32>
    %11 = math.exp %10 : vector<8x24xf32>
    %cst_9 = arith.constant 1.000000e+00 : f32
    %12 = vector.broadcast %cst_9 : f32 to vector<8x24xf32>
    %13 = arith.addf %12, %11 : vector<8x24xf32>
    %14 = arith.divf %12, %13 : vector<8x24xf32>
    %15 = arith.mulf %6, %14 : vector<8x24xf32>
    %16 = arith.mulf %15, %9 : vector<8x24xf32>
    %17 = arith.truncf %16 : vector<8x24xf32> to vector<8x24xbf16>
    %c0_10 = arith.constant 0 : index
    %c0_11 = arith.constant 0 : index
    %c0_12 = arith.constant 0 : index
    %18 = vector.load %arg9[%c0_10, %c0_11, %c0_12] : memref<1x24x32xbf16, #tpu.memory_space<vmem>>, vector<1x24x32xbf16>
    %19 = vector.shape_cast %18 : vector<1x24x32xbf16> to vector<24x32xbf16>
    %cst_13 = arith.constant dense<0.000000e+00> : vector<8x32xf32>
    %20 = tpu.matmul %17, %19, %cst_13 {dimension_numbers = #tpu.dot_dimension_numbers<[1], [0], [0], [1], [0, 0, 1, 1], [], []>} : vector<8x24xbf16>, vector<24x32xbf16>, vector<8x32xf32> -> vector<8x32xf32>
    %21 = arith.index_cast %arg0 : i32 to index
    %22 = arith.index_cast %arg1 : i32 to index
    %23 = memref.load %arg6[%21, %22] : memref<2x2xf32, #tpu.memory_space<smem>>
    %24 = vector.broadcast %23 : f32 to vector<8x32xf32>
    %25 = arith.mulf %20, %24 : vector<8x32xf32>
    %c0_i32_14 = arith.constant 0 : i32
    %26 = arith.cmpi eq, %arg1, %c0_i32_14 : i32
    %27 = arith.extui %26 : i1 to i32
    %c0_i32_15 = arith.constant 0 : i32
    %28 = arith.cmpi ne, %27, %c0_i32_15 : i32
    scf.if %28 {
      %c0_18 = arith.constant 0 : index
      %c0_19 = arith.constant 0 : index
      %c0_20 = arith.constant 0 : index
      %32 = vector.load %arg10[%c0_18, %c0_19, %c0_20] : memref<1x8x32xf32, #tpu.memory_space<vmem>>, vector<1x8x32xf32>
      %33 = vector.shape_cast %32 : vector<1x8x32xf32> to vector<8x32xf32>
      %34 = vector.shape_cast %25 : vector<8x32xf32> to vector<1x8x32xf32>
      tpu.vector_store %arg10[%c0_18, %c0_19, %c0_20], %34 {strides = array<i32>} : memref<1x8x32xf32, #tpu.memory_space<vmem>>, vector<1x8x32xf32>,
    } else {
    }
    %c0_i32_16 = arith.constant 0 : i32
    %29 = arith.cmpi sgt, %arg1, %c0_i32_16 : i32
    %30 = arith.extui %29 : i1 to i32
    %c0_i32_17 = arith.constant 0 : i32
    %31 = arith.cmpi ne, %30, %c0_i32_17 : i32
    scf.if %31 {
      %c0_18 = arith.constant 0 : index
      %c0_19 = arith.constant 0 : index
      %c0_20 = arith.constant 0 : index
      %32 = vector.load %arg10[%c0_18, %c0_19, %c0_20] : memref<1x8x32xf32, #tpu.memory_space<vmem>>, vector<1x8x32xf32>
      %33 = vector.shape_cast %32 : vector<1x8x32xf32> to vector<8x32xf32>
      %34 = arith.addf %33, %25 : vector<8x32xf32>
      %c0_21 = arith.constant 0 : index
      %c0_22 = arith.constant 0 : index
      %c0_23 = arith.constant 0 : index
      %35 = vector.load %arg10[%c0_21, %c0_22, %c0_23] : memref<1x8x32xf32, #tpu.memory_space<vmem>>, vector<1x8x32xf32>
      %36 = vector.shape_cast %35 : vector<1x8x32xf32> to vector<8x32xf32>
      %37 = vector.shape_cast %34 : vector<8x32xf32> to vector<1x8x32xf32>
      tpu.vector_store %arg10[%c0_21, %c0_22, %c0_23], %37 {strides = array<i32>} : memref<1x8x32xf32, #tpu.memory_space<vmem>>, vector<1x8x32xf32>,
    } else {
    }
    return
  }
  func.func @transform_0(%arg0: i32, %arg1: i32) -> (i32, i32, i32) {
    %c0_i32 = arith.constant 0 : i32
    %c0_i32_0 = arith.constant 0 : i32
    %c0_i32_1 = arith.constant 0 : i32
    return %arg0, %c0_i32, %c0_i32_0 : i32, i32, i32
  }
  func.func @transform_1(%arg0: i32, %arg1: i32) -> (i32, i32) {
    %c0_i32 = arith.constant 0 : i32
    %c0_i32_0 = arith.constant 0 : i32
    %c0_i32_1 = arith.constant 0 : i32
    return %c0_i32, %c0_i32_0 : i32, i32
  }
  func.func @transform_2(%arg0: i32, %arg1: i32) -> (i32, i32, i32) {
    %c0_i32 = arith.constant 0 : i32
    %c0_i32_0 = arith.constant 0 : i32
    %c0_i32_1 = arith.constant 0 : i32
    return %arg0, %c0_i32, %c0_i32_0 : i32, i32, i32
  }
  func.func @transform_3(%arg0: i32, %arg1: i32) -> (i32, i32, i32) {
    %c0_i32 = arith.constant 0 : i32
    %c0_i32_0 = arith.constant 0 : i32
    %c0_i32_1 = arith.constant 0 : i32
    return %arg0, %c0_i32, %c0_i32_0 : i32, i32, i32
  }
  func.func @transform_4(%arg0: i32, %arg1: i32) -> (i32, i32) {
    %c0_i32 = arith.constant 0 : i32
    %c0_i32_0 = arith.constant 0 : i32
    %c0_i32_1 = arith.constant 0 : i32
    return %c0_i32, %c0_i32_0 : i32, i32
  }
  func.func @transform_5(%arg0: i32, %arg1: i32) -> (i32, i32, i32) {
    %c0_i32 = arith.constant 0 : i32
    %c0_i32_0 = arith.constant 0 : i32
    %c0_i32_1 = arith.constant 0 : i32
    return %arg1, %c0_i32, %c0_i32_0 : i32, i32, i32
  }
  func.func @transform_6(%arg0: i32, %arg1: i32) -> (i32, i32, i32) {
    %c0_i32 = arith.constant 0 : i32
    %c0_i32_0 = arith.constant 0 : i32
    %c0_i32_1 = arith.constant 0 : i32
    return %arg1, %c0_i32, %c0_i32_0 : i32, i32, i32
  }
  func.func @transform_7(%arg0: i32, %arg1: i32) -> (i32, i32, i32) {
    %c0_i32 = arith.constant 0 : i32
    %c0_i32_0 = arith.constant 0 : i32
    %c0_i32_1 = arith.constant 0 : i32
    return %arg1, %c0_i32, %c0_i32_0 : i32, i32, i32
  }
  func.func @transform_8(%arg0: i32, %arg1: i32) -> (i32, i32, i32) {
    %c0_i32 = arith.constant 0 : i32
    %c0_i32_0 = arith.constant 0 : i32
    %c0_i32_1 = arith.constant 0 : i32
    return %arg0, %c0_i32, %c0_i32_0 : i32, i32, i32
  }
}

module attributes {stable_mosaic.version = 11 : i64} {
  func.func @_attn_block_kernel(%arg0: i32, %arg1: memref<1x8x32xf32, #tpu.memory_space<vmem>>, %arg2: memref<1x32xf32, #tpu.memory_space<vmem>>, %arg3: memref<1x1x32xf32, #tpu.memory_space<vmem>>, %arg4: memref<1x1x32xf32, #tpu.memory_space<vmem>>, %arg5: memref<1x1x32xf32, #tpu.memory_space<vmem>>, %arg6: memref<1x1x8xf32, #tpu.memory_space<vmem>>, %arg7: memref<32x96xbf16, #tpu.memory_space<vmem>>, %arg8: memref<1x32xf32, #tpu.memory_space<vmem>>, %arg9: memref<1x32xf32, #tpu.memory_space<vmem>>, %arg10: memref<8x32xf32, #tpu.memory_space<vmem>>, %arg11: memref<8x32xf32, #tpu.memory_space<vmem>>, %arg12: memref<32x32xf32, #tpu.memory_space<vmem>>, %arg13: memref<32x32xf32, #tpu.memory_space<vmem>>, %arg14: memref<1x5x16xf32, #tpu.memory_space<vmem>>, %arg15: memref<1x16xf32, #tpu.memory_space<vmem>>, %arg16: memref<1x1x5xf32, #tpu.memory_space<vmem>>, %arg17: memref<16x64xbf16, #tpu.memory_space<vmem>>, %arg18: memref<1x32xf32, #tpu.memory_space<vmem>>, %arg19: memref<1x32xf32, #tpu.memory_space<vmem>>, %arg20: memref<32x32xbf16, #tpu.memory_space<vmem>>, %arg21: memref<1x8x32xf32, #tpu.memory_space<vmem>>, %arg22: memref<8x32xbf16, #tpu.memory_space<vmem>>, %arg23: memref<8x32xbf16, #tpu.memory_space<vmem>>, %arg24: memref<8x32xbf16, #tpu.memory_space<vmem>>, %arg25: memref<5x32xbf16, #tpu.memory_space<vmem>>, %arg26: memref<5x32xbf16, #tpu.memory_space<vmem>>, %arg27: memref<8x32xf32, #tpu.memory_space<vmem>>) attributes {dimension_semantics = [#tpu.dimension_semantics<parallel>], iteration_bounds = array<i64: 2>, scalar_prefetch = 0 : i64, scratch_operands = 6 : i64, tpu.core_type = #tpu.core_type<tc>, window_params = [{transform_indices = @transform_0, window_bounds = array<i64: 1, 8, 32>}, {pipeline_mode = #tpu.pipeline_mode<synchronous>, transform_indices = @transform_1, window_bounds = array<i64: 1, 32>}, {transform_indices = @transform_2, window_bounds = array<i64: 1, 1, 32>}, {transform_indices = @transform_3, window_bounds = array<i64: 1, 1, 32>}, {transform_indices = @transform_4, window_bounds = array<i64: 1, 1, 32>}, {transform_indices = @transform_5, window_bounds = array<i64: 1, 1, 8>}, {pipeline_mode = #tpu.pipeline_mode<synchronous>, transform_indices = @transform_6, window_bounds = array<i64: 32, 96>}, {pipeline_mode = #tpu.pipeline_mode<synchronous>, transform_indices = @transform_7, window_bounds = array<i64: 1, 32>}, {pipeline_mode = #tpu.pipeline_mode<synchronous>, transform_indices = @transform_8, window_bounds = array<i64: 1, 32>}, {pipeline_mode = #tpu.pipeline_mode<synchronous>, transform_indices = @transform_9, window_bounds = array<i64: 8, 32>}, {pipeline_mode = #tpu.pipeline_mode<synchronous>, transform_indices = @transform_10, window_bounds = array<i64: 8, 32>}, {pipeline_mode = #tpu.pipeline_mode<synchronous>, transform_indices = @transform_11, window_bounds = array<i64: 32, 32>}, {pipeline_mode = #tpu.pipeline_mode<synchronous>, transform_indices = @transform_12, window_bounds = array<i64: 32, 32>}, {transform_indices = @transform_13, window_bounds = array<i64: 1, 5, 16>}, {pipeline_mode = #tpu.pipeline_mode<synchronous>, transform_indices = @transform_14, window_bounds = array<i64: 1, 16>}, {transform_indices = @transform_15, window_bounds = array<i64: 1, 1, 5>}, {pipeline_mode = #tpu.pipeline_mode<synchronous>, transform_indices = @transform_16, window_bounds = array<i64: 16, 64>}, {pipeline_mode = #tpu.pipeline_mode<synchronous>, transform_indices = @transform_17, window_bounds = array<i64: 1, 32>}, {pipeline_mode = #tpu.pipeline_mode<synchronous>, transform_indices = @transform_18, window_bounds = array<i64: 1, 32>}, {pipeline_mode = #tpu.pipeline_mode<synchronous>, transform_indices = @transform_19, window_bounds = array<i64: 32, 32>}, {transform_indices = @transform_20, window_bounds = array<i64: 1, 8, 32>}]} {
    %c0 = arith.constant 0 : index
    %c0_0 = arith.constant 0 : index
    %c0_1 = arith.constant 0 : index
    %0 = vector.load %arg1[%c0, %c0_0, %c0_1] : memref<1x8x32xf32, #tpu.memory_space<vmem>>, vector<1x8x32xf32>
    %1 = vector.shape_cast %0 : vector<1x8x32xf32> to vector<8x32xf32>
    %2 = arith.mulf %1, %1 : vector<8x32xf32>
    %cst = arith.constant dense<0.000000e+00> : vector<8xf32>
    %3 = vector.multi_reduction <add>, %2, %cst [1] : vector<8x32xf32> to vector<8xf32>
    %4 = vector.shape_cast %3 : vector<8xf32> to vector<8x1xf32>
    %cst_2 = arith.constant 3.200000e+01 : f32
    %5 = vector.broadcast %cst_2 : f32 to vector<8x1xf32>
    %6 = arith.divf %4, %5 : vector<8x1xf32>
    %cst_3 = arith.constant 9.99999974E-6 : f32
    %7 = vector.broadcast %cst_3 : f32 to vector<8x1xf32>
    %8 = arith.addf %6, %7 : vector<8x1xf32>
    %9 = math.rsqrt %8 : vector<8x1xf32>
    %10 = vector.broadcast %9 : vector<8x1xf32> to vector<8x32xf32>
    %11 = arith.mulf %1, %10 : vector<8x32xf32>
    %c0_4 = arith.constant 0 : index
    %c0_5 = arith.constant 0 : index
    %12 = vector.load %arg2[%c0_4, %c0_5] : memref<1x32xf32, #tpu.memory_space<vmem>>, vector<1x32xf32>
    %13 = vector.broadcast %12 : vector<1x32xf32> to vector<8x32xf32>
    %14 = arith.mulf %11, %13 : vector<8x32xf32>
    %c0_6 = arith.constant 0 : index
    %c0_7 = arith.constant 0 : index
    %c0_8 = arith.constant 0 : index
    %15 = vector.load %arg4[%c0_6, %c0_7, %c0_8] : memref<1x1x32xf32, #tpu.memory_space<vmem>>, vector<1x1x32xf32>
    %16 = vector.shape_cast %15 : vector<1x1x32xf32> to vector<1x32xf32>
    %cst_9 = arith.constant 1.000000e+00 : f32
    %17 = vector.broadcast %cst_9 : f32 to vector<1x32xf32>
    %18 = arith.addf %17, %16 : vector<1x32xf32>
    %19 = vector.broadcast %18 : vector<1x32xf32> to vector<8x32xf32>
    %20 = arith.mulf %14, %19 : vector<8x32xf32>
    %c0_10 = arith.constant 0 : index
    %c0_11 = arith.constant 0 : index
    %c0_12 = arith.constant 0 : index
    %21 = vector.load %arg3[%c0_10, %c0_11, %c0_12] : memref<1x1x32xf32, #tpu.memory_space<vmem>>, vector<1x1x32xf32>
    %22 = vector.shape_cast %21 : vector<1x1x32xf32> to vector<1x32xf32>
    %23 = vector.broadcast %22 : vector<1x32xf32> to vector<8x32xf32>
    %24 = arith.addf %20, %23 : vector<8x32xf32>
    %25 = arith.truncf %24 : vector<8x32xf32> to vector<8x32xbf16>
    %c0_13 = arith.constant 0 : index
    %c0_14 = arith.constant 0 : index
    %26 = vector.load %arg7[%c0_13, %c0_14] : memref<32x96xbf16, #tpu.memory_space<vmem>>, vector<32x96xbf16>
    %cst_15 = arith.constant dense<0.000000e+00> : vector<8x96xf32>
    %27 = tpu.matmul %25, %26, %cst_15 {dimension_numbers = #tpu.dot_dimension_numbers<[1], [0], [0], [1], [0, 0, 1, 1], [], []>} : vector<8x32xbf16>, vector<32x96xbf16>, vector<8x96xf32> -> vector<8x96xf32>
    %28 = vector.extract_strided_slice %27 {offsets = [0, 0], sizes = [8, 32], strides = [1, 1]} : vector<8x96xf32> to vector<8x32xf32>
    %29 = vector.extract_strided_slice %27 {offsets = [0, 32], sizes = [8, 32], strides = [1, 1]} : vector<8x96xf32> to vector<8x32xf32>
    %30 = vector.extract_strided_slice %27 {offsets = [0, 64], sizes = [8, 32], strides = [1, 1]} : vector<8x96xf32> to vector<8x32xf32>
    %c0_16 = arith.constant 0 : index
    %c0_17 = arith.constant 0 : index
    %31 = vector.load %arg13[%c0_16, %c0_17] : memref<32x32xf32, #tpu.memory_space<vmem>>, vector<32x32xf32>
    %c0_18 = arith.constant 0 : index
    %c0_19 = arith.constant 0 : index
    %32 = vector.load %arg12[%c0_18, %c0_19] : memref<32x32xf32, #tpu.memory_space<vmem>>, vector<32x32xf32>
    %c0_20 = arith.constant 0 : index
    %c0_21 = arith.constant 0 : index
    %33 = vector.load %arg10[%c0_20, %c0_21] : memref<8x32xf32, #tpu.memory_space<vmem>>, vector<8x32xf32>
    %c0_22 = arith.constant 0 : index
    %c0_23 = arith.constant 0 : index
    %34 = vector.load %arg11[%c0_22, %c0_23] : memref<8x32xf32, #tpu.memory_space<vmem>>, vector<8x32xf32>
    %35 = arith.mulf %28, %28 : vector<8x32xf32>
    %cst_24 = arith.constant dense<0.000000e+00> : vector<8x32xf32>
    %36 = tpu.matmul %35, %31, %cst_24 {dimension_numbers = #tpu.dot_dimension_numbers<[1], [0], [0], [1], [0, 0, 1, 1], [], []>} : vector<8x32xf32>, vector<32x32xf32>, vector<8x32xf32> -> vector<8x32xf32>
    %cst_25 = arith.constant 9.99999974E-6 : f32
    %37 = vector.broadcast %cst_25 : f32 to vector<8x32xf32>
    %38 = arith.addf %36, %37 : vector<8x32xf32>
    %39 = math.rsqrt %38 : vector<8x32xf32>
    %40 = arith.mulf %28, %39 : vector<8x32xf32>
    %c0_26 = arith.constant 0 : index
    %c0_27 = arith.constant 0 : index
    %41 = vector.load %arg8[%c0_26, %c0_27] : memref<1x32xf32, #tpu.memory_space<vmem>>, vector<1x32xf32>
    %42 = vector.broadcast %41 : vector<1x32xf32> to vector<8x32xf32>
    %43 = arith.mulf %40, %42 : vector<8x32xf32>
    %44 = arith.mulf %29, %29 : vector<8x32xf32>
    %cst_28 = arith.constant dense<0.000000e+00> : vector<8x32xf32>
    %45 = tpu.matmul %44, %31, %cst_28 {dimension_numbers = #tpu.dot_dimension_numbers<[1], [0], [0], [1], [0, 0, 1, 1], [], []>} : vector<8x32xf32>, vector<32x32xf32>, vector<8x32xf32> -> vector<8x32xf32>
    %cst_29 = arith.constant 9.99999974E-6 : f32
    %46 = vector.broadcast %cst_29 : f32 to vector<8x32xf32>
    %47 = arith.addf %45, %46 : vector<8x32xf32>
    %48 = math.rsqrt %47 : vector<8x32xf32>
    %49 = arith.mulf %29, %48 : vector<8x32xf32>
    %c0_30 = arith.constant 0 : index
    %c0_31 = arith.constant 0 : index
    %50 = vector.load %arg9[%c0_30, %c0_31] : memref<1x32xf32, #tpu.memory_space<vmem>>, vector<1x32xf32>
    %51 = vector.broadcast %50 : vector<1x32xf32> to vector<8x32xf32>
    %52 = arith.mulf %49, %51 : vector<8x32xf32>
    %53 = arith.mulf %43, %33 : vector<8x32xf32>
    %cst_32 = arith.constant dense<0.000000e+00> : vector<8x32xf32>
    %54 = tpu.matmul %43, %32, %cst_32 {dimension_numbers = #tpu.dot_dimension_numbers<[1], [0], [0], [1], [0, 0, 1, 1], [], []>} : vector<8x32xf32>, vector<32x32xf32>, vector<8x32xf32> -> vector<8x32xf32>
    %55 = arith.mulf %54, %34 : vector<8x32xf32>
    %56 = arith.addf %53, %55 : vector<8x32xf32>
    %57 = arith.truncf %56 : vector<8x32xf32> to vector<8x32xbf16>
    %c0_33 = arith.constant 0 : index
    %c0_34 = arith.constant 0 : index
    %58 = vector.load %arg22[%c0_33, %c0_34] : memref<8x32xbf16, #tpu.memory_space<vmem>>, vector<8x32xbf16>
    tpu.vector_store %arg22[%c0_33, %c0_34], %57 {strides = array<i32>} : memref<8x32xbf16, #tpu.memory_space<vmem>>, vector<8x32xbf16>,
    %59 = arith.mulf %52, %33 : vector<8x32xf32>
    %cst_35 = arith.constant dense<0.000000e+00> : vector<8x32xf32>
    %60 = tpu.matmul %52, %32, %cst_35 {dimension_numbers = #tpu.dot_dimension_numbers<[1], [0], [0], [1], [0, 0, 1, 1], [], []>} : vector<8x32xf32>, vector<32x32xf32>, vector<8x32xf32> -> vector<8x32xf32>
    %61 = arith.mulf %60, %34 : vector<8x32xf32>
    %62 = arith.addf %59, %61 : vector<8x32xf32>
    %63 = arith.truncf %62 : vector<8x32xf32> to vector<8x32xbf16>
    %c0_36 = arith.constant 0 : index
    %c0_37 = arith.constant 0 : index
    %64 = vector.load %arg23[%c0_36, %c0_37] : memref<8x32xbf16, #tpu.memory_space<vmem>>, vector<8x32xbf16>
    tpu.vector_store %arg23[%c0_36, %c0_37], %63 {strides = array<i32>} : memref<8x32xbf16, #tpu.memory_space<vmem>>, vector<8x32xbf16>,
    %65 = arith.truncf %30 : vector<8x32xf32> to vector<8x32xbf16>
    %c0_38 = arith.constant 0 : index
    %c0_39 = arith.constant 0 : index
    %66 = vector.load %arg24[%c0_38, %c0_39] : memref<8x32xbf16, #tpu.memory_space<vmem>>, vector<8x32xbf16>
    tpu.vector_store %arg24[%c0_38, %c0_39], %65 {strides = array<i32>} : memref<8x32xbf16, #tpu.memory_space<vmem>>, vector<8x32xbf16>,
    %c0_40 = arith.constant 0 : index
    %c0_41 = arith.constant 0 : index
    %c0_42 = arith.constant 0 : index
    %67 = vector.load %arg14[%c0_40, %c0_41, %c0_42] : memref<1x5x16xf32, #tpu.memory_space<vmem>>, vector<1x5x16xf32>
    %68 = vector.shape_cast %67 : vector<1x5x16xf32> to vector<5x16xf32>
    %69 = arith.mulf %68, %68 : vector<5x16xf32>
    %cst_43 = arith.constant dense<0.000000e+00> : vector<5xf32>
    %70 = vector.multi_reduction <add>, %69, %cst_43 [1] : vector<5x16xf32> to vector<5xf32>
    %71 = vector.shape_cast %70 : vector<5xf32> to vector<5x1xf32>
    %cst_44 = arith.constant 1.600000e+01 : f32
    %72 = vector.broadcast %cst_44 : f32 to vector<5x1xf32>
    %73 = arith.divf %71, %72 : vector<5x1xf32>
    %cst_45 = arith.constant 9.99999974E-6 : f32
    %74 = vector.broadcast %cst_45 : f32 to vector<5x1xf32>
    %75 = arith.addf %73, %74 : vector<5x1xf32>
    %76 = math.rsqrt %75 : vector<5x1xf32>
    %77 = vector.broadcast %76 : vector<5x1xf32> to vector<5x16xf32>
    %78 = arith.mulf %68, %77 : vector<5x16xf32>
    %c0_46 = arith.constant 0 : index
    %c0_47 = arith.constant 0 : index
    %79 = vector.load %arg15[%c0_46, %c0_47] : memref<1x16xf32, #tpu.memory_space<vmem>>, vector<1x16xf32>
    %80 = vector.broadcast %79 : vector<1x16xf32> to vector<5x16xf32>
    %81 = arith.mulf %78, %80 : vector<5x16xf32>
    %82 = arith.truncf %81 : vector<5x16xf32> to vector<5x16xbf16>
    %c0_48 = arith.constant 0 : index
    %c0_49 = arith.constant 0 : index
    %83 = vector.load %arg17[%c0_48, %c0_49] : memref<16x64xbf16, #tpu.memory_space<vmem>>, vector<16x64xbf16>
    %cst_50 = arith.constant dense<0.000000e+00> : vector<5x64xf32>
    %84 = tpu.matmul %82, %83, %cst_50 {dimension_numbers = #tpu.dot_dimension_numbers<[1], [0], [0], [1], [0, 0, 1, 1], [], []>} : vector<5x16xbf16>, vector<16x64xbf16>, vector<5x64xf32> -> vector<5x64xf32>
    %85 = vector.extract_strided_slice %84 {offsets = [0, 0], sizes = [5, 32], strides = [1, 1]} : vector<5x64xf32> to vector<5x32xf32>
    %86 = arith.mulf %85, %85 : vector<5x32xf32>
    %cst_51 = arith.constant dense<0.000000e+00> : vector<5x32xf32>
    %87 = tpu.matmul %86, %31, %cst_51 {dimension_numbers = #tpu.dot_dimension_numbers<[1], [0], [0], [1], [0, 0, 1, 1], [], []>} : vector<5x32xf32>, vector<32x32xf32>, vector<5x32xf32> -> vector<5x32xf32>
    %cst_52 = arith.constant 9.99999974E-6 : f32
    %88 = vector.broadcast %cst_52 : f32 to vector<5x32xf32>
    %89 = arith.addf %87, %88 : vector<5x32xf32>
    %90 = math.rsqrt %89 : vector<5x32xf32>
    %91 = arith.mulf %85, %90 : vector<5x32xf32>
    %c0_53 = arith.constant 0 : index
    %c0_54 = arith.constant 0 : index
    %92 = vector.load %arg18[%c0_53, %c0_54] : memref<1x32xf32, #tpu.memory_space<vmem>>, vector<1x32xf32>
    %93 = vector.broadcast %92 : vector<1x32xf32> to vector<5x32xf32>
    %94 = arith.mulf %91, %93 : vector<5x32xf32>
    %95 = arith.truncf %94 : vector<5x32xf32> to vector<5x32xbf16>
    %c0_55 = arith.constant 0 : index
    %c0_56 = arith.constant 0 : index
    %96 = vector.load %arg25[%c0_55, %c0_56] : memref<5x32xbf16, #tpu.memory_space<vmem>>, vector<5x32xbf16>
    tpu.vector_store %arg25[%c0_55, %c0_56], %95 {strides = array<i32>} : memref<5x32xbf16, #tpu.memory_space<vmem>>, vector<5x32xbf16>,
    %97 = vector.extract_strided_slice %84 {offsets = [0, 32], sizes = [5, 32], strides = [1, 1]} : vector<5x64xf32> to vector<5x32xf32>
    %98 = arith.truncf %97 : vector<5x32xf32> to vector<5x32xbf16>
    %c0_57 = arith.constant 0 : index
    %c0_58 = arith.constant 0 : index
    %99 = vector.load %arg26[%c0_57, %c0_58] : memref<5x32xbf16, #tpu.memory_space<vmem>>, vector<5x32xbf16>
    tpu.vector_store %arg26[%c0_57, %c0_58], %98 {strides = array<i32>} : memref<5x32xbf16, #tpu.memory_space<vmem>>, vector<5x32xbf16>,
    %c0_59 = arith.constant 0 : index
    %c0_60 = arith.constant 0 : index
    %c0_61 = arith.constant 0 : index
    %100 = vector.load %arg6[%c0_59, %c0_60, %c0_61] : memref<1x1x8xf32, #tpu.memory_space<vmem>>, vector<1x1x8xf32>
    %101 = vector.shape_cast %100 : vector<1x1x8xf32> to vector<1x8xf32>
    %c0_62 = arith.constant 0 : index
    %c0_63 = arith.constant 0 : index
    %c0_64 = arith.constant 0 : index
    %102 = vector.load %arg16[%c0_62, %c0_63, %c0_64] : memref<1x1x5xf32, #tpu.memory_space<vmem>>, vector<1x1x5xf32>
    %103 = vector.shape_cast %102 : vector<1x1x5xf32> to vector<1x5xf32>
    %c0_65 = arith.constant 0 : index
    %c0_66 = arith.constant 0 : index
    %104 = vector.load %arg19[%c0_65, %c0_66] : memref<1x32xf32, #tpu.memory_space<vmem>>, vector<1x32xf32>
    %c0_67 = arith.constant 0 : index
    %c0_68 = arith.constant 0 : index
    %105 = vector.load %arg22[%c0_67, %c0_68] : memref<8x32xbf16, #tpu.memory_space<vmem>>, vector<8x8xbf16>
    %c0_69 = arith.constant 0 : index
    %c0_70 = arith.constant 0 : index
    %106 = vector.load %arg23[%c0_69, %c0_70] : memref<8x32xbf16, #tpu.memory_space<vmem>>, vector<8x8xbf16>
    %c0_71 = arith.constant 0 : index
    %c0_72 = arith.constant 0 : index
    %107 = vector.load %arg24[%c0_71, %c0_72] : memref<8x32xbf16, #tpu.memory_space<vmem>>, vector<8x8xbf16>
    %cst_73 = arith.constant dense<0.000000e+00> : vector<8x8xf32>
    %108 = tpu.matmul %105, %106, %cst_73 {dimension_numbers = #tpu.dot_dimension_numbers<[1], [1], [0], [0], [0, 0, 1, 0], [], []>} : vector<8x8xbf16>, vector<8x8xbf16>, vector<8x8xf32> -> vector<8x8xf32>
    %cst_74 = arith.constant 0.353553385 : f32
    %109 = vector.broadcast %cst_74 : f32 to vector<8x8xf32>
    %110 = arith.mulf %108, %109 : vector<8x8xf32>
    %111 = vector.broadcast %101 : vector<1x8xf32> to vector<8x8xf32>
    %112 = arith.addf %110, %111 : vector<8x8xf32>
    %cst_75 = arith.constant dense<0xFF800000> : vector<8xf32>
    %113 = vector.multi_reduction <maximumf>, %112, %cst_75 [1] : vector<8x8xf32> to vector<8xf32>
    %114 = vector.shape_cast %113 : vector<8xf32> to vector<8x1xf32>
    %115 = vector.broadcast %114 : vector<8x1xf32> to vector<8x8xf32>
    %116 = arith.subf %112, %115 : vector<8x8xf32>
    %117 = math.exp %116 : vector<8x8xf32>
    %cst_76 = arith.constant dense<0.000000e+00> : vector<8xf32>
    %118 = vector.multi_reduction <add>, %117, %cst_76 [1] : vector<8x8xf32> to vector<8xf32>
    %119 = vector.shape_cast %118 : vector<8xf32> to vector<8x1xf32>
    %120 = vector.broadcast %119 : vector<8x1xf32> to vector<8x8xf32>
    %121 = arith.divf %117, %120 : vector<8x8xf32>
    %122 = arith.truncf %121 : vector<8x8xf32> to vector<8x8xbf16>
    %cst_77 = arith.constant dense<0.000000e+00> : vector<8x8xf32>
    %123 = tpu.matmul %122, %107, %cst_77 {dimension_numbers = #tpu.dot_dimension_numbers<[1], [0], [0], [1], [0, 0, 1, 1], [], []>} : vector<8x8xbf16>, vector<8x8xbf16>, vector<8x8xf32> -> vector<8x8xf32>
    %c0_78 = arith.constant 0 : index
    %c0_79 = arith.constant 0 : index
    %124 = vector.load %arg25[%c0_78, %c0_79] : memref<5x32xbf16, #tpu.memory_space<vmem>>, vector<5x8xbf16>
    %c0_80 = arith.constant 0 : index
    %c0_81 = arith.constant 0 : index
    %125 = vector.load %arg26[%c0_80, %c0_81] : memref<5x32xbf16, #tpu.memory_space<vmem>>, vector<5x8xbf16>
    %cst_82 = arith.constant dense<0.000000e+00> : vector<8x5xf32>
    %126 = tpu.matmul %105, %124, %cst_82 {dimension_numbers = #tpu.dot_dimension_numbers<[1], [1], [0], [0], [0, 0, 1, 0], [], []>} : vector<8x8xbf16>, vector<5x8xbf16>, vector<8x5xf32> -> vector<8x5xf32>
    %cst_83 = arith.constant 0.353553385 : f32
    %127 = vector.broadcast %cst_83 : f32 to vector<8x5xf32>
    %128 = arith.mulf %126, %127 : vector<8x5xf32>
    %129 = vector.broadcast %103 : vector<1x5xf32> to vector<8x5xf32>
    %130 = arith.addf %128, %129 : vector<8x5xf32>
    %cst_84 = arith.constant dense<0xFF800000> : vector<8xf32>
    %131 = vector.multi_reduction <maximumf>, %130, %cst_84 [1] : vector<8x5xf32> to vector<8xf32>
    %132 = vector.shape_cast %131 : vector<8xf32> to vector<8x1xf32>
    %133 = vector.broadcast %132 : vector<8x1xf32> to vector<8x5xf32>
    %134 = arith.subf %130, %133 : vector<8x5xf32>
    %135 = math.exp %134 : vector<8x5xf32>
    %cst_85 = arith.constant dense<0.000000e+00> : vector<8xf32>
    %136 = vector.multi_reduction <add>, %135, %cst_85 [1] : vector<8x5xf32> to vector<8xf32>
    %137 = vector.shape_cast %136 : vector<8xf32> to vector<8x1xf32>
    %138 = vector.broadcast %137 : vector<8x1xf32> to vector<8x5xf32>
    %139 = arith.divf %135, %138 : vector<8x5xf32>
    %140 = arith.truncf %139 : vector<8x5xf32> to vector<8x5xbf16>
    %cst_86 = arith.constant dense<0.000000e+00> : vector<8x8xf32>
    %141 = tpu.matmul %140, %125, %cst_86 {dimension_numbers = #tpu.dot_dimension_numbers<[1], [0], [0], [1], [0, 0, 1, 1], [], []>} : vector<8x5xbf16>, vector<5x8xbf16>, vector<8x8xf32> -> vector<8x8xf32>
    %142 = vector.extract_strided_slice %104 {offsets = [0, 0], sizes = [1, 8], strides = [1, 1]} : vector<1x32xf32> to vector<1x8xf32>
    %143 = vector.broadcast %142 : vector<1x8xf32> to vector<8x8xf32>
    %144 = arith.mulf %143, %141 : vector<8x8xf32>
    %145 = arith.addf %123, %144 : vector<8x8xf32>
    %c0_87 = arith.constant 0 : index
    %c0_88 = arith.constant 0 : index
    %146 = vector.load %arg27[%c0_87, %c0_88] : memref<8x32xf32, #tpu.memory_space<vmem>>, vector<8x8xf32>
    tpu.vector_store %arg27[%c0_87, %c0_88], %145 {strides = array<i32>} : memref<8x32xf32, #tpu.memory_space<vmem>>, vector<8x8xf32>,
    %c0_89 = arith.constant 0 : index
    %c8 = arith.constant 8 : index
    %147 = vector.load %arg22[%c0_89, %c8] : memref<8x32xbf16, #tpu.memory_space<vmem>>, vector<8x8xbf16>
    %c0_90 = arith.constant 0 : index
    %c8_91 = arith.constant 8 : index
    %148 = vector.load %arg23[%c0_90, %c8_91] : memref<8x32xbf16, #tpu.memory_space<vmem>>, vector<8x8xbf16>
    %c0_92 = arith.constant 0 : index
    %c8_93 = arith.constant 8 : index
    %149 = vector.load %arg24[%c0_92, %c8_93] : memref<8x32xbf16, #tpu.memory_space<vmem>>, vector<8x8xbf16>
    %cst_94 = arith.constant dense<0.000000e+00> : vector<8x8xf32>
    %150 = tpu.matmul %147, %148, %cst_94 {dimension_numbers = #tpu.dot_dimension_numbers<[1], [1], [0], [0], [0, 0, 1, 0], [], []>} : vector<8x8xbf16>, vector<8x8xbf16>, vector<8x8xf32> -> vector<8x8xf32>
    %cst_95 = arith.constant 0.353553385 : f32
    %151 = vector.broadcast %cst_95 : f32 to vector<8x8xf32>
    %152 = arith.mulf %150, %151 : vector<8x8xf32>
    %153 = vector.broadcast %101 : vector<1x8xf32> to vector<8x8xf32>
    %154 = arith.addf %152, %153 : vector<8x8xf32>
    %cst_96 = arith.constant dense<0xFF800000> : vector<8xf32>
    %155 = vector.multi_reduction <maximumf>, %154, %cst_96 [1] : vector<8x8xf32> to vector<8xf32>
    %156 = vector.shape_cast %155 : vector<8xf32> to vector<8x1xf32>
    %157 = vector.broadcast %156 : vector<8x1xf32> to vector<8x8xf32>
    %158 = arith.subf %154, %157 : vector<8x8xf32>
    %159 = math.exp %158 : vector<8x8xf32>
    %cst_97 = arith.constant dense<0.000000e+00> : vector<8xf32>
    %160 = vector.multi_reduction <add>, %159, %cst_97 [1] : vector<8x8xf32> to vector<8xf32>
    %161 = vector.shape_cast %160 : vector<8xf32> to vector<8x1xf32>
    %162 = vector.broadcast %161 : vector<8x1xf32> to vector<8x8xf32>
    %163 = arith.divf %159, %162 : vector<8x8xf32>
    %164 = arith.truncf %163 : vector<8x8xf32> to vector<8x8xbf16>
    %cst_98 = arith.constant dense<0.000000e+00> : vector<8x8xf32>
    %165 = tpu.matmul %164, %149, %cst_98 {dimension_numbers = #tpu.dot_dimension_numbers<[1], [0], [0], [1], [0, 0, 1, 1], [], []>} : vector<8x8xbf16>, vector<8x8xbf16>, vector<8x8xf32> -> vector<8x8xf32>
    %c0_99 = arith.constant 0 : index
    %c8_100 = arith.constant 8 : index
    %166 = vector.load %arg25[%c0_99, %c8_100] : memref<5x32xbf16, #tpu.memory_space<vmem>>, vector<5x8xbf16>
    %c0_101 = arith.constant 0 : index
    %c8_102 = arith.constant 8 : index
    %167 = vector.load %arg26[%c0_101, %c8_102] : memref<5x32xbf16, #tpu.memory_space<vmem>>, vector<5x8xbf16>
    %cst_103 = arith.constant dense<0.000000e+00> : vector<8x5xf32>
    %168 = tpu.matmul %147, %166, %cst_103 {dimension_numbers = #tpu.dot_dimension_numbers<[1], [1], [0], [0], [0, 0, 1, 0], [], []>} : vector<8x8xbf16>, vector<5x8xbf16>, vector<8x5xf32> -> vector<8x5xf32>
    %cst_104 = arith.constant 0.353553385 : f32
    %169 = vector.broadcast %cst_104 : f32 to vector<8x5xf32>
    %170 = arith.mulf %168, %169 : vector<8x5xf32>
    %171 = vector.broadcast %103 : vector<1x5xf32> to vector<8x5xf32>
    %172 = arith.addf %170, %171 : vector<8x5xf32>
    %cst_105 = arith.constant dense<0xFF800000> : vector<8xf32>
    %173 = vector.multi_reduction <maximumf>, %172, %cst_105 [1] : vector<8x5xf32> to vector<8xf32>
    %174 = vector.shape_cast %173 : vector<8xf32> to vector<8x1xf32>
    %175 = vector.broadcast %174 : vector<8x1xf32> to vector<8x5xf32>
    %176 = arith.subf %172, %175 : vector<8x5xf32>
    %177 = math.exp %176 : vector<8x5xf32>
    %cst_106 = arith.constant dense<0.000000e+00> : vector<8xf32>
    %178 = vector.multi_reduction <add>, %177, %cst_106 [1] : vector<8x5xf32> to vector<8xf32>
    %179 = vector.shape_cast %178 : vector<8xf32> to vector<8x1xf32>
    %180 = vector.broadcast %179 : vector<8x1xf32> to vector<8x5xf32>
    %181 = arith.divf %177, %180 : vector<8x5xf32>
    %182 = arith.truncf %181 : vector<8x5xf32> to vector<8x5xbf16>
    %cst_107 = arith.constant dense<0.000000e+00> : vector<8x8xf32>
    %183 = tpu.matmul %182, %167, %cst_107 {dimension_numbers = #tpu.dot_dimension_numbers<[1], [0], [0], [1], [0, 0, 1, 1], [], []>} : vector<8x5xbf16>, vector<5x8xbf16>, vector<8x8xf32> -> vector<8x8xf32>
    %184 = vector.extract_strided_slice %104 {offsets = [0, 8], sizes = [1, 8], strides = [1, 1]} : vector<1x32xf32> to vector<1x8xf32>
    %185 = vector.broadcast %184 : vector<1x8xf32> to vector<8x8xf32>
    %186 = arith.mulf %185, %183 : vector<8x8xf32>
    %187 = arith.addf %165, %186 : vector<8x8xf32>
    %c0_108 = arith.constant 0 : index
    %c8_109 = arith.constant 8 : index
    %188 = vector.load %arg27[%c0_108, %c8_109] : memref<8x32xf32, #tpu.memory_space<vmem>>, vector<8x8xf32>
    tpu.vector_store %arg27[%c0_108, %c8_109], %187 {strides = array<i32>} : memref<8x32xf32, #tpu.memory_space<vmem>>, vector<8x8xf32>,
    %c0_110 = arith.constant 0 : index
    %c16 = arith.constant 16 : index
    %189 = vector.load %arg22[%c0_110, %c16] : memref<8x32xbf16, #tpu.memory_space<vmem>>, vector<8x8xbf16>
    %c0_111 = arith.constant 0 : index
    %c16_112 = arith.constant 16 : index
    %190 = vector.load %arg23[%c0_111, %c16_112] : memref<8x32xbf16, #tpu.memory_space<vmem>>, vector<8x8xbf16>
    %c0_113 = arith.constant 0 : index
    %c16_114 = arith.constant 16 : index
    %191 = vector.load %arg24[%c0_113, %c16_114] : memref<8x32xbf16, #tpu.memory_space<vmem>>, vector<8x8xbf16>
    %cst_115 = arith.constant dense<0.000000e+00> : vector<8x8xf32>
    %192 = tpu.matmul %189, %190, %cst_115 {dimension_numbers = #tpu.dot_dimension_numbers<[1], [1], [0], [0], [0, 0, 1, 0], [], []>} : vector<8x8xbf16>, vector<8x8xbf16>, vector<8x8xf32> -> vector<8x8xf32>
    %cst_116 = arith.constant 0.353553385 : f32
    %193 = vector.broadcast %cst_116 : f32 to vector<8x8xf32>
    %194 = arith.mulf %192, %193 : vector<8x8xf32>
    %195 = vector.broadcast %101 : vector<1x8xf32> to vector<8x8xf32>
    %196 = arith.addf %194, %195 : vector<8x8xf32>
    %cst_117 = arith.constant dense<0xFF800000> : vector<8xf32>
    %197 = vector.multi_reduction <maximumf>, %196, %cst_117 [1] : vector<8x8xf32> to vector<8xf32>
    %198 = vector.shape_cast %197 : vector<8xf32> to vector<8x1xf32>
    %199 = vector.broadcast %198 : vector<8x1xf32> to vector<8x8xf32>
    %200 = arith.subf %196, %199 : vector<8x8xf32>
    %201 = math.exp %200 : vector<8x8xf32>
    %cst_118 = arith.constant dense<0.000000e+00> : vector<8xf32>
    %202 = vector.multi_reduction <add>, %201, %cst_118 [1] : vector<8x8xf32> to vector<8xf32>
    %203 = vector.shape_cast %202 : vector<8xf32> to vector<8x1xf32>
    %204 = vector.broadcast %203 : vector<8x1xf32> to vector<8x8xf32>
    %205 = arith.divf %201, %204 : vector<8x8xf32>
    %206 = arith.truncf %205 : vector<8x8xf32> to vector<8x8xbf16>
    %cst_119 = arith.constant dense<0.000000e+00> : vector<8x8xf32>
    %207 = tpu.matmul %206, %191, %cst_119 {dimension_numbers = #tpu.dot_dimension_numbers<[1], [0], [0], [1], [0, 0, 1, 1], [], []>} : vector<8x8xbf16>, vector<8x8xbf16>, vector<8x8xf32> -> vector<8x8xf32>
    %c0_120 = arith.constant 0 : index
    %c16_121 = arith.constant 16 : index
    %208 = vector.load %arg25[%c0_120, %c16_121] : memref<5x32xbf16, #tpu.memory_space<vmem>>, vector<5x8xbf16>
    %c0_122 = arith.constant 0 : index
    %c16_123 = arith.constant 16 : index
    %209 = vector.load %arg26[%c0_122, %c16_123] : memref<5x32xbf16, #tpu.memory_space<vmem>>, vector<5x8xbf16>
    %cst_124 = arith.constant dense<0.000000e+00> : vector<8x5xf32>
    %210 = tpu.matmul %189, %208, %cst_124 {dimension_numbers = #tpu.dot_dimension_numbers<[1], [1], [0], [0], [0, 0, 1, 0], [], []>} : vector<8x8xbf16>, vector<5x8xbf16>, vector<8x5xf32> -> vector<8x5xf32>
    %cst_125 = arith.constant 0.353553385 : f32
    %211 = vector.broadcast %cst_125 : f32 to vector<8x5xf32>
    %212 = arith.mulf %210, %211 : vector<8x5xf32>
    %213 = vector.broadcast %103 : vector<1x5xf32> to vector<8x5xf32>
    %214 = arith.addf %212, %213 : vector<8x5xf32>
    %cst_126 = arith.constant dense<0xFF800000> : vector<8xf32>
    %215 = vector.multi_reduction <maximumf>, %214, %cst_126 [1] : vector<8x5xf32> to vector<8xf32>
    %216 = vector.shape_cast %215 : vector<8xf32> to vector<8x1xf32>
    %217 = vector.broadcast %216 : vector<8x1xf32> to vector<8x5xf32>
    %218 = arith.subf %214, %217 : vector<8x5xf32>
    %219 = math.exp %218 : vector<8x5xf32>
    %cst_127 = arith.constant dense<0.000000e+00> : vector<8xf32>
    %220 = vector.multi_reduction <add>, %219, %cst_127 [1] : vector<8x5xf32> to vector<8xf32>
    %221 = vector.shape_cast %220 : vector<8xf32> to vector<8x1xf32>
    %222 = vector.broadcast %221 : vector<8x1xf32> to vector<8x5xf32>
    %223 = arith.divf %219, %222 : vector<8x5xf32>
    %224 = arith.truncf %223 : vector<8x5xf32> to vector<8x5xbf16>
    %cst_128 = arith.constant dense<0.000000e+00> : vector<8x8xf32>
    %225 = tpu.matmul %224, %209, %cst_128 {dimension_numbers = #tpu.dot_dimension_numbers<[1], [0], [0], [1], [0, 0, 1, 1], [], []>} : vector<8x5xbf16>, vector<5x8xbf16>, vector<8x8xf32> -> vector<8x8xf32>
    %226 = vector.extract_strided_slice %104 {offsets = [0, 16], sizes = [1, 8], strides = [1, 1]} : vector<1x32xf32> to vector<1x8xf32>
    %227 = vector.broadcast %226 : vector<1x8xf32> to vector<8x8xf32>
    %228 = arith.mulf %227, %225 : vector<8x8xf32>
    %229 = arith.addf %207, %228 : vector<8x8xf32>
    %c0_129 = arith.constant 0 : index
    %c16_130 = arith.constant 16 : index
    %230 = vector.load %arg27[%c0_129, %c16_130] : memref<8x32xf32, #tpu.memory_space<vmem>>, vector<8x8xf32>
    tpu.vector_store %arg27[%c0_129, %c16_130], %229 {strides = array<i32>} : memref<8x32xf32, #tpu.memory_space<vmem>>, vector<8x8xf32>,
    %c0_131 = arith.constant 0 : index
    %c24 = arith.constant 24 : index
    %231 = vector.load %arg22[%c0_131, %c24] : memref<8x32xbf16, #tpu.memory_space<vmem>>, vector<8x8xbf16>
    %c0_132 = arith.constant 0 : index
    %c24_133 = arith.constant 24 : index
    %232 = vector.load %arg23[%c0_132, %c24_133] : memref<8x32xbf16, #tpu.memory_space<vmem>>, vector<8x8xbf16>
    %c0_134 = arith.constant 0 : index
    %c24_135 = arith.constant 24 : index
    %233 = vector.load %arg24[%c0_134, %c24_135] : memref<8x32xbf16, #tpu.memory_space<vmem>>, vector<8x8xbf16>
    %cst_136 = arith.constant dense<0.000000e+00> : vector<8x8xf32>
    %234 = tpu.matmul %231, %232, %cst_136 {dimension_numbers = #tpu.dot_dimension_numbers<[1], [1], [0], [0], [0, 0, 1, 0], [], []>} : vector<8x8xbf16>, vector<8x8xbf16>, vector<8x8xf32> -> vector<8x8xf32>
    %cst_137 = arith.constant 0.353553385 : f32
    %235 = vector.broadcast %cst_137 : f32 to vector<8x8xf32>
    %236 = arith.mulf %234, %235 : vector<8x8xf32>
    %237 = vector.broadcast %101 : vector<1x8xf32> to vector<8x8xf32>
    %238 = arith.addf %236, %237 : vector<8x8xf32>
    %cst_138 = arith.constant dense<0xFF800000> : vector<8xf32>
    %239 = vector.multi_reduction <maximumf>, %238, %cst_138 [1] : vector<8x8xf32> to vector<8xf32>
    %240 = vector.shape_cast %239 : vector<8xf32> to vector<8x1xf32>
    %241 = vector.broadcast %240 : vector<8x1xf32> to vector<8x8xf32>
    %242 = arith.subf %238, %241 : vector<8x8xf32>
    %243 = math.exp %242 : vector<8x8xf32>
    %cst_139 = arith.constant dense<0.000000e+00> : vector<8xf32>
    %244 = vector.multi_reduction <add>, %243, %cst_139 [1] : vector<8x8xf32> to vector<8xf32>
    %245 = vector.shape_cast %244 : vector<8xf32> to vector<8x1xf32>
    %246 = vector.broadcast %245 : vector<8x1xf32> to vector<8x8xf32>
    %247 = arith.divf %243, %246 : vector<8x8xf32>
    %248 = arith.truncf %247 : vector<8x8xf32> to vector<8x8xbf16>
    %cst_140 = arith.constant dense<0.000000e+00> : vector<8x8xf32>
    %249 = tpu.matmul %248, %233, %cst_140 {dimension_numbers = #tpu.dot_dimension_numbers<[1], [0], [0], [1], [0, 0, 1, 1], [], []>} : vector<8x8xbf16>, vector<8x8xbf16>, vector<8x8xf32> -> vector<8x8xf32>
    %c0_141 = arith.constant 0 : index
    %c24_142 = arith.constant 24 : index
    %250 = vector.load %arg25[%c0_141, %c24_142] : memref<5x32xbf16, #tpu.memory_space<vmem>>, vector<5x8xbf16>
    %c0_143 = arith.constant 0 : index
    %c24_144 = arith.constant 24 : index
    %251 = vector.load %arg26[%c0_143, %c24_144] : memref<5x32xbf16, #tpu.memory_space<vmem>>, vector<5x8xbf16>
    %cst_145 = arith.constant dense<0.000000e+00> : vector<8x5xf32>
    %252 = tpu.matmul %231, %250, %cst_145 {dimension_numbers = #tpu.dot_dimension_numbers<[1], [1], [0], [0], [0, 0, 1, 0], [], []>} : vector<8x8xbf16>, vector<5x8xbf16>, vector<8x5xf32> -> vector<8x5xf32>
    %cst_146 = arith.constant 0.353553385 : f32
    %253 = vector.broadcast %cst_146 : f32 to vector<8x5xf32>
    %254 = arith.mulf %252, %253 : vector<8x5xf32>
    %255 = vector.broadcast %103 : vector<1x5xf32> to vector<8x5xf32>
    %256 = arith.addf %254, %255 : vector<8x5xf32>
    %cst_147 = arith.constant dense<0xFF800000> : vector<8xf32>
    %257 = vector.multi_reduction <maximumf>, %256, %cst_147 [1] : vector<8x5xf32> to vector<8xf32>
    %258 = vector.shape_cast %257 : vector<8xf32> to vector<8x1xf32>
    %259 = vector.broadcast %258 : vector<8x1xf32> to vector<8x5xf32>
    %260 = arith.subf %256, %259 : vector<8x5xf32>
    %261 = math.exp %260 : vector<8x5xf32>
    %cst_148 = arith.constant dense<0.000000e+00> : vector<8xf32>
    %262 = vector.multi_reduction <add>, %261, %cst_148 [1] : vector<8x5xf32> to vector<8xf32>
    %263 = vector.shape_cast %262 : vector<8xf32> to vector<8x1xf32>
    %264 = vector.broadcast %263 : vector<8x1xf32> to vector<8x5xf32>
    %265 = arith.divf %261, %264 : vector<8x5xf32>
    %266 = arith.truncf %265 : vector<8x5xf32> to vector<8x5xbf16>
    %cst_149 = arith.constant dense<0.000000e+00> : vector<8x8xf32>
    %267 = tpu.matmul %266, %251, %cst_149 {dimension_numbers = #tpu.dot_dimension_numbers<[1], [0], [0], [1], [0, 0, 1, 1], [], []>} : vector<8x5xbf16>, vector<5x8xbf16>, vector<8x8xf32> -> vector<8x8xf32>
    %268 = vector.extract_strided_slice %104 {offsets = [0, 24], sizes = [1, 8], strides = [1, 1]} : vector<1x32xf32> to vector<1x8xf32>
    %269 = vector.broadcast %268 : vector<1x8xf32> to vector<8x8xf32>
    %270 = arith.mulf %269, %267 : vector<8x8xf32>
    %271 = arith.addf %249, %270 : vector<8x8xf32>
    %c0_150 = arith.constant 0 : index
    %c24_151 = arith.constant 24 : index
    %272 = vector.load %arg27[%c0_150, %c24_151] : memref<8x32xf32, #tpu.memory_space<vmem>>, vector<8x8xf32>
    tpu.vector_store %arg27[%c0_150, %c24_151], %271 {strides = array<i32>} : memref<8x32xf32, #tpu.memory_space<vmem>>, vector<8x8xf32>,
    %c0_152 = arith.constant 0 : index
    %c0_153 = arith.constant 0 : index
    %273 = vector.load %arg27[%c0_152, %c0_153] : memref<8x32xf32, #tpu.memory_space<vmem>>, vector<8x32xf32>
    %274 = arith.truncf %273 : vector<8x32xf32> to vector<8x32xbf16>
    %c0_154 = arith.constant 0 : index
    %c0_155 = arith.constant 0 : index
    %275 = vector.load %arg20[%c0_154, %c0_155] : memref<32x32xbf16, #tpu.memory_space<vmem>>, vector<32x32xbf16>
    %cst_156 = arith.constant dense<0.000000e+00> : vector<8x32xf32>
    %276 = tpu.matmul %274, %275, %cst_156 {dimension_numbers = #tpu.dot_dimension_numbers<[1], [0], [0], [1], [0, 0, 1, 1], [], []>} : vector<8x32xbf16>, vector<32x32xbf16>, vector<8x32xf32> -> vector<8x32xf32>
    %c0_157 = arith.constant 0 : index
    %c0_158 = arith.constant 0 : index
    %c0_159 = arith.constant 0 : index
    %277 = vector.load %arg5[%c0_157, %c0_158, %c0_159] : memref<1x1x32xf32, #tpu.memory_space<vmem>>, vector<1x1x32xf32>
    %278 = vector.shape_cast %277 : vector<1x1x32xf32> to vector<1x32xf32>
    %279 = vector.broadcast %278 : vector<1x32xf32> to vector<8x32xf32>
    %280 = arith.mulf %279, %276 : vector<8x32xf32>
    %281 = arith.addf %1, %280 : vector<8x32xf32>
    %c0_160 = arith.constant 0 : index
    %c0_161 = arith.constant 0 : index
    %c0_162 = arith.constant 0 : index
    %282 = vector.load %arg21[%c0_160, %c0_161, %c0_162] : memref<1x8x32xf32, #tpu.memory_space<vmem>>, vector<1x8x32xf32>
    %283 = vector.shape_cast %282 : vector<1x8x32xf32> to vector<8x32xf32>
    %284 = vector.shape_cast %281 : vector<8x32xf32> to vector<1x8x32xf32>
    tpu.vector_store %arg21[%c0_160, %c0_161, %c0_162], %284 {strides = array<i32>} : memref<1x8x32xf32, #tpu.memory_space<vmem>>, vector<1x8x32xf32>,
    return
  }
  func.func @transform_0(%arg0: i32) -> (i32, i32, i32) {
    %c0_i32 = arith.constant 0 : i32
    %c0_i32_0 = arith.constant 0 : i32
    %c0_i32_1 = arith.constant 0 : i32
    return %arg0, %c0_i32, %c0_i32_0 : i32, i32, i32
  }
  func.func @transform_1(%arg0: i32) -> (i32, i32) {
    %c0_i32 = arith.constant 0 : i32
    %c0_i32_0 = arith.constant 0 : i32
    %c0_i32_1 = arith.constant 0 : i32
    return %c0_i32, %c0_i32_0 : i32, i32
  }
  func.func @transform_2(%arg0: i32) -> (i32, i32, i32) {
    %c0_i32 = arith.constant 0 : i32
    %c0_i32_0 = arith.constant 0 : i32
    %c0_i32_1 = arith.constant 0 : i32
    return %arg0, %c0_i32, %c0_i32_0 : i32, i32, i32
  }
  func.func @transform_3(%arg0: i32) -> (i32, i32, i32) {
    %c0_i32 = arith.constant 0 : i32
    %c0_i32_0 = arith.constant 0 : i32
    %c0_i32_1 = arith.constant 0 : i32
    return %arg0, %c0_i32, %c0_i32_0 : i32, i32, i32
  }
  func.func @transform_4(%arg0: i32) -> (i32, i32, i32) {
    %c0_i32 = arith.constant 0 : i32
    %c0_i32_0 = arith.constant 0 : i32
    %c0_i32_1 = arith.constant 0 : i32
    return %arg0, %c0_i32, %c0_i32_0 : i32, i32, i32
  }
  func.func @transform_5(%arg0: i32) -> (i32, i32, i32) {
    %c0_i32 = arith.constant 0 : i32
    %c0_i32_0 = arith.constant 0 : i32
    %c0_i32_1 = arith.constant 0 : i32
    return %arg0, %c0_i32, %c0_i32_0 : i32, i32, i32
  }
  func.func @transform_6(%arg0: i32) -> (i32, i32) {
    %c0_i32 = arith.constant 0 : i32
    %c0_i32_0 = arith.constant 0 : i32
    %c0_i32_1 = arith.constant 0 : i32
    return %c0_i32, %c0_i32_0 : i32, i32
  }
  func.func @transform_7(%arg0: i32) -> (i32, i32) {
    %c0_i32 = arith.constant 0 : i32
    %c0_i32_0 = arith.constant 0 : i32
    %c0_i32_1 = arith.constant 0 : i32
    return %c0_i32, %c0_i32_0 : i32, i32
  }
  func.func @transform_8(%arg0: i32) -> (i32, i32) {
    %c0_i32 = arith.constant 0 : i32
    %c0_i32_0 = arith.constant 0 : i32
    %c0_i32_1 = arith.constant 0 : i32
    return %c0_i32, %c0_i32_0 : i32, i32
  }
  func.func @transform_9(%arg0: i32) -> (i32, i32) {
    %c0_i32 = arith.constant 0 : i32
    %c0_i32_0 = arith.constant 0 : i32
    %c0_i32_1 = arith.constant 0 : i32
    return %c0_i32, %c0_i32_0 : i32, i32
  }
  func.func @transform_10(%arg0: i32) -> (i32, i32) {
    %c0_i32 = arith.constant 0 : i32
    %c0_i32_0 = arith.constant 0 : i32
    %c0_i32_1 = arith.constant 0 : i32
    return %c0_i32, %c0_i32_0 : i32, i32
  }
  func.func @transform_11(%arg0: i32) -> (i32, i32) {
    %c0_i32 = arith.constant 0 : i32
    %c0_i32_0 = arith.constant 0 : i32
    %c0_i32_1 = arith.constant 0 : i32
    return %c0_i32, %c0_i32_0 : i32, i32
  }
  func.func @transform_12(%arg0: i32) -> (i32, i32) {
    %c0_i32 = arith.constant 0 : i32
    %c0_i32_0 = arith.constant 0 : i32
    %c0_i32_1 = arith.constant 0 : i32
    return %c0_i32, %c0_i32_0 : i32, i32
  }
  func.func @transform_13(%arg0: i32) -> (i32, i32, i32) {
    %c0_i32 = arith.constant 0 : i32
    %c0_i32_0 = arith.constant 0 : i32
    %c0_i32_1 = arith.constant 0 : i32
    return %arg0, %c0_i32, %c0_i32_0 : i32, i32, i32
  }
  func.func @transform_14(%arg0: i32) -> (i32, i32) {
    %c0_i32 = arith.constant 0 : i32
    %c0_i32_0 = arith.constant 0 : i32
    %c0_i32_1 = arith.constant 0 : i32
    return %c0_i32, %c0_i32_0 : i32, i32
  }
  func.func @transform_15(%arg0: i32) -> (i32, i32, i32) {
    %c0_i32 = arith.constant 0 : i32
    %c0_i32_0 = arith.constant 0 : i32
    %c0_i32_1 = arith.constant 0 : i32
    return %arg0, %c0_i32, %c0_i32_0 : i32, i32, i32
  }
  func.func @transform_16(%arg0: i32) -> (i32, i32) {
    %c0_i32 = arith.constant 0 : i32
    %c0_i32_0 = arith.constant 0 : i32
    %c0_i32_1 = arith.constant 0 : i32
    return %c0_i32, %c0_i32_0 : i32, i32
  }
  func.func @transform_17(%arg0: i32) -> (i32, i32) {
    %c0_i32 = arith.constant 0 : i32
    %c0_i32_0 = arith.constant 0 : i32
    %c0_i32_1 = arith.constant 0 : i32
    return %c0_i32, %c0_i32_0 : i32, i32
  }
  func.func @transform_18(%arg0: i32) -> (i32, i32) {
    %c0_i32 = arith.constant 0 : i32
    %c0_i32_0 = arith.constant 0 : i32
    %c0_i32_1 = arith.constant 0 : i32
    return %c0_i32, %c0_i32_0 : i32, i32
  }
  func.func @transform_19(%arg0: i32) -> (i32, i32) {
    %c0_i32 = arith.constant 0 : i32
    %c0_i32_0 = arith.constant 0 : i32
    %c0_i32_1 = arith.constant 0 : i32
    return %c0_i32, %c0_i32_0 : i32, i32
  }
  func.func @transform_20(%arg0: i32) -> (i32, i32, i32) {
    %c0_i32 = arith.constant 0 : i32
    %c0_i32_0 = arith.constant 0 : i32
    %c0_i32_1 = arith.constant 0 : i32
    return %arg0, %c0_i32, %c0_i32_0 : i32, i32, i32
  }
}

module attributes {stable_mosaic.version = 11 : i64} {
  func.func @_cross_attn_gate_kernel(%arg0: i32, %arg1: memref<1x8x32xf32, #tpu.memory_space<vmem>>, %arg2: memref<1x6x32xf32, #tpu.memory_space<vmem>>, %arg3: memref<32x32xbf16, #tpu.memory_space<vmem>>, %arg4: memref<1x32xf32, #tpu.memory_space<vmem>>, %arg5: memref<32x64xbf16, #tpu.memory_space<vmem>>, %arg6: memref<1x64xf32, #tpu.memory_space<vmem>>, %arg7: memref<32x2xbf16, #tpu.memory_space<vmem>>, %arg8: memref<1x2xf32, #tpu.memory_space<vmem>>, %arg9: memref<1x8x2xf32, #tpu.memory_space<vmem>>, %arg10: memref<8x32xbf16, #tpu.memory_space<vmem>>, %arg11: memref<6x32xbf16, #tpu.memory_space<vmem>>, %arg12: memref<6x32xbf16, #tpu.memory_space<vmem>>, %arg13: memref<8x32xf32, #tpu.memory_space<vmem>>) attributes {dimension_semantics = [#tpu.dimension_semantics<parallel>], iteration_bounds = array<i64: 2>, scalar_prefetch = 0 : i64, scratch_operands = 4 : i64, tpu.core_type = #tpu.core_type<tc>, window_params = [{transform_indices = @transform_0, window_bounds = array<i64: 1, 8, 32>}, {transform_indices = @transform_1, window_bounds = array<i64: 1, 6, 32>}, {pipeline_mode = #tpu.pipeline_mode<synchronous>, transform_indices = @transform_2, window_bounds = array<i64: 32, 32>}, {pipeline_mode = #tpu.pipeline_mode<synchronous>, transform_indices = @transform_3, window_bounds = array<i64: 1, 32>}, {pipeline_mode = #tpu.pipeline_mode<synchronous>, transform_indices = @transform_4, window_bounds = array<i64: 32, 64>}, {pipeline_mode = #tpu.pipeline_mode<synchronous>, transform_indices = @transform_5, window_bounds = array<i64: 1, 64>}, {pipeline_mode = #tpu.pipeline_mode<synchronous>, transform_indices = @transform_6, window_bounds = array<i64: 32, 2>}, {pipeline_mode = #tpu.pipeline_mode<synchronous>, transform_indices = @transform_7, window_bounds = array<i64: 1, 2>}, {transform_indices = @transform_8, window_bounds = array<i64: 1, 8, 2>}]} {
    %c0 = arith.constant 0 : index
    %c0_0 = arith.constant 0 : index
    %c0_1 = arith.constant 0 : index
    %0 = vector.load %arg1[%c0, %c0_0, %c0_1] : memref<1x8x32xf32, #tpu.memory_space<vmem>>, vector<1x8x32xf32>
    %1 = vector.shape_cast %0 : vector<1x8x32xf32> to vector<8x32xf32>
    %2 = arith.truncf %1 : vector<8x32xf32> to vector<8x32xbf16>
    %c0_2 = arith.constant 0 : index
    %c0_3 = arith.constant 0 : index
    %c0_4 = arith.constant 0 : index
    %3 = vector.load %arg2[%c0_2, %c0_3, %c0_4] : memref<1x6x32xf32, #tpu.memory_space<vmem>>, vector<1x6x32xf32>
    %4 = vector.shape_cast %3 : vector<1x6x32xf32> to vector<6x32xf32>
    %5 = arith.truncf %4 : vector<6x32xf32> to vector<6x32xbf16>
    %c0_5 = arith.constant 0 : index
    %c0_6 = arith.constant 0 : index
    %6 = vector.load %arg3[%c0_5, %c0_6] : memref<32x32xbf16, #tpu.memory_space<vmem>>, vector<32x32xbf16>
    %cst = arith.constant dense<0.000000e+00> : vector<8x32xf32>
    %7 = tpu.matmul %2, %6, %cst {dimension_numbers = #tpu.dot_dimension_numbers<[1], [0], [0], [1], [0, 0, 1, 1], [], []>} : vector<8x32xbf16>, vector<32x32xbf16>, vector<8x32xf32> -> vector<8x32xf32>
    %c0_7 = arith.constant 0 : index
    %c0_8 = arith.constant 0 : index
    %8 = vector.load %arg4[%c0_7, %c0_8] : memref<1x32xf32, #tpu.memory_space<vmem>>, vector<1x32xf32>
    %9 = vector.broadcast %8 : vector<1x32xf32> to vector<8x32xf32>
    %10 = arith.addf %7, %9 : vector<8x32xf32>
    %11 = arith.truncf %10 : vector<8x32xf32> to vector<8x32xbf16>
    %c0_9 = arith.constant 0 : index
    %c0_10 = arith.constant 0 : index
    %12 = vector.load %arg10[%c0_9, %c0_10] : memref<8x32xbf16, #tpu.memory_space<vmem>>, vector<8x32xbf16>
    tpu.vector_store %arg10[%c0_9, %c0_10], %11 {strides = array<i32>} : memref<8x32xbf16, #tpu.memory_space<vmem>>, vector<8x32xbf16>,
    %c0_11 = arith.constant 0 : index
    %c0_12 = arith.constant 0 : index
    %13 = vector.load %arg5[%c0_11, %c0_12] : memref<32x64xbf16, #tpu.memory_space<vmem>>, vector<32x64xbf16>
    %cst_13 = arith.constant dense<0.000000e+00> : vector<6x64xf32>
    %14 = tpu.matmul %5, %13, %cst_13 {dimension_numbers = #tpu.dot_dimension_numbers<[1], [0], [0], [1], [0, 0, 1, 1], [], []>} : vector<6x32xbf16>, vector<32x64xbf16>, vector<6x64xf32> -> vector<6x64xf32>
    %c0_14 = arith.constant 0 : index
    %c0_15 = arith.constant 0 : index
    %15 = vector.load %arg6[%c0_14, %c0_15] : memref<1x64xf32, #tpu.memory_space<vmem>>, vector<1x64xf32>
    %16 = vector.broadcast %15 : vector<1x64xf32> to vector<6x64xf32>
    %17 = arith.addf %14, %16 : vector<6x64xf32>
    %18 = vector.extract_strided_slice %17 {offsets = [0, 0], sizes = [6, 32], strides = [1, 1]} : vector<6x64xf32> to vector<6x32xf32>
    %19 = arith.truncf %18 : vector<6x32xf32> to vector<6x32xbf16>
    %c0_16 = arith.constant 0 : index
    %c0_17 = arith.constant 0 : index
    %20 = vector.load %arg11[%c0_16, %c0_17] : memref<6x32xbf16, #tpu.memory_space<vmem>>, vector<6x32xbf16>
    tpu.vector_store %arg11[%c0_16, %c0_17], %19 {strides = array<i32>} : memref<6x32xbf16, #tpu.memory_space<vmem>>, vector<6x32xbf16>,
    %21 = vector.extract_strided_slice %17 {offsets = [0, 32], sizes = [6, 32], strides = [1, 1]} : vector<6x64xf32> to vector<6x32xf32>
    %22 = arith.truncf %21 : vector<6x32xf32> to vector<6x32xbf16>
    %c0_18 = arith.constant 0 : index
    %c0_19 = arith.constant 0 : index
    %23 = vector.load %arg12[%c0_18, %c0_19] : memref<6x32xbf16, #tpu.memory_space<vmem>>, vector<6x32xbf16>
    tpu.vector_store %arg12[%c0_18, %c0_19], %22 {strides = array<i32>} : memref<6x32xbf16, #tpu.memory_space<vmem>>, vector<6x32xbf16>,
    %c0_20 = arith.constant 0 : index
    %c0_21 = arith.constant 0 : index
    %24 = vector.load %arg10[%c0_20, %c0_21] : memref<8x32xbf16, #tpu.memory_space<vmem>>, vector<8x4xbf16>
    %c0_22 = arith.constant 0 : index
    %c0_23 = arith.constant 0 : index
    %25 = vector.load %arg11[%c0_22, %c0_23] : memref<6x32xbf16, #tpu.memory_space<vmem>>, vector<6x4xbf16>
    %c0_24 = arith.constant 0 : index
    %c0_25 = arith.constant 0 : index
    %26 = vector.load %arg12[%c0_24, %c0_25] : memref<6x32xbf16, #tpu.memory_space<vmem>>, vector<6x4xbf16>
    %cst_26 = arith.constant dense<0.000000e+00> : vector<8x6xf32>
    %27 = tpu.matmul %24, %25, %cst_26 {dimension_numbers = #tpu.dot_dimension_numbers<[1], [1], [0], [0], [0, 0, 1, 0], [], []>} : vector<8x4xbf16>, vector<6x4xbf16>, vector<8x6xf32> -> vector<8x6xf32>
    %cst_27 = arith.constant 5.000000e-01 : f32
    %28 = vector.broadcast %cst_27 : f32 to vector<8x6xf32>
    %29 = arith.mulf %27, %28 : vector<8x6xf32>
    %cst_28 = arith.constant dense<0xFF800000> : vector<8xf32>
    %30 = vector.multi_reduction <maximumf>, %29, %cst_28 [1] : vector<8x6xf32> to vector<8xf32>
    %31 = vector.shape_cast %30 : vector<8xf32> to vector<8x1xf32>
    %32 = vector.broadcast %31 : vector<8x1xf32> to vector<8x6xf32>
    %33 = arith.subf %29, %32 : vector<8x6xf32>
    %34 = math.exp %33 : vector<8x6xf32>
    %cst_29 = arith.constant dense<0.000000e+00> : vector<8xf32>
    %35 = vector.multi_reduction <add>, %34, %cst_29 [1] : vector<8x6xf32> to vector<8xf32>
    %36 = vector.shape_cast %35 : vector<8xf32> to vector<8x1xf32>
    %37 = vector.broadcast %36 : vector<8x1xf32> to vector<8x6xf32>
    %38 = arith.divf %34, %37 : vector<8x6xf32>
    %39 = arith.truncf %38 : vector<8x6xf32> to vector<8x6xbf16>
    %cst_30 = arith.constant dense<0.000000e+00> : vector<8x4xf32>
    %40 = tpu.matmul %39, %26, %cst_30 {dimension_numbers = #tpu.dot_dimension_numbers<[1], [0], [0], [1], [0, 0, 1, 1], [], []>} : vector<8x6xbf16>, vector<6x4xbf16>, vector<8x4xf32> -> vector<8x4xf32>
    %c0_31 = arith.constant 0 : index
    %c0_32 = arith.constant 0 : index
    %41 = vector.load %arg13[%c0_31, %c0_32] : memref<8x32xf32, #tpu.memory_space<vmem>>, vector<8x4xf32>
    tpu.vector_store %arg13[%c0_31, %c0_32], %40 {strides = array<i32>} : memref<8x32xf32, #tpu.memory_space<vmem>>, vector<8x4xf32>,
    %c0_33 = arith.constant 0 : index
    %c4 = arith.constant 4 : index
    %42 = vector.load %arg10[%c0_33, %c4] : memref<8x32xbf16, #tpu.memory_space<vmem>>, vector<8x4xbf16>
    %c0_34 = arith.constant 0 : index
    %c4_35 = arith.constant 4 : index
    %43 = vector.load %arg11[%c0_34, %c4_35] : memref<6x32xbf16, #tpu.memory_space<vmem>>, vector<6x4xbf16>
    %c0_36 = arith.constant 0 : index
    %c4_37 = arith.constant 4 : index
    %44 = vector.load %arg12[%c0_36, %c4_37] : memref<6x32xbf16, #tpu.memory_space<vmem>>, vector<6x4xbf16>
    %cst_38 = arith.constant dense<0.000000e+00> : vector<8x6xf32>
    %45 = tpu.matmul %42, %43, %cst_38 {dimension_numbers = #tpu.dot_dimension_numbers<[1], [1], [0], [0], [0, 0, 1, 0], [], []>} : vector<8x4xbf16>, vector<6x4xbf16>, vector<8x6xf32> -> vector<8x6xf32>
    %cst_39 = arith.constant 5.000000e-01 : f32
    %46 = vector.broadcast %cst_39 : f32 to vector<8x6xf32>
    %47 = arith.mulf %45, %46 : vector<8x6xf32>
    %cst_40 = arith.constant dense<0xFF800000> : vector<8xf32>
    %48 = vector.multi_reduction <maximumf>, %47, %cst_40 [1] : vector<8x6xf32> to vector<8xf32>
    %49 = vector.shape_cast %48 : vector<8xf32> to vector<8x1xf32>
    %50 = vector.broadcast %49 : vector<8x1xf32> to vector<8x6xf32>
    %51 = arith.subf %47, %50 : vector<8x6xf32>
    %52 = math.exp %51 : vector<8x6xf32>
    %cst_41 = arith.constant dense<0.000000e+00> : vector<8xf32>
    %53 = vector.multi_reduction <add>, %52, %cst_41 [1] : vector<8x6xf32> to vector<8xf32>
    %54 = vector.shape_cast %53 : vector<8xf32> to vector<8x1xf32>
    %55 = vector.broadcast %54 : vector<8x1xf32> to vector<8x6xf32>
    %56 = arith.divf %52, %55 : vector<8x6xf32>
    %57 = arith.truncf %56 : vector<8x6xf32> to vector<8x6xbf16>
    %cst_42 = arith.constant dense<0.000000e+00> : vector<8x4xf32>
    %58 = tpu.matmul %57, %44, %cst_42 {dimension_numbers = #tpu.dot_dimension_numbers<[1], [0], [0], [1], [0, 0, 1, 1], [], []>} : vector<8x6xbf16>, vector<6x4xbf16>, vector<8x4xf32> -> vector<8x4xf32>
    %c0_43 = arith.constant 0 : index
    %c4_44 = arith.constant 4 : index
    %59 = vector.load %arg13[%c0_43, %c4_44] : memref<8x32xf32, #tpu.memory_space<vmem>>, vector<8x4xf32>
    tpu.vector_store %arg13[%c0_43, %c4_44], %58 {strides = array<i32>} : memref<8x32xf32, #tpu.memory_space<vmem>>, vector<8x4xf32>,
    %c0_45 = arith.constant 0 : index
    %c8 = arith.constant 8 : index
    %60 = vector.load %arg10[%c0_45, %c8] : memref<8x32xbf16, #tpu.memory_space<vmem>>, vector<8x4xbf16>
    %c0_46 = arith.constant 0 : index
    %c8_47 = arith.constant 8 : index
    %61 = vector.load %arg11[%c0_46, %c8_47] : memref<6x32xbf16, #tpu.memory_space<vmem>>, vector<6x4xbf16>
    %c0_48 = arith.constant 0 : index
    %c8_49 = arith.constant 8 : index
    %62 = vector.load %arg12[%c0_48, %c8_49] : memref<6x32xbf16, #tpu.memory_space<vmem>>, vector<6x4xbf16>
    %cst_50 = arith.constant dense<0.000000e+00> : vector<8x6xf32>
    %63 = tpu.matmul %60, %61, %cst_50 {dimension_numbers = #tpu.dot_dimension_numbers<[1], [1], [0], [0], [0, 0, 1, 0], [], []>} : vector<8x4xbf16>, vector<6x4xbf16>, vector<8x6xf32> -> vector<8x6xf32>
    %cst_51 = arith.constant 5.000000e-01 : f32
    %64 = vector.broadcast %cst_51 : f32 to vector<8x6xf32>
    %65 = arith.mulf %63, %64 : vector<8x6xf32>
    %cst_52 = arith.constant dense<0xFF800000> : vector<8xf32>
    %66 = vector.multi_reduction <maximumf>, %65, %cst_52 [1] : vector<8x6xf32> to vector<8xf32>
    %67 = vector.shape_cast %66 : vector<8xf32> to vector<8x1xf32>
    %68 = vector.broadcast %67 : vector<8x1xf32> to vector<8x6xf32>
    %69 = arith.subf %65, %68 : vector<8x6xf32>
    %70 = math.exp %69 : vector<8x6xf32>
    %cst_53 = arith.constant dense<0.000000e+00> : vector<8xf32>
    %71 = vector.multi_reduction <add>, %70, %cst_53 [1] : vector<8x6xf32> to vector<8xf32>
    %72 = vector.shape_cast %71 : vector<8xf32> to vector<8x1xf32>
    %73 = vector.broadcast %72 : vector<8x1xf32> to vector<8x6xf32>
    %74 = arith.divf %70, %73 : vector<8x6xf32>
    %75 = arith.truncf %74 : vector<8x6xf32> to vector<8x6xbf16>
    %cst_54 = arith.constant dense<0.000000e+00> : vector<8x4xf32>
    %76 = tpu.matmul %75, %62, %cst_54 {dimension_numbers = #tpu.dot_dimension_numbers<[1], [0], [0], [1], [0, 0, 1, 1], [], []>} : vector<8x6xbf16>, vector<6x4xbf16>, vector<8x4xf32> -> vector<8x4xf32>
    %c0_55 = arith.constant 0 : index
    %c8_56 = arith.constant 8 : index
    %77 = vector.load %arg13[%c0_55, %c8_56] : memref<8x32xf32, #tpu.memory_space<vmem>>, vector<8x4xf32>
    tpu.vector_store %arg13[%c0_55, %c8_56], %76 {strides = array<i32>} : memref<8x32xf32, #tpu.memory_space<vmem>>, vector<8x4xf32>,
    %c0_57 = arith.constant 0 : index
    %c12 = arith.constant 12 : index
    %78 = vector.load %arg10[%c0_57, %c12] : memref<8x32xbf16, #tpu.memory_space<vmem>>, vector<8x4xbf16>
    %c0_58 = arith.constant 0 : index
    %c12_59 = arith.constant 12 : index
    %79 = vector.load %arg11[%c0_58, %c12_59] : memref<6x32xbf16, #tpu.memory_space<vmem>>, vector<6x4xbf16>
    %c0_60 = arith.constant 0 : index
    %c12_61 = arith.constant 12 : index
    %80 = vector.load %arg12[%c0_60, %c12_61] : memref<6x32xbf16, #tpu.memory_space<vmem>>, vector<6x4xbf16>
    %cst_62 = arith.constant dense<0.000000e+00> : vector<8x6xf32>
    %81 = tpu.matmul %78, %79, %cst_62 {dimension_numbers = #tpu.dot_dimension_numbers<[1], [1], [0], [0], [0, 0, 1, 0], [], []>} : vector<8x4xbf16>, vector<6x4xbf16>, vector<8x6xf32> -> vector<8x6xf32>
    %cst_63 = arith.constant 5.000000e-01 : f32
    %82 = vector.broadcast %cst_63 : f32 to vector<8x6xf32>
    %83 = arith.mulf %81, %82 : vector<8x6xf32>
    %cst_64 = arith.constant dense<0xFF800000> : vector<8xf32>
    %84 = vector.multi_reduction <maximumf>, %83, %cst_64 [1] : vector<8x6xf32> to vector<8xf32>
    %85 = vector.shape_cast %84 : vector<8xf32> to vector<8x1xf32>
    %86 = vector.broadcast %85 : vector<8x1xf32> to vector<8x6xf32>
    %87 = arith.subf %83, %86 : vector<8x6xf32>
    %88 = math.exp %87 : vector<8x6xf32>
    %cst_65 = arith.constant dense<0.000000e+00> : vector<8xf32>
    %89 = vector.multi_reduction <add>, %88, %cst_65 [1] : vector<8x6xf32> to vector<8xf32>
    %90 = vector.shape_cast %89 : vector<8xf32> to vector<8x1xf32>
    %91 = vector.broadcast %90 : vector<8x1xf32> to vector<8x6xf32>
    %92 = arith.divf %88, %91 : vector<8x6xf32>
    %93 = arith.truncf %92 : vector<8x6xf32> to vector<8x6xbf16>
    %cst_66 = arith.constant dense<0.000000e+00> : vector<8x4xf32>
    %94 = tpu.matmul %93, %80, %cst_66 {dimension_numbers = #tpu.dot_dimension_numbers<[1], [0], [0], [1], [0, 0, 1, 1], [], []>} : vector<8x6xbf16>, vector<6x4xbf16>, vector<8x4xf32> -> vector<8x4xf32>
    %c0_67 = arith.constant 0 : index
    %c12_68 = arith.constant 12 : index
    %95 = vector.load %arg13[%c0_67, %c12_68] : memref<8x32xf32, #tpu.memory_space<vmem>>, vector<8x4xf32>
    tpu.vector_store %arg13[%c0_67, %c12_68], %94 {strides = array<i32>} : memref<8x32xf32, #tpu.memory_space<vmem>>, vector<8x4xf32>,
    %c0_69 = arith.constant 0 : index
    %c16 = arith.constant 16 : index
    %96 = vector.load %arg10[%c0_69, %c16] : memref<8x32xbf16, #tpu.memory_space<vmem>>, vector<8x4xbf16>
    %c0_70 = arith.constant 0 : index
    %c16_71 = arith.constant 16 : index
    %97 = vector.load %arg11[%c0_70, %c16_71] : memref<6x32xbf16, #tpu.memory_space<vmem>>, vector<6x4xbf16>
    %c0_72 = arith.constant 0 : index
    %c16_73 = arith.constant 16 : index
    %98 = vector.load %arg12[%c0_72, %c16_73] : memref<6x32xbf16, #tpu.memory_space<vmem>>, vector<6x4xbf16>
    %cst_74 = arith.constant dense<0.000000e+00> : vector<8x6xf32>
    %99 = tpu.matmul %96, %97, %cst_74 {dimension_numbers = #tpu.dot_dimension_numbers<[1], [1], [0], [0], [0, 0, 1, 0], [], []>} : vector<8x4xbf16>, vector<6x4xbf16>, vector<8x6xf32> -> vector<8x6xf32>
    %cst_75 = arith.constant 5.000000e-01 : f32
    %100 = vector.broadcast %cst_75 : f32 to vector<8x6xf32>
    %101 = arith.mulf %99, %100 : vector<8x6xf32>
    %cst_76 = arith.constant dense<0xFF800000> : vector<8xf32>
    %102 = vector.multi_reduction <maximumf>, %101, %cst_76 [1] : vector<8x6xf32> to vector<8xf32>
    %103 = vector.shape_cast %102 : vector<8xf32> to vector<8x1xf32>
    %104 = vector.broadcast %103 : vector<8x1xf32> to vector<8x6xf32>
    %105 = arith.subf %101, %104 : vector<8x6xf32>
    %106 = math.exp %105 : vector<8x6xf32>
    %cst_77 = arith.constant dense<0.000000e+00> : vector<8xf32>
    %107 = vector.multi_reduction <add>, %106, %cst_77 [1] : vector<8x6xf32> to vector<8xf32>
    %108 = vector.shape_cast %107 : vector<8xf32> to vector<8x1xf32>
    %109 = vector.broadcast %108 : vector<8x1xf32> to vector<8x6xf32>
    %110 = arith.divf %106, %109 : vector<8x6xf32>
    %111 = arith.truncf %110 : vector<8x6xf32> to vector<8x6xbf16>
    %cst_78 = arith.constant dense<0.000000e+00> : vector<8x4xf32>
    %112 = tpu.matmul %111, %98, %cst_78 {dimension_numbers = #tpu.dot_dimension_numbers<[1], [0], [0], [1], [0, 0, 1, 1], [], []>} : vector<8x6xbf16>, vector<6x4xbf16>, vector<8x4xf32> -> vector<8x4xf32>
    %c0_79 = arith.constant 0 : index
    %c16_80 = arith.constant 16 : index
    %113 = vector.load %arg13[%c0_79, %c16_80] : memref<8x32xf32, #tpu.memory_space<vmem>>, vector<8x4xf32>
    tpu.vector_store %arg13[%c0_79, %c16_80], %112 {strides = array<i32>} : memref<8x32xf32, #tpu.memory_space<vmem>>, vector<8x4xf32>,
    %c0_81 = arith.constant 0 : index
    %c20 = arith.constant 20 : index
    %114 = vector.load %arg10[%c0_81, %c20] : memref<8x32xbf16, #tpu.memory_space<vmem>>, vector<8x4xbf16>
    %c0_82 = arith.constant 0 : index
    %c20_83 = arith.constant 20 : index
    %115 = vector.load %arg11[%c0_82, %c20_83] : memref<6x32xbf16, #tpu.memory_space<vmem>>, vector<6x4xbf16>
    %c0_84 = arith.constant 0 : index
    %c20_85 = arith.constant 20 : index
    %116 = vector.load %arg12[%c0_84, %c20_85] : memref<6x32xbf16, #tpu.memory_space<vmem>>, vector<6x4xbf16>
    %cst_86 = arith.constant dense<0.000000e+00> : vector<8x6xf32>
    %117 = tpu.matmul %114, %115, %cst_86 {dimension_numbers = #tpu.dot_dimension_numbers<[1], [1], [0], [0], [0, 0, 1, 0], [], []>} : vector<8x4xbf16>, vector<6x4xbf16>, vector<8x6xf32> -> vector<8x6xf32>
    %cst_87 = arith.constant 5.000000e-01 : f32
    %118 = vector.broadcast %cst_87 : f32 to vector<8x6xf32>
    %119 = arith.mulf %117, %118 : vector<8x6xf32>
    %cst_88 = arith.constant dense<0xFF800000> : vector<8xf32>
    %120 = vector.multi_reduction <maximumf>, %119, %cst_88 [1] : vector<8x6xf32> to vector<8xf32>
    %121 = vector.shape_cast %120 : vector<8xf32> to vector<8x1xf32>
    %122 = vector.broadcast %121 : vector<8x1xf32> to vector<8x6xf32>
    %123 = arith.subf %119, %122 : vector<8x6xf32>
    %124 = math.exp %123 : vector<8x6xf32>
    %cst_89 = arith.constant dense<0.000000e+00> : vector<8xf32>
    %125 = vector.multi_reduction <add>, %124, %cst_89 [1] : vector<8x6xf32> to vector<8xf32>
    %126 = vector.shape_cast %125 : vector<8xf32> to vector<8x1xf32>
    %127 = vector.broadcast %126 : vector<8x1xf32> to vector<8x6xf32>
    %128 = arith.divf %124, %127 : vector<8x6xf32>
    %129 = arith.truncf %128 : vector<8x6xf32> to vector<8x6xbf16>
    %cst_90 = arith.constant dense<0.000000e+00> : vector<8x4xf32>
    %130 = tpu.matmul %129, %116, %cst_90 {dimension_numbers = #tpu.dot_dimension_numbers<[1], [0], [0], [1], [0, 0, 1, 1], [], []>} : vector<8x6xbf16>, vector<6x4xbf16>, vector<8x4xf32> -> vector<8x4xf32>
    %c0_91 = arith.constant 0 : index
    %c20_92 = arith.constant 20 : index
    %131 = vector.load %arg13[%c0_91, %c20_92] : memref<8x32xf32, #tpu.memory_space<vmem>>, vector<8x4xf32>
    tpu.vector_store %arg13[%c0_91, %c20_92], %130 {strides = array<i32>} : memref<8x32xf32, #tpu.memory_space<vmem>>, vector<8x4xf32>,
    %c0_93 = arith.constant 0 : index
    %c24 = arith.constant 24 : index
    %132 = vector.load %arg10[%c0_93, %c24] : memref<8x32xbf16, #tpu.memory_space<vmem>>, vector<8x4xbf16>
    %c0_94 = arith.constant 0 : index
    %c24_95 = arith.constant 24 : index
    %133 = vector.load %arg11[%c0_94, %c24_95] : memref<6x32xbf16, #tpu.memory_space<vmem>>, vector<6x4xbf16>
    %c0_96 = arith.constant 0 : index
    %c24_97 = arith.constant 24 : index
    %134 = vector.load %arg12[%c0_96, %c24_97] : memref<6x32xbf16, #tpu.memory_space<vmem>>, vector<6x4xbf16>
    %cst_98 = arith.constant dense<0.000000e+00> : vector<8x6xf32>
    %135 = tpu.matmul %132, %133, %cst_98 {dimension_numbers = #tpu.dot_dimension_numbers<[1], [1], [0], [0], [0, 0, 1, 0], [], []>} : vector<8x4xbf16>, vector<6x4xbf16>, vector<8x6xf32> -> vector<8x6xf32>
    %cst_99 = arith.constant 5.000000e-01 : f32
    %136 = vector.broadcast %cst_99 : f32 to vector<8x6xf32>
    %137 = arith.mulf %135, %136 : vector<8x6xf32>
    %cst_100 = arith.constant dense<0xFF800000> : vector<8xf32>
    %138 = vector.multi_reduction <maximumf>, %137, %cst_100 [1] : vector<8x6xf32> to vector<8xf32>
    %139 = vector.shape_cast %138 : vector<8xf32> to vector<8x1xf32>
    %140 = vector.broadcast %139 : vector<8x1xf32> to vector<8x6xf32>
    %141 = arith.subf %137, %140 : vector<8x6xf32>
    %142 = math.exp %141 : vector<8x6xf32>
    %cst_101 = arith.constant dense<0.000000e+00> : vector<8xf32>
    %143 = vector.multi_reduction <add>, %142, %cst_101 [1] : vector<8x6xf32> to vector<8xf32>
    %144 = vector.shape_cast %143 : vector<8xf32> to vector<8x1xf32>
    %145 = vector.broadcast %144 : vector<8x1xf32> to vector<8x6xf32>
    %146 = arith.divf %142, %145 : vector<8x6xf32>
    %147 = arith.truncf %146 : vector<8x6xf32> to vector<8x6xbf16>
    %cst_102 = arith.constant dense<0.000000e+00> : vector<8x4xf32>
    %148 = tpu.matmul %147, %134, %cst_102 {dimension_numbers = #tpu.dot_dimension_numbers<[1], [0], [0], [1], [0, 0, 1, 1], [], []>} : vector<8x6xbf16>, vector<6x4xbf16>, vector<8x4xf32> -> vector<8x4xf32>
    %c0_103 = arith.constant 0 : index
    %c24_104 = arith.constant 24 : index
    %149 = vector.load %arg13[%c0_103, %c24_104] : memref<8x32xf32, #tpu.memory_space<vmem>>, vector<8x4xf32>
    tpu.vector_store %arg13[%c0_103, %c24_104], %148 {strides = array<i32>} : memref<8x32xf32, #tpu.memory_space<vmem>>, vector<8x4xf32>,
    %c0_105 = arith.constant 0 : index
    %c28 = arith.constant 28 : index
    %150 = vector.load %arg10[%c0_105, %c28] : memref<8x32xbf16, #tpu.memory_space<vmem>>, vector<8x4xbf16>
    %c0_106 = arith.constant 0 : index
    %c28_107 = arith.constant 28 : index
    %151 = vector.load %arg11[%c0_106, %c28_107] : memref<6x32xbf16, #tpu.memory_space<vmem>>, vector<6x4xbf16>
    %c0_108 = arith.constant 0 : index
    %c28_109 = arith.constant 28 : index
    %152 = vector.load %arg12[%c0_108, %c28_109] : memref<6x32xbf16, #tpu.memory_space<vmem>>, vector<6x4xbf16>
    %cst_110 = arith.constant dense<0.000000e+00> : vector<8x6xf32>
    %153 = tpu.matmul %150, %151, %cst_110 {dimension_numbers = #tpu.dot_dimension_numbers<[1], [1], [0], [0], [0, 0, 1, 0], [], []>} : vector<8x4xbf16>, vector<6x4xbf16>, vector<8x6xf32> -> vector<8x6xf32>
    %cst_111 = arith.constant 5.000000e-01 : f32
    %154 = vector.broadcast %cst_111 : f32 to vector<8x6xf32>
    %155 = arith.mulf %153, %154 : vector<8x6xf32>
    %cst_112 = arith.constant dense<0xFF800000> : vector<8xf32>
    %156 = vector.multi_reduction <maximumf>, %155, %cst_112 [1] : vector<8x6xf32> to vector<8xf32>
    %157 = vector.shape_cast %156 : vector<8xf32> to vector<8x1xf32>
    %158 = vector.broadcast %157 : vector<8x1xf32> to vector<8x6xf32>
    %159 = arith.subf %155, %158 : vector<8x6xf32>
    %160 = math.exp %159 : vector<8x6xf32>
    %cst_113 = arith.constant dense<0.000000e+00> : vector<8xf32>
    %161 = vector.multi_reduction <add>, %160, %cst_113 [1] : vector<8x6xf32> to vector<8xf32>
    %162 = vector.shape_cast %161 : vector<8xf32> to vector<8x1xf32>
    %163 = vector.broadcast %162 : vector<8x1xf32> to vector<8x6xf32>
    %164 = arith.divf %160, %163 : vector<8x6xf32>
    %165 = arith.truncf %164 : vector<8x6xf32> to vector<8x6xbf16>
    %cst_114 = arith.constant dense<0.000000e+00> : vector<8x4xf32>
    %166 = tpu.matmul %165, %152, %cst_114 {dimension_numbers = #tpu.dot_dimension_numbers<[1], [0], [0], [1], [0, 0, 1, 1], [], []>} : vector<8x6xbf16>, vector<6x4xbf16>, vector<8x4xf32> -> vector<8x4xf32>
    %c0_115 = arith.constant 0 : index
    %c28_116 = arith.constant 28 : index
    %167 = vector.load %arg13[%c0_115, %c28_116] : memref<8x32xf32, #tpu.memory_space<vmem>>, vector<8x4xf32>
    tpu.vector_store %arg13[%c0_115, %c28_116], %166 {strides = array<i32>} : memref<8x32xf32, #tpu.memory_space<vmem>>, vector<8x4xf32>,
    %c0_117 = arith.constant 0 : index
    %c0_118 = arith.constant 0 : index
    %168 = vector.load %arg13[%c0_117, %c0_118] : memref<8x32xf32, #tpu.memory_space<vmem>>, vector<8x32xf32>
    %169 = arith.truncf %168 : vector<8x32xf32> to vector<8x32xbf16>
    %c0_119 = arith.constant 0 : index
    %c0_120 = arith.constant 0 : index
    %170 = vector.load %arg7[%c0_119, %c0_120] : memref<32x2xbf16, #tpu.memory_space<vmem>>, vector<32x2xbf16>
    %cst_121 = arith.constant dense<0.000000e+00> : vector<8x2xf32>
    %171 = tpu.matmul %169, %170, %cst_121 {dimension_numbers = #tpu.dot_dimension_numbers<[1], [0], [0], [1], [0, 0, 1, 1], [], []>} : vector<8x32xbf16>, vector<32x2xbf16>, vector<8x2xf32> -> vector<8x2xf32>
    %c0_122 = arith.constant 0 : index
    %c0_123 = arith.constant 0 : index
    %172 = vector.load %arg8[%c0_122, %c0_123] : memref<1x2xf32, #tpu.memory_space<vmem>>, vector<1x2xf32>
    %173 = vector.broadcast %172 : vector<1x2xf32> to vector<8x2xf32>
    %174 = arith.addf %171, %173 : vector<8x2xf32>
    %c0_124 = arith.constant 0 : index
    %c0_125 = arith.constant 0 : index
    %c0_126 = arith.constant 0 : index
    %175 = vector.load %arg9[%c0_124, %c0_125, %c0_126] : memref<1x8x2xf32, #tpu.memory_space<vmem>>, vector<1x8x2xf32>
    %176 = vector.shape_cast %175 : vector<1x8x2xf32> to vector<8x2xf32>
    %177 = vector.shape_cast %174 : vector<8x2xf32> to vector<1x8x2xf32>
    tpu.vector_store %arg9[%c0_124, %c0_125, %c0_126], %177 {strides = array<i32>} : memref<1x8x2xf32, #tpu.memory_space<vmem>>, vector<1x8x2xf32>,
    return
  }
  func.func @transform_0(%arg0: i32) -> (i32, i32, i32) {
    %c0_i32 = arith.constant 0 : i32
    %c0_i32_0 = arith.constant 0 : i32
    %c0_i32_1 = arith.constant 0 : i32
    return %arg0, %c0_i32, %c0_i32_0 : i32, i32, i32
  }
  func.func @transform_1(%arg0: i32) -> (i32, i32, i32) {
    %c0_i32 = arith.constant 0 : i32
    %c0_i32_0 = arith.constant 0 : i32
    %c0_i32_1 = arith.constant 0 : i32
    return %arg0, %c0_i32, %c0_i32_0 : i32, i32, i32
  }
  func.func @transform_2(%arg0: i32) -> (i32, i32) {
    %c0_i32 = arith.constant 0 : i32
    %c0_i32_0 = arith.constant 0 : i32
    %c0_i32_1 = arith.constant 0 : i32
    return %c0_i32, %c0_i32_0 : i32, i32
  }
  func.func @transform_3(%arg0: i32) -> (i32, i32) {
    %c0_i32 = arith.constant 0 : i32
    %c0_i32_0 = arith.constant 0 : i32
    %c0_i32_1 = arith.constant 0 : i32
    return %c0_i32, %c0_i32_0 : i32, i32
  }
  func.func @transform_4(%arg0: i32) -> (i32, i32) {
    %c0_i32 = arith.constant 0 : i32
    %c0_i32_0 = arith.constant 0 : i32
    %c0_i32_1 = arith.constant 0 : i32
    return %c0_i32, %c0_i32_0 : i32, i32
  }
  func.func @transform_5(%arg0: i32) -> (i32, i32) {
    %c0_i32 = arith.constant 0 : i32
    %c0_i32_0 = arith.constant 0 : i32
    %c0_i32_1 = arith.constant 0 : i32
    return %c0_i32, %c0_i32_0 : i32, i32
  }
  func.func @transform_6(%arg0: i32) -> (i32, i32) {
    %c0_i32 = arith.constant 0 : i32
    %c0_i32_0 = arith.constant 0 : i32
    %c0_i32_1 = arith.constant 0 : i32
    return %c0_i32, %c0_i32_0 : i32, i32
  }
  func.func @transform_7(%arg0: i32) -> (i32, i32) {
    %c0_i32 = arith.constant 0 : i32
    %c0_i32_0 = arith.constant 0 : i32
    %c0_i32_1 = arith.constant 0 : i32
    return %c0_i32, %c0_i32_0 : i32, i32
  }
  func.func @transform_8(%arg0: i32) -> (i32, i32, i32) {
    %c0_i32 = arith.constant 0 : i32
    %c0_i32_0 = arith.constant 0 : i32
    %c0_i32_1 = arith.constant 0 : i32
    return %arg0, %c0_i32, %c0_i32_0 : i32, i32, i32
  }
}

module attributes {stable_mosaic.version = 11 : i64} {
  func.func @_moe_bank2_kernel(%arg0: i32, %arg1: i32, %arg2: memref<1x8x32xf32, #tpu.memory_space<vmem>>, %arg3: memref<1x8x32xf32, #tpu.memory_space<vmem>>, %arg4: memref<1x1x32xf32, #tpu.memory_space<vmem>>, %arg5: memref<1x1x8x1xf32, #tpu.memory_space<vmem>>, %arg6: memref<1x32x24xbf16, #tpu.memory_space<vmem>>, %arg7: memref<1x32x24xbf16, #tpu.memory_space<vmem>>, %arg8: memref<1x24x32xbf16, #tpu.memory_space<vmem>>, %arg9: memref<1x8x32xf32, #tpu.memory_space<vmem>>, %arg10: memref<8x32xbf16, #tpu.memory_space<vmem>>) attributes {dimension_semantics = [#tpu.dimension_semantics<parallel>, #tpu.dimension_semantics<arbitrary>], iteration_bounds = array<i64: 2, 2>, scalar_prefetch = 0 : i64, scratch_operands = 1 : i64, tpu.core_type = #tpu.core_type<tc>, window_params = [{transform_indices = @transform_0, window_bounds = array<i64: 1, 8, 32>}, {transform_indices = @transform_1, window_bounds = array<i64: 1, 8, 32>}, {transform_indices = @transform_2, window_bounds = array<i64: 1, 1, 32>}, {transform_indices = @transform_3, window_bounds = array<i64: 1, 1, 8, 1>}, {transform_indices = @transform_4, window_bounds = array<i64: 1, 32, 24>}, {transform_indices = @transform_5, window_bounds = array<i64: 1, 32, 24>}, {transform_indices = @transform_6, window_bounds = array<i64: 1, 24, 32>}, {transform_indices = @transform_7, window_bounds = array<i64: 1, 8, 32>}]} {
    %c0_i32 = arith.constant 0 : i32
    %0 = arith.cmpi eq, %arg1, %c0_i32 : i32
    %1 = arith.extui %0 : i1 to i32
    %c0_i32_0 = arith.constant 0 : i32
    %2 = arith.cmpi ne, %1, %c0_i32_0 : i32
    scf.if %2 {
      %c0_23 = arith.constant 0 : index
      %c0_24 = arith.constant 0 : index
      %c0_25 = arith.constant 0 : index
      %34 = vector.load %arg2[%c0_23, %c0_24, %c0_25] : memref<1x8x32xf32, #tpu.memory_space<vmem>>, vector<1x8x32xf32>
      %35 = vector.shape_cast %34 : vector<1x8x32xf32> to vector<8x32xf32>
      %36 = arith.truncf %35 : vector<8x32xf32> to vector<8x32xbf16>
      %c0_26 = arith.constant 0 : index
      %c0_27 = arith.constant 0 : index
      %37 = vector.load %arg10[%c0_26, %c0_27] : memref<8x32xbf16, #tpu.memory_space<vmem>>, vector<8x32xbf16>
      tpu.vector_store %arg10[%c0_26, %c0_27], %36 {strides = array<i32>} : memref<8x32xbf16, #tpu.memory_space<vmem>>, vector<8x32xbf16>,
    } else {
    }
    %c0 = arith.constant 0 : index
    %c0_1 = arith.constant 0 : index
    %3 = vector.load %arg10[%c0, %c0_1] : memref<8x32xbf16, #tpu.memory_space<vmem>>, vector<8x32xbf16>
    %c0_2 = arith.constant 0 : index
    %c0_3 = arith.constant 0 : index
    %c0_4 = arith.constant 0 : index
    %4 = vector.load %arg6[%c0_2, %c0_3, %c0_4] : memref<1x32x24xbf16, #tpu.memory_space<vmem>>, vector<1x32x24xbf16>
    %5 = vector.shape_cast %4 : vector<1x32x24xbf16> to vector<32x24xbf16>
    %cst = arith.constant dense<0.000000e+00> : vector<8x24xf32>
    %6 = tpu.matmul %3, %5, %cst {dimension_numbers = #tpu.dot_dimension_numbers<[1], [0], [0], [1], [0, 0, 1, 1], [], []>} : vector<8x32xbf16>, vector<32x24xbf16>, vector<8x24xf32> -> vector<8x24xf32>
    %c0_5 = arith.constant 0 : index
    %c0_6 = arith.constant 0 : index
    %c0_7 = arith.constant 0 : index
    %7 = vector.load %arg7[%c0_5, %c0_6, %c0_7] : memref<1x32x24xbf16, #tpu.memory_space<vmem>>, vector<1x32x24xbf16>
    %8 = vector.shape_cast %7 : vector<1x32x24xbf16> to vector<32x24xbf16>
    %cst_8 = arith.constant dense<0.000000e+00> : vector<8x24xf32>
    %9 = tpu.matmul %3, %8, %cst_8 {dimension_numbers = #tpu.dot_dimension_numbers<[1], [0], [0], [1], [0, 0, 1, 1], [], []>} : vector<8x32xbf16>, vector<32x24xbf16>, vector<8x24xf32> -> vector<8x24xf32>
    %10 = arith.negf %6 : vector<8x24xf32>
    %11 = math.exp %10 : vector<8x24xf32>
    %cst_9 = arith.constant 1.000000e+00 : f32
    %12 = vector.broadcast %cst_9 : f32 to vector<8x24xf32>
    %13 = arith.addf %12, %11 : vector<8x24xf32>
    %14 = arith.divf %12, %13 : vector<8x24xf32>
    %15 = arith.mulf %6, %14 : vector<8x24xf32>
    %16 = arith.mulf %15, %9 : vector<8x24xf32>
    %17 = arith.truncf %16 : vector<8x24xf32> to vector<8x24xbf16>
    %c0_10 = arith.constant 0 : index
    %c0_11 = arith.constant 0 : index
    %c0_12 = arith.constant 0 : index
    %18 = vector.load %arg8[%c0_10, %c0_11, %c0_12] : memref<1x24x32xbf16, #tpu.memory_space<vmem>>, vector<1x24x32xbf16>
    %19 = vector.shape_cast %18 : vector<1x24x32xbf16> to vector<24x32xbf16>
    %cst_13 = arith.constant dense<0.000000e+00> : vector<8x32xf32>
    %20 = tpu.matmul %17, %19, %cst_13 {dimension_numbers = #tpu.dot_dimension_numbers<[1], [0], [0], [1], [0, 0, 1, 1], [], []>} : vector<8x24xbf16>, vector<24x32xbf16>, vector<8x32xf32> -> vector<8x32xf32>
    %c0_14 = arith.constant 0 : index
    %c0_15 = arith.constant 0 : index
    %c0_16 = arith.constant 0 : index
    %c0_17 = arith.constant 0 : index
    %21 = vector.load %arg5[%c0_14, %c0_15, %c0_16, %c0_17] : memref<1x1x8x1xf32, #tpu.memory_space<vmem>>, vector<1x1x8x1xf32>
    %22 = vector.shape_cast %21 : vector<1x1x8x1xf32> to vector<8x1xf32>
    %23 = vector.broadcast %22 : vector<8x1xf32> to vector<8x32xf32>
    %24 = arith.mulf %20, %23 : vector<8x32xf32>
    %c0_i32_18 = arith.constant 0 : i32
    %25 = arith.cmpi eq, %arg1, %c0_i32_18 : i32
    %26 = arith.extui %25 : i1 to i32
    %c0_i32_19 = arith.constant 0 : i32
    %27 = arith.cmpi ne, %26, %c0_i32_19 : i32
    scf.if %27 {
      %c0_23 = arith.constant 0 : index
      %c0_24 = arith.constant 0 : index
      %c0_25 = arith.constant 0 : index
      %34 = vector.load %arg9[%c0_23, %c0_24, %c0_25] : memref<1x8x32xf32, #tpu.memory_space<vmem>>, vector<1x8x32xf32>
      %35 = vector.shape_cast %34 : vector<1x8x32xf32> to vector<8x32xf32>
      %36 = vector.shape_cast %24 : vector<8x32xf32> to vector<1x8x32xf32>
      tpu.vector_store %arg9[%c0_23, %c0_24, %c0_25], %36 {strides = array<i32>} : memref<1x8x32xf32, #tpu.memory_space<vmem>>, vector<1x8x32xf32>,
    } else {
    }
    %c0_i32_20 = arith.constant 0 : i32
    %28 = arith.cmpi sgt, %arg1, %c0_i32_20 : i32
    %29 = arith.extui %28 : i1 to i32
    %c0_i32_21 = arith.constant 0 : i32
    %30 = arith.cmpi ne, %29, %c0_i32_21 : i32
    scf.if %30 {
      %c0_23 = arith.constant 0 : index
      %c0_24 = arith.constant 0 : index
      %c0_25 = arith.constant 0 : index
      %34 = vector.load %arg9[%c0_23, %c0_24, %c0_25] : memref<1x8x32xf32, #tpu.memory_space<vmem>>, vector<1x8x32xf32>
      %35 = vector.shape_cast %34 : vector<1x8x32xf32> to vector<8x32xf32>
      %36 = arith.addf %35, %24 : vector<8x32xf32>
      %c0_26 = arith.constant 0 : index
      %c0_27 = arith.constant 0 : index
      %c0_28 = arith.constant 0 : index
      %37 = vector.load %arg9[%c0_26, %c0_27, %c0_28] : memref<1x8x32xf32, #tpu.memory_space<vmem>>, vector<1x8x32xf32>
      %38 = vector.shape_cast %37 : vector<1x8x32xf32> to vector<8x32xf32>
      %39 = vector.shape_cast %36 : vector<8x32xf32> to vector<1x8x32xf32>
      tpu.vector_store %arg9[%c0_26, %c0_27, %c0_28], %39 {strides = array<i32>} : memref<1x8x32xf32, #tpu.memory_space<vmem>>, vector<1x8x32xf32>,
    } else {
    }
    %c1_i32 = arith.constant 1 : i32
    %31 = arith.cmpi eq, %arg1, %c1_i32 : i32
    %32 = arith.extui %31 : i1 to i32
    %c0_i32_22 = arith.constant 0 : i32
    %33 = arith.cmpi ne, %32, %c0_i32_22 : i32
    scf.if %33 {
      %c0_23 = arith.constant 0 : index
      %c0_24 = arith.constant 0 : index
      %c0_25 = arith.constant 0 : index
      %34 = vector.load %arg3[%c0_23, %c0_24, %c0_25] : memref<1x8x32xf32, #tpu.memory_space<vmem>>, vector<1x8x32xf32>
      %35 = vector.shape_cast %34 : vector<1x8x32xf32> to vector<8x32xf32>
      %c0_26 = arith.constant 0 : index
      %c0_27 = arith.constant 0 : index
      %c0_28 = arith.constant 0 : index
      %36 = vector.load %arg4[%c0_26, %c0_27, %c0_28] : memref<1x1x32xf32, #tpu.memory_space<vmem>>, vector<1x1x32xf32>
      %37 = vector.shape_cast %36 : vector<1x1x32xf32> to vector<1x32xf32>
      %c0_29 = arith.constant 0 : index
      %c0_30 = arith.constant 0 : index
      %c0_31 = arith.constant 0 : index
      %38 = vector.load %arg2[%c0_29, %c0_30, %c0_31] : memref<1x8x32xf32, #tpu.memory_space<vmem>>, vector<1x8x32xf32>
      %39 = vector.shape_cast %38 : vector<1x8x32xf32> to vector<8x32xf32>
      %c0_32 = arith.constant 0 : index
      %c0_33 = arith.constant 0 : index
      %c0_34 = arith.constant 0 : index
      %40 = vector.load %arg9[%c0_32, %c0_33, %c0_34] : memref<1x8x32xf32, #tpu.memory_space<vmem>>, vector<1x8x32xf32>
      %41 = vector.shape_cast %40 : vector<1x8x32xf32> to vector<8x32xf32>
      %42 = arith.addf %39, %41 : vector<8x32xf32>
      %43 = vector.broadcast %37 : vector<1x32xf32> to vector<8x32xf32>
      %44 = arith.mulf %43, %42 : vector<8x32xf32>
      %45 = arith.addf %35, %44 : vector<8x32xf32>
      %c0_35 = arith.constant 0 : index
      %c0_36 = arith.constant 0 : index
      %c0_37 = arith.constant 0 : index
      %46 = vector.load %arg9[%c0_35, %c0_36, %c0_37] : memref<1x8x32xf32, #tpu.memory_space<vmem>>, vector<1x8x32xf32>
      %47 = vector.shape_cast %46 : vector<1x8x32xf32> to vector<8x32xf32>
      %48 = vector.shape_cast %45 : vector<8x32xf32> to vector<1x8x32xf32>
      tpu.vector_store %arg9[%c0_35, %c0_36, %c0_37], %48 {strides = array<i32>} : memref<1x8x32xf32, #tpu.memory_space<vmem>>, vector<1x8x32xf32>,
    } else {
    }
    return
  }
  func.func @transform_0(%arg0: i32, %arg1: i32) -> (i32, i32, i32) {
    %c0_i32 = arith.constant 0 : i32
    %c0_i32_0 = arith.constant 0 : i32
    %c0_i32_1 = arith.constant 0 : i32
    return %arg0, %c0_i32, %c0_i32_0 : i32, i32, i32
  }
  func.func @transform_1(%arg0: i32, %arg1: i32) -> (i32, i32, i32) {
    %c0_i32 = arith.constant 0 : i32
    %c0_i32_0 = arith.constant 0 : i32
    %c0_i32_1 = arith.constant 0 : i32
    return %arg0, %c0_i32, %c0_i32_0 : i32, i32, i32
  }
  func.func @transform_2(%arg0: i32, %arg1: i32) -> (i32, i32, i32) {
    %c0_i32 = arith.constant 0 : i32
    %c0_i32_0 = arith.constant 0 : i32
    %c0_i32_1 = arith.constant 0 : i32
    return %arg0, %c0_i32, %c0_i32_0 : i32, i32, i32
  }
  func.func @transform_3(%arg0: i32, %arg1: i32) -> (i32, i32, i32, i32) {
    %c0_i32 = arith.constant 0 : i32
    %c0_i32_0 = arith.constant 0 : i32
    %c0_i32_1 = arith.constant 0 : i32
    return %arg0, %arg1, %c0_i32, %c0_i32_0 : i32, i32, i32, i32
  }
  func.func @transform_4(%arg0: i32, %arg1: i32) -> (i32, i32, i32) {
    %c0_i32 = arith.constant 0 : i32
    %c0_i32_0 = arith.constant 0 : i32
    %c0_i32_1 = arith.constant 0 : i32
    return %arg1, %c0_i32, %c0_i32_0 : i32, i32, i32
  }
  func.func @transform_5(%arg0: i32, %arg1: i32) -> (i32, i32, i32) {
    %c0_i32 = arith.constant 0 : i32
    %c0_i32_0 = arith.constant 0 : i32
    %c0_i32_1 = arith.constant 0 : i32
    return %arg1, %c0_i32, %c0_i32_0 : i32, i32, i32
  }
  func.func @transform_6(%arg0: i32, %arg1: i32) -> (i32, i32, i32) {
    %c0_i32 = arith.constant 0 : i32
    %c0_i32_0 = arith.constant 0 : i32
    %c0_i32_1 = arith.constant 0 : i32
    return %arg1, %c0_i32, %c0_i32_0 : i32, i32, i32
  }
  func.func @transform_7(%arg0: i32, %arg1: i32) -> (i32, i32, i32) {
    %c0_i32 = arith.constant 0 : i32
    %c0_i32_0 = arith.constant 0 : i32
    %c0_i32_1 = arith.constant 0 : i32
    return %arg0, %c0_i32, %c0_i32_0 : i32, i32, i32
  }
}

</mosaic_0001>

<llo_original>
// kernel: tile.15
$region0: #{tile.15}
  #allocation0 [shape = 's32[1]{0}', space=sflag, size = 0x4, scoped, tag = 'scoped memory for tile.15']
  %s0 = inlined_call_operand.vmem [shape: f32[2], index: 0, kind: input, shape index: {}]
  %s1 = inlined_call_operand.vmem [shape: f32[4,2], index: 1, kind: output, shape index: {}]
  // Predicated region
  $region2: #{tile.15} parent=0 // pred_check
    _
  $region3: #{tile.15} parent=0 // pred_check_branch
    %3 = sbr.rel (0) target = $region5
  $region4: #{tile.15} parent=0 // pred_region
    _
  $region5: #{tile.15} parent=0 // pred_fallthru
    _
  %v4 = vld [vmem:[%s0] ss:$0 sm:$0xff]
  %5 = vst [vmem:[%s1] sm:$0xf] %v4

// kernel: tile.25
$region0: #{tile.25}
  %s0 = inlined_call_operand.vmem [shape: f32[8,4,8], index: 0, kind: input, shape index: {}]
  %s1 = inlined_call_operand.vmem [shape: f32[8,32], index: 1, kind: output, shape index: {}]
  $region1: #{tile.25} parent=0
    #allocation0 [shape = 'u8[32768]{0}', space=vmem, size = 0x8000, scoped, tag = 'scoped mem for input reshape']
    %s3 = sshllo.u32 0, 4
    %s4 = smul.addr 4, 7
    %s5 = scalar_lea.vmem %s0, %s4
    %v6 = vld [vmem:[%s5] sm:%s3]
    %s7 = scalar_lea.vmem [#allocation0], 56
    %8 = vst [vmem:[%s7] sm:%s3] %v6
    %s9 = smul.addr 4, 6
    %s10 = scalar_lea.vmem %s0, %s9
    %v11 = vld [vmem:[%s10] sm:%s3]
    %s12 = scalar_lea.vmem [#allocation0], 48
    %13 = vst [vmem:[%s12] sm:%s3] %v11
    %s14 = smul.addr 4, 5
    %s15 = scalar_lea.vmem %s0, %s14
    %v16 = vld [vmem:[%s15] sm:%s3]
    %s17 = scalar_lea.vmem [#allocation0], 40
    %18 = vst [vmem:[%s17] sm:%s3] %v16
    %s19 = smul.addr 4, 4
    %s20 = scalar_lea.vmem %s0, %s19
    %v21 = vld [vmem:[%s20] sm:%s3]
    %s22 = scalar_lea.vmem [#allocation0], 32
    %23 = vst [vmem:[%s22] sm:%s3] %v21
    %s24 = smul.addr 4, 3
    %s25 = scalar_lea.vmem %s0, %s24
    %v26 = vld [vmem:[%s25] sm:%s3]
    %s27 = scalar_lea.vmem [#allocation0], 24
    %28 = vst [vmem:[%s27] sm:%s3] %v26
    %s29 = smul.addr 4, 2
    %s30 = scalar_lea.vmem %s0, %s29
    %v31 = vld [vmem:[%s30] sm:%s3]
    %s32 = scalar_lea.vmem [#allocation0], 16
    %33 = vst [vmem:[%s32] sm:%s3] %v31
    %s34 = scalar_lea.vmem %s0, 4
    %v35 = vld [vmem:[%s34] sm:%s3]
    %s36 = scalar_lea.vmem [#allocation0], 8
    %37 = vst [vmem:[%s36] sm:%s3] %v35
    %v38 = vld [vmem:[%s0] sm:%s3]
    %39 = vst [vmem:[#allocation0] sm:%s3] %v38
    %v40 = vld [vmem:[#allocation0] ss:$8 sm:$0xf]
    %v41 = vld [vmem:[#allocation0] ss:$8 sm:$0xf0]
    %vm42 = vcmask 1047556
    %v43 = vsel %vm42, %v41, %v40
    %vm44 = vcmask 64512
    %45 = vst.msk [vmem:[%s1] sm:$0xff] %vm44, %v43
    %s46 = scalar_lea.vmem [#allocation0], 3
    %v47 = vld [vmem:[%s46] ss:$8 sm:$0xf]
    %s48 = scalar_lea.vmem [#allocation0], 3
    %v49 = vld [vmem:[%s48] ss:$8 sm:$0xf0]
    %vm50 = vcmask 1047556
    %v51 = vsel %vm50, %v49, %v47
    %52 = vrot.lane.b32.xlu0 %v51, 24
    %v53 = vpop.permute.xlu0 %52
    %vm54 = vcmask 261312
    %55 = vst.msk [vmem:[%s1] sm:$0xff] %vm54, %v53
    %s56 = scalar_lea.vmem [#allocation0], 2
    %v57 = vld [vmem:[%s56] ss:$8 sm:$0xf]
    %s58 = scalar_lea.vmem [#allocation0], 2
    %v59 = vld [vmem:[%s58] ss:$8 sm:$0xf0]
    %vm60 = vcmask 1047556
    %v61 = vsel %vm60, %v59, %v57
    %62 = vrot.lane.b32.xlu0 %v61, 16
    %v63 = vpop.permute.xlu0 %62
    %vm64 = vcmask 195712
    %65 = vst.msk [vmem:[%s1] sm:$0xff] %vm64, %v63
    %s66 = scalar_lea.vmem [#allocation0], 1
    %v67 = vld [vmem:[%s66] ss:$8 sm:$0xf]
    %s68 = scalar_lea.vmem [#allocation0], 1
    %v69 = vld [vmem:[%s68] ss:$8 sm:$0xf0]
    %vm70 = vcmask 1047556
    %v71 = vsel %vm70, %v69, %v67
    %72 = vrot.lane.b32.xlu0 %v71, 8
    %v73 = vpop.permute.xlu0 %72
    %vm74 = vcmask 130112
    %75 = vst.msk [vmem:[%s1] sm:$0xff] %vm74, %v73

// kernel: transformer_block_forward.7
$region0: #{transformer_block_forward.7}
  #allocation0 [shape = 'u32[]', space=smem, size = 0x4, offset = 0x4, fixed_abs, tag = 'smem constant byte address 0x4 - core index']
  #allocation1 [shape = 'u32[144,128]{1,0:T(1,128)}', space=vmem, size = 0x12000, scoped, tag = 'internal scratch']
  %s0 = inlined_call_operand.vmem [shape: f32[2,32], index: 0, kind: input, shape index: {}]
  %s1 = inlined_call_operand.vmem [shape: bf16[32,192], index: 1, kind: input, shape index: {}]
  %s2 = inlined_call_operand.vmem [shape: f32[1,192], index: 2, kind: input, shape index: {}]
  %s3 = inlined_call_operand.vmem [shape: f32[2,32], index: 3, kind: input, shape index: {}]
  %s4 = inlined_call_operand.vmem [shape: f32[32,2], index: 4, kind: input, shape index: {}]
  %s5 = inlined_call_operand.vmem [shape: f32[1,2], index: 5, kind: input, shape index: {}]
  %s6 = inlined_call_operand.vmem [shape: f32[2,192], index: 6, kind: output, shape index: {0}]
  %s7 = inlined_call_operand.vmem [shape: f32[2,2], index: 7, kind: output, shape index: {1}]
  %8 = xla_tuple %s6, %s7
  %s9 = sld [smem:[#allocation0]]
  $region42: #{transformer_block_forward.7} parent=0
    _
  %s11 = ssub.s32 1, %s9
  %s12 = scalar_select 0, %s11, %s9
  // Predicated region
  $region2: #{transformer_block_forward.7} parent=0 // pred_check
    _
  $region3: #{transformer_block_forward.7} parent=0 // pred_check_branch
    %14 = sbr.rel (0) target = $region5
  $region4: #{transformer_block_forward.7} parent=0 // pred_region
    _
  $region5: #{transformer_block_forward.7} parent=0 // pred_fallthru
    _
  // Predicated region
  $region6: #{transformer_block_forward.7} parent=0 // pred_check
    _
  $region7: #{transformer_block_forward.7} parent=0 // pred_check_branch
    %16 = sbr.rel (0) target = $region9
  $region8: #{transformer_block_forward.7} parent=0 // pred_region
    _
  $region9: #{transformer_block_forward.7} parent=0 // pred_fallthru
    _
  // Predicated region
  $region10: #{transformer_block_forward.7} parent=0 // pred_check
    _
  $region11: #{transformer_block_forward.7} parent=0 // pred_check_branch
    %18 = sbr.rel (0) target = $region13
  $region12: #{transformer_block_forward.7} parent=0 // pred_region
    _
  $region13: #{transformer_block_forward.7} parent=0 // pred_fallthru
    _
  // Predicated region
  $region14: #{transformer_block_forward.7} parent=0 // pred_check
    _
  $region15: #{transformer_block_forward.7} parent=0 // pred_check_branch
    %20 = sbr.rel (0) target = $region17
  $region16: #{transformer_block_forward.7} parent=0 // pred_region
    _
  $region17: #{transformer_block_forward.7} parent=0 // pred_fallthru
    _
  // Predicated region
  $region18: #{transformer_block_forward.7} parent=0 // pred_check
    _
  $region19: #{transformer_block_forward.7} parent=0 // pred_check_branch
    %22 = sbr.rel (0) target = $region21
  $region20: #{transformer_block_forward.7} parent=0 // pred_region
    _
  $region21: #{transformer_block_forward.7} parent=0 // pred_fallthru
    _
  // Predicated region
  $region22: #{transformer_block_forward.7} parent=0 // pred_check
    _
  $region23: #{transformer_block_forward.7} parent=0 // pred_check_branch
    %24 = sbr.rel (0) target = $region25
  $region24: #{transformer_block_forward.7} parent=0 // pred_region
    _
  $region25: #{transformer_block_forward.7} parent=0 // pred_fallthru
    _
  %v26 = vld [vmem:[%s0] sm:$0x3]
  %v27 = vxor.u32 %v26, 2147483648
  %v28 = vmul.f32 %v27, 1.442695
  %v29 = vpow.pop %v28
  %v30 = vadd.f32 %v29, 1.0
  %v31 = vrcp.pop %v30
  %v32 = vmul.f32 1.0, %v31
  %v33 = vmul.f32 %v26, %v32
  %v34 = vpack.c.bf16 %v33, %v33
  %v35 = vld [vmem:[%s1] sm:$0xff]
  %v36 = vld [vmem:[%s1 + $0x8] sm:$0xff]
  %v37 = vld [vmem:[%s1 + $0x10] sm:$0xff]
  %v38 = vld [vmem:[%s1 + $0x18] sm:$0xff]
  %v39 = vld [vmem:[%s2] sm:$0x3]
  %v41 = vlaneseq
  %v42 = vshrl.u32 %v41, 7
  %v43 = vsub.s32 0, %v42
  %v44 = vrot.slane %v39, %v43
  %v45 = vlaneseq
  %v46 = vshrl.u32 %v45, 7
  %v47 = vsub.s32 1, %v46
  %v48 = vrot.slane %v39, %v47
  %v55 = vunpack.c.l.b16 %v35
  %v56 = vunpack.c.h.b16 %v35
  %v57 = vunpack.c.l.b16 %v36
  %v58 = vunpack.c.h.b16 %v36
  %v59 = vunpack.c.l.b16 %v37
  %v60 = vunpack.c.h.b16 %v37
  %v61 = vunpack.c.l.b16 %v38
  %v62 = vunpack.c.h.b16 %v38
  %v63 = vpack.c.b16 %v57, %v55
  %v64 = vpack.c.b16 %v58, %v56
  %v65 = vpack.c.b16 %v61, %v59
  %v66 = vpack.c.b16 %v62, %v60
  %vm71 = vcmask 261120
  %v73 = vsel %vm71, %v34, 0
  %75 = vmatprep.subr.bf16.mxu0 %v64
  %76 = vmatpush1.bf16.msra.mxu0 %v63
  %77 = vmatprep.subr.bf16.mxu0 %v66
  %78 = vmatpush1.bf16.msra.mxu0 %v65
  %79 = vmatprep.subr.bf16.mxu0 0
  %80 = vmatpush1.bf16.msra.mxu0 0
  %81 = vmatprep.subr.bf16.mxu0 0
  %82 = vmatpush1.bf16.msra.mxu0 0
  %83 = vmatprep.subr.bf16.mxu0 0
  %84 = vmatpush1.bf16.msra.mxu0 0
  %85 = vmatprep.subr.bf16.mxu0 0
  %86 = vmatpush1.bf16.msra.mxu0 0
  %87 = vmatprep.subr.bf16.mxu0 0
  %88 = vmatpush1.bf16.msra.mxu0 0
  %89 = vmatprep.subr.bf16.mxu0 0
  %90 = vmatpush1.bf16.msra.mxu0 0
  %91 = vmatprep.subr.bf16.mxu0 0
  %92 = vmatpush1.bf16.msra.mxu0 0
  %93 = vmatprep.subr.bf16.mxu0 0
  %94 = vmatpush1.bf16.msra.mxu0 0
  %95 = vmatprep.subr.bf16.mxu0 0
  %96 = vmatpush1.bf16.msra.mxu0 0
  %97 = vmatprep.subr.bf16.mxu0 0
  %98 = vmatpush1.bf16.msra.mxu0 0
  %99 = vmatprep.subr.bf16.mxu0 0
  %100 = vmatpush1.bf16.msra.mxu0 0
  %101 = vmatprep.subr.bf16.mxu0 0
  %102 = vmatpush1.bf16.msra.mxu0 0
  %103 = vmatprep.subr.bf16.mxu0 0
  %104 = vmatpush1.bf16.msra.mxu0 0
  %105 = vmatprep.subr.bf16.mxu0 0
  %106 = vmatpush1.bf16.msra.mxu0 0
  %107 = vmatprep.mubr.bf16.mxu0 0
  %108 = vmatmul.mubr.bf16.gmra.mrb[0].mxu0 %v73
  %v109 = vpop.f32.mrb[0].mxu0
  %v110 = vadd.f32 %v44, %v109
  %v111 = vpop.f32.mrb[0].mxu0
  %v112 = vadd.f32 %v48, %v111
  %v113 = vpop.f32.mrb[0].mxu0
  %v114 = vpop.f32.mrb[0].mxu0
  %115 = vdwg.mxu0
  %v118 = vcombine.low %v110, %v112
  %v120 = vunpack.c.l.s4 1983009808
  %v121 = vunpack.c.0.s8 %v120
  %v122 = vlaneseq
  %v123 = vshrl.u32 %v122, 7
  %v124 = vsub.s32 %v121, %v123
  %v125 = vrot.slane %v118, %v124
  %vm127 = vcmask 1041408
  %vm128 = vcmask 519170
  %vm129 = vmor %vm128, %vm127
  %130 = vst.msk [vmem:[%s6] sm:$0xf] %vm129, %v125
  %v131 = vld [vmem:[%s3] sm:$0x3]
  %v132 = vld [vmem:[%s4] sm:$0xff]
  %v133 = vld [vmem:[%s4 + $0x8] sm:$0xff]
  %v134 = vld [vmem:[%s4 + $0x10] sm:$0xff]
  %v135 = vld [vmem:[%s4 + $0x18] sm:$0xff]
  %v136 = vld [vmem:[%s5] sm:$0x1]
  %v138 = vlaneseq
  %v139 = vshrl.u32 %v138, 7
  %v140 = vsub.s32 0, %v139
  %v141 = vrot.slane %v136, %v140
  %v144 = vsel %vm71, %v131, 0
  %146 = vmatprep.subr.mxu0 0.0
  %147 = vmatpush1.msra.mxu0 %v132
  %148 = vmatprep.subr.mxu0 0.0
  %149 = vmatpush1.msra.mxu0 %v133
  %150 = vmatprep.subr.mxu0 0.0
  %151 = vmatpush1.msra.mxu0 %v134
  %152 = vmatprep.subr.mxu0 0.0
  %153 = vmatpush1.msra.mxu0 %v135
  %154 = vmatprep.subr.mxu0 0.0
  %155 = vmatpush1.msra.mxu0 0.0
  %156 = vmatprep.subr.mxu0 0.0
  %157 = vmatpush1.msra.mxu0 0.0
  %158 = vmatprep.subr.mxu0 0.0
  %159 = vmatpush1.msra.mxu0 0.0
  %160 = vmatprep.subr.mxu0 0.0
  %161 = vmatpush1.msra.mxu0 0.0
  %162 = vmatprep.subr.mxu0 0.0
  %163 = vmatpush1.msra.mxu0 0.0
  %164 = vmatprep.subr.mxu0 0.0
  %165 = vmatpush1.msra.mxu0 0.0
  %166 = vmatprep.subr.mxu0 0.0
  %167 = vmatpush1.msra.mxu0 0.0
  %168 = vmatprep.subr.mxu0 0.0
  %169 = vmatpush1.msra.mxu0 0.0
  %170 = vmatprep.subr.mxu0 0.0
  %171 = vmatpush1.msra.mxu0 0.0
  %172 = vmatprep.subr.mxu0 0.0
  %173 = vmatpush1.msra.mxu0 0.0
  %174 = vmatprep.subr.mxu0 0.0
  %175 = vmatpush1.msra.mxu0 0.0
  %176 = vmatprep.subr.mxu0 0.0
  %177 = vmatpush1.msra.mxu0 0.0
  %178 = vmatprep.subr.mxu0 0.0
  %179 = vmatpush1.msra.mxu0 0.0
  %180 = vmatprep.subr.mxu0 0.0
  %181 = vmatpush1.msra.mxu0 0.0
  %182 = vmatprep.subr.mxu0 0.0
  %183 = vmatpush1.msra.mxu0 0.0
  %184 = vmatprep.subr.mxu0 0.0
  %185 = vmatpush1.msra.mxu0 0.0
  %186 = vmatprep.subr.mxu0 0.0
  %187 = vmatpush1.msra.mxu0 0.0
  %188 = vmatprep.subr.mxu0 0.0
  %189 = vmatpush1.msra.mxu0 0.0
  %190 = vmatprep.subr.mxu0 0.0
  %191 = vmatpush1.msra.mxu0 0.0
  %192 = vmatprep.subr.mxu0 0.0
  %193 = vmatpush1.msra.mxu0 0.0
  %194 = vmatprep.subr.mxu0 0.0
  %195 = vmatpush1.msra.mxu0 0.0
  %196 = vmatprep.subr.mxu0 0.0
  %197 = vmatpush1.msra.mxu0 0.0
  %198 = vmatprep.subr.mxu0 0.0
  %199 = vmatpush1.msra.mxu0 0.0
  %200 = vmatprep.subr.mxu0 0.0
  %201 = vmatpush1.msra.mxu0 0.0
  %202 = vmatprep.subr.mxu0 0.0
  %203 = vmatpush1.msra.mxu0 0.0
  %204 = vmatprep.subr.mxu0 0.0
  %205 = vmatpush1.msra.mxu0 0.0
  %206 = vmatprep.subr.mxu0 0.0
  %207 = vmatpush1.msra.mxu0 0.0
  %208 = vmatprep.subr.mxu0 0.0
  %209 = vmatpush1.msra.mxu0 0.0
  %210 = vmatprep.mubr.f32.mxu0 0.0
  %211 = vmatmul.mubr.f32.gmra.mrb[0].mxu0 %v144
  %v212 = vpop.f32.mrb[0].mxu0
  %v213 = vadd.f32 %v141, %v212
  %v214 = vpop.f32.mrb[0].mxu0
  %215 = vdwg.mxu0
  %vm216 = vcmask 9216
  %217 = vst.msk [vmem:[%s7] sm:$0x3] %vm216, %v213
  // Predicated region
  $region26: #{transformer_block_forward.7} parent=0 // pred_check
    _
  $region27: #{transformer_block_forward.7} parent=0 // pred_check_branch
    %219 = sbr.rel (0) target = $region29
  $region28: #{transformer_block_forward.7} parent=0 // pred_region
    _
  $region29: #{transformer_block_forward.7} parent=0 // pred_fallthru
    _
  // Predicated region
  $region30: #{transformer_block_forward.7} parent=0 // pred_check
    _
  $region31: #{transformer_block_forward.7} parent=0 // pred_check_branch
    %221 = sbr.rel (0) target = $region33
  $region32: #{transformer_block_forward.7} parent=0 // pred_region
    _
  $region33: #{transformer_block_forward.7} parent=0 // pred_fallthru
    _
  // Predicated region
  $region34: #{transformer_block_forward.7} parent=0 // pred_check
    _
  $region35: #{transformer_block_forward.7} parent=0 // pred_check_branch
    %223 = sbr.rel (0) target = $region37
  $region36: #{transformer_block_forward.7} parent=0 // pred_region
    _
  $region37: #{transformer_block_forward.7} parent=0 // pred_fallthru
    _
  // Predicated region
  $region38: #{transformer_block_forward.7} parent=0 // pred_check
    _
  $region39: #{transformer_block_forward.7} parent=0 // pred_check_branch
    %225 = sbr.rel (0) target = $region41
  $region40: #{transformer_block_forward.7} parent=0 // pred_region
    _
  $region41: #{transformer_block_forward.7} parent=0 // pred_fallthru
    _

// kernel: transformer_block_forward.9
$region0: #{transformer_block_forward.9}
  #allocation0 [shape = 'u32[]', space=smem, size = 0x4, offset = 0x4, fixed_abs, tag = 'smem constant byte address 0x4 - core index']
  #allocation1 [shape = 'u32[144,128]{1,0:T(1,128)}', space=vmem, size = 0x12000, scoped, tag = 'internal scratch']
  #allocation2 [shape = 'bf16[8,32]{1,0:T(8,128)(2,1)}', space=vmem, size = 0x800, scoped, tag = 'scratch operand']
  %s0 = inlined_call_operand.vmem [shape: f32[2,8,32], index: 0, kind: input, shape index: {}]
  %s1 = inlined_call_operand.vmem [shape: f32[1,32], index: 1, kind: input, shape index: {}]
  %s2 = inlined_call_operand.vmem [shape: f32[2,1,32], index: 2, kind: input, shape index: {}]
  %s3 = inlined_call_operand.vmem [shape: f32[2,1,32], index: 3, kind: input, shape index: {}]
  %s4 = inlined_call_operand.vmem [shape: f32[2,2], index: 4, kind: input, shape index: {}]
  %s5 = inlined_call_operand.vmem [shape: bf16[2,32,24], index: 5, kind: input, shape index: {}]
  %s6 = inlined_call_operand.vmem [shape: bf16[2,32,24], index: 6, kind: input, shape index: {}]
  %s7 = inlined_call_operand.vmem [shape: bf16[2,24,32], index: 7, kind: input, shape index: {}]
  %s8 = inlined_call_operand.vmem [shape: f32[2,8,32], index: 8, kind: output, shape index: {}]
  %s9 = sld [smem:[#allocation0]]
  $region81: #{transformer_block_forward.9} parent=0
    _
  %s11 = ssub.s32 1, %s9
  %s12 = scalar_select 0, %s11, %s9
  $region1: #{transformer_block_forward.9} parent=0
    #allocation3 [shape = 'u8[1024]{0}', space=smem, size = 0x400, scoped, tag = 'input window, operand 4, single buffered']
    #allocation4 [shape = 's32[2]{0}', space=sflag, size = 0x8, scoped, tag = 'scoped memory for transformer_block_forward.9']
    %13 = vsyncpa [#allocation4], 0
    loop: start=0, step=1, limit=6
    $region2: #{transformer_block_forward.9} parent=1 // loop_pre_header
      _
    $region3: #{transformer_block_forward.9} parent=1 // loop_header
      %s15 = sphi 0, %s19
      %p16 = scmp.ge.s32.totalorder %s15, 6
      %s22 = sphi 0, %s34
      %s23 = sphi 0, %s30
      %s24 = sphi 0, %s22
      %s25 = sphi 0, %s23
      %s26 = sphi 0, %s24
      %s27 = sphi 0, %s25
      %s37 = sphi 0, %s39
      %s40 = sphi 0, %s37
      %s41 = sphi 0, %s40
      %s57 = sphi 0, %s41
      %s61 = sphi 0, %s61
      %s63 = sphi 0, %s61
      %s64 = sphi 0, %s63
      %s78 = sphi 0, %s64
      %s84 = sphi 0, %s86
      %s87 = sphi 0, %s84
      %s88 = sphi 0, %s87
      %s104 = sphi 0, %s88
      %s110 = sphi 0, %s112
      %s113 = sphi 0, %s110
      %s114 = sphi 0, %s113
      %s130 = sphi 0, %s114
      %s134 = sphi 0, %s134
      %s136 = sphi 0, %s134
      %s137 = sphi 0, %s136
      %s151 = sphi 0, %s137
      %s157 = sphi 0, %s159
      %s160 = sphi 0, %s157
      %s161 = sphi 0, %s160
      %s177 = sphi 0, %s161
      %s183 = sphi 0, %s185
      %s186 = sphi 0, %s183
      %s187 = sphi 0, %s186
      %s203 = sphi 0, %s187
      %s209 = sphi 0, %s211
      %s212 = sphi 0, %s209
      %s213 = sphi 0, %s212
      %s229 = sphi 0, %s213
      %s235 = sphi 0, %s237
      %s238 = sphi 0, %s235
      %s239 = sphi 0, %s238
      %s255 = sphi 0, %s239
    $region4: #{transformer_block_forward.9} parent=1 // loop_header_branch
      %18 = sbr.rel (%p16) target = $region8
    $region5: #{transformer_block_forward.9} parent=1 // loop_body
      %s20 = ssub.s32 %s15, 1
      %s21 = ssub.s32 %s15, 2
      %s28 = sadd.s32 1, %s23
      %p29 = scmp.ge.s32.totalorder %s28, 2
      %s30 = scalar_select %p29, 0, %s28
      %s31 = sadd.s32 1, %s22
      %s32 = scalar_select %p29, %s31, %s22
      %p33 = scmp.ge.s32.totalorder %s32, 2
      %s34 = scalar_select %p33, 0, %s32
      %s35 = ssub.s32 %s22, %s34
      %p36 = scmp.eq.s32.totalorder %s35, 0
      %s38 = sadd.s32 %s37, 1
      %s39 = scalar_select %p36, %s37, %s38
      %p42 = pneg %p36
      %p43 = scmp.eq.s32.totalorder %s15, 3
      %p44 = por %p42, %p43
      %p45 = scmp.ne.s32.totalorder %s37, %s40
      %p46 = scmp.eq.s32.totalorder %s15, 0
      %p47 = por %p45, %p46
      %p48 = scmp.ne.s32.totalorder %s37, %s40
      %p49 = scmp.eq.s32.totalorder %s20, 3
      %p50 = por %p48, %p49
      %p51 = scmp.ne.s32.totalorder %s40, %s41
      %p52 = scmp.eq.s32.totalorder %s20, 0
      %p53 = por %p51, %p52
      %p54 = scmp.ne.s32.totalorder %s40, %s41
      %p55 = scmp.eq.s32.totalorder %s21, 3
      %p56 = por %p54, %p55
      %p58 = scmp.ne.s32.totalorder %s41, %s57
      %p59 = scmp.eq.s32.totalorder %s21, 0
      %p60 = por %p58, %p59
      %s62 = sadd.s32 %s61, 1
      %p65 = scmp.eq.s32.totalorder %s15, 3
      %p66 = scmp.ne.s32.totalorder %s61, %s63
      %p67 = scmp.eq.s32.totalorder %s15, 0
      %p68 = por %p66, %p67
      %p69 = scmp.ne.s32.totalorder %s61, %s63
      %p70 = scmp.eq.s32.totalorder %s20, 3
      %p71 = por %p69, %p70
      %p72 = scmp.ne.s32.totalorder %s63, %s64
      %p73 = scmp.eq.s32.totalorder %s20, 0
      %p74 = por %p72, %p73
      %p75 = scmp.ne.s32.totalorder %s63, %s64
      %p76 = scmp.eq.s32.totalorder %s21, 3
      %p77 = por %p75, %p76
      %p79 = scmp.ne.s32.totalorder %s64, %s78
      %p80 = scmp.eq.s32.totalorder %s21, 0
      %p81 = por %p79, %p80
      %s82 = ssub.s32 %s22, %s34
      %p83 = scmp.eq.s32.totalorder %s82, 0
      %s85 = sadd.s32 %s84, 1
      %s86 = scalar_select %p83, %s84, %s85
      %p89 = pneg %p83
      %p90 = scmp.eq.s32.totalorder %s15, 3
      %p91 = por %p89, %p90
      %p92 = scmp.ne.s32.totalorder %s84, %s87
      %p93 = scmp.eq.s32.totalorder %s15, 0
      %p94 = por %p92, %p93
      %p95 = scmp.ne.s32.totalorder %s84, %s87
      %p96 = scmp.eq.s32.totalorder %s20, 3
      %p97 = por %p95, %p96
      %p98 = scmp.ne.s32.totalorder %s87, %s88
      %p99 = scmp.eq.s32.totalorder %s20, 0
      %p100 = por %p98, %p99
      %p101 = scmp.ne.s32.totalorder %s87, %s88
      %p102 = scmp.eq.s32.totalorder %s21, 3
      %p103 = por %p101, %p102
      %p105 = scmp.ne.s32.totalorder %s88, %s104
      %p106 = scmp.eq.s32.totalorder %s21, 0
      %p107 = por %p105, %p106
      %s108 = ssub.s32 %s22, %s34
      %p109 = scmp.eq.s32.totalorder %s108, 0
      %s111 = sadd.s32 %s110, 1
      %s112 = scalar_select %p109, %s110, %s111
      %p115 = pneg %p109
      %p116 = scmp.eq.s32.totalorder %s15, 3
      %p117 = por %p115, %p116
      %p118 = scmp.ne.s32.totalorder %s110, %s113
      %p119 = scmp.eq.s32.totalorder %s15, 0
      %p120 = por %p118, %p119
      %p121 = scmp.ne.s32.totalorder %s110, %s113
      %p122 = scmp.eq.s32.totalorder %s20, 3
      %p123 = por %p121, %p122
      %p124 = scmp.ne.s32.totalorder %s113, %s114
      %p125 = scmp.eq.s32.totalorder %s20, 0
      %p126 = por %p124, %p125
      %p127 = scmp.ne.s32.totalorder %s113, %s114
      %p128 = scmp.eq.s32.totalorder %s21, 3
      %p129 = por %p127, %p128
      %p131 = scmp.ne.s32.totalorder %s114, %s130
      %p132 = scmp.eq.s32.totalorder %s21, 0
      %p133 = por %p131, %p132
      %s135 = sadd.s32 %s134, 1
      %p138 = scmp.eq.s32.totalorder %s15, 3
      %p139 = scmp.ne.s32.totalorder %s134, %s136
      %p140 = scmp.eq.s32.totalorder %s15, 0
      %p141 = por %p139, %p140
      %p142 = scmp.ne.s32.totalorder %s134, %s136
      %p143 = scmp.eq.s32.totalorder %s20, 3
      %p144 = por %p142, %p143
      %p145 = scmp.ne.s32.totalorder %s136, %s137
      %p146 = scmp.eq.s32.totalorder %s20, 0
      %p147 = por %p145, %p146
      %p148 = scmp.ne.s32.totalorder %s136, %s137
      %p149 = scmp.eq.s32.totalorder %s21, 3
      %p150 = por %p148, %p149
      %p152 = scmp.ne.s32.totalorder %s137, %s151
      %p153 = scmp.eq.s32.totalorder %s21, 0
      %p154 = por %p152, %p153
      %s155 = ssub.s32 %s23, %s30
      %p156 = scmp.eq.s32.totalorder %s155, 0
      %s158 = sadd.s32 %s157, 1
      %s159 = scalar_select %p156, %s157, %s158
      %p162 = pneg %p156
      %p163 = scmp.eq.s32.totalorder %s15, 3
      %p164 = por %p162, %p163
      %p165 = scmp.ne.s32.totalorder %s157, %s160
      %p166 = scmp.eq.s32.totalorder %s15, 0
      %p167 = por %p165, %p166
      %p168 = scmp.ne.s32.totalorder %s157, %s160
      %p169 = scmp.eq.s32.totalorder %s20, 3
      %p170 = por %p168, %p169
      %p171 = scmp.ne.s32.totalorder %s160, %s161
      %p172 = scmp.eq.s32.totalorder %s20, 0
      %p173 = por %p171, %p172
      %p174 = scmp.ne.s32.totalorder %s160, %s161
      %p175 = scmp.eq.s32.totalorder %s21, 3
      %p176 = por %p174, %p175
      %p178 = scmp.ne.s32.totalorder %s161, %s177
      %p179 = scmp.eq.s32.totalorder %s21, 0
      %p180 = por %p178, %p179
      %s181 = ssub.s32 %s23, %s30
      %p182 = scmp.eq.s32.totalorder %s181, 0
      %s184 = sadd.s32 %s183, 1
      %s185 = scalar_select %p182, %s183, %s184
      %p188 = pneg %p182
      %p189 = scmp.eq.s32.totalorder %s15, 3
      %p190 = por %p188, %p189
      %p191 = scmp.ne.s32.totalorder %s183, %s186
      %p192 = scmp.eq.s32.totalorder %s15, 0
      %p193 = por %p191, %p192
      %p194 = scmp.ne.s32.totalorder %s183, %s186
      %p195 = scmp.eq.s32.totalorder %s20, 3
      %p196 = por %p194, %p195
      %p197 = scmp.ne.s32.totalorder %s186, %s187
      %p198 = scmp.eq.s32.totalorder %s20, 0
      %p199 = por %p197, %p198
      %p200 = scmp.ne.s32.totalorder %s186, %s187
      %p201 = scmp.eq.s32.totalorder %s21, 3
      %p202 = por %p200, %p201
      %p204 = scmp.ne.s32.totalorder %s187, %s203
      %p205 = scmp.eq.s32.totalorder %s21, 0
      %p206 = por %p204, %p205
      %s207 = ssub.s32 %s23, %s30
      %p208 = scmp.eq.s32.totalorder %s207, 0
      %s210 = sadd.s32 %s209, 1
      %s211 = scalar_select %p208, %s209, %s210
      %p214 = pneg %p208
      %p215 = scmp.eq.s32.totalorder %s15, 3
      %p216 = por %p214, %p215
      %p217 = scmp.ne.s32.totalorder %s209, %s212
      %p218 = scmp.eq.s32.totalorder %s15, 0
      %p219 = por %p217, %p218
      %p220 = scmp.ne.s32.totalorder %s209, %s212
      %p221 = scmp.eq.s32.totalorder %s20, 3
      %p222 = por %p220, %p221
      %p223 = scmp.ne.s32.totalorder %s212, %s213
      %p224 = scmp.eq.s32.totalorder %s20, 0
      %p225 = por %p223, %p224
      %p226 = scmp.ne.s32.totalorder %s212, %s213
      %p227 = scmp.eq.s32.totalorder %s21, 3
      %p228 = por %p226, %p227
      %p230 = scmp.ne.s32.totalorder %s213, %s229
      %p231 = scmp.eq.s32.totalorder %s21, 0
      %p232 = por %p230, %p231
      %s233 = ssub.s32 %s22, %s34
      %p234 = scmp.eq.s32.totalorder %s233, 0
      %s236 = sadd.s32 %s235, 1
      %s237 = scalar_select %p234, %s235, %s236
      %p240 = pneg %p234
      %p241 = scmp.eq.s32.totalorder %s15, 3
      %p242 = por %p240, %p241
      %p243 = scmp.ne.s32.totalorder %s235, %s238
      %p244 = scmp.eq.s32.totalorder %s15, 0
      %p245 = por %p243, %p244
      %p246 = scmp.ne.s32.totalorder %s235, %s238
      %p247 = scmp.eq.s32.totalorder %s20, 3
      %p248 = por %p246, %p247
      %p249 = scmp.ne.s32.totalorder %s238, %s239
      %p250 = scmp.eq.s32.totalorder %s20, 0
      %p251 = por %p249, %p250
      %p252 = scmp.ne.s32.totalorder %s238, %s239
      %p253 = scmp.eq.s32.totalorder %s21, 3
      %p254 = por %p252, %p253
      %p256 = scmp.ne.s32.totalorder %s239, %s255
      %p257 = scmp.eq.s32.totalorder %s21, 0
      %p258 = por %p256, %p257
      %p259 = scmp.le.s32.totalorder 1, %s15
      %p260 = scmp.lt.s32.totalorder %s15, 5
      %p261 = pnand %p259, %p260
      %p262 = pneg %p261
      // Predicated region
      $region9: #{transformer_block_forward.9} parent=5 // pred_check
        _
      $region10: #{transformer_block_forward.9} parent=5 // pred_check_branch
        %264 = sbr.rel (%p261) target = $region12
      $region11: #{transformer_block_forward.9} parent=5 // pred_region
        %s265 = ssub.s32 %s15, 1
        // Predicated region
        $region13: #{transformer_block_forward.9} parent=11 // pred_check
          %p266 = pneg %p74
        $region14: #{transformer_block_forward.9} parent=11 // pred_check_branch
          %268 = sbr.rel (%p266) target = $region16
        $region15: #{transformer_block_forward.9} parent=11 // pred_region
          _
        $region16: #{transformer_block_forward.9} parent=11 // pred_fallthru
          _
        // Predicated region
        $region17: #{transformer_block_forward.9} parent=11 // pred_check
          %p269 = pneg %p147
        $region18: #{transformer_block_forward.9} parent=11 // pred_check_branch
          %271 = sbr.rel (%p269) target = $region20
        $region19: #{transformer_block_forward.9} parent=11 // pred_region
          %s273 = ssub.s32 32, 32
          %274 = vsyncadd [#allocation4], %s273
          %s276 = sshll.u32 %s4, 4
          %s277 = int_to_ptr.vmem [resolvable:$true] %s276
          %279 = dma.vmem_to_smem %s277, 32, [#allocation3], [#allocation4]
        $region20: #{transformer_block_forward.9} parent=11 // pred_fallthru
          _
      $region12: #{transformer_block_forward.9} parent=5 // pred_fallthru
        _
      %p280 = scmp.lt.s32.totalorder %s15, 4
      // Predicated region
      $region21: #{transformer_block_forward.9} parent=5 // pred_check
        %p281 = pneg %p280
      $region22: #{transformer_block_forward.9} parent=5 // pred_check_branch
        %283 = sbr.rel (%p281) target = $region24
      $region23: #{transformer_block_forward.9} parent=5 // pred_region
        // Predicated region
        $region25: #{transformer_block_forward.9} parent=23 // pred_check
          %p284 = pneg %p47
        $region26: #{transformer_block_forward.9} parent=23 // pred_check_branch
          %286 = sbr.rel (%p284) target = $region28
        $region27: #{transformer_block_forward.9} parent=23 // pred_region
          %p287 = scmp.lt.s32.totalorder %s22, 1
          %s288 = scalar_select %p287, %s22, 1
          %s289 = smul.addr %s288, 8
          %s290 = scalar_lea.vmem %s0, %s289
        $region28: #{transformer_block_forward.9} parent=23 // pred_fallthru
          _
        // Predicated region
        $region29: #{transformer_block_forward.9} parent=23 // pred_check
          %p291 = pneg %p94
        $region30: #{transformer_block_forward.9} parent=23 // pred_check_branch
          %293 = sbr.rel (%p291) target = $region32
        $region31: #{transformer_block_forward.9} parent=23 // pred_region
          %p294 = scmp.lt.s32.totalorder %s22, 1
          %s295 = scalar_select %p294, %s22, 1
          %s296 = scalar_lea.vmem %s2, %s295
        $region32: #{transformer_block_forward.9} parent=23 // pred_fallthru
          _
        // Predicated region
        $region33: #{transformer_block_forward.9} parent=23 // pred_check
          %p297 = pneg %p120
        $region34: #{transformer_block_forward.9} parent=23 // pred_check_branch
          %299 = sbr.rel (%p297) target = $region36
        $region35: #{transformer_block_forward.9} parent=23 // pred_region
          %p300 = scmp.lt.s32.totalorder %s22, 1
          %s301 = scalar_select %p300, %s22, 1
          %s302 = scalar_lea.vmem %s3, %s301
        $region36: #{transformer_block_forward.9} parent=23 // pred_fallthru
          _
        // Predicated region
        $region37: #{transformer_block_forward.9} parent=23 // pred_check
          %p303 = pneg %p167
        $region38: #{transformer_block_forward.9} parent=23 // pred_check_branch
          %305 = sbr.rel (%p303) target = $region40
        $region39: #{transformer_block_forward.9} parent=23 // pred_region
          %p306 = scmp.lt.s32.totalorder %s23, 1
          %s307 = scalar_select %p306, %s23, 1
          %s308 = smul.addr %s307, 4
          %s309 = smul.addr %s308, 4
          %s310 = scalar_lea.vmem %s5, %s309
        $region40: #{transformer_block_forward.9} parent=23 // pred_fallthru
          _
        // Predicated region
        $region41: #{transformer_block_forward.9} parent=23 // pred_check
          %p311 = pneg %p193
        $region42: #{transformer_block_forward.9} parent=23 // pred_check_branch
          %313 = sbr.rel (%p311) target = $region44
        $region43: #{transformer_block_forward.9} parent=23 // pred_region
          %p314 = scmp.lt.s32.totalorder %s23, 1
          %s315 = scalar_select %p314, %s23, 1
          %s316 = smul.addr %s315, 4
          %s317 = smul.addr %s316, 4
          %s318 = scalar_lea.vmem %s6, %s317
        $region44: #{transformer_block_forward.9} parent=23 // pred_fallthru
          _
        // Predicated region
        $region45: #{transformer_block_forward.9} parent=23 // pred_check
          %p319 = pneg %p219
        $region46: #{transformer_block_forward.9} parent=23 // pred_check_branch
          %321 = sbr.rel (%p319) target = $region48
        $region47: #{transformer_block_forward.9} parent=23 // pred_region
          %p322 = scmp.lt.s32.totalorder %s23, 1
          %s323 = scalar_select %p322, %s23, 1
          %s324 = smul.addr %s323, 3
          %s325 = smul.addr %s324, 4
          %s326 = scalar_lea.vmem %s7, %s325
        $region48: #{transformer_block_forward.9} parent=23 // pred_fallthru
          _
      $region24: #{transformer_block_forward.9} parent=5 // pred_fallthru
        _
      %p327 = scmp.le.s32.totalorder 1, %s15
      %p328 = scmp.lt.s32.totalorder %s15, 5
      %p329 = pnand %p327, %p328
      %p330 = pneg %p329
      // Predicated region
      $region49: #{transformer_block_forward.9} parent=5 // pred_check
        _
      $region50: #{transformer_block_forward.9} parent=5 // pred_check_branch
        %332 = sbr.rel (%p329) target = $region52
      $region51: #{transformer_block_forward.9} parent=5 // pred_region
        %s333 = ssub.s32 %s15, 1
        // Predicated region
        $region53: #{transformer_block_forward.9} parent=51 // pred_check
          %p334 = pneg %p147
        $region54: #{transformer_block_forward.9} parent=51 // pred_check_branch
          %336 = sbr.rel (%p334) target = $region56
        $region55: #{transformer_block_forward.9} parent=51 // pred_region
          %337 = dma.done [#allocation4], 32
        $region56: #{transformer_block_forward.9} parent=51 // pred_fallthru
          _
        %338 = sfence
        %p339 = scmp.lt.s32.totalorder %s24, 1
        %s340 = scalar_select %p339, %s24, 1
        %s341 = smul.addr %s340, 8
        %s342 = scalar_lea.vmem %s0, %s341
        %p343 = pneg %p53
        %p344 = pneg %p50
        %p345 = pneg %p74
        %p346 = pneg %p71
        %p347 = scmp.lt.s32.totalorder %s24, 1
        %s348 = scalar_select %p347, %s24, 1
        %s349 = scalar_lea.vmem %s2, %s348
        %p350 = pneg %p100
        %p351 = pneg %p97
        %p352 = scmp.lt.s32.totalorder %s24, 1
        %s353 = scalar_select %p352, %s24, 1
        %s354 = scalar_lea.vmem %s3, %s353
        %p355 = pneg %p126
        %p356 = pneg %p123
        %p357 = pneg %p147
        %p358 = pneg %p144
        %p359 = scmp.lt.s32.totalorder %s25, 1
        %s360 = scalar_select %p359, %s25, 1
        %s361 = smul.addr %s360, 4
        %s362 = smul.addr %s361, 4
        %s363 = scalar_lea.vmem %s5, %s362
        %p364 = pneg %p173
        %p365 = pneg %p170
        %p366 = scmp.lt.s32.totalorder %s25, 1
        %s367 = scalar_select %p366, %s25, 1
        %s368 = smul.addr %s367, 4
        %s369 = smul.addr %s368, 4
        %s370 = scalar_lea.vmem %s6, %s369
        %p371 = pneg %p199
        %p372 = pneg %p196
        %p373 = scmp.lt.s32.totalorder %s25, 1
        %s374 = scalar_select %p373, %s25, 1
        %s375 = smul.addr %s374, 3
        %s376 = smul.addr %s375, 4
        %s377 = scalar_lea.vmem %s7, %s376
        %p378 = pneg %p225
        %p379 = pneg %p222
        %p380 = pneg %p251
        %p381 = pneg %p248
        %p382 = scmp.lt.s32.totalorder %s24, 1
        %s383 = scalar_select %p382, %s24, 1
        %s384 = smul.addr %s383, 8
        %s385 = scalar_lea.vmem %s8, %s384
        %p386 = scmp.lt.s32.totalorder %s24, 1
        %s387 = scalar_select %p386, %s24, 1
        %s388 = smul.addr %s387, 8
        %s389 = scalar_lea.vmem %s0, %s388
        %p390 = scmp.lt.s32.totalorder %s24, 1
        %s391 = scalar_select %p390, %s24, 1
        %s392 = scalar_lea.vmem %s2, %s391
        %p393 = scmp.lt.s32.totalorder %s24, 1
        %s394 = scalar_select %p393, %s24, 1
        %s395 = scalar_lea.vmem %s3, %s394
        %p396 = scmp.lt.s32.totalorder %s25, 1
        %s397 = scalar_select %p396, %s25, 1
        %s398 = smul.addr %s397, 4
        %s399 = smul.addr %s398, 4
        %s400 = scalar_lea.vmem %s5, %s399
        %p401 = scmp.lt.s32.totalorder %s25, 1
        %s402 = scalar_select %p401, %s25, 1
        %s403 = smul.addr %s402, 4
        %s404 = smul.addr %s403, 4
        %s405 = scalar_lea.vmem %s6, %s404
        %p406 = scmp.lt.s32.totalorder %s25, 1
        %s407 = scalar_select %p406, %s25, 1
        %s408 = smul.addr %s407, 3
        %s409 = smul.addr %s408, 4
        %s410 = scalar_lea.vmem %s7, %s409
        %p411 = scmp.lt.s32.totalorder %s24, 1
        %s412 = scalar_select %p411, %s24, 1
        %s413 = smul.addr %s412, 8
        %s414 = scalar_lea.vmem %s8, %s413
        %p416 = scmp.eq.s32.totalorder %s25, 0
        // Predicated region
        $region57: #{transformer_block_forward.9} parent=51 // pred_check
          %p417 = pneg %p416
        $region58: #{transformer_block_forward.9} parent=51 // pred_check_branch
          %419 = sbr.rel (%p417) target = $region60
        $region59: #{transformer_block_forward.9} parent=51 // pred_region
          %v420 = vld [vmem:[%s389] sm:$0xff]
          %v421 = vmul.f32 %v420, %v420
          %vm422 = vcmask 261120
          %v423 = vsel %vm422, %v421, 0.0
          %424 = vadd.xlane.f32.xlu0 %v423
          %v425 = vpop.xlane.xlu0 %424
          %v426 = vrcp.pop 32.0
          %v427 = vmul.f32 %v425, %v426
          %v428 = vadd.f32 %v427, 1e-05
          %v429 = vrsqrt.pop %v428
          %v430 = vmul.f32 %v420, %v429
          %v431 = vld [vmem:[%s1] sm:$0x1]
          %v433 = vlaneseq
          %v434 = vshrl.u32 %v433, 7
          %v435 = vsub.s32 0, %v434
          %v436 = vrot.slane %v431, %v435
          %v438 = vmul.f32 %v430, %v436
          %v439 = vld [vmem:[%s395] sm:$0x1]
          %v440 = vadd.f32 %v439, 1.0
          %v442 = vlaneseq
          %v443 = vshrl.u32 %v442, 7
          %v444 = vsub.s32 0, %v443
          %v445 = vrot.slane %v440, %v444
          %v447 = vmul.f32 %v438, %v445
          %v448 = vld [vmem:[%s392] sm:$0x1]
          %v450 = vlaneseq
          %v451 = vshrl.u32 %v450, 7
          %v452 = vsub.s32 0, %v451
          %v453 = vrot.slane %v448, %v452
          %v455 = vadd.f32 %v447, %v453
          %v456 = vpack.c.bf16 %v455, %v455
          %vm457 = vcmask 257024
          %458 = vst.msk [vmem:[#allocation2] sm:$0xf] %vm457, %v456
        $region60: #{transformer_block_forward.9} parent=51 // pred_fallthru
          _
        %v459 = vld [vmem:[#allocation2] sm:$0xf]
        %v460 = vld [vmem:[%s400] sm:$0xf]
        %v461 = vld [vmem:[%s400 + $0x4] sm:$0xf]
        %v462 = vld [vmem:[%s400 + $0x8] sm:$0xf]
        %v463 = vld [vmem:[%s400 + $0xc] sm:$0xf]
        %v468 = vunpack.c.l.b16 %v460
        %v469 = vunpack.c.l.b16 %v461
        %v470 = vunpack.c.l.b16 %v462
        %v471 = vunpack.c.l.b16 %v463
        %v472 = vpack.c.b16 %v469, %v468
        %v473 = vpack.c.b16 %v471, %v470
        %vm476 = vcmask 261120
        %v478 = vsel %vm476, %v459, 0
        %480 = vmatprep.subr.bf16.mxu0 0
        %481 = vmatpush1.bf16.msra.mxu0 %v472
        %482 = vmatprep.subr.bf16.mxu0 0
        %483 = vmatpush1.bf16.msra.mxu0 %v473
        %484 = vmatprep.subr.bf16.mxu0 0
        %485 = vmatpush1.bf16.msra.mxu0 0
        %486 = vmatprep.subr.bf16.mxu0 0
        %487 = vmatpush1.bf16.msra.mxu0 0
        %488 = vmatprep.subr.bf16.mxu0 0
        %489 = vmatpush1.bf16.msra.mxu0 0
        %490 = vmatprep.subr.bf16.mxu0 0
        %491 = vmatpush1.bf16.msra.mxu0 0
        %492 = vmatprep.subr.bf16.mxu0 0
        %493 = vmatpush1.bf16.msra.mxu0 0
        %494 = vmatprep.subr.bf16.mxu0 0
        %495 = vmatpush1.bf16.msra.mxu0 0
        %496 = vmatprep.subr.bf16.mxu0 0
        %497 = vmatpush1.bf16.msra.mxu0 0
        %498 = vmatprep.subr.bf16.mxu0 0
        %499 = vmatpush1.bf16.msra.mxu0 0
        %500 = vmatprep.subr.bf16.mxu0 0
        %501 = vmatpush1.bf16.msra.mxu0 0
        %502 = vmatprep.subr.bf16.mxu0 0
        %503 = vmatpush1.bf16.msra.mxu0 0
        %504 = vmatprep.subr.bf16.mxu0 0
        %505 = vmatpush1.bf16.msra.mxu0 0
        %506 = vmatprep.subr.bf16.mxu0 0
        %507 = vmatpush1.bf16.msra.mxu0 0
        %508 = vmatprep.subr.bf16.mxu0 0
        %509 = vmatpush1.bf16.msra.mxu0 0
        %510 = vmatprep.subr.bf16.mxu0 0
        %511 = vmatpush1.bf16.msra.mxu0 0
        %512 = vmatprep.mubr.bf16.mxu0 0
        %513 = vmatmul.mubr.bf16.gmra.mrb[0].mxu0 %v478
        %v514 = vpop.f32.mrb[0].mxu0
        %v515 = vadd.f32 0.0, %v514
        %v516 = vpop.f32.mrb[0].mxu0
        %v517 = vpop.f32.mrb[0].mxu0
        %v518 = vpop.f32.mrb[0].mxu0
        %519 = vdwg.mxu0
        %v520 = vld [vmem:[%s405] sm:$0xf]
        %v521 = vld [vmem:[%s405 + $0x4] sm:$0xf]
        %v522 = vld [vmem:[%s405 + $0x8] sm:$0xf]
        %v523 = vld [vmem:[%s405 + $0xc] sm:$0xf]
        %v528 = vunpack.c.l.b16 %v520
        %v529 = vunpack.c.l.b16 %v521
        %v530 = vunpack.c.l.b16 %v522
        %v531 = vunpack.c.l.b16 %v523
        %v532 = vpack.c.b16 %v529, %v528
        %v533 = vpack.c.b16 %v531, %v530
        %536 = vmatprep.subr.bf16.mxu0 0
        %537 = vmatpush1.bf16.msra.mxu0 %v532
        %538 = vmatprep.subr.bf16.mxu0 0
        %539 = vmatpush1.bf16.msra.mxu0 %v533
        %540 = vmatprep.subr.bf16.mxu0 0
        %541 = vmatpush1.bf16.msra.mxu0 0
        %542 = vmatprep.subr.bf16.mxu0 0
        %543 = vmatpush1.bf16.msra.mxu0 0
        %544 = vmatprep.subr.bf16.mxu0 0
        %545 = vmatpush1.bf16.msra.mxu0 0
        %546 = vmatprep.subr.bf16.mxu0 0
        %547 = vmatpush1.bf16.msra.mxu0 0
        %548 = vmatprep.subr.bf16.mxu0 0
        %549 = vmatpush1.bf16.msra.mxu0 0
        %550 = vmatprep.subr.bf16.mxu0 0
        %551 = vmatpush1.bf16.msra.mxu0 0
        %552 = vmatprep.subr.bf16.mxu0 0
        %553 = vmatpush1.bf16.msra.mxu0 0
        %554 = vmatprep.subr.bf16.mxu0 0
        %555 = vmatpush1.bf16.msra.mxu0 0
        %556 = vmatprep.subr.bf16.mxu0 0
        %557 = vmatpush1.bf16.msra.mxu0 0
        %558 = vmatprep.subr.bf16.mxu0 0
        %559 = vmatpush1.bf16.msra.mxu0 0
        %560 = vmatprep.subr.bf16.mxu0 0
        %561 = vmatpush1.bf16.msra.mxu0 0
        %562 = vmatprep.subr.bf16.mxu0 0
        %563 = vmatpush1.bf16.msra.mxu0 0
        %564 = vmatprep.subr.bf16.mxu0 0
        %565 = vmatpush1.bf16.msra.mxu0 0
        %566 = vmatprep.subr.bf16.mxu0 0
        %567 = vmatpush1.bf16.msra.mxu0 0
        %568 = vmatprep.mubr.bf16.mxu0 0
        %569 = vmatmul.mubr.bf16.gmra.mrb[0].mxu0 %v478
        %v570 = vpop.f32.mrb[0].mxu0
        %v571 = vadd.f32 0.0, %v570
        %v572 = vpop.f32.mrb[0].mxu0
        %v573 = vpop.f32.mrb[0].mxu0
        %v574 = vpop.f32.mrb[0].mxu0
        %575 = vdwg.mxu0
        %v576 = vxor.u32 %v515, 2147483648
        %v577 = vmul.f32 %v576, 1.442695
        %v578 = vpow.pop %v577
        %v579 = vadd.f32 %v578, 1.0
        %v580 = vrcp.pop %v579
        %v581 = vmul.f32 1.0, %v580
        %v582 = vmul.f32 %v515, %v581
        %v583 = vmul.f32 %v582, %v571
        %v584 = vpack.c.bf16 %v583, %v583
        %v585 = vld [vmem:[%s410] sm:$0xf]
        %v586 = vld [vmem:[%s410 + $0x4] sm:$0xf]
        %v587 = vld [vmem:[%s410 + $0x8] sm:$0xf]
        %v591 = vunpack.c.l.b16 %v585
        %v592 = vunpack.c.l.b16 %v586
        %v593 = vunpack.c.l.b16 %v587
        %v594 = vpack.c.b16 %v592, %v591
        %v595 = vpack.c.b16 %v593, %v593
        %vm597 = vcmask 195584
        %v599 = vsel %vm597, %v584, 0
        %vm601 = vcmask 1043456
        %v603 = vsel %vm601, %v595, 0
        %605 = vmatprep.subr.bf16.mxu0 0
        %606 = vmatpush1.bf16.msra.mxu0 %v594
        %607 = vmatprep.subr.bf16.mxu0 0
        %608 = vmatpush1.bf16.msra.mxu0 %v603
        %609 = vmatprep.subr.bf16.mxu0 0
        %610 = vmatpush1.bf16.msra.mxu0 0
        %611 = vmatprep.subr.bf16.mxu0 0
        %612 = vmatpush1.bf16.msra.mxu0 0
        %613 = vmatprep.subr.bf16.mxu0 0
        %614 = vmatpush1.bf16.msra.mxu0 0
        %615 = vmatprep.subr.bf16.mxu0 0
        %616 = vmatpush1.bf16.msra.mxu0 0
        %617 = vmatprep.subr.bf16.mxu0 0
        %618 = vmatpush1.bf16.msra.mxu0 0
        %619 = vmatprep.subr.bf16.mxu0 0
        %620 = vmatpush1.bf16.msra.mxu0 0
        %621 = vmatprep.subr.bf16.mxu0 0
        %622 = vmatpush1.bf16.msra.mxu0 0
        %623 = vmatprep.subr.bf16.mxu0 0
        %624 = vmatpush1.bf16.msra.mxu0 0
        %625 = vmatprep.subr.bf16.mxu0 0
        %626 = vmatpush1.bf16.msra.mxu0 0
        %627 = vmatprep.subr.bf16.mxu0 0
        %628 = vmatpush1.bf16.msra.mxu0 0
        %629 = vmatprep.subr.bf16.mxu0 0
        %630 = vmatpush1.bf16.msra.mxu0 0
        %631 = vmatprep.subr.bf16.mxu0 0
        %632 = vmatpush1.bf16.msra.mxu0 0
        %633 = vmatprep.subr.bf16.mxu0 0
        %634 = vmatpush1.bf16.msra.mxu0 0
        %635 = vmatprep.subr.bf16.mxu0 0
        %636 = vmatpush1.bf16.msra.mxu0 0
        %637 = vmatprep.mubr.bf16.mxu0 0
        %638 = vmatmul.mubr.bf16.gmra.mrb[0].mxu0 %v599
        %v639 = vpop.f32.mrb[0].mxu0
        %v640 = vadd.f32 0.0, %v639
        %v641 = vpop.f32.mrb[0].mxu0
        %v642 = vpop.f32.mrb[0].mxu0
        %v643 = vpop.f32.mrb[0].mxu0
        %644 = vdwg.mxu0
        %s645 = sshra.s32 %s25, 7
        %s646 = sand.u32 %s25, 127
        %s647 = sadd.s32 %s645, %s24
        %s648 = smul.u32 %s647, 128
        %s649 = sshra.s32 %s25, 7
        %s650 = sand.u32 %s25, 127
        %s651 = sadd.s32 %s648, %s650
        %s652 = sld [smem:[#allocation3 + %s651]]
        %v653 = vstv %s652
        %v654 = vmul.f32 %v640, %v653
        // Predicated region
        $region61: #{transformer_block_forward.9} parent=51 // pred_check
          %p655 = pneg %p416
        $region62: #{transformer_block_forward.9} parent=51 // pred_check_branch
          %657 = sbr.rel (%p655) target = $region64
        $region63: #{transformer_block_forward.9} parent=51 // pred_region
          %658 = vst.msk [vmem:[%s414] sm:$0xff] %vm476, %v654
        $region64: #{transformer_block_forward.9} parent=51 // pred_fallthru
          _
        %p659 = scmp.gt.s32.totalorder %s25, 0
        // Predicated region
        $region65: #{transformer_block_forward.9} parent=51 // pred_check
          %p660 = pneg %p659
        $region66: #{transformer_block_forward.9} parent=51 // pred_check_branch
          %662 = sbr.rel (%p660) target = $region68
        $region67: #{transformer_block_forward.9} parent=51 // pred_region
          %v663 = vld [vmem:[%s414] sm:$0xff]
          %v664 = vadd.f32 %v663, %v654
          %665 = vst.msk [vmem:[%s414] sm:$0xff] %vm476, %v664
        $region68: #{transformer_block_forward.9} parent=51 // pred_fallthru
          _
        %p666 = scmp.lt.s32.totalorder %s24, 1
        %s667 = scalar_select %p666, %s24, 1
        %s668 = smul.addr %s667, 8
        %s669 = scalar_lea.vmem %s8, %s668
        // Predicated region
        $region69: #{transformer_block_forward.9} parent=51 // pred_check
          %p670 = pneg %p248
        $region70: #{transformer_block_forward.9} parent=51 // pred_check_branch
          %672 = sbr.rel (%p670) target = $region72
        $region71: #{transformer_block_forward.9} parent=51 // pred_region
          _
        $region72: #{transformer_block_forward.9} parent=51 // pred_fallthru
          _
      $region52: #{transformer_block_forward.9} parent=5 // pred_fallthru
        _
      %p673 = scmp.le.s32.totalorder 2, %s15
      // Predicated region
      $region73: #{transformer_block_forward.9} parent=5 // pred_check
        %p674 = pneg %p673
      $region74: #{transformer_block_forward.9} parent=5 // pred_check_branch
        %676 = sbr.rel (%p674) target = $region76
      $region75: #{transformer_block_forward.9} parent=5 // pred_region
        %s677 = ssub.s32 %s15, 2
        // Predicated region
        $region77: #{transformer_block_forward.9} parent=75 // pred_check
          %p678 = pneg %p254
        $region78: #{transformer_block_forward.9} parent=75 // pred_check_branch
          %680 = sbr.rel (%p678) target = $region80
        $region79: #{transformer_block_forward.9} parent=75 // pred_region
          %p681 = scmp.lt.s32.totalorder %s26, 1
          %s682 = scalar_select %p681, %s26, 1
          %s683 = smul.addr %s682, 8
          %s684 = scalar_lea.vmem %s8, %s683
        $region80: #{transformer_block_forward.9} parent=75 // pred_fallthru
          _
      $region76: #{transformer_block_forward.9} parent=5 // pred_fallthru
        _
    $region6: #{transformer_block_forward.9} parent=1 // loop_footer
      %s19 = sadd.s32 1, %s15
    $region7: #{transformer_block_forward.9} parent=1 // loop_footer_branch
      %14 = sbr.rel target = $region3
    $region8: #{transformer_block_forward.9} parent=1 // loop_exit
      _
    %685 = vsyncpa [#allocation4], 1
    %s686 = scalar_lea.sflag [#allocation4], 1
    %687 = vsyncpa %s686, 1

// kernel: div.20
$region0: #{div.20}
  %s0 = inlined_call_operand.vmem [shape: f32[2,8], index: 0, kind: input, shape index: {}]
  %s1 = inlined_call_operand.vmem [shape: f32[16], index: 1, kind: output, shape index: {}]
  $region1: #{div.20} parent=0
    #allocation0 [shape = 'u8[4096]{0}', space=vmem, size = 0x1000, scoped, tag = 'scoped mem for output reshape']
    #allocation1 [shape = 'u8[4096]{0}', space=vmem, size = 0x1000, scoped, tag = 'scoped mem for input reshape']
    %s3 = sshllo.u32 0, 2
    %v4 = vld [vmem:[%s0] sm:%s3]
    %5 = vst [vmem:[#allocation1] sm:%s3] %v4
    %v6 = vld [vmem:[#allocation1] sm:$0x1]
    %vm7 = vcmask 64512
    %8 = vst.msk [vmem:[#allocation0] sm:$0x1] %vm7, %v6
    %s9 = scalar_lea.vmem [#allocation1], 1
    %v10 = vld [vmem:[%s9] sm:$0x1]
    %11 = vrot.lane.b32.xlu0 %v10, 8
    %v12 = vpop.permute.xlu0 %11
    %vm13 = vcmask 130112
    %14 = vst.msk [vmem:[#allocation0] sm:$0x1] %vm13, %v12
    %s16 = sshllo.u32 0, 1
    %v18 = vld [vmem:[#allocation0] sm:%s16]
    %s19 = sshllo.u32 0, 1
    %20 = vst [vmem:[%s1] sm:%s19] %v18

// kernel: transformer_block_forward.10
$region0: #{transformer_block_forward.10}
  #allocation0 [shape = 'u32[]', space=smem, size = 0x4, offset = 0x4, fixed_abs, tag = 'smem constant byte address 0x4 - core index']
  #allocation1 [shape = 'u32[144,128]{1,0:T(1,128)}', space=vmem, size = 0x12000, scoped, tag = 'internal scratch']
  #allocation2 [shape = 'bf16[8,32]{1,0:T(8,128)(2,1)}', space=vmem, size = 0x800, scoped, tag = 'scratch operand']
  #allocation3 [shape = 'bf16[6,32]{1,0:T(8,128)(2,1)}', space=vmem, size = 0x800, scoped, tag = 'scratch operand']
  #allocation4 [shape = 'bf16[6,32]{1,0:T(8,128)(2,1)}', space=vmem, size = 0x800, scoped, tag = 'scratch operand']
  #allocation5 [shape = 'f32[8,32]{1,0:T(8,128)}', space=vmem, size = 0x1000, scoped, tag = 'scratch operand']
  %s0 = inlined_call_operand.vmem [shape: f32[2,8,32], index: 0, kind: input, shape index: {}]
  %s1 = inlined_call_operand.vmem [shape: f32[2,6,32], index: 1, kind: input, shape index: {}]
  %s2 = inlined_call_operand.vmem [shape: bf16[32,32], index: 2, kind: input, shape index: {}]
  %s3 = inlined_call_operand.vmem [shape: f32[1,32], index: 3, kind: input, shape index: {}]
  %s4 = inlined_call_operand.vmem [shape: bf16[32,64], index: 4, kind: input, shape index: {}]
  %s5 = inlined_call_operand.vmem [shape: f32[1,64], index: 5, kind: input, shape index: {}]
  %s6 = inlined_call_operand.vmem [shape: bf16[32,2], index: 6, kind: input, shape index: {}]
  %s7 = inlined_call_operand.vmem [shape: f32[1,2], index: 7, kind: input, shape index: {}]
  %s8 = inlined_call_operand.vmem [shape: f32[2,8,2], index: 8, kind: output, shape index: {}]
  %s9 = sld [smem:[#allocation0]]
  $region65: #{transformer_block_forward.10} parent=0
    _
  %s11 = ssub.s32 1, %s9
  %s12 = scalar_select 0, %s11, %s9
  loop: start=0, step=1, limit=4
  $region2: #{transformer_block_forward.10} parent=0 // loop_pre_header
    _
  $region3: #{transformer_block_forward.10} parent=0 // loop_header
    %s14 = sphi 0, %s18
    %p15 = scmp.ge.s32.totalorder %s14, 4
    %s24 = sphi 0, %s26
    %s27 = sphi 0, %s24
    %s28 = sphi 0, %s27
    %s44 = sphi 0, %s28
    %s50 = sphi 0, %s52
    %s53 = sphi 0, %s50
    %s54 = sphi 0, %s53
    %s70 = sphi 0, %s54
    %s74 = sphi 0, %s74
    %s76 = sphi 0, %s74
    %s77 = sphi 0, %s76
    %s91 = sphi 0, %s77
    %s95 = sphi 0, %s95
    %s97 = sphi 0, %s95
    %s98 = sphi 0, %s97
    %s112 = sphi 0, %s98
    %s116 = sphi 0, %s116
    %s118 = sphi 0, %s116
    %s119 = sphi 0, %s118
    %s133 = sphi 0, %s119
    %s137 = sphi 0, %s137
    %s139 = sphi 0, %s137
    %s140 = sphi 0, %s139
    %s154 = sphi 0, %s140
    %s158 = sphi 0, %s158
    %s160 = sphi 0, %s158
    %s161 = sphi 0, %s160
    %s175 = sphi 0, %s161
    %s179 = sphi 0, %s179
    %s181 = sphi 0, %s179
    %s182 = sphi 0, %s181
    %s196 = sphi 0, %s182
    %s202 = sphi 0, %s204
    %s205 = sphi 0, %s202
    %s206 = sphi 0, %s205
    %s222 = sphi 0, %s206
  $region4: #{transformer_block_forward.10} parent=0 // loop_header_branch
    %17 = sbr.rel (%p15) target = $region8
  $region5: #{transformer_block_forward.10} parent=0 // loop_body
    %s19 = ssub.s32 %s14, 1
    %s20 = ssub.s32 %s14, 2
    %s21 = sadd.s32 %s14, 1
    %s22 = ssub.s32 %s14, %s21
    %p23 = scmp.eq.s32.totalorder %s22, 0
    %s25 = sadd.s32 %s24, 1
    %s26 = scalar_select %p23, %s24, %s25
    %p29 = pneg %p23
    %p30 = scmp.eq.s32.totalorder %s14, 1
    %p31 = por %p29, %p30
    %p32 = scmp.ne.s32.totalorder %s24, %s27
    %p33 = scmp.eq.s32.totalorder %s14, 0
    %p34 = por %p32, %p33
    %p35 = scmp.ne.s32.totalorder %s24, %s27
    %p36 = scmp.eq.s32.totalorder %s19, 1
    %p37 = por %p35, %p36
    %p38 = scmp.ne.s32.totalorder %s27, %s28
    %p39 = scmp.eq.s32.totalorder %s19, 0
    %p40 = por %p38, %p39
    %p41 = scmp.ne.s32.totalorder %s27, %s28
    %p42 = scmp.eq.s32.totalorder %s20, 1
    %p43 = por %p41, %p42
    %p45 = scmp.ne.s32.totalorder %s28, %s44
    %p46 = scmp.eq.s32.totalorder %s20, 0
    %p47 = por %p45, %p46
    %s48 = ssub.s32 %s14, %s21
    %p49 = scmp.eq.s32.totalorder %s48, 0
    %s51 = sadd.s32 %s50, 1
    %s52 = scalar_select %p49, %s50, %s51
    %p55 = pneg %p49
    %p56 = scmp.eq.s32.totalorder %s14, 1
    %p57 = por %p55, %p56
    %p58 = scmp.ne.s32.totalorder %s50, %s53
    %p59 = scmp.eq.s32.totalorder %s14, 0
    %p60 = por %p58, %p59
    %p61 = scmp.ne.s32.totalorder %s50, %s53
    %p62 = scmp.eq.s32.totalorder %s19, 1
    %p63 = por %p61, %p62
    %p64 = scmp.ne.s32.totalorder %s53, %s54
    %p65 = scmp.eq.s32.totalorder %s19, 0
    %p66 = por %p64, %p65
    %p67 = scmp.ne.s32.totalorder %s53, %s54
    %p68 = scmp.eq.s32.totalorder %s20, 1
    %p69 = por %p67, %p68
    %p71 = scmp.ne.s32.totalorder %s54, %s70
    %p72 = scmp.eq.s32.totalorder %s20, 0
    %p73 = por %p71, %p72
    %s75 = sadd.s32 %s74, 1
    %p78 = scmp.eq.s32.totalorder %s14, 1
    %p79 = scmp.ne.s32.totalorder %s74, %s76
    %p80 = scmp.eq.s32.totalorder %s14, 0
    %p81 = por %p79, %p80
    %p82 = scmp.ne.s32.totalorder %s74, %s76
    %p83 = scmp.eq.s32.totalorder %s19, 1
    %p84 = por %p82, %p83
    %p85 = scmp.ne.s32.totalorder %s76, %s77
    %p86 = scmp.eq.s32.totalorder %s19, 0
    %p87 = por %p85, %p86
    %p88 = scmp.ne.s32.totalorder %s76, %s77
    %p89 = scmp.eq.s32.totalorder %s20, 1
    %p90 = por %p88, %p89
    %p92 = scmp.ne.s32.totalorder %s77, %s91
    %p93 = scmp.eq.s32.totalorder %s20, 0
    %p94 = por %p92, %p93
    %s96 = sadd.s32 %s95, 1
    %p99 = scmp.eq.s32.totalorder %s14, 1
    %p100 = scmp.ne.s32.totalorder %s95, %s97
    %p101 = scmp.eq.s32.totalorder %s14, 0
    %p102 = por %p100, %p101
    %p103 = scmp.ne.s32.totalorder %s95, %s97
    %p104 = scmp.eq.s32.totalorder %s19, 1
    %p105 = por %p103, %p104
    %p106 = scmp.ne.s32.totalorder %s97, %s98
    %p107 = scmp.eq.s32.totalorder %s19, 0
    %p108 = por %p106, %p107
    %p109 = scmp.ne.s32.totalorder %s97, %s98
    %p110 = scmp.eq.s32.totalorder %s20, 1
    %p111 = por %p109, %p110
    %p113 = scmp.ne.s32.totalorder %s98, %s112
    %p114 = scmp.eq.s32.totalorder %s20, 0
    %p115 = por %p113, %p114
    %s117 = sadd.s32 %s116, 1
    %p120 = scmp.eq.s32.totalorder %s14, 1
    %p121 = scmp.ne.s32.totalorder %s116, %s118
    %p122 = scmp.eq.s32.totalorder %s14, 0
    %p123 = por %p121, %p122
    %p124 = scmp.ne.s32.totalorder %s116, %s118
    %p125 = scmp.eq.s32.totalorder %s19, 1
    %p126 = por %p124, %p125
    %p127 = scmp.ne.s32.totalorder %s118, %s119
    %p128 = scmp.eq.s32.totalorder %s19, 0
    %p129 = por %p127, %p128
    %p130 = scmp.ne.s32.totalorder %s118, %s119
    %p131 = scmp.eq.s32.totalorder %s20, 1
    %p132 = por %p130, %p131
    %p134 = scmp.ne.s32.totalorder %s119, %s133
    %p135 = scmp.eq.s32.totalorder %s20, 0
    %p136 = por %p134, %p135
    %s138 = sadd.s32 %s137, 1
    %p141 = scmp.eq.s32.totalorder %s14, 1
    %p142 = scmp.ne.s32.totalorder %s137, %s139
    %p143 = scmp.eq.s32.totalorder %s14, 0
    %p144 = por %p142, %p143
    %p145 = scmp.ne.s32.totalorder %s137, %s139
    %p146 = scmp.eq.s32.totalorder %s19, 1
    %p147 = por %p145, %p146
    %p148 = scmp.ne.s32.totalorder %s139, %s140
    %p149 = scmp.eq.s32.totalorder %s19, 0
    %p150 = por %p148, %p149
    %p151 = scmp.ne.s32.totalorder %s139, %s140
    %p152 = scmp.eq.s32.totalorder %s20, 1
    %p153 = por %p151, %p152
    %p155 = scmp.ne.s32.totalorder %s140, %s154
    %p156 = scmp.eq.s32.totalorder %s20, 0
    %p157 = por %p155, %p156
    %s159 = sadd.s32 %s158, 1
    %p162 = scmp.eq.s32.totalorder %s14, 1
    %p163 = scmp.ne.s32.totalorder %s158, %s160
    %p164 = scmp.eq.s32.totalorder %s14, 0
    %p165 = por %p163, %p164
    %p166 = scmp.ne.s32.totalorder %s158, %s160
    %p167 = scmp.eq.s32.totalorder %s19, 1
    %p168 = por %p166, %p167
    %p169 = scmp.ne.s32.totalorder %s160, %s161
    %p170 = scmp.eq.s32.totalorder %s19, 0
    %p171 = por %p169, %p170
    %p172 = scmp.ne.s32.totalorder %s160, %s161
    %p173 = scmp.eq.s32.totalorder %s20, 1
    %p174 = por %p172, %p173
    %p176 = scmp.ne.s32.totalorder %s161, %s175
    %p177 = scmp.eq.s32.totalorder %s20, 0
    %p178 = por %p176, %p177
    %s180 = sadd.s32 %s179, 1
    %p183 = scmp.eq.s32.totalorder %s14, 1
    %p184 = scmp.ne.s32.totalorder %s179, %s181
    %p185 = scmp.eq.s32.totalorder %s14, 0
    %p186 = por %p184, %p185
    %p187 = scmp.ne.s32.totalorder %s179, %s181
    %p188 = scmp.eq.s32.totalorder %s19, 1
    %p189 = por %p187, %p188
    %p190 = scmp.ne.s32.totalorder %s181, %s182
    %p191 = scmp.eq.s32.totalorder %s19, 0
    %p192 = por %p190, %p191
    %p193 = scmp.ne.s32.totalorder %s181, %s182
    %p194 = scmp.eq.s32.totalorder %s20, 1
    %p195 = por %p193, %p194
    %p197 = scmp.ne.s32.totalorder %s182, %s196
    %p198 = scmp.eq.s32.totalorder %s20, 0
    %p199 = por %p197, %p198
    %s200 = ssub.s32 %s14, %s21
    %p201 = scmp.eq.s32.totalorder %s200, 0
    %s203 = sadd.s32 %s202, 1
    %s204 = scalar_select %p201, %s202, %s203
    %p207 = pneg %p201
    %p208 = scmp.eq.s32.totalorder %s14, 1
    %p209 = por %p207, %p208
    %p210 = scmp.ne.s32.totalorder %s202, %s205
    %p211 = scmp.eq.s32.totalorder %s14, 0
    %p212 = por %p210, %p211
    %p213 = scmp.ne.s32.totalorder %s202, %s205
    %p214 = scmp.eq.s32.totalorder %s19, 1
    %p215 = por %p213, %p214
    %p216 = scmp.ne.s32.totalorder %s205, %s206
    %p217 = scmp.eq.s32.totalorder %s19, 0
    %p218 = por %p216, %p217
    %p219 = scmp.ne.s32.totalorder %s205, %s206
    %p220 = scmp.eq.s32.totalorder %s20, 1
    %p221 = por %p219, %p220
    %p223 = scmp.ne.s32.totalorder %s206, %s222
    %p224 = scmp.eq.s32.totalorder %s20, 0
    %p225 = por %p223, %p224
    %p226 = scmp.le.s32.totalorder 1, %s14
    %p227 = scmp.lt.s32.totalorder %s14, 3
    %p228 = pnand %p226, %p227
    %p229 = pneg %p228
    // Predicated region
    $region9: #{transformer_block_forward.10} parent=5 // pred_check
      _
    $region10: #{transformer_block_forward.10} parent=5 // pred_check_branch
      %231 = sbr.rel (%p228) target = $region12
    $region11: #{transformer_block_forward.10} parent=5 // pred_region
      %s232 = ssub.s32 %s14, 1
      // Predicated region
      $region13: #{transformer_block_forward.10} parent=11 // pred_check
        %p233 = pneg %p87
      $region14: #{transformer_block_forward.10} parent=11 // pred_check_branch
        %235 = sbr.rel (%p233) target = $region16
      $region15: #{transformer_block_forward.10} parent=11 // pred_region
        _
      $region16: #{transformer_block_forward.10} parent=11 // pred_fallthru
        _
      // Predicated region
      $region17: #{transformer_block_forward.10} parent=11 // pred_check
        %p236 = pneg %p108
      $region18: #{transformer_block_forward.10} parent=11 // pred_check_branch
        %238 = sbr.rel (%p236) target = $region20
      $region19: #{transformer_block_forward.10} parent=11 // pred_region
        _
      $region20: #{transformer_block_forward.10} parent=11 // pred_fallthru
        _
      // Predicated region
      $region21: #{transformer_block_forward.10} parent=11 // pred_check
        %p239 = pneg %p129
      $region22: #{transformer_block_forward.10} parent=11 // pred_check_branch
        %241 = sbr.rel (%p239) target = $region24
      $region23: #{transformer_block_forward.10} parent=11 // pred_region
        _
      $region24: #{transformer_block_forward.10} parent=11 // pred_fallthru
        _
      // Predicated region
      $region25: #{transformer_block_forward.10} parent=11 // pred_check
        %p242 = pneg %p150
      $region26: #{transformer_block_forward.10} parent=11 // pred_check_branch
        %244 = sbr.rel (%p242) target = $region28
      $region27: #{transformer_block_forward.10} parent=11 // pred_region
        _
      $region28: #{transformer_block_forward.10} parent=11 // pred_fallthru
        _
      // Predicated region
      $region29: #{transformer_block_forward.10} parent=11 // pred_check
        %p245 = pneg %p171
      $region30: #{transformer_block_forward.10} parent=11 // pred_check_branch
        %247 = sbr.rel (%p245) target = $region32
      $region31: #{transformer_block_forward.10} parent=11 // pred_region
        _
      $region32: #{transformer_block_forward.10} parent=11 // pred_fallthru
        _
      // Predicated region
      $region33: #{transformer_block_forward.10} parent=11 // pred_check
        %p248 = pneg %p192
      $region34: #{transformer_block_forward.10} parent=11 // pred_check_branch
        %250 = sbr.rel (%p248) target = $region36
      $region35: #{transformer_block_forward.10} parent=11 // pred_region
        _
      $region36: #{transformer_block_forward.10} parent=11 // pred_fallthru
        _
    $region12: #{transformer_block_forward.10} parent=5 // pred_fallthru
      _
    %p251 = scmp.lt.s32.totalorder %s14, 2
    // Predicated region
    $region37: #{transformer_block_forward.10} parent=5 // pred_check
      %p252 = pneg %p251
    $region38: #{transformer_block_forward.10} parent=5 // pred_check_branch
      %254 = sbr.rel (%p252) target = $region40
    $region39: #{transformer_block_forward.10} parent=5 // pred_region
      // Predicated region
      $region41: #{transformer_block_forward.10} parent=39 // pred_check
        %p255 = pneg %p34
      $region42: #{transformer_block_forward.10} parent=39 // pred_check_branch
        %257 = sbr.rel (%p255) target = $region44
      $region43: #{transformer_block_forward.10} parent=39 // pred_region
        %p258 = scmp.lt.s32.totalorder %s14, 1
        %s259 = scalar_select %p258, %s14, 1
        %s260 = smul.addr %s259, 8
        %s261 = scalar_lea.vmem %s0, %s260
      $region44: #{transformer_block_forward.10} parent=39 // pred_fallthru
        _
      // Predicated region
      $region45: #{transformer_block_forward.10} parent=39 // pred_check
        %p262 = pneg %p60
      $region46: #{transformer_block_forward.10} parent=39 // pred_check_branch
        %264 = sbr.rel (%p262) target = $region48
      $region47: #{transformer_block_forward.10} parent=39 // pred_region
        %p265 = scmp.lt.s32.totalorder %s14, 1
        %s266 = scalar_select %p265, %s14, 1
        %s267 = smul.addr %s266, 8
        %s268 = scalar_lea.vmem %s1, %s267
      $region48: #{transformer_block_forward.10} parent=39 // pred_fallthru
        _
    $region40: #{transformer_block_forward.10} parent=5 // pred_fallthru
      _
    %p269 = scmp.le.s32.totalorder 1, %s14
    %p270 = scmp.lt.s32.totalorder %s14, 3
    %p271 = pnand %p269, %p270
    %p272 = pneg %p271
    // Predicated region
    $region49: #{transformer_block_forward.10} parent=5 // pred_check
      _
    $region50: #{transformer_block_forward.10} parent=5 // pred_check_branch
      %274 = sbr.rel (%p271) target = $region52
    $region51: #{transformer_block_forward.10} parent=5 // pred_region
      %s275 = ssub.s32 %s14, 1
      %p276 = scmp.lt.s32.totalorder %s19, 1
      %s277 = scalar_select %p276, %s19, 1
      %s278 = smul.addr %s277, 8
      %s279 = scalar_lea.vmem %s0, %s278
      %p280 = pneg %p40
      %p281 = pneg %p37
      %p282 = scmp.lt.s32.totalorder %s19, 1
      %s283 = scalar_select %p282, %s19, 1
      %s284 = smul.addr %s283, 8
      %s285 = scalar_lea.vmem %s1, %s284
      %p286 = pneg %p66
      %p287 = pneg %p63
      %p288 = pneg %p87
      %p289 = pneg %p84
      %p290 = pneg %p108
      %p291 = pneg %p105
      %p292 = pneg %p129
      %p293 = pneg %p126
      %p294 = pneg %p150
      %p295 = pneg %p147
      %p296 = pneg %p171
      %p297 = pneg %p168
      %p298 = pneg %p192
      %p299 = pneg %p189
      %p300 = pneg %p218
      %p301 = pneg %p215
      %p302 = scmp.lt.s32.totalorder %s19, 1
      %s303 = scalar_select %p302, %s19, 1
      %s304 = smul.addr %s303, 8
      %s305 = scalar_lea.vmem %s8, %s304
      %p306 = scmp.lt.s32.totalorder %s19, 1
      %s307 = scalar_select %p306, %s19, 1
      %s308 = smul.addr %s307, 8
      %s309 = scalar_lea.vmem %s0, %s308
      %p310 = scmp.lt.s32.totalorder %s19, 1
      %s311 = scalar_select %p310, %s19, 1
      %s312 = smul.addr %s311, 8
      %s313 = scalar_lea.vmem %s1, %s312
      %p314 = scmp.lt.s32.totalorder %s19, 1
      %s315 = scalar_select %p314, %s19, 1
      %s316 = smul.addr %s315, 8
      %s317 = scalar_lea.vmem %s8, %s316
      %v319 = vld [vmem:[%s309] sm:$0xff]
      %v320 = vpack.c.bf16 %v319, %v319
      %v321 = vld [vmem:[%s313] sm:$0x3f]
      %v322 = vpack.c.bf16 %v321, %v321
      %v323 = vld [vmem:[%s2] sm:$0xf]
      %v324 = vld [vmem:[%s2 + $0x4] sm:$0xf]
      %v325 = vld [vmem:[%s2 + $0x8] sm:$0xf]
      %v326 = vld [vmem:[%s2 + $0xc] sm:$0xf]
      %v327 = vld [vmem:[%s3] sm:$0x1]
      %v329 = vlaneseq
      %v330 = vshrl.u32 %v329, 7
      %v331 = vsub.s32 0, %v330
      %v332 = vrot.slane %v327, %v331
      %v338 = vunpack.c.l.b16 %v323
      %v339 = vunpack.c.l.b16 %v324
      %v340 = vunpack.c.l.b16 %v325
      %v341 = vunpack.c.l.b16 %v326
      %v342 = vpack.c.b16 %v339, %v338
      %v343 = vpack.c.b16 %v341, %v340
      %vm346 = vcmask 261120
      %v348 = vsel %vm346, %v320, 0
      %350 = vmatprep.subr.bf16.mxu0 0
      %351 = vmatpush1.bf16.msra.mxu0 %v342
      %352 = vmatprep.subr.bf16.mxu0 0
      %353 = vmatpush1.bf16.msra.mxu0 %v343
      %354 = vmatprep.subr.bf16.mxu0 0
      %355 = vmatpush1.bf16.msra.mxu0 0
      %356 = vmatprep.subr.bf16.mxu0 0
      %357 = vmatpush1.bf16.msra.mxu0 0
      %358 = vmatprep.subr.bf16.mxu0 0
      %359 = vmatpush1.bf16.msra.mxu0 0
      %360 = vmatprep.subr.bf16.mxu0 0
      %361 = vmatpush1.bf16.msra.mxu0 0
      %362 = vmatprep.subr.bf16.mxu0 0
      %363 = vmatpush1.bf16.msra.mxu0 0
      %364 = vmatprep.subr.bf16.mxu0 0
      %365 = vmatpush1.bf16.msra.mxu0 0
      %366 = vmatprep.subr.bf16.mxu0 0
      %367 = vmatpush1.bf16.msra.mxu0 0
      %368 = vmatprep.subr.bf16.mxu0 0
      %369 = vmatpush1.bf16.msra.mxu0 0
      %370 = vmatprep.subr.bf16.mxu0 0
      %371 = vmatpush1.bf16.msra.mxu0 0
      %372 = vmatprep.subr.bf16.mxu0 0
      %373 = vmatpush1.bf16.msra.mxu0 0
      %374 = vmatprep.subr.bf16.mxu0 0
      %375 = vmatpush1.bf16.msra.mxu0 0
      %376 = vmatprep.subr.bf16.mxu0 0
      %377 = vmatpush1.bf16.msra.mxu0 0
      %378 = vmatprep.subr.bf16.mxu0 0
      %379 = vmatpush1.bf16.msra.mxu0 0
      %380 = vmatprep.subr.bf16.mxu0 0
      %381 = vmatpush1.bf16.msra.mxu0 0
      %382 = vmatprep.mubr.bf16.mxu0 0
      %383 = vmatmul.mubr.bf16.gmra.mrb[0].mxu0 %v348
      %v384 = vpop.f32.mrb[0].mxu0
      %v385 = vadd.f32 %v332, %v384
      %v386 = vpop.f32.mrb[0].mxu0
      %v387 = vpop.f32.mrb[0].mxu0
      %v388 = vpop.f32.mrb[0].mxu0
      %389 = vdwg.mxu0
      %v390 = vpack.c.bf16 %v385, %v385
      %vm391 = vcmask 257024
      %392 = vst.msk [vmem:[#allocation2] sm:$0xf] %vm391, %v390
      %v393 = vld [vmem:[%s4] sm:$0xf]
      %v394 = vld [vmem:[%s4 + $0x4] sm:$0xf]
      %v395 = vld [vmem:[%s4 + $0x8] sm:$0xf]
      %v396 = vld [vmem:[%s4 + $0xc] sm:$0xf]
      %v397 = vld [vmem:[%s5] sm:$0x1]
      %v399 = vlaneseq
      %v400 = vshrl.u32 %v399, 7
      %v401 = vsub.s32 0, %v400
      %v402 = vrot.slane %v397, %v401
      %v408 = vunpack.c.l.b16 %v393
      %v409 = vunpack.c.l.b16 %v394
      %v410 = vunpack.c.l.b16 %v395
      %v411 = vunpack.c.l.b16 %v396
      %v412 = vpack.c.b16 %v409, %v408
      %v413 = vpack.c.b16 %v411, %v410
      %v417 = vsel %vm346, %v322, 0
      %419 = vmatprep.subr.bf16.mxu0 0
      %420 = vmatpush1.bf16.msra.mxu0 %v412
      %421 = vmatprep.subr.bf16.mxu0 0
      %422 = vmatpush1.bf16.msra.mxu0 %v413
      %423 = vmatprep.subr.bf16.mxu0 0
      %424 = vmatpush1.bf16.msra.mxu0 0
      %425 = vmatprep.subr.bf16.mxu0 0
      %426 = vmatpush1.bf16.msra.mxu0 0
      %427 = vmatprep.subr.bf16.mxu0 0
      %428 = vmatpush1.bf16.msra.mxu0 0
      %429 = vmatprep.subr.bf16.mxu0 0
      %430 = vmatpush1.bf16.msra.mxu0 0
      %431 = vmatprep.subr.bf16.mxu0 0
      %432 = vmatpush1.bf16.msra.mxu0 0
      %433 = vmatprep.subr.bf16.mxu0 0
      %434 = vmatpush1.bf16.msra.mxu0 0
      %435 = vmatprep.subr.bf16.mxu0 0
      %436 = vmatpush1.bf16.msra.mxu0 0
      %437 = vmatprep.subr.bf16.mxu0 0
      %438 = vmatpush1.bf16.msra.mxu0 0
      %439 = vmatprep.subr.bf16.mxu0 0
      %440 = vmatpush1.bf16.msra.mxu0 0
      %441 = vmatprep.subr.bf16.mxu0 0
      %442 = vmatpush1.bf16.msra.mxu0 0
      %443 = vmatprep.subr.bf16.mxu0 0
      %444 = vmatpush1.bf16.msra.mxu0 0
      %445 = vmatprep.subr.bf16.mxu0 0
      %446 = vmatpush1.bf16.msra.mxu0 0
      %447 = vmatprep.subr.bf16.mxu0 0
      %448 = vmatpush1.bf16.msra.mxu0 0
      %449 = vmatprep.subr.bf16.mxu0 0
      %450 = vmatpush1.bf16.msra.mxu0 0
      %451 = vmatprep.mubr.bf16.mxu0 0
      %452 = vmatmul.mubr.bf16.gmra.mrb[0].mxu0 %v417
      %v453 = vpop.f32.mrb[0].mxu0
      %v454 = vadd.f32 %v402, %v453
      %v455 = vpop.f32.mrb[0].mxu0
      %v456 = vpop.f32.mrb[0].mxu0
      %v457 = vpop.f32.mrb[0].mxu0
      %458 = vdwg.mxu0
      %v459 = vpack.c.bf16 %v454, %v454
      %vm460 = vcmask 256000
      %461 = vst.msk [vmem:[#allocation3] sm:$0x7] %vm460, %v459
      %v463 = vunpack.c.l.b16 %v459
      %v464 = vpack.c.b16 %v463, %v463
      %465 = vrot.lane.b32.xlu0 %v464, 96
      %v466 = vpop.permute.xlu0 %465
      %468 = vst.msk [vmem:[#allocation4] sm:$0x7] %vm460, %v466
      %v469 = vld [vmem:[#allocation2] sm:$0xf]
      %v470 = vld [vmem:[#allocation3] sm:$0x7]
      %v471 = vld [vmem:[#allocation4] sm:$0x7]
      %vm472 = vcmask 31744
      %v474 = vsel %vm472, %v469, 0
      %v477 = vsel %vm472, %v470, 0
      %479 = vmatprep.subr.bf16.mxu0 0
      %480 = vmatpush1.bf16.xpose.msra.mxu0 %v477
      %481 = vmatprep.subr.bf16.mxu0 0
      %482 = vmatpush1.bf16.xpose.msra.mxu0 0
      %483 = vmatprep.subr.bf16.mxu0 0
      %484 = vmatpush1.bf16.xpose.msra.mxu0 0
      %485 = vmatprep.subr.bf16.mxu0 0
      %486 = vmatpush1.bf16.xpose.msra.mxu0 0
      %487 = vmatprep.subr.bf16.mxu0 0
      %488 = vmatpush1.bf16.xpose.msra.mxu0 0
      %489 = vmatprep.subr.bf16.mxu0 0
      %490 = vmatpush1.bf16.xpose.msra.mxu0 0
      %491 = vmatprep.subr.bf16.mxu0 0
      %492 = vmatpush1.bf16.xpose.msra.mxu0 0
      %493 = vmatprep.subr.bf16.mxu0 0
      %494 = vmatpush1.bf16.xpose.msra.mxu0 0
      %495 = vmatprep.subr.bf16.mxu0 0
      %496 = vmatpush1.bf16.xpose.msra.mxu0 0
      %497 = vmatprep.subr.bf16.mxu0 0
      %498 = vmatpush1.bf16.xpose.msra.mxu0 0
      %499 = vmatprep.subr.bf16.mxu0 0
      %500 = vmatpush1.bf16.xpose.msra.mxu0 0
      %501 = vmatprep.subr.bf16.mxu0 0
      %502 = vmatpush1.bf16.xpose.msra.mxu0 0
      %503 = vmatprep.subr.bf16.mxu0 0
      %504 = vmatpush1.bf16.xpose.msra.mxu0 0
      %505 = vmatprep.subr.bf16.mxu0 0
      %506 = vmatpush1.bf16.xpose.msra.mxu0 0
      %507 = vmatprep.subr.bf16.mxu0 0
      %508 = vmatpush1.bf16.xpose.msra.mxu0 0
      %509 = vmatprep.subr.bf16.mxu0 0
      %510 = vmatpush1.bf16.xpose.msra.mxu0 0
      %511 = vmatprep.mubr.bf16.mxu0 0
      %512 = vmatmul.mubr.bf16.gmra.mrb[0].mxu0 %v474
      %v513 = vpop.f32.mrb[0].mxu0
      %v514 = vadd.f32 0.0, %v513
      %v515 = vpop.f32.mrb[0].mxu0
      %v516 = vpop.f32.mrb[0].mxu0
      %v517 = vpop.f32.mrb[0].mxu0
      %518 = vdwg.mxu0
      %v519 = vmul.f32 %v514, 0.5
      %vm520 = vcmask 48128
      %v521 = vsel %vm520, %v519, -inf
      %522 = vmax.xlane.f32.xlu0 %v521
      %v523 = vpop.xlane.xlu0 %522
      %v524 = vsub.f32 %v519, %v523
      %v525 = vmul.f32 %v524, 1.442695
      %v526 = vpow.pop %v525
      %v527 = vsel %vm520, %v526, 0.0
      %528 = vadd.xlane.f32.xlu0 %v527
      %v529 = vpop.xlane.xlu0 %528
      %v530 = vrcp.pop %v529
      %v531 = vmul.f32 %v526, %v530
      %v532 = vpack.c.bf16 %v531, %v531
      %v534 = vsel %vm520, %v532, 0
      %vm536 = vcmask 1042432
      %v538 = vsel %vm536, %v471, 0
      %540 = vmatprep.subr.bf16.mxu0 0
      %541 = vmatpush1.bf16.msra.mxu0 %v538
      %542 = vmatprep.subr.bf16.mxu0 0
      %543 = vmatpush1.bf16.msra.mxu0 0
      %544 = vmatprep.subr.bf16.mxu0 0
      %545 = vmatpush1.bf16.msra.mxu0 0
      %546 = vmatprep.subr.bf16.mxu0 0
      %547 = vmatpush1.bf16.msra.mxu0 0
      %548 = vmatprep.subr.bf16.mxu0 0
      %549 = vmatpush1.bf16.msra.mxu0 0
      %550 = vmatprep.subr.bf16.mxu0 0
      %551 = vmatpush1.bf16.msra.mxu0 0
      %552 = vmatprep.subr.bf16.mxu0 0
      %553 = vmatpush1.bf16.msra.mxu0 0
      %554 = vmatprep.subr.bf16.mxu0 0
      %555 = vmatpush1.bf16.msra.mxu0 0
      %556 = vmatprep.subr.bf16.mxu0 0
      %557 = vmatpush1.bf16.msra.mxu0 0
      %558 = vmatprep.subr.bf16.mxu0 0
      %559 = vmatpush1.bf16.msra.mxu0 0
      %560 = vmatprep.subr.bf16.mxu0 0
      %561 = vmatpush1.bf16.msra.mxu0 0
      %562 = vmatprep.subr.bf16.mxu0 0
      %563 = vmatpush1.bf16.msra.mxu0 0
      %564 = vmatprep.subr.bf16.mxu0 0
      %565 = vmatpush1.bf16.msra.mxu0 0
      %566 = vmatprep.subr.bf16.mxu0 0
      %567 = vmatpush1.bf16.msra.mxu0 0
      %568 = vmatprep.subr.bf16.mxu0 0
      %569 = vmatpush1.bf16.msra.mxu0 0
      %570 = vmatprep.subr.bf16.mxu0 0
      %571 = vmatpush1.bf16.msra.mxu0 0
      %572 = vmatprep.mubr.bf16.mxu0 0
      %573 = vmatmul.mubr.bf16.gmra.mrb[0].mxu0 %v534
      %v574 = vpop.f32.mrb[0].mxu0
      %v575 = vadd.f32 0.0, %v574
      %v576 = vpop.f32.mrb[0].mxu0
      %v577 = vpop.f32.mrb[0].mxu0
      %v578 = vpop.f32.mrb[0].mxu0
      %579 = vdwg.mxu0
      %580 = vst.msk [vmem:[#allocation5] sm:$0xff] %vm472, %v575
      %v581 = vld [vmem:[#allocation2] sm:$0xf]
      %v582 = vld [vmem:[#allocation3] sm:$0x7]
      %v583 = vld [vmem:[#allocation4] sm:$0x7]
      %v585 = vunpack.c.l.b16 %v581
      %v586 = vpack.c.b16 %v585, %v585
      %587 = vrot.lane.b32.xlu0 %v586, 124
      %v588 = vpop.permute.xlu0 %587
      %v590 = vunpack.c.l.b16 %v582
      %v591 = vpack.c.b16 %v590, %v590
      %592 = vrot.lane.b32.xlu0 %v591, 124
      %v593 = vpop.permute.xlu0 %592
      %v595 = vsel %vm472, %v588, 0
      %v598 = vsel %vm472, %v593, 0
      %600 = vmatprep.subr.bf16.mxu0 0
      %601 = vmatpush1.bf16.xpose.msra.mxu0 %v598
      %602 = vmatprep.subr.bf16.mxu0 0
      %603 = vmatpush1.bf16.xpose.msra.mxu0 0
      %604 = vmatprep.subr.bf16.mxu0 0
      %605 = vmatpush1.bf16.xpose.msra.mxu0 0
      %606 = vmatprep.subr.bf16.mxu0 0
      %607 = vmatpush1.bf16.xpose.msra.mxu0 0
      %608 = vmatprep.subr.bf16.mxu0 0
      %609 = vmatpush1.bf16.xpose.msra.mxu0 0
      %610 = vmatprep.subr.bf16.mxu0 0
      %611 = vmatpush1.bf16.xpose.msra.mxu0 0
      %612 = vmatprep.subr.bf16.mxu0 0
      %613 = vmatpush1.bf16.xpose.msra.mxu0 0
      %614 = vmatprep.subr.bf16.mxu0 0
      %615 = vmatpush1.bf16.xpose.msra.mxu0 0
      %616 = vmatprep.subr.bf16.mxu0 0
      %617 = vmatpush1.bf16.xpose.msra.mxu0 0
      %618 = vmatprep.subr.bf16.mxu0 0
      %619 = vmatpush1.bf16.xpose.msra.mxu0 0
      %620 = vmatprep.subr.bf16.mxu0 0
      %621 = vmatpush1.bf16.xpose.msra.mxu0 0
      %622 = vmatprep.subr.bf16.mxu0 0
      %623 = vmatpush1.bf16.xpose.msra.mxu0 0
      %624 = vmatprep.subr.bf16.mxu0 0
      %625 = vmatpush1.bf16.xpose.msra.mxu0 0
      %626 = vmatprep.subr.bf16.mxu0 0
      %627 = vmatpush1.bf16.xpose.msra.mxu0 0
      %628 = vmatprep.subr.bf16.mxu0 0
      %629 = vmatpush1.bf16.xpose.msra.mxu0 0
      %630 = vmatprep.subr.bf16.mxu0 0
      %631 = vmatpush1.bf16.xpose.msra.mxu0 0
      %632 = vmatprep.mubr.bf16.mxu0 0
      %633 = vmatmul.mubr.bf16.gmra.mrb[0].mxu0 %v595
      %v634 = vpop.f32.mrb[0].mxu0
      %v635 = vadd.f32 0.0, %v634
      %v636 = vpop.f32.mrb[0].mxu0
      %v637 = vpop.f32.mrb[0].mxu0
      %v638 = vpop.f32.mrb[0].mxu0
      %639 = vdwg.mxu0
      %v640 = vmul.f32 %v635, 0.5
      %v641 = vsel %vm520, %v640, -inf
      %642 = vmax.xlane.f32.xlu0 %v641
      %v643 = vpop.xlane.xlu0 %642
      %v644 = vsub.f32 %v640, %v643
      %v645 = vmul.f32 %v644, 1.442695
      %v646 = vpow.pop %v645
      %v647 = vsel %vm520, %v646, 0.0
      %648 = vadd.xlane.f32.xlu0 %v647
      %v649 = vpop.xlane.xlu0 %648
      %v650 = vrcp.pop %v649
      %v651 = vmul.f32 %v646, %v650
      %v652 = vpack.c.bf16 %v651, %v651
      %v654 = vunpack.c.l.b16 %v583
      %v655 = vpack.c.b16 %v654, %v654
      %656 = vrot.lane.b32.xlu0 %v655, 124
      %v657 = vpop.permute.xlu0 %656
      %v659 = vsel %vm520, %v652, 0
      %v662 = vsel %vm536, %v657, 0
      %664 = vmatprep.subr.bf16.mxu0 0
      %665 = vmatpush1.bf16.msra.mxu0 %v662
      %666 = vmatprep.subr.bf16.mxu0 0
      %667 = vmatpush1.bf16.msra.mxu0 0
      %668 = vmatprep.subr.bf16.mxu0 0
      %669 = vmatpush1.bf16.msra.mxu0 0
      %670 = vmatprep.subr.bf16.mxu0 0
      %671 = vmatpush1.bf16.msra.mxu0 0
      %672 = vmatprep.subr.bf16.mxu0 0
      %673 = vmatpush1.bf16.msra.mxu0 0
      %674 = vmatprep.subr.bf16.mxu0 0
      %675 = vmatpush1.bf16.msra.mxu0 0
      %676 = vmatprep.subr.bf16.mxu0 0
      %677 = vmatpush1.bf16.msra.mxu0 0
      %678 = vmatprep.subr.bf16.mxu0 0
      %679 = vmatpush1.bf16.msra.mxu0 0
      %680 = vmatprep.subr.bf16.mxu0 0
      %681 = vmatpush1.bf16.msra.mxu0 0
      %682 = vmatprep.subr.bf16.mxu0 0
      %683 = vmatpush1.bf16.msra.mxu0 0
      %684 = vmatprep.subr.bf16.mxu0 0
      %685 = vmatpush1.bf16.msra.mxu0 0
      %686 = vmatprep.subr.bf16.mxu0 0
      %687 = vmatpush1.bf16.msra.mxu0 0
      %688 = vmatprep.subr.bf16.mxu0 0
      %689 = vmatpush1.bf16.msra.mxu0 0
      %690 = vmatprep.subr.bf16.mxu0 0
      %691 = vmatpush1.bf16.msra.mxu0 0
      %692 = vmatprep.subr.bf16.mxu0 0
      %693 = vmatpush1.bf16.msra.mxu0 0
      %694 = vmatprep.subr.bf16.mxu0 0
      %695 = vmatpush1.bf16.msra.mxu0 0
      %696 = vmatprep.mubr.bf16.mxu0 0
      %697 = vmatmul.mubr.bf16.gmra.mrb[0].mxu0 %v659
      %v698 = vpop.f32.mrb[0].mxu0
      %v699 = vadd.f32 0.0, %v698
      %v700 = vpop.f32.mrb[0].mxu0
      %v701 = vpop.f32.mrb[0].mxu0
      %v702 = vpop.f32.mrb[0].mxu0
      %703 = vdwg.mxu0
      %705 = vrot.lane.b32.xlu0 %v699, 4
      %v706 = vpop.permute.xlu0 %705
      %vm708 = vcmask 64544
      %709 = vst.msk [vmem:[#allocation5] sm:$0xff] %vm708, %v706
      %v710 = vld [vmem:[#allocation2] sm:$0xf]
      %v711 = vld [vmem:[#allocation3] sm:$0x7]
      %v712 = vld [vmem:[#allocation4] sm:$0x7]
      %v714 = vunpack.c.l.b16 %v710
      %v715 = vpack.c.b16 %v714, %v714
      %716 = vrot.lane.b32.xlu0 %v715, 120
      %v717 = vpop.permute.xlu0 %716
      %v719 = vunpack.c.l.b16 %v711
      %v720 = vpack.c.b16 %v719, %v719
      %721 = vrot.lane.b32.xlu0 %v720, 120
      %v722 = vpop.permute.xlu0 %721
      %v724 = vsel %vm472, %v717, 0
      %v727 = vsel %vm472, %v722, 0
      %729 = vmatprep.subr.bf16.mxu0 0
      %730 = vmatpush1.bf16.xpose.msra.mxu0 %v727
      %731 = vmatprep.subr.bf16.mxu0 0
      %732 = vmatpush1.bf16.xpose.msra.mxu0 0
      %733 = vmatprep.subr.bf16.mxu0 0
      %734 = vmatpush1.bf16.xpose.msra.mxu0 0
      %735 = vmatprep.subr.bf16.mxu0 0
      %736 = vmatpush1.bf16.xpose.msra.mxu0 0
      %737 = vmatprep.subr.bf16.mxu0 0
      %738 = vmatpush1.bf16.xpose.msra.mxu0 0
      %739 = vmatprep.subr.bf16.mxu0 0
      %740 = vmatpush1.bf16.xpose.msra.mxu0 0
      %741 = vmatprep.subr.bf16.mxu0 0
      %742 = vmatpush1.bf16.xpose.msra.mxu0 0
      %743 = vmatprep.subr.bf16.mxu0 0
      %744 = vmatpush1.bf16.xpose.msra.mxu0 0
      %745 = vmatprep.subr.bf16.mxu0 0
      %746 = vmatpush1.bf16.xpose.msra.mxu0 0
      %747 = vmatprep.subr.bf16.mxu0 0
      %748 = vmatpush1.bf16.xpose.msra.mxu0 0
      %749 = vmatprep.subr.bf16.mxu0 0
      %750 = vmatpush1.bf16.xpose.msra.mxu0 0
      %751 = vmatprep.subr.bf16.mxu0 0
      %752 = vmatpush1.bf16.xpose.msra.mxu0 0
      %753 = vmatprep.subr.bf16.mxu0 0
      %754 = vmatpush1.bf16.xpose.msra.mxu0 0
      %755 = vmatprep.subr.bf16.mxu0 0
      %756 = vmatpush1.bf16.xpose.msra.mxu0 0
      %757 = vmatprep.subr.bf16.mxu0 0
      %758 = vmatpush1.bf16.xpose.msra.mxu0 0
      %759 = vmatprep.subr.bf16.mxu0 0
      %760 = vmatpush1.bf16.xpose.msra.mxu0 0
      %761 = vmatprep.mubr.bf16.mxu0 0
      %762 = vmatmul.mubr.bf16.gmra.mrb[0].mxu0 %v724
      %v763 = vpop.f32.mrb[0].mxu0
      %v764 = vadd.f32 0.0, %v763
      %v765 = vpop.f32.mrb[0].mxu0
      %v766 = vpop.f32.mrb[0].mxu0
      %v767 = vpop.f32.mrb[0].mxu0
      %768 = vdwg.mxu0
      %v769 = vmul.f32 %v764, 0.5
      %v770 = vsel %vm520, %v769, -inf
      %771 = vmax.xlane.f32.xlu0 %v770
      %v772 = vpop.xlane.xlu0 %771
      %v773 = vsub.f32 %v769, %v772
      %v774 = vmul.f32 %v773, 1.442695
      %v775 = vpow.pop %v774
      %v776 = vsel %vm520, %v775, 0.0
      %777 = vadd.xlane.f32.xlu0 %v776
      %v778 = vpop.xlane.xlu0 %777
      %v779 = vrcp.pop %v778
      %v780 = vmul.f32 %v775, %v779
      %v781 = vpack.c.bf16 %v780, %v780
      %v783 = vunpack.c.l.b16 %v712
      %v784 = vpack.c.b16 %v783, %v783
      %785 = vrot.lane.b32.xlu0 %v784, 120
      %v786 = vpop.permute.xlu0 %785
      %v788 = vsel %vm520, %v781, 0
      %v791 = vsel %vm536, %v786, 0
      %793 = vmatprep.subr.bf16.mxu0 0
      %794 = vmatpush1.bf16.msra.mxu0 %v791
      %795 = vmatprep.subr.bf16.mxu0 0
      %796 = vmatpush1.bf16.msra.mxu0 0
      %797 = vmatprep.subr.bf16.mxu0 0
      %798 = vmatpush1.bf16.msra.mxu0 0
      %799 = vmatprep.subr.bf16.mxu0 0
      %800 = vmatpush1.bf16.msra.mxu0 0
      %801 = vmatprep.subr.bf16.mxu0 0
      %802 = vmatpush1.bf16.msra.mxu0 0
      %803 = vmatprep.subr.bf16.mxu0 0
      %804 = vmatpush1.bf16.msra.mxu0 0
      %805 = vmatprep.subr.bf16.mxu0 0
      %806 = vmatpush1.bf16.msra.mxu0 0
      %807 = vmatprep.subr.bf16.mxu0 0
      %808 = vmatpush1.bf16.msra.mxu0 0
      %809 = vmatprep.subr.bf16.mxu0 0
      %810 = vmatpush1.bf16.msra.mxu0 0
      %811 = vmatprep.subr.bf16.mxu0 0
      %812 = vmatpush1.bf16.msra.mxu0 0
      %813 = vmatprep.subr.bf16.mxu0 0
      %814 = vmatpush1.bf16.msra.mxu0 0
      %815 = vmatprep.subr.bf16.mxu0 0
      %816 = vmatpush1.bf16.msra.mxu0 0
      %817 = vmatprep.subr.bf16.mxu0 0
      %818 = vmatpush1.bf16.msra.mxu0 0
      %819 = vmatprep.subr.bf16.mxu0 0
      %820 = vmatpush1.bf16.msra.mxu0 0
      %821 = vmatprep.subr.bf16.mxu0 0
      %822 = vmatpush1.bf16.msra.mxu0 0
      %823 = vmatprep.subr.bf16.mxu0 0
      %824 = vmatpush1.bf16.msra.mxu0 0
      %825 = vmatprep.mubr.bf16.mxu0 0
      %826 = vmatmul.mubr.bf16.gmra.mrb[0].mxu0 %v788
      %v827 = vpop.f32.mrb[0].mxu0
      %v828 = vadd.f32 0.0, %v827
      %v829 = vpop.f32.mrb[0].mxu0
      %v830 = vpop.f32.mrb[0].mxu0
      %v831 = vpop.f32.mrb[0].mxu0
      %832 = vdwg.mxu0
      %834 = vrot.lane.b32.xlu0 %v828, 8
      %v835 = vpop.permute.xlu0 %834
      %vm837 = vcmask 97344
      %838 = vst.msk [vmem:[#allocation5] sm:$0xff] %vm837, %v835
      %v839 = vld [vmem:[#allocation2] sm:$0xf]
      %v840 = vld [vmem:[#allocation3] sm:$0x7]
      %v841 = vld [vmem:[#allocation4] sm:$0x7]
      %v843 = vunpack.c.l.b16 %v839
      %v844 = vpack.c.b16 %v843, %v843
      %845 = vrot.lane.b32.xlu0 %v844, 116
      %v846 = vpop.permute.xlu0 %845
      %v848 = vunpack.c.l.b16 %v840
      %v849 = vpack.c.b16 %v848, %v848
      %850 = vrot.lane.b32.xlu0 %v849, 116
      %v851 = vpop.permute.xlu0 %850
      %v853 = vsel %vm472, %v846, 0
      %v856 = vsel %vm472, %v851, 0
      %858 = vmatprep.subr.bf16.mxu0 0
      %859 = vmatpush1.bf16.xpose.msra.mxu0 %v856
      %860 = vmatprep.subr.bf16.mxu0 0
      %861 = vmatpush1.bf16.xpose.msra.mxu0 0
      %862 = vmatprep.subr.bf16.mxu0 0
      %863 = vmatpush1.bf16.xpose.msra.mxu0 0
      %864 = vmatprep.subr.bf16.mxu0 0
      %865 = vmatpush1.bf16.xpose.msra.mxu0 0
      %866 = vmatprep.subr.bf16.mxu0 0
      %867 = vmatpush1.bf16.xpose.msra.mxu0 0
      %868 = vmatprep.subr.bf16.mxu0 0
      %869 = vmatpush1.bf16.xpose.msra.mxu0 0
      %870 = vmatprep.subr.bf16.mxu0 0
      %871 = vmatpush1.bf16.xpose.msra.mxu0 0
      %872 = vmatprep.subr.bf16.mxu0 0
      %873 = vmatpush1.bf16.xpose.msra.mxu0 0
      %874 = vmatprep.subr.bf16.mxu0 0
      %875 = vmatpush1.bf16.xpose.msra.mxu0 0
      %876 = vmatprep.subr.bf16.mxu0 0
      %877 = vmatpush1.bf16.xpose.msra.mxu0 0
      %878 = vmatprep.subr.bf16.mxu0 0
      %879 = vmatpush1.bf16.xpose.msra.mxu0 0
      %880 = vmatprep.subr.bf16.mxu0 0
      %881 = vmatpush1.bf16.xpose.msra.mxu0 0
      %882 = vmatprep.subr.bf16.mxu0 0
      %883 = vmatpush1.bf16.xpose.msra.mxu0 0
      %884 = vmatprep.subr.bf16.mxu0 0
      %885 = vmatpush1.bf16.xpose.msra.mxu0 0
      %886 = vmatprep.subr.bf16.mxu0 0
      %887 = vmatpush1.bf16.xpose.msra.mxu0 0
      %888 = vmatprep.subr.bf16.mxu0 0
      %889 = vmatpush1.bf16.xpose.msra.mxu0 0
      %890 = vmatprep.mubr.bf16.mxu0 0
      %891 = vmatmul.mubr.bf16.gmra.mrb[0].mxu0 %v853
      %v892 = vpop.f32.mrb[0].mxu0
      %v893 = vadd.f32 0.0, %v892
      %v894 = vpop.f32.mrb[0].mxu0
      %v895 = vpop.f32.mrb[0].mxu0
      %v896 = vpop.f32.mrb[0].mxu0
      %897 = vdwg.mxu0
      %v898 = vmul.f32 %v893, 0.5
      %v899 = vsel %vm520, %v898, -inf
      %900 = vmax.xlane.f32.xlu0 %v899
      %v901 = vpop.xlane.xlu0 %900
      %v902 = vsub.f32 %v898, %v901
      %v903 = vmul.f32 %v902, 1.442695
      %v904 = vpow.pop %v903
      %v905 = vsel %vm520, %v904, 0.0
      %906 = vadd.xlane.f32.xlu0 %v905
      %v907 = vpop.xlane.xlu0 %906
      %v908 = vrcp.pop %v907
      %v909 = vmul.f32 %v904, %v908
      %v910 = vpack.c.bf16 %v909, %v909
      %v912 = vunpack.c.l.b16 %v841
      %v913 = vpack.c.b16 %v912, %v912
      %914 = vrot.lane.b32.xlu0 %v913, 116
      %v915 = vpop.permute.xlu0 %914
      %v917 = vsel %vm520, %v910, 0
      %v920 = vsel %vm536, %v915, 0
      %922 = vmatprep.subr.bf16.mxu0 0
      %923 = vmatpush1.bf16.msra.mxu0 %v920
      %924 = vmatprep.subr.bf16.mxu0 0
      %925 = vmatpush1.bf16.msra.mxu0 0
      %926 = vmatprep.subr.bf16.mxu0 0
      %927 = vmatpush1.bf16.msra.mxu0 0
      %928 = vmatprep.subr.bf16.mxu0 0
      %929 = vmatpush1.bf16.msra.mxu0 0
      %930 = vmatprep.subr.bf16.mxu0 0
      %931 = vmatpush1.bf16.msra.mxu0 0
      %932 = vmatprep.subr.bf16.mxu0 0
      %933 = vmatpush1.bf16.msra.mxu0 0
      %934 = vmatprep.subr.bf16.mxu0 0
      %935 = vmatpush1.bf16.msra.mxu0 0
      %936 = vmatprep.subr.bf16.mxu0 0
      %937 = vmatpush1.bf16.msra.mxu0 0
      %938 = vmatprep.subr.bf16.mxu0 0
      %939 = vmatpush1.bf16.msra.mxu0 0
      %940 = vmatprep.subr.bf16.mxu0 0
      %941 = vmatpush1.bf16.msra.mxu0 0
      %942 = vmatprep.subr.bf16.mxu0 0
      %943 = vmatpush1.bf16.msra.mxu0 0
      %944 = vmatprep.subr.bf16.mxu0 0
      %945 = vmatpush1.bf16.msra.mxu0 0
      %946 = vmatprep.subr.bf16.mxu0 0
      %947 = vmatpush1.bf16.msra.mxu0 0
      %948 = vmatprep.subr.bf16.mxu0 0
      %949 = vmatpush1.bf16.msra.mxu0 0
      %950 = vmatprep.subr.bf16.mxu0 0
      %951 = vmatpush1.bf16.msra.mxu0 0
      %952 = vmatprep.subr.bf16.mxu0 0
      %953 = vmatpush1.bf16.msra.mxu0 0
      %954 = vmatprep.mubr.bf16.mxu0 0
      %955 = vmatmul.mubr.bf16.gmra.mrb[0].mxu0 %v917
      %v956 = vpop.f32.mrb[0].mxu0
      %v957 = vadd.f32 0.0, %v956
      %v958 = vpop.f32.mrb[0].mxu0
      %v959 = vpop.f32.mrb[0].mxu0
      %v960 = vpop.f32.mrb[0].mxu0
      %961 = vdwg.mxu0
      %963 = vrot.lane.b32.xlu0 %v957, 12
      %v964 = vpop.permute.xlu0 %963
      %vm966 = vcmask 130144
      %967 = vst.msk [vmem:[#allocation5] sm:$0xff] %vm966, %v964
      %v968 = vld [vmem:[#allocation2] sm:$0xf]
      %v969 = vld [vmem:[#allocation3] sm:$0x7]
      %v970 = vld [vmem:[#allocation4] sm:$0x7]
      %v972 = vunpack.c.l.b16 %v968
      %v973 = vpack.c.b16 %v972, %v972
      %974 = vrot.lane.b32.xlu0 %v973, 112
      %v975 = vpop.permute.xlu0 %974
      %v977 = vunpack.c.l.b16 %v969
      %v978 = vpack.c.b16 %v977, %v977
      %979 = vrot.lane.b32.xlu0 %v978, 112
      %v980 = vpop.permute.xlu0 %979
      %v982 = vsel %vm472, %v975, 0
      %v985 = vsel %vm472, %v980, 0
      %987 = vmatprep.subr.bf16.mxu0 0
      %988 = vmatpush1.bf16.xpose.msra.mxu0 %v985
      %989 = vmatprep.subr.bf16.mxu0 0
      %990 = vmatpush1.bf16.xpose.msra.mxu0 0
      %991 = vmatprep.subr.bf16.mxu0 0
      %992 = vmatpush1.bf16.xpose.msra.mxu0 0
      %993 = vmatprep.subr.bf16.mxu0 0
      %994 = vmatpush1.bf16.xpose.msra.mxu0 0
      %995 = vmatprep.subr.bf16.mxu0 0
      %996 = vmatpush1.bf16.xpose.msra.mxu0 0
      %997 = vmatprep.subr.bf16.mxu0 0
      %998 = vmatpush1.bf16.xpose.msra.mxu0 0
      %999 = vmatprep.subr.bf16.mxu0 0
      %1000 = vmatpush1.bf16.xpose.msra.mxu0 0
      %1001 = vmatprep.subr.bf16.mxu0 0
      %1002 = vmatpush1.bf16.xpose.msra.mxu0 0
      %1003 = vmatprep.subr.bf16.mxu0 0
      %1004 = vmatpush1.bf16.xpose.msra.mxu0 0
      %1005 = vmatprep.subr.bf16.mxu0 0
      %1006 = vmatpush1.bf16.xpose.msra.mxu0 0
      %1007 = vmatprep.subr.bf16.mxu0 0
      %1008 = vmatpush1.bf16.xpose.msra.mxu0 0
      %1009 = vmatprep.subr.bf16.mxu0 0
      %1010 = vmatpush1.bf16.xpose.msra.mxu0 0
      %1011 = vmatprep.subr.bf16.mxu0 0
      %1012 = vmatpush1.bf16.xpose.msra.mxu0 0
      %1013 = vmatprep.subr.bf16.mxu0 0
      %1014 = vmatpush1.bf16.xpose.msra.mxu0 0
      %1015 = vmatprep.subr.bf16.mxu0 0
      %1016 = vmatpush1.bf16.xpose.msra.mxu0 0
      %1017 = vmatprep.subr.bf16.mxu0 0
      %1018 = vmatpush1.bf16.xpose.msra.mxu0 0
      %1019 = vmatprep.mubr.bf16.mxu0 0
      %1020 = vmatmul.mubr.bf16.gmra.mrb[0].mxu0 %v982
      %v1021 = vpop.f32.mrb[0].mxu0
      %v1022 = vadd.f32 0.0, %v1021
      %v1023 = vpop.f32.mrb[0].mxu0
      %v1024 = vpop.f32.mrb[0].mxu0
      %v1025 = vpop.f32.mrb[0].mxu0
      %1026 = vdwg.mxu0
      %v1027 = vmul.f32 %v1022, 0.5
      %v1028 = vsel %vm520, %v1027, -inf
      %1029 = vmax.xlane.f32.xlu0 %v1028
      %v1030 = vpop.xlane.xlu0 %1029
      %v1031 = vsub.f32 %v1027, %v1030
      %v1032 = vmul.f32 %v1031, 1.442695
      %v1033 = vpow.pop %v1032
      %v1034 = vsel %vm520, %v1033, 0.0
      %1035 = vadd.xlane.f32.xlu0 %v1034
      %v1036 = vpop.xlane.xlu0 %1035
      %v1037 = vrcp.pop %v1036
      %v1038 = vmul.f32 %v1033, %v1037
      %v1039 = vpack.c.bf16 %v1038, %v1038
      %v1041 = vunpack.c.l.b16 %v970
      %v1042 = vpack.c.b16 %v1041, %v1041
      %1043 = vrot.lane.b32.xlu0 %v1042, 112
      %v1044 = vpop.permute.xlu0 %1043
      %v1046 = vsel %vm520, %v1039, 0
      %v1049 = vsel %vm536, %v1044, 0
      %1051 = vmatprep.subr.bf16.mxu0 0
      %1052 = vmatpush1.bf16.msra.mxu0 %v1049
      %1053 = vmatprep.subr.bf16.mxu0 0
      %1054 = vmatpush1.bf16.msra.mxu0 0
      %1055 = vmatprep.subr.bf16.mxu0 0
      %1056 = vmatpush1.bf16.msra.mxu0 0
      %1057 = vmatprep.subr.bf16.mxu0 0
      %1058 = vmatpush1.bf16.msra.mxu0 0
      %1059 = vmatprep.subr.bf16.mxu0 0
      %1060 = vmatpush1.bf16.msra.mxu0 0
      %1061 = vmatprep.subr.bf16.mxu0 0
      %1062 = vmatpush1.bf16.msra.mxu0 0
      %1063 = vmatprep.subr.bf16.mxu0 0
      %1064 = vmatpush1.bf16.msra.mxu0 0
      %1065 = vmatprep.subr.bf16.mxu0 0
      %1066 = vmatpush1.bf16.msra.mxu0 0
      %1067 = vmatprep.subr.bf16.mxu0 0
      %1068 = vmatpush1.bf16.msra.mxu0 0
      %1069 = vmatprep.subr.bf16.mxu0 0
      %1070 = vmatpush1.bf16.msra.mxu0 0
      %1071 = vmatprep.subr.bf16.mxu0 0
      %1072 = vmatpush1.bf16.msra.mxu0 0
      %1073 = vmatprep.subr.bf16.mxu0 0
      %1074 = vmatpush1.bf16.msra.mxu0 0
      %1075 = vmatprep.subr.bf16.mxu0 0
      %1076 = vmatpush1.bf16.msra.mxu0 0
      %1077 = vmatprep.subr.bf16.mxu0 0
      %1078 = vmatpush1.bf16.msra.mxu0 0
      %1079 = vmatprep.subr.bf16.mxu0 0
      %1080 = vmatpush1.bf16.msra.mxu0 0
      %1081 = vmatprep.subr.bf16.mxu0 0
      %1082 = vmatpush1.bf16.msra.mxu0 0
      %1083 = vmatprep.mubr.bf16.mxu0 0
      %1084 = vmatmul.mubr.bf16.gmra.mrb[0].mxu0 %v1046
      %v1085 = vpop.f32.mrb[0].mxu0
      %v1086 = vadd.f32 0.0, %v1085
      %v1087 = vpop.f32.mrb[0].mxu0
      %v1088 = vpop.f32.mrb[0].mxu0
      %v1089 = vpop.f32.mrb[0].mxu0
      %1090 = vdwg.mxu0
      %1092 = vrot.lane.b32.xlu0 %v1086, 16
      %v1093 = vpop.permute.xlu0 %1092
      %vm1095 = vcmask 162944
      %1096 = vst.msk [vmem:[#allocation5] sm:$0xff] %vm1095, %v1093
      %v1097 = vld [vmem:[#allocation2] sm:$0xf]
      %v1098 = vld [vmem:[#allocation3] sm:$0x7]
      %v1099 = vld [vmem:[#allocation4] sm:$0x7]
      %v1101 = vunpack.c.l.b16 %v1097
      %v1102 = vpack.c.b16 %v1101, %v1101
      %1103 = vrot.lane.b32.xlu0 %v1102, 108
      %v1104 = vpop.permute.xlu0 %1103
      %v1106 = vunpack.c.l.b16 %v1098
      %v1107 = vpack.c.b16 %v1106, %v1106
      %1108 = vrot.lane.b32.xlu0 %v1107, 108
      %v1109 = vpop.permute.xlu0 %1108
      %v1111 = vsel %vm472, %v1104, 0
      %v1114 = vsel %vm472, %v1109, 0
      %1116 = vmatprep.subr.bf16.mxu0 0
      %1117 = vmatpush1.bf16.xpose.msra.mxu0 %v1114
      %1118 = vmatprep.subr.bf16.mxu0 0
      %1119 = vmatpush1.bf16.xpose.msra.mxu0 0
      %1120 = vmatprep.subr.bf16.mxu0 0
      %1121 = vmatpush1.bf16.xpose.msra.mxu0 0
      %1122 = vmatprep.subr.bf16.mxu0 0
      %1123 = vmatpush1.bf16.xpose.msra.mxu0 0
      %1124 = vmatprep.subr.bf16.mxu0 0
      %1125 = vmatpush1.bf16.xpose.msra.mxu0 0
      %1126 = vmatprep.subr.bf16.mxu0 0
      %1127 = vmatpush1.bf16.xpose.msra.mxu0 0
      %1128 = vmatprep.subr.bf16.mxu0 0
      %1129 = vmatpush1.bf16.xpose.msra.mxu0 0
      %1130 = vmatprep.subr.bf16.mxu0 0
      %1131 = vmatpush1.bf16.xpose.msra.mxu0 0
      %1132 = vmatprep.subr.bf16.mxu0 0
      %1133 = vmatpush1.bf16.xpose.msra.mxu0 0
      %1134 = vmatprep.subr.bf16.mxu0 0
      %1135 = vmatpush1.bf16.xpose.msra.mxu0 0
      %1136 = vmatprep.subr.bf16.mxu0 0
      %1137 = vmatpush1.bf16.xpose.msra.mxu0 0
      %1138 = vmatprep.subr.bf16.mxu0 0
      %1139 = vmatpush1.bf16.xpose.msra.mxu0 0
      %1140 = vmatprep.subr.bf16.mxu0 0
      %1141 = vmatpush1.bf16.xpose.msra.mxu0 0
      %1142 = vmatprep.subr.bf16.mxu0 0
      %1143 = vmatpush1.bf16.xpose.msra.mxu0 0
      %1144 = vmatprep.subr.bf16.mxu0 0
      %1145 = vmatpush1.bf16.xpose.msra.mxu0 0
      %1146 = vmatprep.subr.bf16.mxu0 0
      %1147 = vmatpush1.bf16.xpose.msra.mxu0 0
      %1148 = vmatprep.mubr.bf16.mxu0 0
      %1149 = vmatmul.mubr.bf16.gmra.mrb[0].mxu0 %v1111
      %v1150 = vpop.f32.mrb[0].mxu0
      %v1151 = vadd.f32 0.0, %v1150
      %v1152 = vpop.f32.mrb[0].mxu0
      %v1153 = vpop.f32.mrb[0].mxu0
      %v1154 = vpop.f32.mrb[0].mxu0
      %1155 = vdwg.mxu0
      %v1156 = vmul.f32 %v1151, 0.5
      %v1157 = vsel %vm520, %v1156, -inf
      %1158 = vmax.xlane.f32.xlu0 %v1157
      %v1159 = vpop.xlane.xlu0 %1158
      %v1160 = vsub.f32 %v1156, %v1159
      %v1161 = vmul.f32 %v1160, 1.442695
      %v1162 = vpow.pop %v1161
      %v1163 = vsel %vm520, %v1162, 0.0
      %1164 = vadd.xlane.f32.xlu0 %v1163
      %v1165 = vpop.xlane.xlu0 %1164
      %v1166 = vrcp.pop %v1165
      %v1167 = vmul.f32 %v1162, %v1166
      %v1168 = vpack.c.bf16 %v1167, %v1167
      %v1170 = vunpack.c.l.b16 %v1099
      %v1171 = vpack.c.b16 %v1170, %v1170
      %1172 = vrot.lane.b32.xlu0 %v1171, 108
      %v1173 = vpop.permute.xlu0 %1172
      %v1175 = vsel %vm520, %v1168, 0
      %v1178 = vsel %vm536, %v1173, 0
      %1180 = vmatprep.subr.bf16.mxu0 0
      %1181 = vmatpush1.bf16.msra.mxu0 %v1178
      %1182 = vmatprep.subr.bf16.mxu0 0
      %1183 = vmatpush1.bf16.msra.mxu0 0
      %1184 = vmatprep.subr.bf16.mxu0 0
      %1185 = vmatpush1.bf16.msra.mxu0 0
      %1186 = vmatprep.subr.bf16.mxu0 0
      %1187 = vmatpush1.bf16.msra.mxu0 0
      %1188 = vmatprep.subr.bf16.mxu0 0
      %1189 = vmatpush1.bf16.msra.mxu0 0
      %1190 = vmatprep.subr.bf16.mxu0 0
      %1191 = vmatpush1.bf16.msra.mxu0 0
      %1192 = vmatprep.subr.bf16.mxu0 0
      %1193 = vmatpush1.bf16.msra.mxu0 0
      %1194 = vmatprep.subr.bf16.mxu0 0
      %1195 = vmatpush1.bf16.msra.mxu0 0
      %1196 = vmatprep.subr.bf16.mxu0 0
      %1197 = vmatpush1.bf16.msra.mxu0 0
      %1198 = vmatprep.subr.bf16.mxu0 0
      %1199 = vmatpush1.bf16.msra.mxu0 0
      %1200 = vmatprep.subr.bf16.mxu0 0
      %1201 = vmatpush1.bf16.msra.mxu0 0
      %1202 = vmatprep.subr.bf16.mxu0 0
      %1203 = vmatpush1.bf16.msra.mxu0 0
      %1204 = vmatprep.subr.bf16.mxu0 0
      %1205 = vmatpush1.bf16.msra.mxu0 0
      %1206 = vmatprep.subr.bf16.mxu0 0
      %1207 = vmatpush1.bf16.msra.mxu0 0
      %1208 = vmatprep.subr.bf16.mxu0 0
      %1209 = vmatpush1.bf16.msra.mxu0 0
      %1210 = vmatprep.subr.bf16.mxu0 0
      %1211 = vmatpush1.bf16.msra.mxu0 0
      %1212 = vmatprep.mubr.bf16.mxu0 0
      %1213 = vmatmul.mubr.bf16.gmra.mrb[0].mxu0 %v1175
      %v1214 = vpop.f32.mrb[0].mxu0
      %v1215 = vadd.f32 0.0, %v1214
      %v1216 = vpop.f32.mrb[0].mxu0
      %v1217 = vpop.f32.mrb[0].mxu0
      %v1218 = vpop.f32.mrb[0].mxu0
      %1219 = vdwg.mxu0
      %1221 = vrot.lane.b32.xlu0 %v1215, 20
      %v1222 = vpop.permute.xlu0 %1221
      %vm1224 = vcmask 195744
      %1225 = vst.msk [vmem:[#allocation5] sm:$0xff] %vm1224, %v1222
      %v1226 = vld [vmem:[#allocation2] sm:$0xf]
      %v1227 = vld [vmem:[#allocation3] sm:$0x7]
      %v1228 = vld [vmem:[#allocation4] sm:$0x7]
      %v1230 = vunpack.c.l.b16 %v1226
      %v1231 = vpack.c.b16 %v1230, %v1230
      %1232 = vrot.lane.b32.xlu0 %v1231, 104
      %v1233 = vpop.permute.xlu0 %1232
      %v1235 = vunpack.c.l.b16 %v1227
      %v1236 = vpack.c.b16 %v1235, %v1235
      %1237 = vrot.lane.b32.xlu0 %v1236, 104
      %v1238 = vpop.permute.xlu0 %1237
      %v1240 = vsel %vm472, %v1233, 0
      %v1243 = vsel %vm472, %v1238, 0
      %1245 = vmatprep.subr.bf16.mxu0 0
      %1246 = vmatpush1.bf16.xpose.msra.mxu0 %v1243
      %1247 = vmatprep.subr.bf16.mxu0 0
      %1248 = vmatpush1.bf16.xpose.msra.mxu0 0
      %1249 = vmatprep.subr.bf16.mxu0 0
      %1250 = vmatpush1.bf16.xpose.msra.mxu0 0
      %1251 = vmatprep.subr.bf16.mxu0 0
      %1252 = vmatpush1.bf16.xpose.msra.mxu0 0
      %1253 = vmatprep.subr.bf16.mxu0 0
      %1254 = vmatpush1.bf16.xpose.msra.mxu0 0
      %1255 = vmatprep.subr.bf16.mxu0 0
      %1256 = vmatpush1.bf16.xpose.msra.mxu0 0
      %1257 = vmatprep.subr.bf16.mxu0 0
      %1258 = vmatpush1.bf16.xpose.msra.mxu0 0
      %1259 = vmatprep.subr.bf16.mxu0 0
      %1260 = vmatpush1.bf16.xpose.msra.mxu0 0
      %1261 = vmatprep.subr.bf16.mxu0 0
      %1262 = vmatpush1.bf16.xpose.msra.mxu0 0
      %1263 = vmatprep.subr.bf16.mxu0 0
      %1264 = vmatpush1.bf16.xpose.msra.mxu0 0
      %1265 = vmatprep.subr.bf16.mxu0 0
      %1266 = vmatpush1.bf16.xpose.msra.mxu0 0
      %1267 = vmatprep.subr.bf16.mxu0 0
      %1268 = vmatpush1.bf16.xpose.msra.mxu0 0
      %1269 = vmatprep.subr.bf16.mxu0 0
      %1270 = vmatpush1.bf16.xpose.msra.mxu0 0
      %1271 = vmatprep.subr.bf16.mxu0 0
      %1272 = vmatpush1.bf16.xpose.msra.mxu0 0
      %1273 = vmatprep.subr.bf16.mxu0 0
      %1274 = vmatpush1.bf16.xpose.msra.mxu0 0
      %1275 = vmatprep.subr.bf16.mxu0 0
      %1276 = vmatpush1.bf16.xpose.msra.mxu0 0
      %1277 = vmatprep.mubr.bf16.mxu0 0
      %1278 = vmatmul.mubr.bf16.gmra.mrb[0].mxu0 %v1240
      %v1279 = vpop.f32.mrb[0].mxu0
      %v1280 = vadd.f32 0.0, %v1279
      %v1281 = vpop.f32.mrb[0].mxu0
      %v1282 = vpop.f32.mrb[0].mxu0
      %v1283 = vpop.f32.mrb[0].mxu0
      %1284 = vdwg.mxu0
      %v1285 = vmul.f32 %v1280, 0.5
      %v1286 = vsel %vm520, %v1285, -inf
      %1287 = vmax.xlane.f32.xlu0 %v1286
      %v1288 = vpop.xlane.xlu0 %1287
      %v1289 = vsub.f32 %v1285, %v1288
      %v1290 = vmul.f32 %v1289, 1.442695
      %v1291 = vpow.pop %v1290
      %v1292 = vsel %vm520, %v1291, 0.0
      %1293 = vadd.xlane.f32.xlu0 %v1292
      %v1294 = vpop.xlane.xlu0 %1293
      %v1295 = vrcp.pop %v1294
      %v1296 = vmul.f32 %v1291, %v1295
      %v1297 = vpack.c.bf16 %v1296, %v1296
      %v1299 = vunpack.c.l.b16 %v1228
      %v1300 = vpack.c.b16 %v1299, %v1299
      %1301 = vrot.lane.b32.xlu0 %v1300, 104
      %v1302 = vpop.permute.xlu0 %1301
      %v1304 = vsel %vm520, %v1297, 0
      %v1307 = vsel %vm536, %v1302, 0
      %1309 = vmatprep.subr.bf16.mxu0 0
      %1310 = vmatpush1.bf16.msra.mxu0 %v1307
      %1311 = vmatprep.subr.bf16.mxu0 0
      %1312 = vmatpush1.bf16.msra.mxu0 0
      %1313 = vmatprep.subr.bf16.mxu0 0
      %1314 = vmatpush1.bf16.msra.mxu0 0
      %1315 = vmatprep.subr.bf16.mxu0 0
      %1316 = vmatpush1.bf16.msra.mxu0 0
      %1317 = vmatprep.subr.bf16.mxu0 0
      %1318 = vmatpush1.bf16.msra.mxu0 0
      %1319 = vmatprep.subr.bf16.mxu0 0
      %1320 = vmatpush1.bf16.msra.mxu0 0
      %1321 = vmatprep.subr.bf16.mxu0 0
      %1322 = vmatpush1.bf16.msra.mxu0 0
      %1323 = vmatprep.subr.bf16.mxu0 0
      %1324 = vmatpush1.bf16.msra.mxu0 0
      %1325 = vmatprep.subr.bf16.mxu0 0
      %1326 = vmatpush1.bf16.msra.mxu0 0
      %1327 = vmatprep.subr.bf16.mxu0 0
      %1328 = vmatpush1.bf16.msra.mxu0 0
      %1329 = vmatprep.subr.bf16.mxu0 0
      %1330 = vmatpush1.bf16.msra.mxu0 0
      %1331 = vmatprep.subr.bf16.mxu0 0
      %1332 = vmatpush1.bf16.msra.mxu0 0
      %1333 = vmatprep.subr.bf16.mxu0 0
      %1334 = vmatpush1.bf16.msra.mxu0 0
      %1335 = vmatprep.subr.bf16.mxu0 0
      %1336 = vmatpush1.bf16.msra.mxu0 0
      %1337 = vmatprep.subr.bf16.mxu0 0
      %1338 = vmatpush1.bf16.msra.mxu0 0
      %1339 = vmatprep.subr.bf16.mxu0 0
      %1340 = vmatpush1.bf16.msra.mxu0 0
      %1341 = vmatprep.mubr.bf16.mxu0 0
      %1342 = vmatmul.mubr.bf16.gmra.mrb[0].mxu0 %v1304
      %v1343 = vpop.f32.mrb[0].mxu0
      %v1344 = vadd.f32 0.0, %v1343
      %v1345 = vpop.f32.mrb[0].mxu0
      %v1346 = vpop.f32.mrb[0].mxu0
      %v1347 = vpop.f32.mrb[0].mxu0
      %1348 = vdwg.mxu0
      %1350 = vrot.lane.b32.xlu0 %v1344, 24
      %v1351 = vpop.permute.xlu0 %1350
      %vm1353 = vcmask 228544
      %1354 = vst.msk [vmem:[#allocation5] sm:$0xff] %vm1353, %v1351
      %v1355 = vld [vmem:[#allocation2] sm:$0xf]
      %v1356 = vld [vmem:[#allocation3] sm:$0x7]
      %v1357 = vld [vmem:[#allocation4] sm:$0x7]
      %v1359 = vunpack.c.l.b16 %v1355
      %v1360 = vpack.c.b16 %v1359, %v1359
      %1361 = vrot.lane.b32.xlu0 %v1360, 100
      %v1362 = vpop.permute.xlu0 %1361
      %v1364 = vunpack.c.l.b16 %v1356
      %v1365 = vpack.c.b16 %v1364, %v1364
      %1366 = vrot.lane.b32.xlu0 %v1365, 100
      %v1367 = vpop.permute.xlu0 %1366
      %v1369 = vsel %vm472, %v1362, 0
      %v1372 = vsel %vm472, %v1367, 0
      %1374 = vmatprep.subr.bf16.mxu0 0
      %1375 = vmatpush1.bf16.xpose.msra.mxu0 %v1372
      %1376 = vmatprep.subr.bf16.mxu0 0
      %1377 = vmatpush1.bf16.xpose.msra.mxu0 0
      %1378 = vmatprep.subr.bf16.mxu0 0
      %1379 = vmatpush1.bf16.xpose.msra.mxu0 0
      %1380 = vmatprep.subr.bf16.mxu0 0
      %1381 = vmatpush1.bf16.xpose.msra.mxu0 0
      %1382 = vmatprep.subr.bf16.mxu0 0
      %1383 = vmatpush1.bf16.xpose.msra.mxu0 0
      %1384 = vmatprep.subr.bf16.mxu0 0
      %1385 = vmatpush1.bf16.xpose.msra.mxu0 0
      %1386 = vmatprep.subr.bf16.mxu0 0
      %1387 = vmatpush1.bf16.xpose.msra.mxu0 0
      %1388 = vmatprep.subr.bf16.mxu0 0
      %1389 = vmatpush1.bf16.xpose.msra.mxu0 0
      %1390 = vmatprep.subr.bf16.mxu0 0
      %1391 = vmatpush1.bf16.xpose.msra.mxu0 0
      %1392 = vmatprep.subr.bf16.mxu0 0
      %1393 = vmatpush1.bf16.xpose.msra.mxu0 0
      %1394 = vmatprep.subr.bf16.mxu0 0
      %1395 = vmatpush1.bf16.xpose.msra.mxu0 0
      %1396 = vmatprep.subr.bf16.mxu0 0
      %1397 = vmatpush1.bf16.xpose.msra.mxu0 0
      %1398 = vmatprep.subr.bf16.mxu0 0
      %1399 = vmatpush1.bf16.xpose.msra.mxu0 0
      %1400 = vmatprep.subr.bf16.mxu0 0
      %1401 = vmatpush1.bf16.xpose.msra.mxu0 0
      %1402 = vmatprep.subr.bf16.mxu0 0
      %1403 = vmatpush1.bf16.xpose.msra.mxu0 0
      %1404 = vmatprep.subr.bf16.mxu0 0
      %1405 = vmatpush1.bf16.xpose.msra.mxu0 0
      %1406 = vmatprep.mubr.bf16.mxu0 0
      %1407 = vmatmul.mubr.bf16.gmra.mrb[0].mxu0 %v1369
      %v1408 = vpop.f32.mrb[0].mxu0
      %v1409 = vadd.f32 0.0, %v1408
      %v1410 = vpop.f32.mrb[0].mxu0
      %v1411 = vpop.f32.mrb[0].mxu0
      %v1412 = vpop.f32.mrb[0].mxu0
      %1413 = vdwg.mxu0
      %v1414 = vmul.f32 %v1409, 0.5
      %v1415 = vsel %vm520, %v1414, -inf
      %1416 = vmax.xlane.f32.xlu0 %v1415
      %v1417 = vpop.xlane.xlu0 %1416
      %v1418 = vsub.f32 %v1414, %v1417
      %v1419 = vmul.f32 %v1418, 1.442695
      %v1420 = vpow.pop %v1419
      %v1421 = vsel %vm520, %v1420, 0.0
      %1422 = vadd.xlane.f32.xlu0 %v1421
      %v1423 = vpop.xlane.xlu0 %1422
      %v1424 = vrcp.pop %v1423
      %v1425 = vmul.f32 %v1420, %v1424
      %v1426 = vpack.c.bf16 %v1425, %v1425
      %v1428 = vunpack.c.l.b16 %v1357
      %v1429 = vpack.c.b16 %v1428, %v1428
      %1430 = vrot.lane.b32.xlu0 %v1429, 100
      %v1431 = vpop.permute.xlu0 %1430
      %v1433 = vsel %vm520, %v1426, 0
      %v1436 = vsel %vm536, %v1431, 0
      %1438 = vmatprep.subr.bf16.mxu0 0
      %1439 = vmatpush1.bf16.msra.mxu0 %v1436
      %1440 = vmatprep.subr.bf16.mxu0 0
      %1441 = vmatpush1.bf16.msra.mxu0 0
      %1442 = vmatprep.subr.bf16.mxu0 0
      %1443 = vmatpush1.bf16.msra.mxu0 0
      %1444 = vmatprep.subr.bf16.mxu0 0
      %1445 = vmatpush1.bf16.msra.mxu0 0
      %1446 = vmatprep.subr.bf16.mxu0 0
      %1447 = vmatpush1.bf16.msra.mxu0 0
      %1448 = vmatprep.subr.bf16.mxu0 0
      %1449 = vmatpush1.bf16.msra.mxu0 0
      %1450 = vmatprep.subr.bf16.mxu0 0
      %1451 = vmatpush1.bf16.msra.mxu0 0
      %1452 = vmatprep.subr.bf16.mxu0 0
      %1453 = vmatpush1.bf16.msra.mxu0 0
      %1454 = vmatprep.subr.bf16.mxu0 0
      %1455 = vmatpush1.bf16.msra.mxu0 0
      %1456 = vmatprep.subr.bf16.mxu0 0
      %1457 = vmatpush1.bf16.msra.mxu0 0
      %1458 = vmatprep.subr.bf16.mxu0 0
      %1459 = vmatpush1.bf16.msra.mxu0 0
      %1460 = vmatprep.subr.bf16.mxu0 0
      %1461 = vmatpush1.bf16.msra.mxu0 0
      %1462 = vmatprep.subr.bf16.mxu0 0
      %1463 = vmatpush1.bf16.msra.mxu0 0
      %1464 = vmatprep.subr.bf16.mxu0 0
      %1465 = vmatpush1.bf16.msra.mxu0 0
      %1466 = vmatprep.subr.bf16.mxu0 0
      %1467 = vmatpush1.bf16.msra.mxu0 0
      %1468 = vmatprep.subr.bf16.mxu0 0
      %1469 = vmatpush1.bf16.msra.mxu0 0
      %1470 = vmatprep.mubr.bf16.mxu0 0
      %1471 = vmatmul.mubr.bf16.gmra.mrb[0].mxu0 %v1433
      %v1472 = vpop.f32.mrb[0].mxu0
      %v1473 = vadd.f32 0.0, %v1472
      %v1474 = vpop.f32.mrb[0].mxu0
      %v1475 = vpop.f32.mrb[0].mxu0
      %v1476 = vpop.f32.mrb[0].mxu0
      %1477 = vdwg.mxu0
      %1479 = vrot.lane.b32.xlu0 %v1473, 28
      %v1480 = vpop.permute.xlu0 %1479
      %vm1482 = vcmask 261344
      %1483 = vst.msk [vmem:[#allocation5] sm:$0xff] %vm1482, %v1480
      %v1484 = vld [vmem:[#allocation5] sm:$0xff]
      %v1485 = vpack.c.bf16 %v1484, %v1484
      %v1486 = vld [vmem:[%s6] sm:$0xf]
      %v1487 = vld [vmem:[%s6 + $0x4] sm:$0xf]
      %v1488 = vld [vmem:[%s6 + $0x8] sm:$0xf]
      %v1489 = vld [vmem:[%s6 + $0xc] sm:$0xf]
      %v1490 = vld [vmem:[%s7] sm:$0x1]
      %v1492 = vlaneseq
      %v1493 = vshrl.u32 %v1492, 7
      %v1494 = vsub.s32 0, %v1493
      %v1495 = vrot.slane %v1490, %v1494
      %v1501 = vunpack.c.l.b16 %v1486
      %v1502 = vunpack.c.l.b16 %v1487
      %v1503 = vunpack.c.l.b16 %v1488
      %v1504 = vunpack.c.l.b16 %v1489
      %v1505 = vpack.c.b16 %v1502, %v1501
      %v1506 = vpack.c.b16 %v1504, %v1503
      %v1510 = vsel %vm346, %v1485, 0
      %1512 = vmatprep.subr.bf16.mxu0 0
      %1513 = vmatpush1.bf16.msra.mxu0 %v1505
      %1514 = vmatprep.subr.bf16.mxu0 0
      %1515 = vmatpush1.bf16.msra.mxu0 %v1506
      %1516 = vmatprep.subr.bf16.mxu0 0
      %1517 = vmatpush1.bf16.msra.mxu0 0
      %1518 = vmatprep.subr.bf16.mxu0 0
      %1519 = vmatpush1.bf16.msra.mxu0 0
      %1520 = vmatprep.subr.bf16.mxu0 0
      %1521 = vmatpush1.bf16.msra.mxu0 0
      %1522 = vmatprep.subr.bf16.mxu0 0
      %1523 = vmatpush1.bf16.msra.mxu0 0
      %1524 = vmatprep.subr.bf16.mxu0 0
      %1525 = vmatpush1.bf16.msra.mxu0 0
      %1526 = vmatprep.subr.bf16.mxu0 0
      %1527 = vmatpush1.bf16.msra.mxu0 0
      %1528 = vmatprep.subr.bf16.mxu0 0
      %1529 = vmatpush1.bf16.msra.mxu0 0
      %1530 = vmatprep.subr.bf16.mxu0 0
      %1531 = vmatpush1.bf16.msra.mxu0 0
      %1532 = vmatprep.subr.bf16.mxu0 0
      %1533 = vmatpush1.bf16.msra.mxu0 0
      %1534 = vmatprep.subr.bf16.mxu0 0
      %1535 = vmatpush1.bf16.msra.mxu0 0
      %1536 = vmatprep.subr.bf16.mxu0 0
      %1537 = vmatpush1.bf16.msra.mxu0 0
      %1538 = vmatprep.subr.bf16.mxu0 0
      %1539 = vmatpush1.bf16.msra.mxu0 0
      %1540 = vmatprep.subr.bf16.mxu0 0
      %1541 = vmatpush1.bf16.msra.mxu0 0
      %1542 = vmatprep.subr.bf16.mxu0 0
      %1543 = vmatpush1.bf16.msra.mxu0 0
      %1544 = vmatprep.mubr.bf16.mxu0 0
      %1545 = vmatmul.mubr.bf16.gmra.mrb[0].mxu0 %v1510
      %v1546 = vpop.f32.mrb[0].mxu0
      %v1547 = vadd.f32 %v1495, %v1546
      %v1548 = vpop.f32.mrb[0].mxu0
      %v1549 = vpop.f32.mrb[0].mxu0
      %v1550 = vpop.f32.mrb[0].mxu0
      %1551 = vdwg.mxu0
      %vm1552 = vcmask 15360
      %1553 = vst.msk [vmem:[%s317] sm:$0xff] %vm1552, %v1547
      %p1554 = scmp.lt.s32.totalorder %s19, 1
      %s1555 = scalar_select %p1554, %s19, 1
      %s1556 = smul.addr %s1555, 8
      %s1557 = scalar_lea.vmem %s8, %s1556
      // Predicated region
      $region53: #{transformer_block_forward.10} parent=51 // pred_check
        %p1558 = pneg %p215
      $region54: #{transformer_block_forward.10} parent=51 // pred_check_branch
        %1560 = sbr.rel (%p1558) target = $region56
      $region55: #{transformer_block_forward.10} parent=51 // pred_region
        _
      $region56: #{transformer_block_forward.10} parent=51 // pred_fallthru
        _
    $region52: #{transformer_block_forward.10} parent=5 // pred_fallthru
      _
    %p1561 = scmp.le.s32.totalorder 2, %s14
    // Predicated region
    $region57: #{transformer_block_forward.10} parent=5 // pred_check
      %p1562 = pneg %p1561
    $region58: #{transformer_block_forward.10} parent=5 // pred_check_branch
      %1564 = sbr.rel (%p1562) target = $region60
    $region59: #{transformer_block_forward.10} parent=5 // pred_region
      %s1565 = ssub.s32 %s14, 2
      // Predicated region
      $region61: #{transformer_block_forward.10} parent=59 // pred_check
        %p1566 = pneg %p221
      $region62: #{transformer_block_forward.10} parent=59 // pred_check_branch
        %1568 = sbr.rel (%p1566) target = $region64
      $region63: #{transformer_block_forward.10} parent=59 // pred_region
        %p1569 = scmp.lt.s32.totalorder %s20, 1
        %s1570 = scalar_select %p1569, %s20, 1
        %s1571 = smul.addr %s1570, 8
        %s1572 = scalar_lea.vmem %s8, %s1571
      $region64: #{transformer_block_forward.10} parent=59 // pred_fallthru
        _
    $region60: #{transformer_block_forward.10} parent=5 // pred_fallthru
      _
  $region6: #{transformer_block_forward.10} parent=0 // loop_footer
    %s18 = sadd.s32 1, %s14
  $region7: #{transformer_block_forward.10} parent=0 // loop_footer_branch
    %13 = sbr.rel target = $region3
  $region8: #{transformer_block_forward.10} parent=0 // loop_exit
    _

// kernel: transformer_block_forward.11
$region0: #{transformer_block_forward.11}
  #allocation0 [shape = 'u32[]', space=smem, size = 0x4, offset = 0x4, fixed_abs, tag = 'smem constant byte address 0x4 - core index']
  #allocation1 [shape = 'u32[144,128]{1,0:T(1,128)}', space=vmem, size = 0x12000, scoped, tag = 'internal scratch']
  #allocation2 [shape = 'bf16[8,32]{1,0:T(8,128)(2,1)}', space=vmem, size = 0x800, scoped, tag = 'scratch operand']
  %s0 = inlined_call_operand.vmem [shape: f32[2,8,32], index: 0, kind: input, shape index: {}]
  %s1 = inlined_call_operand.vmem [shape: f32[2,8,32], index: 1, kind: input, shape index: {}]
  %s2 = inlined_call_operand.vmem [shape: f32[2,1,32], index: 2, kind: input, shape index: {}]
  %s3 = inlined_call_operand.vmem [shape: f32[2,2,8,1], index: 3, kind: input, shape index: {}]
  %s4 = inlined_call_operand.vmem [shape: bf16[2,32,24], index: 4, kind: input, shape index: {}]
  %s5 = inlined_call_operand.vmem [shape: bf16[2,32,24], index: 5, kind: input, shape index: {}]
  %s6 = inlined_call_operand.vmem [shape: bf16[2,24,32], index: 6, kind: input, shape index: {}]
  %s7 = inlined_call_operand.hbm [shape: f32[2,8,32], index: 7, kind: output, shape index: {}]
  %s8 = sld [smem:[#allocation0]]
  $region77: #{transformer_block_forward.11} parent=0
    _
  %s10 = ssub.s32 1, %s8
  %s11 = scalar_select 0, %s10, %s8
  $region1: #{transformer_block_forward.11} parent=0
    #allocation3 [shape = 'u8[8192]{0}', space=vmem, size = 0x2000, scoped, tag = 'output window, operand 0']
    #allocation4 [shape = 's32[2]{0}', space=sflag, size = 0x8, scoped, tag = 'scoped memory for transformer_block_forward.11']
    %12 = vsyncpa [#allocation4], 0
    %s13 = scalar_lea.sflag [#allocation4], 1
    %14 = vsyncpa %s13, 0
    loop: start=0, step=1, limit=6
    $region2: #{transformer_block_forward.11} parent=1 // loop_pre_header
      _
    $region3: #{transformer_block_forward.11} parent=1 // loop_header
      %s16 = sphi 0, %s20
      %p17 = scmp.ge.s32.totalorder %s16, 6
      %s23 = sphi 0, %s35
      %s24 = sphi 0, %s31
      %s25 = sphi 0, %s23
      %s26 = sphi 0, %s24
      %s27 = sphi 0, %s25
      %s28 = sphi 0, %s26
      %s38 = sphi 0, %s40
      %s41 = sphi 0, %s38
      %s42 = sphi 0, %s41
      %s58 = sphi 0, %s42
      %s64 = sphi 0, %s66
      %s67 = sphi 0, %s64
      %s68 = sphi 0, %s67
      %s84 = sphi 0, %s68
      %s90 = sphi 0, %s92
      %s93 = sphi 0, %s90
      %s94 = sphi 0, %s93
      %s110 = sphi 0, %s94
      %s118 = sphi 0, %s120
      %s121 = sphi 0, %s118
      %s122 = sphi 0, %s121
      %s138 = sphi 0, %s122
      %s144 = sphi 0, %s146
      %s147 = sphi 0, %s144
      %s148 = sphi 0, %s147
      %s164 = sphi 0, %s148
      %s170 = sphi 0, %s172
      %s173 = sphi 0, %s170
      %s174 = sphi 0, %s173
      %s190 = sphi 0, %s174
      %s196 = sphi 0, %s198
      %s199 = sphi 0, %s196
      %s200 = sphi 0, %s199
      %s216 = sphi 0, %s200
      %s222 = sphi 0, %s224
      %s225 = sphi 0, %s222
      %s226 = sphi 0, %s225
      %s242 = sphi 0, %s226
    $region4: #{transformer_block_forward.11} parent=1 // loop_header_branch
      %19 = sbr.rel (%p17) target = $region8
    $region5: #{transformer_block_forward.11} parent=1 // loop_body
      %s21 = ssub.s32 %s16, 1
      %s22 = ssub.s32 %s16, 2
      %s29 = sadd.s32 1, %s24
      %p30 = scmp.ge.s32.totalorder %s29, 2
      %s31 = scalar_select %p30, 0, %s29
      %s32 = sadd.s32 1, %s23
      %s33 = scalar_select %p30, %s32, %s23
      %p34 = scmp.ge.s32.totalorder %s33, 2
      %s35 = scalar_select %p34, 0, %s33
      %s36 = ssub.s32 %s23, %s35
      %p37 = scmp.eq.s32.totalorder %s36, 0
      %s39 = sadd.s32 %s38, 1
      %s40 = scalar_select %p37, %s38, %s39
      %p43 = pneg %p37
      %p44 = scmp.eq.s32.totalorder %s16, 3
      %p45 = por %p43, %p44
      %p46 = scmp.ne.s32.totalorder %s38, %s41
      %p47 = scmp.eq.s32.totalorder %s16, 0
      %p48 = por %p46, %p47
      %p49 = scmp.ne.s32.totalorder %s38, %s41
      %p50 = scmp.eq.s32.totalorder %s21, 3
      %p51 = por %p49, %p50
      %p52 = scmp.ne.s32.totalorder %s41, %s42
      %p53 = scmp.eq.s32.totalorder %s21, 0
      %p54 = por %p52, %p53
      %p55 = scmp.ne.s32.totalorder %s41, %s42
      %p56 = scmp.eq.s32.totalorder %s22, 3
      %p57 = por %p55, %p56
      %p59 = scmp.ne.s32.totalorder %s42, %s58
      %p60 = scmp.eq.s32.totalorder %s22, 0
      %p61 = por %p59, %p60
      %s62 = ssub.s32 %s23, %s35
      %p63 = scmp.eq.s32.totalorder %s62, 0
      %s65 = sadd.s32 %s64, 1
      %s66 = scalar_select %p63, %s64, %s65
      %p69 = pneg %p63
      %p70 = scmp.eq.s32.totalorder %s16, 3
      %p71 = por %p69, %p70
      %p72 = scmp.ne.s32.totalorder %s64, %s67
      %p73 = scmp.eq.s32.totalorder %s16, 0
      %p74 = por %p72, %p73
      %p75 = scmp.ne.s32.totalorder %s64, %s67
      %p76 = scmp.eq.s32.totalorder %s21, 3
      %p77 = por %p75, %p76
      %p78 = scmp.ne.s32.totalorder %s67, %s68
      %p79 = scmp.eq.s32.totalorder %s21, 0
      %p80 = por %p78, %p79
      %p81 = scmp.ne.s32.totalorder %s67, %s68
      %p82 = scmp.eq.s32.totalorder %s22, 3
      %p83 = por %p81, %p82
      %p85 = scmp.ne.s32.totalorder %s68, %s84
      %p86 = scmp.eq.s32.totalorder %s22, 0
      %p87 = por %p85, %p86
      %s88 = ssub.s32 %s23, %s35
      %p89 = scmp.eq.s32.totalorder %s88, 0
      %s91 = sadd.s32 %s90, 1
      %s92 = scalar_select %p89, %s90, %s91
      %p95 = pneg %p89
      %p96 = scmp.eq.s32.totalorder %s16, 3
      %p97 = por %p95, %p96
      %p98 = scmp.ne.s32.totalorder %s90, %s93
      %p99 = scmp.eq.s32.totalorder %s16, 0
      %p100 = por %p98, %p99
      %p101 = scmp.ne.s32.totalorder %s90, %s93
      %p102 = scmp.eq.s32.totalorder %s21, 3
      %p103 = por %p101, %p102
      %p104 = scmp.ne.s32.totalorder %s93, %s94
      %p105 = scmp.eq.s32.totalorder %s21, 0
      %p106 = por %p104, %p105
      %p107 = scmp.ne.s32.totalorder %s93, %s94
      %p108 = scmp.eq.s32.totalorder %s22, 3
      %p109 = por %p107, %p108
      %p111 = scmp.ne.s32.totalorder %s94, %s110
      %p112 = scmp.eq.s32.totalorder %s22, 0
      %p113 = por %p111, %p112
      %s114 = ssub.s32 %s23, %s35
      %s115 = ssub.s32 %s24, %s31
      %s116 = sor.u32 %s114, %s115
      %p117 = scmp.eq.s32.totalorder %s116, 0
      %s119 = sadd.s32 %s118, 1
      %s120 = scalar_select %p117, %s118, %s119
      %p123 = pneg %p117
      %p124 = scmp.eq.s32.totalorder %s16, 3
      %p125 = por %p123, %p124
      %p126 = scmp.ne.s32.totalorder %s118, %s121
      %p127 = scmp.eq.s32.totalorder %s16, 0
      %p128 = por %p126, %p127
      %p129 = scmp.ne.s32.totalorder %s118, %s121
      %p130 = scmp.eq.s32.totalorder %s21, 3
      %p131 = por %p129, %p130
      %p132 = scmp.ne.s32.totalorder %s121, %s122
      %p133 = scmp.eq.s32.totalorder %s21, 0
      %p134 = por %p132, %p133
      %p135 = scmp.ne.s32.totalorder %s121, %s122
      %p136 = scmp.eq.s32.totalorder %s22, 3
      %p137 = por %p135, %p136
      %p139 = scmp.ne.s32.totalorder %s122, %s138
      %p140 = scmp.eq.s32.totalorder %s22, 0
      %p141 = por %p139, %p140
      %s142 = ssub.s32 %s24, %s31
      %p143 = scmp.eq.s32.totalorder %s142, 0
      %s145 = sadd.s32 %s144, 1
      %s146 = scalar_select %p143, %s144, %s145
      %p149 = pneg %p143
      %p150 = scmp.eq.s32.totalorder %s16, 3
      %p151 = por %p149, %p150
      %p152 = scmp.ne.s32.totalorder %s144, %s147
      %p153 = scmp.eq.s32.totalorder %s16, 0
      %p154 = por %p152, %p153
      %p155 = scmp.ne.s32.totalorder %s144, %s147
      %p156 = scmp.eq.s32.totalorder %s21, 3
      %p157 = por %p155, %p156
      %p158 = scmp.ne.s32.totalorder %s147, %s148
      %p159 = scmp.eq.s32.totalorder %s21, 0
      %p160 = por %p158, %p159
      %p161 = scmp.ne.s32.totalorder %s147, %s148
      %p162 = scmp.eq.s32.totalorder %s22, 3
      %p163 = por %p161, %p162
      %p165 = scmp.ne.s32.totalorder %s148, %s164
      %p166 = scmp.eq.s32.totalorder %s22, 0
      %p167 = por %p165, %p166
      %s168 = ssub.s32 %s24, %s31
      %p169 = scmp.eq.s32.totalorder %s168, 0
      %s171 = sadd.s32 %s170, 1
      %s172 = scalar_select %p169, %s170, %s171
      %p175 = pneg %p169
      %p176 = scmp.eq.s32.totalorder %s16, 3
      %p177 = por %p175, %p176
      %p178 = scmp.ne.s32.totalorder %s170, %s173
      %p179 = scmp.eq.s32.totalorder %s16, 0
      %p180 = por %p178, %p179
      %p181 = scmp.ne.s32.totalorder %s170, %s173
      %p182 = scmp.eq.s32.totalorder %s21, 3
      %p183 = por %p181, %p182
      %p184 = scmp.ne.s32.totalorder %s173, %s174
      %p185 = scmp.eq.s32.totalorder %s21, 0
      %p186 = por %p184, %p185
      %p187 = scmp.ne.s32.totalorder %s173, %s174
      %p188 = scmp.eq.s32.totalorder %s22, 3
      %p189 = por %p187, %p188
      %p191 = scmp.ne.s32.totalorder %s174, %s190
      %p192 = scmp.eq.s32.totalorder %s22, 0
      %p193 = por %p191, %p192
      %s194 = ssub.s32 %s24, %s31
      %p195 = scmp.eq.s32.totalorder %s194, 0
      %s197 = sadd.s32 %s196, 1
      %s198 = scalar_select %p195, %s196, %s197
      %p201 = pneg %p195
      %p202 = scmp.eq.s32.totalorder %s16, 3
      %p203 = por %p201, %p202
      %p204 = scmp.ne.s32.totalorder %s196, %s199
      %p205 = scmp.eq.s32.totalorder %s16, 0
      %p206 = por %p204, %p205
      %p207 = scmp.ne.s32.totalorder %s196, %s199
      %p208 = scmp.eq.s32.totalorder %s21, 3
      %p209 = por %p207, %p208
      %p210 = scmp.ne.s32.totalorder %s199, %s200
      %p211 = scmp.eq.s32.totalorder %s21, 0
      %p212 = por %p210, %p211
      %p213 = scmp.ne.s32.totalorder %s199, %s200
      %p214 = scmp.eq.s32.totalorder %s22, 3
      %p215 = por %p213, %p214
      %p217 = scmp.ne.s32.totalorder %s200, %s216
      %p218 = scmp.eq.s32.totalorder %s22, 0
      %p219 = por %p217, %p218
      %s220 = ssub.s32 %s23, %s35
      %p221 = scmp.eq.s32.totalorder %s220, 0
      %s223 = sadd.s32 %s222, 1
      %s224 = scalar_select %p221, %s222, %s223
      %p227 = pneg %p221
      %p228 = scmp.eq.s32.totalorder %s16, 3
      %p229 = por %p227, %p228
      %p230 = scmp.ne.s32.totalorder %s222, %s225
      %p231 = scmp.eq.s32.totalorder %s16, 0
      %p232 = por %p230, %p231
      %p233 = scmp.ne.s32.totalorder %s222, %s225
      %p234 = scmp.eq.s32.totalorder %s21, 3
      %p235 = por %p233, %p234
      %p236 = scmp.ne.s32.totalorder %s225, %s226
      %p237 = scmp.eq.s32.totalorder %s21, 0
      %p238 = por %p236, %p237
      %p239 = scmp.ne.s32.totalorder %s225, %s226
      %p240 = scmp.eq.s32.totalorder %s22, 3
      %p241 = por %p239, %p240
      %p243 = scmp.ne.s32.totalorder %s226, %s242
      %p244 = scmp.eq.s32.totalorder %s22, 0
      %p245 = por %p243, %p244
      %p246 = scmp.le.s32.totalorder 1, %s16
      %p247 = scmp.lt.s32.totalorder %s16, 5
      %p248 = pnand %p246, %p247
      %p249 = pneg %p248
      // Predicated region
      $region9: #{transformer_block_forward.11} parent=5 // pred_check
        _
      $region10: #{transformer_block_forward.11} parent=5 // pred_check_branch
        %251 = sbr.rel (%p248) target = $region12
      $region11: #{transformer_block_forward.11} parent=5 // pred_region
        %s252 = ssub.s32 %s16, 1
      $region12: #{transformer_block_forward.11} parent=5 // pred_fallthru
        _
      %p253 = scmp.lt.s32.totalorder %s16, 4
      // Predicated region
      $region13: #{transformer_block_forward.11} parent=5 // pred_check
        %p254 = pneg %p253
      $region14: #{transformer_block_forward.11} parent=5 // pred_check_branch
        %256 = sbr.rel (%p254) target = $region16
      $region15: #{transformer_block_forward.11} parent=5 // pred_region
        // Predicated region
        $region17: #{transformer_block_forward.11} parent=15 // pred_check
          %p257 = pneg %p48
        $region18: #{transformer_block_forward.11} parent=15 // pred_check_branch
          %259 = sbr.rel (%p257) target = $region20
        $region19: #{transformer_block_forward.11} parent=15 // pred_region
          %p260 = scmp.lt.s32.totalorder %s23, 1
          %s261 = scalar_select %p260, %s23, 1
          %s262 = smul.addr %s261, 8
          %s263 = scalar_lea.vmem %s0, %s262
        $region20: #{transformer_block_forward.11} parent=15 // pred_fallthru
          _
        // Predicated region
        $region21: #{transformer_block_forward.11} parent=15 // pred_check
          %p264 = pneg %p74
        $region22: #{transformer_block_forward.11} parent=15 // pred_check_branch
          %266 = sbr.rel (%p264) target = $region24
        $region23: #{transformer_block_forward.11} parent=15 // pred_region
          %p267 = scmp.lt.s32.totalorder %s23, 1
          %s268 = scalar_select %p267, %s23, 1
          %s269 = smul.addr %s268, 8
          %s270 = scalar_lea.vmem %s1, %s269
        $region24: #{transformer_block_forward.11} parent=15 // pred_fallthru
          _
        // Predicated region
        $region25: #{transformer_block_forward.11} parent=15 // pred_check
          %p271 = pneg %p100
        $region26: #{transformer_block_forward.11} parent=15 // pred_check_branch
          %273 = sbr.rel (%p271) target = $region28
        $region27: #{transformer_block_forward.11} parent=15 // pred_region
          %p274 = scmp.lt.s32.totalorder %s23, 1
          %s275 = scalar_select %p274, %s23, 1
          %s276 = scalar_lea.vmem %s2, %s275
        $region28: #{transformer_block_forward.11} parent=15 // pred_fallthru
          _
        // Predicated region
        $region29: #{transformer_block_forward.11} parent=15 // pred_check
          %p277 = pneg %p128
        $region30: #{transformer_block_forward.11} parent=15 // pred_check_branch
          %279 = sbr.rel (%p277) target = $region32
        $region31: #{transformer_block_forward.11} parent=15 // pred_region
          %p280 = scmp.lt.s32.totalorder %s23, 1
          %s281 = scalar_select %p280, %s23, 1
          %p282 = scmp.lt.s32.totalorder %s24, 1
          %s283 = scalar_select %p282, %s24, 1
          %s284 = smul.addr %s281, 2
          %s285 = sadd.s32 %s283, %s284
          %s286 = smul.addr %s285, 8
          %s287 = scalar_lea.vmem %s3, %s286
        $region32: #{transformer_block_forward.11} parent=15 // pred_fallthru
          _
        // Predicated region
        $region33: #{transformer_block_forward.11} parent=15 // pred_check
          %p288 = pneg %p154
        $region34: #{transformer_block_forward.11} parent=15 // pred_check_branch
          %290 = sbr.rel (%p288) target = $region36
        $region35: #{transformer_block_forward.11} parent=15 // pred_region
          %p291 = scmp.lt.s32.totalorder %s24, 1
          %s292 = scalar_select %p291, %s24, 1
          %s293 = smul.addr %s292, 4
          %s294 = smul.addr %s293, 4
          %s295 = scalar_lea.vmem %s4, %s294
        $region36: #{transformer_block_forward.11} parent=15 // pred_fallthru
          _
        // Predicated region
        $region37: #{transformer_block_forward.11} parent=15 // pred_check
          %p296 = pneg %p180
        $region38: #{transformer_block_forward.11} parent=15 // pred_check_branch
          %298 = sbr.rel (%p296) target = $region40
        $region39: #{transformer_block_forward.11} parent=15 // pred_region
          %p299 = scmp.lt.s32.totalorder %s24, 1
          %s300 = scalar_select %p299, %s24, 1
          %s301 = smul.addr %s300, 4
          %s302 = smul.addr %s301, 4
          %s303 = scalar_lea.vmem %s5, %s302
        $region40: #{transformer_block_forward.11} parent=15 // pred_fallthru
          _
        // Predicated region
        $region41: #{transformer_block_forward.11} parent=15 // pred_check
          %p304 = pneg %p206
        $region42: #{transformer_block_forward.11} parent=15 // pred_check_branch
          %306 = sbr.rel (%p304) target = $region44
        $region43: #{transformer_block_forward.11} parent=15 // pred_region
          %p307 = scmp.lt.s32.totalorder %s24, 1
          %s308 = scalar_select %p307, %s24, 1
          %s309 = smul.addr %s308, 3
          %s310 = smul.addr %s309, 4
          %s311 = scalar_lea.vmem %s6, %s310
        $region44: #{transformer_block_forward.11} parent=15 // pred_fallthru
          _
      $region16: #{transformer_block_forward.11} parent=5 // pred_fallthru
        _
      %p312 = scmp.le.s32.totalorder 1, %s16
      %p313 = scmp.lt.s32.totalorder %s16, 5
      %p314 = pnand %p312, %p313
      %p315 = pneg %p314
      // Predicated region
      $region45: #{transformer_block_forward.11} parent=5 // pred_check
        _
      $region46: #{transformer_block_forward.11} parent=5 // pred_check_branch
        %317 = sbr.rel (%p314) target = $region48
      $region47: #{transformer_block_forward.11} parent=5 // pred_region
        %s318 = ssub.s32 %s16, 1
        %p319 = scmp.lt.s32.totalorder %s25, 1
        %s320 = scalar_select %p319, %s25, 1
        %s321 = smul.addr %s320, 8
        %s322 = scalar_lea.vmem %s0, %s321
        %p323 = pneg %p54
        %p324 = pneg %p51
        %p325 = scmp.lt.s32.totalorder %s25, 1
        %s326 = scalar_select %p325, %s25, 1
        %s327 = smul.addr %s326, 8
        %s328 = scalar_lea.vmem %s1, %s327
        %p329 = pneg %p80
        %p330 = pneg %p77
        %p331 = scmp.lt.s32.totalorder %s25, 1
        %s332 = scalar_select %p331, %s25, 1
        %s333 = scalar_lea.vmem %s2, %s332
        %p334 = pneg %p106
        %p335 = pneg %p103
        %p336 = scmp.lt.s32.totalorder %s25, 1
        %s337 = scalar_select %p336, %s25, 1
        %p338 = scmp.lt.s32.totalorder %s26, 1
        %s339 = scalar_select %p338, %s26, 1
        %s340 = smul.addr %s337, 2
        %s341 = sadd.s32 %s339, %s340
        %s342 = smul.addr %s341, 8
        %s343 = scalar_lea.vmem %s3, %s342
        %p344 = pneg %p134
        %p345 = pneg %p131
        %p346 = scmp.lt.s32.totalorder %s26, 1
        %s347 = scalar_select %p346, %s26, 1
        %s348 = smul.addr %s347, 4
        %s349 = smul.addr %s348, 4
        %s350 = scalar_lea.vmem %s4, %s349
        %p351 = pneg %p160
        %p352 = pneg %p157
        %p353 = scmp.lt.s32.totalorder %s26, 1
        %s354 = scalar_select %p353, %s26, 1
        %s355 = smul.addr %s354, 4
        %s356 = smul.addr %s355, 4
        %s357 = scalar_lea.vmem %s5, %s356
        %p358 = pneg %p186
        %p359 = pneg %p183
        %p360 = scmp.lt.s32.totalorder %s26, 1
        %s361 = scalar_select %p360, %s26, 1
        %s362 = smul.addr %s361, 3
        %s363 = smul.addr %s362, 4
        %s364 = scalar_lea.vmem %s6, %s363
        %p365 = pneg %p212
        %p366 = pneg %p209
        %p367 = pneg %p238
        %p368 = pneg %p235
        %s369 = sand.u32 %s225, 1
        %s370 = scalar_lea.sflag [#allocation4], %s369
        %s371 = sand.u32 %s225, 1
        %s372 = smul.addr %s371, 8
        %s373 = scalar_lea.vmem [#allocation3], %s372
        %p374 = scmp.lt.s32.totalorder %s25, 1
        %s375 = scalar_select %p374, %s25, 1
        %s376 = smul.addr %s375, 8
        %s377 = scalar_lea.vmem %s0, %s376
        %p378 = scmp.lt.s32.totalorder %s25, 1
        %s379 = scalar_select %p378, %s25, 1
        %s380 = smul.addr %s379, 8
        %s381 = scalar_lea.vmem %s1, %s380
        %p382 = scmp.lt.s32.totalorder %s25, 1
        %s383 = scalar_select %p382, %s25, 1
        %s384 = scalar_lea.vmem %s2, %s383
        %p385 = scmp.lt.s32.totalorder %s25, 1
        %s386 = scalar_select %p385, %s25, 1
        %p387 = scmp.lt.s32.totalorder %s26, 1
        %s388 = scalar_select %p387, %s26, 1
        %s389 = smul.addr %s386, 2
        %s390 = sadd.s32 %s388, %s389
        %s391 = smul.addr %s390, 8
        %s392 = scalar_lea.vmem %s3, %s391
        %p393 = scmp.lt.s32.totalorder %s26, 1
        %s394 = scalar_select %p393, %s26, 1
        %s395 = smul.addr %s394, 4
        %s396 = smul.addr %s395, 4
        %s397 = scalar_lea.vmem %s4, %s396
        %p398 = scmp.lt.s32.totalorder %s26, 1
        %s399 = scalar_select %p398, %s26, 1
        %s400 = smul.addr %s399, 4
        %s401 = smul.addr %s400, 4
        %s402 = scalar_lea.vmem %s5, %s401
        %p403 = scmp.lt.s32.totalorder %s26, 1
        %s404 = scalar_select %p403, %s26, 1
        %s405 = smul.addr %s404, 3
        %s406 = smul.addr %s405, 4
        %s407 = scalar_lea.vmem %s6, %s406
        %p409 = scmp.eq.s32.totalorder %s26, 0
        // Predicated region
        $region49: #{transformer_block_forward.11} parent=47 // pred_check
          %p410 = pneg %p409
        $region50: #{transformer_block_forward.11} parent=47 // pred_check_branch
          %412 = sbr.rel (%p410) target = $region52
        $region51: #{transformer_block_forward.11} parent=47 // pred_region
          %v413 = vld [vmem:[%s377] sm:$0xff]
          %v414 = vpack.c.bf16 %v413, %v413
          %vm415 = vcmask 257024
          %416 = vst.msk [vmem:[#allocation2] sm:$0xf] %vm415, %v414
        $region52: #{transformer_block_forward.11} parent=47 // pred_fallthru
          _
        %v417 = vld [vmem:[#allocation2] sm:$0xf]
        %v418 = vld [vmem:[%s397] sm:$0xf]
        %v419 = vld [vmem:[%s397 + $0x4] sm:$0xf]
        %v420 = vld [vmem:[%s397 + $0x8] sm:$0xf]
        %v421 = vld [vmem:[%s397 + $0xc] sm:$0xf]
        %v426 = vunpack.c.l.b16 %v418
        %v427 = vunpack.c.l.b16 %v419
        %v428 = vunpack.c.l.b16 %v420
        %v429 = vunpack.c.l.b16 %v421
        %v430 = vpack.c.b16 %v427, %v426
        %v431 = vpack.c.b16 %v429, %v428
        %vm434 = vcmask 261120
        %v436 = vsel %vm434, %v417, 0
        %438 = vmatprep.subr.bf16.mxu0 0
        %439 = vmatpush1.bf16.msra.mxu0 %v430
        %440 = vmatprep.subr.bf16.mxu0 0
        %441 = vmatpush1.bf16.msra.mxu0 %v431
        %442 = vmatprep.subr.bf16.mxu0 0
        %443 = vmatpush1.bf16.msra.mxu0 0
        %444 = vmatprep.subr.bf16.mxu0 0
        %445 = vmatpush1.bf16.msra.mxu0 0
        %446 = vmatprep.subr.bf16.mxu0 0
        %447 = vmatpush1.bf16.msra.mxu0 0
        %448 = vmatprep.subr.bf16.mxu0 0
        %449 = vmatpush1.bf16.msra.mxu0 0
        %450 = vmatprep.subr.bf16.mxu0 0
        %451 = vmatpush1.bf16.msra.mxu0 0
        %452 = vmatprep.subr.bf16.mxu0 0
        %453 = vmatpush1.bf16.msra.mxu0 0
        %454 = vmatprep.subr.bf16.mxu0 0
        %455 = vmatpush1.bf16.msra.mxu0 0
        %456 = vmatprep.subr.bf16.mxu0 0
        %457 = vmatpush1.bf16.msra.mxu0 0
        %458 = vmatprep.subr.bf16.mxu0 0
        %459 = vmatpush1.bf16.msra.mxu0 0
        %460 = vmatprep.subr.bf16.mxu0 0
        %461 = vmatpush1.bf16.msra.mxu0 0
        %462 = vmatprep.subr.bf16.mxu0 0
        %463 = vmatpush1.bf16.msra.mxu0 0
        %464 = vmatprep.subr.bf16.mxu0 0
        %465 = vmatpush1.bf16.msra.mxu0 0
        %466 = vmatprep.subr.bf16.mxu0 0
        %467 = vmatpush1.bf16.msra.mxu0 0
        %468 = vmatprep.subr.bf16.mxu0 0
        %469 = vmatpush1.bf16.msra.mxu0 0
        %470 = vmatprep.mubr.bf16.mxu0 0
        %471 = vmatmul.mubr.bf16.gmra.mrb[0].mxu0 %v436
        %v472 = vpop.f32.mrb[0].mxu0
        %v473 = vadd.f32 0.0, %v472
        %v474 = vpop.f32.mrb[0].mxu0
        %v475 = vpop.f32.mrb[0].mxu0
        %v476 = vpop.f32.mrb[0].mxu0
        %477 = vdwg.mxu0
        %v478 = vld [vmem:[%s402] sm:$0xf]
        %v479 = vld [vmem:[%s402 + $0x4] sm:$0xf]
        %v480 = vld [vmem:[%s402 + $0x8] sm:$0xf]
        %v481 = vld [vmem:[%s402 + $0xc] sm:$0xf]
        %v486 = vunpack.c.l.b16 %v478
        %v487 = vunpack.c.l.b16 %v479
        %v488 = vunpack.c.l.b16 %v480
        %v489 = vunpack.c.l.b16 %v481
        %v490 = vpack.c.b16 %v487, %v486
        %v491 = vpack.c.b16 %v489, %v488
        %494 = vmatprep.subr.bf16.mxu0 0
        %495 = vmatpush1.bf16.msra.mxu0 %v490
        %496 = vmatprep.subr.bf16.mxu0 0
        %497 = vmatpush1.bf16.msra.mxu0 %v491
        %498 = vmatprep.subr.bf16.mxu0 0
        %499 = vmatpush1.bf16.msra.mxu0 0
        %500 = vmatprep.subr.bf16.mxu0 0
        %501 = vmatpush1.bf16.msra.mxu0 0
        %502 = vmatprep.subr.bf16.mxu0 0
        %503 = vmatpush1.bf16.msra.mxu0 0
        %504 = vmatprep.subr.bf16.mxu0 0
        %505 = vmatpush1.bf16.msra.mxu0 0
        %506 = vmatprep.subr.bf16.mxu0 0
        %507 = vmatpush1.bf16.msra.mxu0 0
        %508 = vmatprep.subr.bf16.mxu0 0
        %509 = vmatpush1.bf16.msra.mxu0 0
        %510 = vmatprep.subr.bf16.mxu0 0
        %511 = vmatpush1.bf16.msra.mxu0 0
        %512 = vmatprep.subr.bf16.mxu0 0
        %513 = vmatpush1.bf16.msra.mxu0 0
        %514 = vmatprep.subr.bf16.mxu0 0
        %515 = vmatpush1.bf16.msra.mxu0 0
        %516 = vmatprep.subr.bf16.mxu0 0
        %517 = vmatpush1.bf16.msra.mxu0 0
        %518 = vmatprep.subr.bf16.mxu0 0
        %519 = vmatpush1.bf16.msra.mxu0 0
        %520 = vmatprep.subr.bf16.mxu0 0
        %521 = vmatpush1.bf16.msra.mxu0 0
        %522 = vmatprep.subr.bf16.mxu0 0
        %523 = vmatpush1.bf16.msra.mxu0 0
        %524 = vmatprep.subr.bf16.mxu0 0
        %525 = vmatpush1.bf16.msra.mxu0 0
        %526 = vmatprep.mubr.bf16.mxu0 0
        %527 = vmatmul.mubr.bf16.gmra.mrb[0].mxu0 %v436
        %v528 = vpop.f32.mrb[0].mxu0
        %v529 = vadd.f32 0.0, %v528
        %v530 = vpop.f32.mrb[0].mxu0
        %v531 = vpop.f32.mrb[0].mxu0
        %v532 = vpop.f32.mrb[0].mxu0
        %533 = vdwg.mxu0
        %v534 = vxor.u32 %v473, 2147483648
        %v535 = vmul.f32 %v534, 1.442695
        %v536 = vpow.pop %v535
        %v537 = vadd.f32 %v536, 1.0
        %v538 = vrcp.pop %v537
        %v539 = vmul.f32 1.0, %v538
        %v540 = vmul.f32 %v473, %v539
        %v541 = vmul.f32 %v540, %v529
        %v542 = vpack.c.bf16 %v541, %v541
        %v543 = vld [vmem:[%s407] sm:$0xf]
        %v544 = vld [vmem:[%s407 + $0x4] sm:$0xf]
        %v545 = vld [vmem:[%s407 + $0x8] sm:$0xf]
        %v549 = vunpack.c.l.b16 %v543
        %v550 = vunpack.c.l.b16 %v544
        %v551 = vunpack.c.l.b16 %v545
        %v552 = vpack.c.b16 %v550, %v549
        %v553 = vpack.c.b16 %v551, %v551
        %vm555 = vcmask 195584
        %v557 = vsel %vm555, %v542, 0
        %vm559 = vcmask 1043456
        %v561 = vsel %vm559, %v553, 0
        %563 = vmatprep.subr.bf16.mxu0 0
        %564 = vmatpush1.bf16.msra.mxu0 %v552
        %565 = vmatprep.subr.bf16.mxu0 0
        %566 = vmatpush1.bf16.msra.mxu0 %v561
        %567 = vmatprep.subr.bf16.mxu0 0
        %568 = vmatpush1.bf16.msra.mxu0 0
        %569 = vmatprep.subr.bf16.mxu0 0
        %570 = vmatpush1.bf16.msra.mxu0 0
        %571 = vmatprep.subr.bf16.mxu0 0
        %572 = vmatpush1.bf16.msra.mxu0 0
        %573 = vmatprep.subr.bf16.mxu0 0
        %574 = vmatpush1.bf16.msra.mxu0 0
        %575 = vmatprep.subr.bf16.mxu0 0
        %576 = vmatpush1.bf16.msra.mxu0 0
        %577 = vmatprep.subr.bf16.mxu0 0
        %578 = vmatpush1.bf16.msra.mxu0 0
        %579 = vmatprep.subr.bf16.mxu0 0
        %580 = vmatpush1.bf16.msra.mxu0 0
        %581 = vmatprep.subr.bf16.mxu0 0
        %582 = vmatpush1.bf16.msra.mxu0 0
        %583 = vmatprep.subr.bf16.mxu0 0
        %584 = vmatpush1.bf16.msra.mxu0 0
        %585 = vmatprep.subr.bf16.mxu0 0
        %586 = vmatpush1.bf16.msra.mxu0 0
        %587 = vmatprep.subr.bf16.mxu0 0
        %588 = vmatpush1.bf16.msra.mxu0 0
        %589 = vmatprep.subr.bf16.mxu0 0
        %590 = vmatpush1.bf16.msra.mxu0 0
        %591 = vmatprep.subr.bf16.mxu0 0
        %592 = vmatpush1.bf16.msra.mxu0 0
        %593 = vmatprep.subr.bf16.mxu0 0
        %594 = vmatpush1.bf16.msra.mxu0 0
        %595 = vmatprep.mubr.bf16.mxu0 0
        %596 = vmatmul.mubr.bf16.gmra.mrb[0].mxu0 %v557
        %v597 = vpop.f32.mrb[0].mxu0
        %v598 = vadd.f32 0.0, %v597
        %v599 = vpop.f32.mrb[0].mxu0
        %v600 = vpop.f32.mrb[0].mxu0
        %v601 = vpop.f32.mrb[0].mxu0
        %602 = vdwg.mxu0
        %v603 = vld [vmem:[%s392] sm:$0xff]
        %605 = vset.pattern.permute.xlu0 0
        %606 = vperm.xlu0 %605, %v603
        %v607 = vpop.permute.xlu0 %606
        %v609 = vmul.f32 %v598, %v607
        // Predicated region
        $region53: #{transformer_block_forward.11} parent=47 // pred_check
          %p610 = pneg %p409
        $region54: #{transformer_block_forward.11} parent=47 // pred_check_branch
          %612 = sbr.rel (%p610) target = $region56
        $region55: #{transformer_block_forward.11} parent=47 // pred_region
          %613 = vst.msk [vmem:[%s373] sm:$0xff] %vm434, %v609
        $region56: #{transformer_block_forward.11} parent=47 // pred_fallthru
          _
        %p614 = scmp.gt.s32.totalorder %s26, 0
        // Predicated region
        $region57: #{transformer_block_forward.11} parent=47 // pred_check
          %p615 = pneg %p614
        $region58: #{transformer_block_forward.11} parent=47 // pred_check_branch
          %617 = sbr.rel (%p615) target = $region60
        $region59: #{transformer_block_forward.11} parent=47 // pred_region
          %v618 = vld [vmem:[%s373] sm:$0xff]
          %v619 = vadd.f32 %v618, %v609
          %620 = vst.msk [vmem:[%s373] sm:$0xff] %vm434, %v619
        $region60: #{transformer_block_forward.11} parent=47 // pred_fallthru
          _
        %p621 = scmp.eq.s32.totalorder %s26, 1
        // Predicated region
        $region61: #{transformer_block_forward.11} parent=47 // pred_check
          %p622 = pneg %p621
        $region62: #{transformer_block_forward.11} parent=47 // pred_check_branch
          %624 = sbr.rel (%p622) target = $region64
        $region63: #{transformer_block_forward.11} parent=47 // pred_region
          %v625 = vld [vmem:[%s381] sm:$0xff]
          %v626 = vld [vmem:[%s384] sm:$0x1]
          %v627 = vld [vmem:[%s377] sm:$0xff]
          %v628 = vld [vmem:[%s373] sm:$0xff]
          %v629 = vadd.f32 %v627, %v628
          %v631 = vlaneseq
          %v632 = vshrl.u32 %v631, 7
          %v633 = vsub.s32 0, %v632
          %v634 = vrot.slane %v626, %v633
          %v636 = vmul.f32 %v634, %v629
          %v637 = vadd.f32 %v625, %v636
          %638 = vst.msk [vmem:[%s373] sm:$0xff] %vm434, %v637
        $region64: #{transformer_block_forward.11} parent=47 // pred_fallthru
          _
        %s639 = sand.u32 %s225, 1
        %s640 = scalar_lea.sflag [#allocation4], %s639
        %s641 = sand.u32 %s225, 1
        %s642 = smul.addr %s641, 8
        %s643 = scalar_lea.vmem [#allocation3], %s642
        // Predicated region
        $region65: #{transformer_block_forward.11} parent=47 // pred_check
          %p644 = pneg %p235
        $region66: #{transformer_block_forward.11} parent=47 // pred_check_branch
          %646 = sbr.rel (%p644) target = $region68
        $region67: #{transformer_block_forward.11} parent=47 // pred_region
          %s648 = ssub.s32 128, 128
          %649 = vsyncadd %s640, %s648
          %s650 = smul.addr %s25, 128
          %s651 = scalar_lea.hbm %s7, %s650
          %s653 = sshll.u32 %s643, 4
          %s654 = int_to_ptr.vmem [resolvable:$true] %s653
          %656 = dma.vmem_to_hbm [thread:$0]  %s654, 128, %s651, %s640
        $region68: #{transformer_block_forward.11} parent=47 // pred_fallthru
          _
      $region48: #{transformer_block_forward.11} parent=5 // pred_fallthru
        _
      %p657 = scmp.le.s32.totalorder 2, %s16
      // Predicated region
      $region69: #{transformer_block_forward.11} parent=5 // pred_check
        %p658 = pneg %p657
      $region70: #{transformer_block_forward.11} parent=5 // pred_check_branch
        %660 = sbr.rel (%p658) target = $region72
      $region71: #{transformer_block_forward.11} parent=5 // pred_region
        %s661 = ssub.s32 %s16, 2
        // Predicated region
        $region73: #{transformer_block_forward.11} parent=71 // pred_check
          %p662 = pneg %p241
        $region74: #{transformer_block_forward.11} parent=71 // pred_check_branch
          %664 = sbr.rel (%p662) target = $region76
        $region75: #{transformer_block_forward.11} parent=71 // pred_region
          %s665 = sand.u32 %s226, 1
          %s666 = scalar_lea.sflag [#allocation4], %s665
          %s667 = sand.u32 %s226, 1
          %s668 = smul.addr %s667, 8
          %s669 = scalar_lea.vmem [#allocation3], %s668
          %670 = dma.done %s666, 128
        $region76: #{transformer_block_forward.11} parent=71 // pred_fallthru
          _
      $region72: #{transformer_block_forward.11} parent=5 // pred_fallthru
        _
    $region6: #{transformer_block_forward.11} parent=1 // loop_footer
      %s20 = sadd.s32 1, %s16
    $region7: #{transformer_block_forward.11} parent=1 // loop_footer_branch
      %15 = sbr.rel target = $region3
    $region8: #{transformer_block_forward.11} parent=1 // loop_exit
      _
    %671 = vsyncpa [#allocation4], 1
    %s672 = scalar_lea.sflag [#allocation4], 1
    %673 = vsyncpa %s672, 1

// kernel: transformer_block_forward.8
$region0: #{transformer_block_forward.8}
  #allocation0 [shape = 'u32[]', space=smem, size = 0x4, offset = 0x4, fixed_abs, tag = 'smem constant byte address 0x4 - core index']
  #allocation1 [shape = 'u32[144,128]{1,0:T(1,128)}', space=vmem, size = 0x12000, scoped, tag = 'internal scratch']
  #allocation2 [shape = 'bf16[8,32]{1,0:T(8,128)(2,1)}', space=vmem, size = 0x800, scoped, tag = 'scratch operand']
  #allocation3 [shape = 'bf16[8,32]{1,0:T(8,128)(2,1)}', space=vmem, size = 0x800, scoped, tag = 'scratch operand']
  #allocation4 [shape = 'bf16[8,32]{1,0:T(8,128)(2,1)}', space=vmem, size = 0x800, scoped, tag = 'scratch operand']
  #allocation5 [shape = 'bf16[5,32]{1,0:T(8,128)(2,1)}', space=vmem, size = 0x800, scoped, tag = 'scratch operand']
  #allocation6 [shape = 'bf16[5,32]{1,0:T(8,128)(2,1)}', space=vmem, size = 0x800, scoped, tag = 'scratch operand']
  #allocation7 [shape = 'f32[8,32]{1,0:T(8,128)}', space=vmem, size = 0x1000, scoped, tag = 'scratch operand']
  %s0 = inlined_call_operand.vmem [shape: f32[2,8,32], index: 0, kind: input, shape index: {}]
  %s1 = inlined_call_operand.vmem [shape: f32[1,32], index: 1, kind: input, shape index: {}]
  %s2 = inlined_call_operand.vmem [shape: f32[2,1,32], index: 2, kind: input, shape index: {}]
  %s3 = inlined_call_operand.vmem [shape: f32[2,1,32], index: 3, kind: input, shape index: {}]
  %s4 = inlined_call_operand.vmem [shape: f32[2,1,32], index: 4, kind: input, shape index: {}]
  %s5 = inlined_call_operand.vmem [shape: f32[2,1,8], index: 5, kind: input, shape index: {}]
  %s6 = inlined_call_operand.vmem [shape: bf16[32,96], index: 6, kind: input, shape index: {}]
  %s7 = inlined_call_operand.vmem [shape: f32[1,32], index: 7, kind: input, shape index: {}]
  %s8 = inlined_call_operand.vmem [shape: f32[1,32], index: 8, kind: input, shape index: {}]
  %s9 = inlined_call_operand.vmem [shape: f32[8,32], index: 9, kind: input, shape index: {}]
  %s10 = inlined_call_operand.vmem [shape: f32[8,32], index: 10, kind: input, shape index: {}]
  %s11 = inlined_call_operand.vmem [shape: f32[32,32], index: 11, kind: input, shape index: {}]
  %s12 = inlined_call_operand.vmem [shape: f32[32,32], index: 12, kind: input, shape index: {}]
  %s13 = inlined_call_operand.vmem [shape: f32[2,5,16], index: 13, kind: input, shape index: {}]
  %s14 = inlined_call_operand.vmem [shape: f32[1,16], index: 14, kind: input, shape index: {}]
  %s15 = inlined_call_operand.vmem [shape: f32[2,1,5], index: 15, kind: input, shape index: {}]
  %s16 = inlined_call_operand.vmem [shape: bf16[16,64], index: 16, kind: input, shape index: {}]
  %s17 = inlined_call_operand.vmem [shape: f32[1,32], index: 17, kind: input, shape index: {}]
  %s18 = inlined_call_operand.vmem [shape: f32[1,32], index: 18, kind: input, shape index: {}]
  %s19 = inlined_call_operand.vmem [shape: bf16[32,32], index: 19, kind: input, shape index: {}]
  %s20 = inlined_call_operand.vmem [shape: f32[2,8,32], index: 20, kind: output, shape index: {}]
  %s21 = sld [smem:[#allocation0]]
  $region113: #{transformer_block_forward.8} parent=0
    _
  %s23 = ssub.s32 1, %s21
  %s24 = scalar_select 0, %s23, %s21
  loop: start=0, step=1, limit=4
  $region2: #{transformer_block_forward.8} parent=0 // loop_pre_header
    _
  $region3: #{transformer_block_forward.8} parent=0 // loop_header
    %s26 = sphi 0, %s30
    %p27 = scmp.ge.s32.totalorder %s26, 4
    %s36 = sphi 0, %s38
    %s39 = sphi 0, %s36
    %s40 = sphi 0, %s39
    %s56 = sphi 0, %s40
    %s60 = sphi 0, %s60
    %s62 = sphi 0, %s60
    %s63 = sphi 0, %s62
    %s77 = sphi 0, %s63
    %s83 = sphi 0, %s85
    %s86 = sphi 0, %s83
    %s87 = sphi 0, %s86
    %s103 = sphi 0, %s87
    %s109 = sphi 0, %s111
    %s112 = sphi 0, %s109
    %s113 = sphi 0, %s112
    %s129 = sphi 0, %s113
    %s135 = sphi 0, %s137
    %s138 = sphi 0, %s135
    %s139 = sphi 0, %s138
    %s155 = sphi 0, %s139
    %s161 = sphi 0, %s163
    %s164 = sphi 0, %s161
    %s165 = sphi 0, %s164
    %s181 = sphi 0, %s165
    %s185 = sphi 0, %s185
    %s187 = sphi 0, %s185
    %s188 = sphi 0, %s187
    %s202 = sphi 0, %s188
    %s206 = sphi 0, %s206
    %s208 = sphi 0, %s206
    %s209 = sphi 0, %s208
    %s223 = sphi 0, %s209
    %s227 = sphi 0, %s227
    %s229 = sphi 0, %s227
    %s230 = sphi 0, %s229
    %s244 = sphi 0, %s230
    %s248 = sphi 0, %s248
    %s250 = sphi 0, %s248
    %s251 = sphi 0, %s250
    %s265 = sphi 0, %s251
    %s269 = sphi 0, %s269
    %s271 = sphi 0, %s269
    %s272 = sphi 0, %s271
    %s286 = sphi 0, %s272
    %s290 = sphi 0, %s290
    %s292 = sphi 0, %s290
    %s293 = sphi 0, %s292
    %s307 = sphi 0, %s293
    %s311 = sphi 0, %s311
    %s313 = sphi 0, %s311
    %s314 = sphi 0, %s313
    %s328 = sphi 0, %s314
    %s334 = sphi 0, %s336
    %s337 = sphi 0, %s334
    %s338 = sphi 0, %s337
    %s354 = sphi 0, %s338
    %s358 = sphi 0, %s358
    %s360 = sphi 0, %s358
    %s361 = sphi 0, %s360
    %s375 = sphi 0, %s361
    %s381 = sphi 0, %s383
    %s384 = sphi 0, %s381
    %s385 = sphi 0, %s384
    %s401 = sphi 0, %s385
    %s405 = sphi 0, %s405
    %s407 = sphi 0, %s405
    %s408 = sphi 0, %s407
    %s422 = sphi 0, %s408
    %s426 = sphi 0, %s426
    %s428 = sphi 0, %s426
    %s429 = sphi 0, %s428
    %s443 = sphi 0, %s429
    %s447 = sphi 0, %s447
    %s449 = sphi 0, %s447
    %s450 = sphi 0, %s449
    %s464 = sphi 0, %s450
    %s468 = sphi 0, %s468
    %s470 = sphi 0, %s468
    %s471 = sphi 0, %s470
    %s485 = sphi 0, %s471
    %s491 = sphi 0, %s493
    %s494 = sphi 0, %s491
    %s495 = sphi 0, %s494
    %s511 = sphi 0, %s495
  $region4: #{transformer_block_forward.8} parent=0 // loop_header_branch
    %29 = sbr.rel (%p27) target = $region8
  $region5: #{transformer_block_forward.8} parent=0 // loop_body
    %s31 = ssub.s32 %s26, 1
    %s32 = ssub.s32 %s26, 2
    %s33 = sadd.s32 %s26, 1
    %s34 = ssub.s32 %s26, %s33
    %p35 = scmp.eq.s32.totalorder %s34, 0
    %s37 = sadd.s32 %s36, 1
    %s38 = scalar_select %p35, %s36, %s37
    %p41 = pneg %p35
    %p42 = scmp.eq.s32.totalorder %s26, 1
    %p43 = por %p41, %p42
    %p44 = scmp.ne.s32.totalorder %s36, %s39
    %p45 = scmp.eq.s32.totalorder %s26, 0
    %p46 = por %p44, %p45
    %p47 = scmp.ne.s32.totalorder %s36, %s39
    %p48 = scmp.eq.s32.totalorder %s31, 1
    %p49 = por %p47, %p48
    %p50 = scmp.ne.s32.totalorder %s39, %s40
    %p51 = scmp.eq.s32.totalorder %s31, 0
    %p52 = por %p50, %p51
    %p53 = scmp.ne.s32.totalorder %s39, %s40
    %p54 = scmp.eq.s32.totalorder %s32, 1
    %p55 = por %p53, %p54
    %p57 = scmp.ne.s32.totalorder %s40, %s56
    %p58 = scmp.eq.s32.totalorder %s32, 0
    %p59 = por %p57, %p58
    %s61 = sadd.s32 %s60, 1
    %p64 = scmp.eq.s32.totalorder %s26, 1
    %p65 = scmp.ne.s32.totalorder %s60, %s62
    %p66 = scmp.eq.s32.totalorder %s26, 0
    %p67 = por %p65, %p66
    %p68 = scmp.ne.s32.totalorder %s60, %s62
    %p69 = scmp.eq.s32.totalorder %s31, 1
    %p70 = por %p68, %p69
    %p71 = scmp.ne.s32.totalorder %s62, %s63
    %p72 = scmp.eq.s32.totalorder %s31, 0
    %p73 = por %p71, %p72
    %p74 = scmp.ne.s32.totalorder %s62, %s63
    %p75 = scmp.eq.s32.totalorder %s32, 1
    %p76 = por %p74, %p75
    %p78 = scmp.ne.s32.totalorder %s63, %s77
    %p79 = scmp.eq.s32.totalorder %s32, 0
    %p80 = por %p78, %p79
    %s81 = ssub.s32 %s26, %s33
    %p82 = scmp.eq.s32.totalorder %s81, 0
    %s84 = sadd.s32 %s83, 1
    %s85 = scalar_select %p82, %s83, %s84
    %p88 = pneg %p82
    %p89 = scmp.eq.s32.totalorder %s26, 1
    %p90 = por %p88, %p89
    %p91 = scmp.ne.s32.totalorder %s83, %s86
    %p92 = scmp.eq.s32.totalorder %s26, 0
    %p93 = por %p91, %p92
    %p94 = scmp.ne.s32.totalorder %s83, %s86
    %p95 = scmp.eq.s32.totalorder %s31, 1
    %p96 = por %p94, %p95
    %p97 = scmp.ne.s32.totalorder %s86, %s87
    %p98 = scmp.eq.s32.totalorder %s31, 0
    %p99 = por %p97, %p98
    %p100 = scmp.ne.s32.totalorder %s86, %s87
    %p101 = scmp.eq.s32.totalorder %s32, 1
    %p102 = por %p100, %p101
    %p104 = scmp.ne.s32.totalorder %s87, %s103
    %p105 = scmp.eq.s32.totalorder %s32, 0
    %p106 = por %p104, %p105
    %s107 = ssub.s32 %s26, %s33
    %p108 = scmp.eq.s32.totalorder %s107, 0
    %s110 = sadd.s32 %s109, 1
    %s111 = scalar_select %p108, %s109, %s110
    %p114 = pneg %p108
    %p115 = scmp.eq.s32.totalorder %s26, 1
    %p116 = por %p114, %p115
    %p117 = scmp.ne.s32.totalorder %s109, %s112
    %p118 = scmp.eq.s32.totalorder %s26, 0
    %p119 = por %p117, %p118
    %p120 = scmp.ne.s32.totalorder %s109, %s112
    %p121 = scmp.eq.s32.totalorder %s31, 1
    %p122 = por %p120, %p121
    %p123 = scmp.ne.s32.totalorder %s112, %s113
    %p124 = scmp.eq.s32.totalorder %s31, 0
    %p125 = por %p123, %p124
    %p126 = scmp.ne.s32.totalorder %s112, %s113
    %p127 = scmp.eq.s32.totalorder %s32, 1
    %p128 = por %p126, %p127
    %p130 = scmp.ne.s32.totalorder %s113, %s129
    %p131 = scmp.eq.s32.totalorder %s32, 0
    %p132 = por %p130, %p131
    %s133 = ssub.s32 %s26, %s33
    %p134 = scmp.eq.s32.totalorder %s133, 0
    %s136 = sadd.s32 %s135, 1
    %s137 = scalar_select %p134, %s135, %s136
    %p140 = pneg %p134
    %p141 = scmp.eq.s32.totalorder %s26, 1
    %p142 = por %p140, %p141
    %p143 = scmp.ne.s32.totalorder %s135, %s138
    %p144 = scmp.eq.s32.totalorder %s26, 0
    %p145 = por %p143, %p144
    %p146 = scmp.ne.s32.totalorder %s135, %s138
    %p147 = scmp.eq.s32.totalorder %s31, 1
    %p148 = por %p146, %p147
    %p149 = scmp.ne.s32.totalorder %s138, %s139
    %p150 = scmp.eq.s32.totalorder %s31, 0
    %p151 = por %p149, %p150
    %p152 = scmp.ne.s32.totalorder %s138, %s139
    %p153 = scmp.eq.s32.totalorder %s32, 1
    %p154 = por %p152, %p153
    %p156 = scmp.ne.s32.totalorder %s139, %s155
    %p157 = scmp.eq.s32.totalorder %s32, 0
    %p158 = por %p156, %p157
    %s159 = ssub.s32 %s26, %s33
    %p160 = scmp.eq.s32.totalorder %s159, 0
    %s162 = sadd.s32 %s161, 1
    %s163 = scalar_select %p160, %s161, %s162
    %p166 = pneg %p160
    %p167 = scmp.eq.s32.totalorder %s26, 1
    %p168 = por %p166, %p167
    %p169 = scmp.ne.s32.totalorder %s161, %s164
    %p170 = scmp.eq.s32.totalorder %s26, 0
    %p171 = por %p169, %p170
    %p172 = scmp.ne.s32.totalorder %s161, %s164
    %p173 = scmp.eq.s32.totalorder %s31, 1
    %p174 = por %p172, %p173
    %p175 = scmp.ne.s32.totalorder %s164, %s165
    %p176 = scmp.eq.s32.totalorder %s31, 0
    %p177 = por %p175, %p176
    %p178 = scmp.ne.s32.totalorder %s164, %s165
    %p179 = scmp.eq.s32.totalorder %s32, 1
    %p180 = por %p178, %p179
    %p182 = scmp.ne.s32.totalorder %s165, %s181
    %p183 = scmp.eq.s32.totalorder %s32, 0
    %p184 = por %p182, %p183
    %s186 = sadd.s32 %s185, 1
    %p189 = scmp.eq.s32.totalorder %s26, 1
    %p190 = scmp.ne.s32.totalorder %s185, %s187
    %p191 = scmp.eq.s32.totalorder %s26, 0
    %p192 = por %p190, %p191
    %p193 = scmp.ne.s32.totalorder %s185, %s187
    %p194 = scmp.eq.s32.totalorder %s31, 1
    %p195 = por %p193, %p194
    %p196 = scmp.ne.s32.totalorder %s187, %s188
    %p197 = scmp.eq.s32.totalorder %s31, 0
    %p198 = por %p196, %p197
    %p199 = scmp.ne.s32.totalorder %s187, %s188
    %p200 = scmp.eq.s32.totalorder %s32, 1
    %p201 = por %p199, %p200
    %p203 = scmp.ne.s32.totalorder %s188, %s202
    %p204 = scmp.eq.s32.totalorder %s32, 0
    %p205 = por %p203, %p204
    %s207 = sadd.s32 %s206, 1
    %p210 = scmp.eq.s32.totalorder %s26, 1
    %p211 = scmp.ne.s32.totalorder %s206, %s208
    %p212 = scmp.eq.s32.totalorder %s26, 0
    %p213 = por %p211, %p212
    %p214 = scmp.ne.s32.totalorder %s206, %s208
    %p215 = scmp.eq.s32.totalorder %s31, 1
    %p216 = por %p214, %p215
    %p217 = scmp.ne.s32.totalorder %s208, %s209
    %p218 = scmp.eq.s32.totalorder %s31, 0
    %p219 = por %p217, %p218
    %p220 = scmp.ne.s32.totalorder %s208, %s209
    %p221 = scmp.eq.s32.totalorder %s32, 1
    %p222 = por %p220, %p221
    %p224 = scmp.ne.s32.totalorder %s209, %s223
    %p225 = scmp.eq.s32.totalorder %s32, 0
    %p226 = por %p224, %p225
    %s228 = sadd.s32 %s227, 1
    %p231 = scmp.eq.s32.totalorder %s26, 1
    %p232 = scmp.ne.s32.totalorder %s227, %s229
    %p233 = scmp.eq.s32.totalorder %s26, 0
    %p234 = por %p232, %p233
    %p235 = scmp.ne.s32.totalorder %s227, %s229
    %p236 = scmp.eq.s32.totalorder %s31, 1
    %p237 = por %p235, %p236
    %p238 = scmp.ne.s32.totalorder %s229, %s230
    %p239 = scmp.eq.s32.totalorder %s31, 0
    %p240 = por %p238, %p239
    %p241 = scmp.ne.s32.totalorder %s229, %s230
    %p242 = scmp.eq.s32.totalorder %s32, 1
    %p243 = por %p241, %p242
    %p245 = scmp.ne.s32.totalorder %s230, %s244
    %p246 = scmp.eq.s32.totalorder %s32, 0
    %p247 = por %p245, %p246
    %s249 = sadd.s32 %s248, 1
    %p252 = scmp.eq.s32.totalorder %s26, 1
    %p253 = scmp.ne.s32.totalorder %s248, %s250
    %p254 = scmp.eq.s32.totalorder %s26, 0
    %p255 = por %p253, %p254
    %p256 = scmp.ne.s32.totalorder %s248, %s250
    %p257 = scmp.eq.s32.totalorder %s31, 1
    %p258 = por %p256, %p257
    %p259 = scmp.ne.s32.totalorder %s250, %s251
    %p260 = scmp.eq.s32.totalorder %s31, 0
    %p261 = por %p259, %p260
    %p262 = scmp.ne.s32.totalorder %s250, %s251
    %p263 = scmp.eq.s32.totalorder %s32, 1
    %p264 = por %p262, %p263
    %p266 = scmp.ne.s32.totalorder %s251, %s265
    %p267 = scmp.eq.s32.totalorder %s32, 0
    %p268 = por %p266, %p267
    %s270 = sadd.s32 %s269, 1
    %p273 = scmp.eq.s32.totalorder %s26, 1
    %p274 = scmp.ne.s32.totalorder %s269, %s271
    %p275 = scmp.eq.s32.totalorder %s26, 0
    %p276 = por %p274, %p275
    %p277 = scmp.ne.s32.totalorder %s269, %s271
    %p278 = scmp.eq.s32.totalorder %s31, 1
    %p279 = por %p277, %p278
    %p280 = scmp.ne.s32.totalorder %s271, %s272
    %p281 = scmp.eq.s32.totalorder %s31, 0
    %p282 = por %p280, %p281
    %p283 = scmp.ne.s32.totalorder %s271, %s272
    %p284 = scmp.eq.s32.totalorder %s32, 1
    %p285 = por %p283, %p284
    %p287 = scmp.ne.s32.totalorder %s272, %s286
    %p288 = scmp.eq.s32.totalorder %s32, 0
    %p289 = por %p287, %p288
    %s291 = sadd.s32 %s290, 1
    %p294 = scmp.eq.s32.totalorder %s26, 1
    %p295 = scmp.ne.s32.totalorder %s290, %s292
    %p296 = scmp.eq.s32.totalorder %s26, 0
    %p297 = por %p295, %p296
    %p298 = scmp.ne.s32.totalorder %s290, %s292
    %p299 = scmp.eq.s32.totalorder %s31, 1
    %p300 = por %p298, %p299
    %p301 = scmp.ne.s32.totalorder %s292, %s293
    %p302 = scmp.eq.s32.totalorder %s31, 0
    %p303 = por %p301, %p302
    %p304 = scmp.ne.s32.totalorder %s292, %s293
    %p305 = scmp.eq.s32.totalorder %s32, 1
    %p306 = por %p304, %p305
    %p308 = scmp.ne.s32.totalorder %s293, %s307
    %p309 = scmp.eq.s32.totalorder %s32, 0
    %p310 = por %p308, %p309
    %s312 = sadd.s32 %s311, 1
    %p315 = scmp.eq.s32.totalorder %s26, 1
    %p316 = scmp.ne.s32.totalorder %s311, %s313
    %p317 = scmp.eq.s32.totalorder %s26, 0
    %p318 = por %p316, %p317
    %p319 = scmp.ne.s32.totalorder %s311, %s313
    %p320 = scmp.eq.s32.totalorder %s31, 1
    %p321 = por %p319, %p320
    %p322 = scmp.ne.s32.totalorder %s313, %s314
    %p323 = scmp.eq.s32.totalorder %s31, 0
    %p324 = por %p322, %p323
    %p325 = scmp.ne.s32.totalorder %s313, %s314
    %p326 = scmp.eq.s32.totalorder %s32, 1
    %p327 = por %p325, %p326
    %p329 = scmp.ne.s32.totalorder %s314, %s328
    %p330 = scmp.eq.s32.totalorder %s32, 0
    %p331 = por %p329, %p330
    %s332 = ssub.s32 %s26, %s33
    %p333 = scmp.eq.s32.totalorder %s332, 0
    %s335 = sadd.s32 %s334, 1
    %s336 = scalar_select %p333, %s334, %s335
    %p339 = pneg %p333
    %p340 = scmp.eq.s32.totalorder %s26, 1
    %p341 = por %p339, %p340
    %p342 = scmp.ne.s32.totalorder %s334, %s337
    %p343 = scmp.eq.s32.totalorder %s26, 0
    %p344 = por %p342, %p343
    %p345 = scmp.ne.s32.totalorder %s334, %s337
    %p346 = scmp.eq.s32.totalorder %s31, 1
    %p347 = por %p345, %p346
    %p348 = scmp.ne.s32.totalorder %s337, %s338
    %p349 = scmp.eq.s32.totalorder %s31, 0
    %p350 = por %p348, %p349
    %p351 = scmp.ne.s32.totalorder %s337, %s338
    %p352 = scmp.eq.s32.totalorder %s32, 1
    %p353 = por %p351, %p352
    %p355 = scmp.ne.s32.totalorder %s338, %s354
    %p356 = scmp.eq.s32.totalorder %s32, 0
    %p357 = por %p355, %p356
    %s359 = sadd.s32 %s358, 1
    %p362 = scmp.eq.s32.totalorder %s26, 1
    %p363 = scmp.ne.s32.totalorder %s358, %s360
    %p364 = scmp.eq.s32.totalorder %s26, 0
    %p365 = por %p363, %p364
    %p366 = scmp.ne.s32.totalorder %s358, %s360
    %p367 = scmp.eq.s32.totalorder %s31, 1
    %p368 = por %p366, %p367
    %p369 = scmp.ne.s32.totalorder %s360, %s361
    %p370 = scmp.eq.s32.totalorder %s31, 0
    %p371 = por %p369, %p370
    %p372 = scmp.ne.s32.totalorder %s360, %s361
    %p373 = scmp.eq.s32.totalorder %s32, 1
    %p374 = por %p372, %p373
    %p376 = scmp.ne.s32.totalorder %s361, %s375
    %p377 = scmp.eq.s32.totalorder %s32, 0
    %p378 = por %p376, %p377
    %s379 = ssub.s32 %s26, %s33
    %p380 = scmp.eq.s32.totalorder %s379, 0
    %s382 = sadd.s32 %s381, 1
    %s383 = scalar_select %p380, %s381, %s382
    %p386 = pneg %p380
    %p387 = scmp.eq.s32.totalorder %s26, 1
    %p388 = por %p386, %p387
    %p389 = scmp.ne.s32.totalorder %s381, %s384
    %p390 = scmp.eq.s32.totalorder %s26, 0
    %p391 = por %p389, %p390
    %p392 = scmp.ne.s32.totalorder %s381, %s384
    %p393 = scmp.eq.s32.totalorder %s31, 1
    %p394 = por %p392, %p393
    %p395 = scmp.ne.s32.totalorder %s384, %s385
    %p396 = scmp.eq.s32.totalorder %s31, 0
    %p397 = por %p395, %p396
    %p398 = scmp.ne.s32.totalorder %s384, %s385
    %p399 = scmp.eq.s32.totalorder %s32, 1
    %p400 = por %p398, %p399
    %p402 = scmp.ne.s32.totalorder %s385, %s401
    %p403 = scmp.eq.s32.totalorder %s32, 0
    %p404 = por %p402, %p403
    %s406 = sadd.s32 %s405, 1
    %p409 = scmp.eq.s32.totalorder %s26, 1
    %p410 = scmp.ne.s32.totalorder %s405, %s407
    %p411 = scmp.eq.s32.totalorder %s26, 0
    %p412 = por %p410, %p411
    %p413 = scmp.ne.s32.totalorder %s405, %s407
    %p414 = scmp.eq.s32.totalorder %s31, 1
    %p415 = por %p413, %p414
    %p416 = scmp.ne.s32.totalorder %s407, %s408
    %p417 = scmp.eq.s32.totalorder %s31, 0
    %p418 = por %p416, %p417
    %p419 = scmp.ne.s32.totalorder %s407, %s408
    %p420 = scmp.eq.s32.totalorder %s32, 1
    %p421 = por %p419, %p420
    %p423 = scmp.ne.s32.totalorder %s408, %s422
    %p424 = scmp.eq.s32.totalorder %s32, 0
    %p425 = por %p423, %p424
    %s427 = sadd.s32 %s426, 1
    %p430 = scmp.eq.s32.totalorder %s26, 1
    %p431 = scmp.ne.s32.totalorder %s426, %s428
    %p432 = scmp.eq.s32.totalorder %s26, 0
    %p433 = por %p431, %p432
    %p434 = scmp.ne.s32.totalorder %s426, %s428
    %p435 = scmp.eq.s32.totalorder %s31, 1
    %p436 = por %p434, %p435
    %p437 = scmp.ne.s32.totalorder %s428, %s429
    %p438 = scmp.eq.s32.totalorder %s31, 0
    %p439 = por %p437, %p438
    %p440 = scmp.ne.s32.totalorder %s428, %s429
    %p441 = scmp.eq.s32.totalorder %s32, 1
    %p442 = por %p440, %p441
    %p444 = scmp.ne.s32.totalorder %s429, %s443
    %p445 = scmp.eq.s32.totalorder %s32, 0
    %p446 = por %p444, %p445
    %s448 = sadd.s32 %s447, 1
    %p451 = scmp.eq.s32.totalorder %s26, 1
    %p452 = scmp.ne.s32.totalorder %s447, %s449
    %p453 = scmp.eq.s32.totalorder %s26, 0
    %p454 = por %p452, %p453
    %p455 = scmp.ne.s32.totalorder %s447, %s449
    %p456 = scmp.eq.s32.totalorder %s31, 1
    %p457 = por %p455, %p456
    %p458 = scmp.ne.s32.totalorder %s449, %s450
    %p459 = scmp.eq.s32.totalorder %s31, 0
    %p460 = por %p458, %p459
    %p461 = scmp.ne.s32.totalorder %s449, %s450
    %p462 = scmp.eq.s32.totalorder %s32, 1
    %p463 = por %p461, %p462
    %p465 = scmp.ne.s32.totalorder %s450, %s464
    %p466 = scmp.eq.s32.totalorder %s32, 0
    %p467 = por %p465, %p466
    %s469 = sadd.s32 %s468, 1
    %p472 = scmp.eq.s32.totalorder %s26, 1
    %p473 = scmp.ne.s32.totalorder %s468, %s470
    %p474 = scmp.eq.s32.totalorder %s26, 0
    %p475 = por %p473, %p474
    %p476 = scmp.ne.s32.totalorder %s468, %s470
    %p477 = scmp.eq.s32.totalorder %s31, 1
    %p478 = por %p476, %p477
    %p479 = scmp.ne.s32.totalorder %s470, %s471
    %p480 = scmp.eq.s32.totalorder %s31, 0
    %p481 = por %p479, %p480
    %p482 = scmp.ne.s32.totalorder %s470, %s471
    %p483 = scmp.eq.s32.totalorder %s32, 1
    %p484 = por %p482, %p483
    %p486 = scmp.ne.s32.totalorder %s471, %s485
    %p487 = scmp.eq.s32.totalorder %s32, 0
    %p488 = por %p486, %p487
    %s489 = ssub.s32 %s26, %s33
    %p490 = scmp.eq.s32.totalorder %s489, 0
    %s492 = sadd.s32 %s491, 1
    %s493 = scalar_select %p490, %s491, %s492
    %p496 = pneg %p490
    %p497 = scmp.eq.s32.totalorder %s26, 1
    %p498 = por %p496, %p497
    %p499 = scmp.ne.s32.totalorder %s491, %s494
    %p500 = scmp.eq.s32.totalorder %s26, 0
    %p501 = por %p499, %p500
    %p502 = scmp.ne.s32.totalorder %s491, %s494
    %p503 = scmp.eq.s32.totalorder %s31, 1
    %p504 = por %p502, %p503
    %p505 = scmp.ne.s32.totalorder %s494, %s495
    %p506 = scmp.eq.s32.totalorder %s31, 0
    %p507 = por %p505, %p506
    %p508 = scmp.ne.s32.totalorder %s494, %s495
    %p509 = scmp.eq.s32.totalorder %s32, 1
    %p510 = por %p508, %p509
    %p512 = scmp.ne.s32.totalorder %s495, %s511
    %p513 = scmp.eq.s32.totalorder %s32, 0
    %p514 = por %p512, %p513
    %p515 = scmp.le.s32.totalorder 1, %s26
    %p516 = scmp.lt.s32.totalorder %s26, 3
    %p517 = pnand %p515, %p516
    %p518 = pneg %p517
    // Predicated region
    $region9: #{transformer_block_forward.8} parent=5 // pred_check
      _
    $region10: #{transformer_block_forward.8} parent=5 // pred_check_branch
      %520 = sbr.rel (%p517) target = $region12
    $region11: #{transformer_block_forward.8} parent=5 // pred_region
      %s521 = ssub.s32 %s26, 1
      // Predicated region
      $region13: #{transformer_block_forward.8} parent=11 // pred_check
        %p522 = pneg %p73
      $region14: #{transformer_block_forward.8} parent=11 // pred_check_branch
        %524 = sbr.rel (%p522) target = $region16
      $region15: #{transformer_block_forward.8} parent=11 // pred_region
        _
      $region16: #{transformer_block_forward.8} parent=11 // pred_fallthru
        _
      // Predicated region
      $region17: #{transformer_block_forward.8} parent=11 // pred_check
        %p525 = pneg %p198
      $region18: #{transformer_block_forward.8} parent=11 // pred_check_branch
        %527 = sbr.rel (%p525) target = $region20
      $region19: #{transformer_block_forward.8} parent=11 // pred_region
        _
      $region20: #{transformer_block_forward.8} parent=11 // pred_fallthru
        _
      // Predicated region
      $region21: #{transformer_block_forward.8} parent=11 // pred_check
        %p528 = pneg %p219
      $region22: #{transformer_block_forward.8} parent=11 // pred_check_branch
        %530 = sbr.rel (%p528) target = $region24
      $region23: #{transformer_block_forward.8} parent=11 // pred_region
        _
      $region24: #{transformer_block_forward.8} parent=11 // pred_fallthru
        _
      // Predicated region
      $region25: #{transformer_block_forward.8} parent=11 // pred_check
        %p531 = pneg %p240
      $region26: #{transformer_block_forward.8} parent=11 // pred_check_branch
        %533 = sbr.rel (%p531) target = $region28
      $region27: #{transformer_block_forward.8} parent=11 // pred_region
        _
      $region28: #{transformer_block_forward.8} parent=11 // pred_fallthru
        _
      // Predicated region
      $region29: #{transformer_block_forward.8} parent=11 // pred_check
        %p534 = pneg %p261
      $region30: #{transformer_block_forward.8} parent=11 // pred_check_branch
        %536 = sbr.rel (%p534) target = $region32
      $region31: #{transformer_block_forward.8} parent=11 // pred_region
        _
      $region32: #{transformer_block_forward.8} parent=11 // pred_fallthru
        _
      // Predicated region
      $region33: #{transformer_block_forward.8} parent=11 // pred_check
        %p537 = pneg %p282
      $region34: #{transformer_block_forward.8} parent=11 // pred_check_branch
        %539 = sbr.rel (%p537) target = $region36
      $region35: #{transformer_block_forward.8} parent=11 // pred_region
        _
      $region36: #{transformer_block_forward.8} parent=11 // pred_fallthru
        _
      // Predicated region
      $region37: #{transformer_block_forward.8} parent=11 // pred_check
        %p540 = pneg %p303
      $region38: #{transformer_block_forward.8} parent=11 // pred_check_branch
        %542 = sbr.rel (%p540) target = $region40
      $region39: #{transformer_block_forward.8} parent=11 // pred_region
        _
      $region40: #{transformer_block_forward.8} parent=11 // pred_fallthru
        _
      // Predicated region
      $region41: #{transformer_block_forward.8} parent=11 // pred_check
        %p543 = pneg %p324
      $region42: #{transformer_block_forward.8} parent=11 // pred_check_branch
        %545 = sbr.rel (%p543) target = $region44
      $region43: #{transformer_block_forward.8} parent=11 // pred_region
        _
      $region44: #{transformer_block_forward.8} parent=11 // pred_fallthru
        _
      // Predicated region
      $region45: #{transformer_block_forward.8} parent=11 // pred_check
        %p546 = pneg %p371
      $region46: #{transformer_block_forward.8} parent=11 // pred_check_branch
        %548 = sbr.rel (%p546) target = $region48
      $region47: #{transformer_block_forward.8} parent=11 // pred_region
        _
      $region48: #{transformer_block_forward.8} parent=11 // pred_fallthru
        _
      // Predicated region
      $region49: #{transformer_block_forward.8} parent=11 // pred_check
        %p549 = pneg %p418
      $region50: #{transformer_block_forward.8} parent=11 // pred_check_branch
        %551 = sbr.rel (%p549) target = $region52
      $region51: #{transformer_block_forward.8} parent=11 // pred_region
        _
      $region52: #{transformer_block_forward.8} parent=11 // pred_fallthru
        _
      // Predicated region
      $region53: #{transformer_block_forward.8} parent=11 // pred_check
        %p552 = pneg %p439
      $region54: #{transformer_block_forward.8} parent=11 // pred_check_branch
        %554 = sbr.rel (%p552) target = $region56
      $region55: #{transformer_block_forward.8} parent=11 // pred_region
        _
      $region56: #{transformer_block_forward.8} parent=11 // pred_fallthru
        _
      // Predicated region
      $region57: #{transformer_block_forward.8} parent=11 // pred_check
        %p555 = pneg %p460
      $region58: #{transformer_block_forward.8} parent=11 // pred_check_branch
        %557 = sbr.rel (%p555) target = $region60
      $region59: #{transformer_block_forward.8} parent=11 // pred_region
        _
      $region60: #{transformer_block_forward.8} parent=11 // pred_fallthru
        _
      // Predicated region
      $region61: #{transformer_block_forward.8} parent=11 // pred_check
        %p558 = pneg %p481
      $region62: #{transformer_block_forward.8} parent=11 // pred_check_branch
        %560 = sbr.rel (%p558) target = $region64
      $region63: #{transformer_block_forward.8} parent=11 // pred_region
        _
      $region64: #{transformer_block_forward.8} parent=11 // pred_fallthru
        _
    $region12: #{transformer_block_forward.8} parent=5 // pred_fallthru
      _
    %p561 = scmp.lt.s32.totalorder %s26, 2
    // Predicated region
    $region65: #{transformer_block_forward.8} parent=5 // pred_check
      %p562 = pneg %p561
    $region66: #{transformer_block_forward.8} parent=5 // pred_check_branch
      %564 = sbr.rel (%p562) target = $region68
    $region67: #{transformer_block_forward.8} parent=5 // pred_region
      // Predicated region
      $region69: #{transformer_block_forward.8} parent=67 // pred_check
        %p565 = pneg %p46
      $region70: #{transformer_block_forward.8} parent=67 // pred_check_branch
        %567 = sbr.rel (%p565) target = $region72
      $region71: #{transformer_block_forward.8} parent=67 // pred_region
        %p568 = scmp.lt.s32.totalorder %s26, 1
        %s569 = scalar_select %p568, %s26, 1
        %s570 = smul.addr %s569, 8
        %s571 = scalar_lea.vmem %s0, %s570
      $region72: #{transformer_block_forward.8} parent=67 // pred_fallthru
        _
      // Predicated region
      $region73: #{transformer_block_forward.8} parent=67 // pred_check
        %p572 = pneg %p93
      $region74: #{transformer_block_forward.8} parent=67 // pred_check_branch
        %574 = sbr.rel (%p572) target = $region76
      $region75: #{transformer_block_forward.8} parent=67 // pred_region
        %p575 = scmp.lt.s32.totalorder %s26, 1
        %s576 = scalar_select %p575, %s26, 1
        %s577 = scalar_lea.vmem %s2, %s576
      $region76: #{transformer_block_forward.8} parent=67 // pred_fallthru
        _
      // Predicated region
      $region77: #{transformer_block_forward.8} parent=67 // pred_check
        %p578 = pneg %p119
      $region78: #{transformer_block_forward.8} parent=67 // pred_check_branch
        %580 = sbr.rel (%p578) target = $region80
      $region79: #{transformer_block_forward.8} parent=67 // pred_region
        %p581 = scmp.lt.s32.totalorder %s26, 1
        %s582 = scalar_select %p581, %s26, 1
        %s583 = scalar_lea.vmem %s3, %s582
      $region80: #{transformer_block_forward.8} parent=67 // pred_fallthru
        _
      // Predicated region
      $region81: #{transformer_block_forward.8} parent=67 // pred_check
        %p584 = pneg %p145
      $region82: #{transformer_block_forward.8} parent=67 // pred_check_branch
        %586 = sbr.rel (%p584) target = $region84
      $region83: #{transformer_block_forward.8} parent=67 // pred_region
        %p587 = scmp.lt.s32.totalorder %s26, 1
        %s588 = scalar_select %p587, %s26, 1
        %s589 = scalar_lea.vmem %s4, %s588
      $region84: #{transformer_block_forward.8} parent=67 // pred_fallthru
        _
      // Predicated region
      $region85: #{transformer_block_forward.8} parent=67 // pred_check
        %p590 = pneg %p171
      $region86: #{transformer_block_forward.8} parent=67 // pred_check_branch
        %592 = sbr.rel (%p590) target = $region88
      $region87: #{transformer_block_forward.8} parent=67 // pred_region
        %p593 = scmp.lt.s32.totalorder %s26, 1
        %s594 = scalar_select %p593, %s26, 1
        %s595 = scalar_lea.vmem %s5, %s594
      $region88: #{transformer_block_forward.8} parent=67 // pred_fallthru
        _
      // Predicated region
      $region89: #{transformer_block_forward.8} parent=67 // pred_check
        %p596 = pneg %p344
      $region90: #{transformer_block_forward.8} parent=67 // pred_check_branch
        %598 = sbr.rel (%p596) target = $region92
      $region91: #{transformer_block_forward.8} parent=67 // pred_region
        %p599 = scmp.lt.s32.totalorder %s26, 1
        %s600 = scalar_select %p599, %s26, 1
        %s601 = smul.addr %s600, 8
        %s602 = scalar_lea.vmem %s13, %s601
      $region92: #{transformer_block_forward.8} parent=67 // pred_fallthru
        _
      // Predicated region
      $region93: #{transformer_block_forward.8} parent=67 // pred_check
        %p603 = pneg %p391
      $region94: #{transformer_block_forward.8} parent=67 // pred_check_branch
        %605 = sbr.rel (%p603) target = $region96
      $region95: #{transformer_block_forward.8} parent=67 // pred_region
        %p606 = scmp.lt.s32.totalorder %s26, 1
        %s607 = scalar_select %p606, %s26, 1
        %s608 = scalar_lea.vmem %s15, %s607
      $region96: #{transformer_block_forward.8} parent=67 // pred_fallthru
        _
    $region68: #{transformer_block_forward.8} parent=5 // pred_fallthru
      _
    %p609 = scmp.le.s32.totalorder 1, %s26
    %p610 = scmp.lt.s32.totalorder %s26, 3
    %p611 = pnand %p609, %p610
    %p612 = pneg %p611
    // Predicated region
    $region97: #{transformer_block_forward.8} parent=5 // pred_check
      _
    $region98: #{transformer_block_forward.8} parent=5 // pred_check_branch
      %614 = sbr.rel (%p611) target = $region100
    $region99: #{transformer_block_forward.8} parent=5 // pred_region
      %s615 = ssub.s32 %s26, 1
      %p616 = scmp.lt.s32.totalorder %s31, 1
      %s617 = scalar_select %p616, %s31, 1
      %s618 = smul.addr %s617, 8
      %s619 = scalar_lea.vmem %s0, %s618
      %p620 = pneg %p52
      %p621 = pneg %p49
      %p622 = pneg %p73
      %p623 = pneg %p70
      %p624 = scmp.lt.s32.totalorder %s31, 1
      %s625 = scalar_select %p624, %s31, 1
      %s626 = scalar_lea.vmem %s2, %s625
      %p627 = pneg %p99
      %p628 = pneg %p96
      %p629 = scmp.lt.s32.totalorder %s31, 1
      %s630 = scalar_select %p629, %s31, 1
      %s631 = scalar_lea.vmem %s3, %s630
      %p632 = pneg %p125
      %p633 = pneg %p122
      %p634 = scmp.lt.s32.totalorder %s31, 1
      %s635 = scalar_select %p634, %s31, 1
      %s636 = scalar_lea.vmem %s4, %s635
      %p637 = pneg %p151
      %p638 = pneg %p148
      %p639 = scmp.lt.s32.totalorder %s31, 1
      %s640 = scalar_select %p639, %s31, 1
      %s641 = scalar_lea.vmem %s5, %s640
      %p642 = pneg %p177
      %p643 = pneg %p174
      %p644 = pneg %p198
      %p645 = pneg %p195
      %p646 = pneg %p219
      %p647 = pneg %p216
      %p648 = pneg %p240
      %p649 = pneg %p237
      %p650 = pneg %p261
      %p651 = pneg %p258
      %p652 = pneg %p282
      %p653 = pneg %p279
      %p654 = pneg %p303
      %p655 = pneg %p300
      %p656 = pneg %p324
      %p657 = pneg %p321
      %p658 = scmp.lt.s32.totalorder %s31, 1
      %s659 = scalar_select %p658, %s31, 1
      %s660 = smul.addr %s659, 8
      %s661 = scalar_lea.vmem %s13, %s660
      %p662 = pneg %p350
      %p663 = pneg %p347
      %p664 = pneg %p371
      %p665 = pneg %p368
      %p666 = scmp.lt.s32.totalorder %s31, 1
      %s667 = scalar_select %p666, %s31, 1
      %s668 = scalar_lea.vmem %s15, %s667
      %p669 = pneg %p397
      %p670 = pneg %p394
      %p671 = pneg %p418
      %p672 = pneg %p415
      %p673 = pneg %p439
      %p674 = pneg %p436
      %p675 = pneg %p460
      %p676 = pneg %p457
      %p677 = pneg %p481
      %p678 = pneg %p478
      %p679 = pneg %p507
      %p680 = pneg %p504
      %p681 = scmp.lt.s32.totalorder %s31, 1
      %s682 = scalar_select %p681, %s31, 1
      %s683 = smul.addr %s682, 8
      %s684 = scalar_lea.vmem %s20, %s683
      %p685 = scmp.lt.s32.totalorder %s31, 1
      %s686 = scalar_select %p685, %s31, 1
      %s687 = smul.addr %s686, 8
      %s688 = scalar_lea.vmem %s0, %s687
      %p689 = scmp.lt.s32.totalorder %s31, 1
      %s690 = scalar_select %p689, %s31, 1
      %s691 = scalar_lea.vmem %s2, %s690
      %p692 = scmp.lt.s32.totalorder %s31, 1
      %s693 = scalar_select %p692, %s31, 1
      %s694 = scalar_lea.vmem %s3, %s693
      %p695 = scmp.lt.s32.totalorder %s31, 1
      %s696 = scalar_select %p695, %s31, 1
      %s697 = scalar_lea.vmem %s4, %s696
      %p698 = scmp.lt.s32.totalorder %s31, 1
      %s699 = scalar_select %p698, %s31, 1
      %s700 = scalar_lea.vmem %s5, %s699
      %p701 = scmp.lt.s32.totalorder %s31, 1
      %s702 = scalar_select %p701, %s31, 1
      %s703 = smul.addr %s702, 8
      %s704 = scalar_lea.vmem %s13, %s703
      %p705 = scmp.lt.s32.totalorder %s31, 1
      %s706 = scalar_select %p705, %s31, 1
      %s707 = scalar_lea.vmem %s15, %s706
      %p708 = scmp.lt.s32.totalorder %s31, 1
      %s709 = scalar_select %p708, %s31, 1
      %s710 = smul.addr %s709, 8
      %s711 = scalar_lea.vmem %s20, %s710
      %v713 = vld [vmem:[%s688] sm:$0xff]
      %v714 = vmul.f32 %v713, %v713
      %vm715 = vcmask 261120
      %v716 = vsel %vm715, %v714, 0.0
      %717 = vadd.xlane.f32.xlu0 %v716
      %v718 = vpop.xlane.xlu0 %717
      %v719 = vrcp.pop 32.0
      %v720 = vmul.f32 %v718, %v719
      %v721 = vadd.f32 %v720, 1e-05
      %v722 = vrsqrt.pop %v721
      %v723 = vmul.f32 %v713, %v722
      %v724 = vld [vmem:[%s1] sm:$0x1]
      %v726 = vlaneseq
      %v727 = vshrl.u32 %v726, 7
      %v728 = vsub.s32 0, %v727
      %v729 = vrot.slane %v724, %v728
      %v731 = vmul.f32 %v723, %v729
      %v732 = vld [vmem:[%s694] sm:$0x1]
      %v733 = vadd.f32 %v732, 1.0
      %v735 = vlaneseq
      %v736 = vshrl.u32 %v735, 7
      %v737 = vsub.s32 0, %v736
      %v738 = vrot.slane %v733, %v737
      %v740 = vmul.f32 %v731, %v738
      %v741 = vld [vmem:[%s691] sm:$0x1]
      %v743 = vlaneseq
      %v744 = vshrl.u32 %v743, 7
      %v745 = vsub.s32 0, %v744
      %v746 = vrot.slane %v741, %v745
      %v748 = vadd.f32 %v740, %v746
      %v749 = vpack.c.bf16 %v748, %v748
      %v750 = vld [vmem:[%s6] sm:$0xf]
      %v751 = vld [vmem:[%s6 + $0x4] sm:$0xf]
      %v752 = vld [vmem:[%s6 + $0x8] sm:$0xf]
      %v753 = vld [vmem:[%s6 + $0xc] sm:$0xf]
      %v758 = vunpack.c.l.b16 %v750
      %v759 = vunpack.c.l.b16 %v751
      %v760 = vunpack.c.l.b16 %v752
      %v761 = vunpack.c.l.b16 %v753
      %v762 = vpack.c.b16 %v759, %v758
      %v763 = vpack.c.b16 %v761, %v760
      %v767 = vsel %vm715, %v749, 0
      %769 = vmatprep.subr.bf16.mxu0 0
      %770 = vmatpush1.bf16.msra.mxu0 %v762
      %771 = vmatprep.subr.bf16.mxu0 0
      %772 = vmatpush1.bf16.msra.mxu0 %v763
      %773 = vmatprep.subr.bf16.mxu0 0
      %774 = vmatpush1.bf16.msra.mxu0 0
      %775 = vmatprep.subr.bf16.mxu0 0
      %776 = vmatpush1.bf16.msra.mxu0 0
      %777 = vmatprep.subr.bf16.mxu0 0
      %778 = vmatpush1.bf16.msra.mxu0 0
      %779 = vmatprep.subr.bf16.mxu0 0
      %780 = vmatpush1.bf16.msra.mxu0 0
      %781 = vmatprep.subr.bf16.mxu0 0
      %782 = vmatpush1.bf16.msra.mxu0 0
      %783 = vmatprep.subr.bf16.mxu0 0
      %784 = vmatpush1.bf16.msra.mxu0 0
      %785 = vmatprep.subr.bf16.mxu0 0
      %786 = vmatpush1.bf16.msra.mxu0 0
      %787 = vmatprep.subr.bf16.mxu0 0
      %788 = vmatpush1.bf16.msra.mxu0 0
      %789 = vmatprep.subr.bf16.mxu0 0
      %790 = vmatpush1.bf16.msra.mxu0 0
      %791 = vmatprep.subr.bf16.mxu0 0
      %792 = vmatpush1.bf16.msra.mxu0 0
      %793 = vmatprep.subr.bf16.mxu0 0
      %794 = vmatpush1.bf16.msra.mxu0 0
      %795 = vmatprep.subr.bf16.mxu0 0
      %796 = vmatpush1.bf16.msra.mxu0 0
      %797 = vmatprep.subr.bf16.mxu0 0
      %798 = vmatpush1.bf16.msra.mxu0 0
      %799 = vmatprep.subr.bf16.mxu0 0
      %800 = vmatpush1.bf16.msra.mxu0 0
      %801 = vmatprep.mubr.bf16.mxu0 0
      %802 = vmatmul.mubr.bf16.gmra.mrb[0].mxu0 %v767
      %v803 = vpop.f32.mrb[0].mxu0
      %v804 = vadd.f32 0.0, %v803
      %v805 = vpop.f32.mrb[0].mxu0
      %v806 = vpop.f32.mrb[0].mxu0
      %v807 = vpop.f32.mrb[0].mxu0
      %808 = vdwg.mxu0
      %v809 = vld [vmem:[%s12] sm:$0xff]
      %v810 = vld [vmem:[%s12 + $0x8] sm:$0xff]
      %v811 = vld [vmem:[%s12 + $0x10] sm:$0xff]
      %v812 = vld [vmem:[%s12 + $0x18] sm:$0xff]
      %v813 = vld [vmem:[%s11] sm:$0xff]
      %v814 = vld [vmem:[%s11 + $0x8] sm:$0xff]
      %v815 = vld [vmem:[%s11 + $0x10] sm:$0xff]
      %v816 = vld [vmem:[%s11 + $0x18] sm:$0xff]
      %v817 = vld [vmem:[%s9] sm:$0xff]
      %v818 = vld [vmem:[%s10] sm:$0xff]
      %v819 = vmul.f32 %v804, %v804
      %v821 = vsel %vm715, %v819, 0
      %823 = vmatprep.subr.mxu0 0.0
      %824 = vmatpush1.msra.mxu0 %v809
      %825 = vmatprep.subr.mxu0 0.0
      %826 = vmatpush1.msra.mxu0 %v810
      %827 = vmatprep.subr.mxu0 0.0
      %828 = vmatpush1.msra.mxu0 %v811
      %829 = vmatprep.subr.mxu0 0.0
      %830 = vmatpush1.msra.mxu0 %v812
      %831 = vmatprep.subr.mxu0 0.0
      %832 = vmatpush1.msra.mxu0 0.0
      %833 = vmatprep.subr.mxu0 0.0
      %834 = vmatpush1.msra.mxu0 0.0
      %835 = vmatprep.subr.mxu0 0.0
      %836 = vmatpush1.msra.mxu0 0.0
      %837 = vmatprep.subr.mxu0 0.0
      %838 = vmatpush1.msra.mxu0 0.0
      %839 = vmatprep.subr.mxu0 0.0
      %840 = vmatpush1.msra.mxu0 0.0
      %841 = vmatprep.subr.mxu0 0.0
      %842 = vmatpush1.msra.mxu0 0.0
      %843 = vmatprep.subr.mxu0 0.0
      %844 = vmatpush1.msra.mxu0 0.0
      %845 = vmatprep.subr.mxu0 0.0
      %846 = vmatpush1.msra.mxu0 0.0
      %847 = vmatprep.subr.mxu0 0.0
      %848 = vmatpush1.msra.mxu0 0.0
      %849 = vmatprep.subr.mxu0 0.0
      %850 = vmatpush1.msra.mxu0 0.0
      %851 = vmatprep.subr.mxu0 0.0
      %852 = vmatpush1.msra.mxu0 0.0
      %853 = vmatprep.subr.mxu0 0.0
      %854 = vmatpush1.msra.mxu0 0.0
      %855 = vmatprep.subr.mxu0 0.0
      %856 = vmatpush1.msra.mxu0 0.0
      %857 = vmatprep.subr.mxu0 0.0
      %858 = vmatpush1.msra.mxu0 0.0
      %859 = vmatprep.subr.mxu0 0.0
      %860 = vmatpush1.msra.mxu0 0.0
      %861 = vmatprep.subr.mxu0 0.0
      %862 = vmatpush1.msra.mxu0 0.0
      %863 = vmatprep.subr.mxu0 0.0
      %864 = vmatpush1.msra.mxu0 0.0
      %865 = vmatprep.subr.mxu0 0.0
      %866 = vmatpush1.msra.mxu0 0.0
      %867 = vmatprep.subr.mxu0 0.0
      %868 = vmatpush1.msra.mxu0 0.0
      %869 = vmatprep.subr.mxu0 0.0
      %870 = vmatpush1.msra.mxu0 0.0
      %871 = vmatprep.subr.mxu0 0.0
      %872 = vmatpush1.msra.mxu0 0.0
      %873 = vmatprep.subr.mxu0 0.0
      %874 = vmatpush1.msra.mxu0 0.0
      %875 = vmatprep.subr.mxu0 0.0
      %876 = vmatpush1.msra.mxu0 0.0
      %877 = vmatprep.subr.mxu0 0.0
      %878 = vmatpush1.msra.mxu0 0.0
      %879 = vmatprep.subr.mxu0 0.0
      %880 = vmatpush1.msra.mxu0 0.0
      %881 = vmatprep.subr.mxu0 0.0
      %882 = vmatpush1.msra.mxu0 0.0
      %883 = vmatprep.subr.mxu0 0.0
      %884 = vmatpush1.msra.mxu0 0.0
      %885 = vmatprep.subr.mxu0 0.0
      %886 = vmatpush1.msra.mxu0 0.0
      %887 = vmatprep.mubr.f32.mxu0 0.0
      %888 = vmatmul.mubr.f32.gmra.mrb[0].mxu0 %v821
      %v889 = vpop.f32.mrb[0].mxu0
      %v890 = vadd.f32 1e-05, %v889
      %v891 = vpop.f32.mrb[0].mxu0
      %892 = vdwg.mxu0
      %v893 = vrsqrt.pop %v890
      %v894 = vmul.f32 %v804, %v893
      %v895 = vld [vmem:[%s7] sm:$0x1]
      %v897 = vlaneseq
      %v898 = vshrl.u32 %v897, 7
      %v899 = vsub.s32 0, %v898
      %v900 = vrot.slane %v895, %v899
      %v902 = vmul.f32 %v894, %v900
      %903 = vrot.lane.b32.xlu0 %v819, 96
      %v904 = vpop.permute.xlu0 %903
      %v905 = vsel %vm715, %v904, 0
      %907 = vmatprep.subr.mxu0 0.0
      %908 = vmatpush1.msra.mxu0 %v809
      %909 = vmatprep.subr.mxu0 0.0
      %910 = vmatpush1.msra.mxu0 %v810
      %911 = vmatprep.subr.mxu0 0.0
      %912 = vmatpush1.msra.mxu0 %v811
      %913 = vmatprep.subr.mxu0 0.0
      %914 = vmatpush1.msra.mxu0 %v812
      %915 = vmatprep.subr.mxu0 0.0
      %916 = vmatpush1.msra.mxu0 0.0
      %917 = vmatprep.subr.mxu0 0.0
      %918 = vmatpush1.msra.mxu0 0.0
      %919 = vmatprep.subr.mxu0 0.0
      %920 = vmatpush1.msra.mxu0 0.0
      %921 = vmatprep.subr.mxu0 0.0
      %922 = vmatpush1.msra.mxu0 0.0
      %923 = vmatprep.subr.mxu0 0.0
      %924 = vmatpush1.msra.mxu0 0.0
      %925 = vmatprep.subr.mxu0 0.0
      %926 = vmatpush1.msra.mxu0 0.0
      %927 = vmatprep.subr.mxu0 0.0
      %928 = vmatpush1.msra.mxu0 0.0
      %929 = vmatprep.subr.mxu0 0.0
      %930 = vmatpush1.msra.mxu0 0.0
      %931 = vmatprep.subr.mxu0 0.0
      %932 = vmatpush1.msra.mxu0 0.0
      %933 = vmatprep.subr.mxu0 0.0
      %934 = vmatpush1.msra.mxu0 0.0
      %935 = vmatprep.subr.mxu0 0.0
      %936 = vmatpush1.msra.mxu0 0.0
      %937 = vmatprep.subr.mxu0 0.0
      %938 = vmatpush1.msra.mxu0 0.0
      %939 = vmatprep.subr.mxu0 0.0
      %940 = vmatpush1.msra.mxu0 0.0
      %941 = vmatprep.subr.mxu0 0.0
      %942 = vmatpush1.msra.mxu0 0.0
      %943 = vmatprep.subr.mxu0 0.0
      %944 = vmatpush1.msra.mxu0 0.0
      %945 = vmatprep.subr.mxu0 0.0
      %946 = vmatpush1.msra.mxu0 0.0
      %947 = vmatprep.subr.mxu0 0.0
      %948 = vmatpush1.msra.mxu0 0.0
      %949 = vmatprep.subr.mxu0 0.0
      %950 = vmatpush1.msra.mxu0 0.0
      %951 = vmatprep.subr.mxu0 0.0
      %952 = vmatpush1.msra.mxu0 0.0
      %953 = vmatprep.subr.mxu0 0.0
      %954 = vmatpush1.msra.mxu0 0.0
      %955 = vmatprep.subr.mxu0 0.0
      %956 = vmatpush1.msra.mxu0 0.0
      %957 = vmatprep.subr.mxu0 0.0
      %958 = vmatpush1.msra.mxu0 0.0
      %959 = vmatprep.subr.mxu0 0.0
      %960 = vmatpush1.msra.mxu0 0.0
      %961 = vmatprep.subr.mxu0 0.0
      %962 = vmatpush1.msra.mxu0 0.0
      %963 = vmatprep.subr.mxu0 0.0
      %964 = vmatpush1.msra.mxu0 0.0
      %965 = vmatprep.subr.mxu0 0.0
      %966 = vmatpush1.msra.mxu0 0.0
      %967 = vmatprep.subr.mxu0 0.0
      %968 = vmatpush1.msra.mxu0 0.0
      %969 = vmatprep.subr.mxu0 0.0
      %970 = vmatpush1.msra.mxu0 0.0
      %971 = vmatprep.mubr.f32.mxu0 0.0
      %972 = vmatmul.mubr.f32.gmra.mrb[0].mxu0 %v905
      %v973 = vpop.f32.mrb[0].mxu0
      %v974 = vadd.f32 1e-05, %v973
      %v975 = vpop.f32.mrb[0].mxu0
      %976 = vdwg.mxu0
      %v977 = vrsqrt.pop %v974
      %979 = vrot.lane.b32.xlu0 %v977, 32
      %v980 = vpop.permute.xlu0 %979
      %v982 = vmul.f32 %v804, %v980
      %v983 = vld [vmem:[%s8] sm:$0x1]
      %v985 = vlaneseq
      %v986 = vshrl.u32 %v985, 7
      %v987 = vsub.s32 0, %v986
      %v988 = vrot.slane %v983, %v987
      %989 = vrot.lane.b32.xlu0 %v988, 32
      %v990 = vpop.permute.xlu0 %989
      %v992 = vmul.f32 %v982, %v990
      %v993 = vmul.f32 %v902, %v817
      %v995 = vsel %vm715, %v902, 0
      %997 = vmatprep.subr.mxu0 0.0
      %998 = vmatpush1.msra.mxu0 %v813
      %999 = vmatprep.subr.mxu0 0.0
      %1000 = vmatpush1.msra.mxu0 %v814
      %1001 = vmatprep.subr.mxu0 0.0
      %1002 = vmatpush1.msra.mxu0 %v815
      %1003 = vmatprep.subr.mxu0 0.0
      %1004 = vmatpush1.msra.mxu0 %v816
      %1005 = vmatprep.subr.mxu0 0.0
      %1006 = vmatpush1.msra.mxu0 0.0
      %1007 = vmatprep.subr.mxu0 0.0
      %1008 = vmatpush1.msra.mxu0 0.0
      %1009 = vmatprep.subr.mxu0 0.0
      %1010 = vmatpush1.msra.mxu0 0.0
      %1011 = vmatprep.subr.mxu0 0.0
      %1012 = vmatpush1.msra.mxu0 0.0
      %1013 = vmatprep.subr.mxu0 0.0
      %1014 = vmatpush1.msra.mxu0 0.0
      %1015 = vmatprep.subr.mxu0 0.0
      %1016 = vmatpush1.msra.mxu0 0.0
      %1017 = vmatprep.subr.mxu0 0.0
      %1018 = vmatpush1.msra.mxu0 0.0
      %1019 = vmatprep.subr.mxu0 0.0
      %1020 = vmatpush1.msra.mxu0 0.0
      %1021 = vmatprep.subr.mxu0 0.0
      %1022 = vmatpush1.msra.mxu0 0.0
      %1023 = vmatprep.subr.mxu0 0.0
      %1024 = vmatpush1.msra.mxu0 0.0
      %1025 = vmatprep.subr.mxu0 0.0
      %1026 = vmatpush1.msra.mxu0 0.0
      %1027 = vmatprep.subr.mxu0 0.0
      %1028 = vmatpush1.msra.mxu0 0.0
      %1029 = vmatprep.subr.mxu0 0.0
      %1030 = vmatpush1.msra.mxu0 0.0
      %1031 = vmatprep.subr.mxu0 0.0
      %1032 = vmatpush1.msra.mxu0 0.0
      %1033 = vmatprep.subr.mxu0 0.0
      %1034 = vmatpush1.msra.mxu0 0.0
      %1035 = vmatprep.subr.mxu0 0.0
      %1036 = vmatpush1.msra.mxu0 0.0
      %1037 = vmatprep.subr.mxu0 0.0
      %1038 = vmatpush1.msra.mxu0 0.0
      %1039 = vmatprep.subr.mxu0 0.0
      %1040 = vmatpush1.msra.mxu0 0.0
      %1041 = vmatprep.subr.mxu0 0.0
      %1042 = vmatpush1.msra.mxu0 0.0
      %1043 = vmatprep.subr.mxu0 0.0
      %1044 = vmatpush1.msra.mxu0 0.0
      %1045 = vmatprep.subr.mxu0 0.0
      %1046 = vmatpush1.msra.mxu0 0.0
      %1047 = vmatprep.subr.mxu0 0.0
      %1048 = vmatpush1.msra.mxu0 0.0
      %1049 = vmatprep.subr.mxu0 0.0
      %1050 = vmatpush1.msra.mxu0 0.0
      %1051 = vmatprep.subr.mxu0 0.0
      %1052 = vmatpush1.msra.mxu0 0.0
      %1053 = vmatprep.subr.mxu0 0.0
      %1054 = vmatpush1.msra.mxu0 0.0
      %1055 = vmatprep.subr.mxu0 0.0
      %1056 = vmatpush1.msra.mxu0 0.0
      %1057 = vmatprep.subr.mxu0 0.0
      %1058 = vmatpush1.msra.mxu0 0.0
      %1059 = vmatprep.subr.mxu0 0.0
      %1060 = vmatpush1.msra.mxu0 0.0
      %1061 = vmatprep.mubr.f32.mxu0 0.0
      %1062 = vmatmul.mubr.f32.gmra.mrb[0].mxu0 %v995
      %v1063 = vpop.f32.mrb[0].mxu0
      %v1064 = vadd.f32 0.0, %v1063
      %v1065 = vpop.f32.mrb[0].mxu0
      %1066 = vdwg.mxu0
      %v1067 = vmul.f32 %v1064, %v818
      %v1068 = vadd.f32 %v993, %v1067
      %v1069 = vpack.c.bf16 %v1068, %v1068
      %vm1070 = vcmask 257024
      %1071 = vst.msk [vmem:[#allocation2] sm:$0xf] %vm1070, %v1069
      %1073 = vrot.lane.b32.xlu0 %v817, 32
      %v1074 = vpop.permute.xlu0 %1073
      %v1076 = vmul.f32 %v992, %v1074
      %1078 = vrot.lane.b32.xlu0 %v992, 96
      %v1079 = vpop.permute.xlu0 %1078
      %v1080 = vsel %vm715, %v1079, 0
      %1082 = vmatprep.subr.mxu0 0.0
      %1083 = vmatpush1.msra.mxu0 %v813
      %1084 = vmatprep.subr.mxu0 0.0
      %1085 = vmatpush1.msra.mxu0 %v814
      %1086 = vmatprep.subr.mxu0 0.0
      %1087 = vmatpush1.msra.mxu0 %v815
      %1088 = vmatprep.subr.mxu0 0.0
      %1089 = vmatpush1.msra.mxu0 %v816
      %1090 = vmatprep.subr.mxu0 0.0
      %1091 = vmatpush1.msra.mxu0 0.0
      %1092 = vmatprep.subr.mxu0 0.0
      %1093 = vmatpush1.msra.mxu0 0.0
      %1094 = vmatprep.subr.mxu0 0.0
      %1095 = vmatpush1.msra.mxu0 0.0
      %1096 = vmatprep.subr.mxu0 0.0
      %1097 = vmatpush1.msra.mxu0 0.0
      %1098 = vmatprep.subr.mxu0 0.0
      %1099 = vmatpush1.msra.mxu0 0.0
      %1100 = vmatprep.subr.mxu0 0.0
      %1101 = vmatpush1.msra.mxu0 0.0
      %1102 = vmatprep.subr.mxu0 0.0
      %1103 = vmatpush1.msra.mxu0 0.0
      %1104 = vmatprep.subr.mxu0 0.0
      %1105 = vmatpush1.msra.mxu0 0.0
      %1106 = vmatprep.subr.mxu0 0.0
      %1107 = vmatpush1.msra.mxu0 0.0
      %1108 = vmatprep.subr.mxu0 0.0
      %1109 = vmatpush1.msra.mxu0 0.0
      %1110 = vmatprep.subr.mxu0 0.0
      %1111 = vmatpush1.msra.mxu0 0.0
      %1112 = vmatprep.subr.mxu0 0.0
      %1113 = vmatpush1.msra.mxu0 0.0
      %1114 = vmatprep.subr.mxu0 0.0
      %1115 = vmatpush1.msra.mxu0 0.0
      %1116 = vmatprep.subr.mxu0 0.0
      %1117 = vmatpush1.msra.mxu0 0.0
      %1118 = vmatprep.subr.mxu0 0.0
      %1119 = vmatpush1.msra.mxu0 0.0
      %1120 = vmatprep.subr.mxu0 0.0
      %1121 = vmatpush1.msra.mxu0 0.0
      %1122 = vmatprep.subr.mxu0 0.0
      %1123 = vmatpush1.msra.mxu0 0.0
      %1124 = vmatprep.subr.mxu0 0.0
      %1125 = vmatpush1.msra.mxu0 0.0
      %1126 = vmatprep.subr.mxu0 0.0
      %1127 = vmatpush1.msra.mxu0 0.0
      %1128 = vmatprep.subr.mxu0 0.0
      %1129 = vmatpush1.msra.mxu0 0.0
      %1130 = vmatprep.subr.mxu0 0.0
      %1131 = vmatpush1.msra.mxu0 0.0
      %1132 = vmatprep.subr.mxu0 0.0
      %1133 = vmatpush1.msra.mxu0 0.0
      %1134 = vmatprep.subr.mxu0 0.0
      %1135 = vmatpush1.msra.mxu0 0.0
      %1136 = vmatprep.subr.mxu0 0.0
      %1137 = vmatpush1.msra.mxu0 0.0
      %1138 = vmatprep.subr.mxu0 0.0
      %1139 = vmatpush1.msra.mxu0 0.0
      %1140 = vmatprep.subr.mxu0 0.0
      %1141 = vmatpush1.msra.mxu0 0.0
      %1142 = vmatprep.subr.mxu0 0.0
      %1143 = vmatpush1.msra.mxu0 0.0
      %1144 = vmatprep.subr.mxu0 0.0
      %1145 = vmatpush1.msra.mxu0 0.0
      %1146 = vmatprep.mubr.f32.mxu0 0.0
      %1147 = vmatmul.mubr.f32.gmra.mrb[0].mxu0 %v1080
      %v1148 = vpop.f32.mrb[0].mxu0
      %v1149 = vadd.f32 0.0, %v1148
      %v1150 = vpop.f32.mrb[0].mxu0
      %1151 = vdwg.mxu0
      %v1152 = vmul.f32 %v1149, %v818
      %1154 = vrot.lane.b32.xlu0 %v1152, 32
      %v1155 = vpop.permute.xlu0 %1154
      %v1157 = vadd.f32 %v1076, %v1155
      %v1158 = vpack.c.bf16 %v1157, %v1157
      %v1160 = vunpack.c.l.b16 %v1158
      %v1161 = vpack.c.b16 %v1160, %v1160
      %1162 = vrot.lane.b32.xlu0 %v1161, 96
      %v1163 = vpop.permute.xlu0 %1162
      %1165 = vst.msk [vmem:[#allocation3] sm:$0xf] %vm1070, %v1163
      %v1166 = vpack.c.bf16 %v804, %v804
      %v1168 = vunpack.c.l.b16 %v1166
      %v1169 = vpack.c.b16 %v1168, %v1168
      %1170 = vrot.lane.b32.xlu0 %v1169, 64
      %v1171 = vpop.permute.xlu0 %1170
      %1173 = vst.msk [vmem:[#allocation4] sm:$0xf] %vm1070, %v1171
      %v1174 = vld [vmem:[%s704] sm:$0x1f]
      %v1175 = vmul.f32 %v1174, %v1174
      %vm1176 = vcmask 126976
      %v1177 = vsel %vm1176, %v1175, 0.0
      %1178 = vadd.xlane.f32.xlu0 %v1177
      %v1179 = vpop.xlane.xlu0 %1178
      %v1180 = vrcp.pop 16.0
      %v1181 = vmul.f32 %v1179, %v1180
      %v1182 = vadd.f32 %v1181, 1e-05
      %v1183 = vrsqrt.pop %v1182
      %v1184 = vmul.f32 %v1174, %v1183
      %v1185 = vld [vmem:[%s14] sm:$0x1]
      %v1187 = vlaneseq
      %v1188 = vshrl.u32 %v1187, 7
      %v1189 = vsub.s32 0, %v1188
      %v1190 = vrot.slane %v1185, %v1189
      %v1192 = vmul.f32 %v1184, %v1190
      %v1193 = vpack.c.bf16 %v1192, %v1192
      %v1194 = vld [vmem:[%s16] sm:$0xf]
      %v1195 = vld [vmem:[%s16 + $0x4] sm:$0xf]
      %v1198 = vunpack.c.l.b16 %v1194
      %v1199 = vunpack.c.l.b16 %v1195
      %v1200 = vpack.c.b16 %v1199, %v1198
      %vm1202 = vcmask 130048
      %v1204 = vsel %vm1202, %v1193, 0
      %1206 = vmatprep.subr.bf16.mxu0 0
      %1207 = vmatpush1.bf16.msra.mxu0 %v1200
      %1208 = vmatprep.subr.bf16.mxu0 0
      %1209 = vmatpush1.bf16.msra.mxu0 0
      %1210 = vmatprep.subr.bf16.mxu0 0
      %1211 = vmatpush1.bf16.msra.mxu0 0
      %1212 = vmatprep.subr.bf16.mxu0 0
      %1213 = vmatpush1.bf16.msra.mxu0 0
      %1214 = vmatprep.subr.bf16.mxu0 0
      %1215 = vmatpush1.bf16.msra.mxu0 0
      %1216 = vmatprep.subr.bf16.mxu0 0
      %1217 = vmatpush1.bf16.msra.mxu0 0
      %1218 = vmatprep.subr.bf16.mxu0 0
      %1219 = vmatpush1.bf16.msra.mxu0 0
      %1220 = vmatprep.subr.bf16.mxu0 0
      %1221 = vmatpush1.bf16.msra.mxu0 0
      %1222 = vmatprep.subr.bf16.mxu0 0
      %1223 = vmatpush1.bf16.msra.mxu0 0
      %1224 = vmatprep.subr.bf16.mxu0 0
      %1225 = vmatpush1.bf16.msra.mxu0 0
      %1226 = vmatprep.subr.bf16.mxu0 0
      %1227 = vmatpush1.bf16.msra.mxu0 0
      %1228 = vmatprep.subr.bf16.mxu0 0
      %1229 = vmatpush1.bf16.msra.mxu0 0
      %1230 = vmatprep.subr.bf16.mxu0 0
      %1231 = vmatpush1.bf16.msra.mxu0 0
      %1232 = vmatprep.subr.bf16.mxu0 0
      %1233 = vmatpush1.bf16.msra.mxu0 0
      %1234 = vmatprep.subr.bf16.mxu0 0
      %1235 = vmatpush1.bf16.msra.mxu0 0
      %1236 = vmatprep.subr.bf16.mxu0 0
      %1237 = vmatpush1.bf16.msra.mxu0 0
      %1238 = vmatprep.mubr.bf16.mxu0 0
      %1239 = vmatmul.mubr.bf16.gmra.mrb[0].mxu0 %v1204
      %v1240 = vpop.f32.mrb[0].mxu0
      %v1241 = vadd.f32 0.0, %v1240
      %v1242 = vpop.f32.mrb[0].mxu0
      %v1243 = vpop.f32.mrb[0].mxu0
      %v1244 = vpop.f32.mrb[0].mxu0
      %1245 = vdwg.mxu0
      %v1246 = vmul.f32 %v1241, %v1241
      %v1248 = vsel %vm715, %v1246, 0
      %1250 = vmatprep.subr.mxu0 0.0
      %1251 = vmatpush1.msra.mxu0 %v809
      %1252 = vmatprep.subr.mxu0 0.0
      %1253 = vmatpush1.msra.mxu0 %v810
      %1254 = vmatprep.subr.mxu0 0.0
      %1255 = vmatpush1.msra.mxu0 %v811
      %1256 = vmatprep.subr.mxu0 0.0
      %1257 = vmatpush1.msra.mxu0 %v812
      %1258 = vmatprep.subr.mxu0 0.0
      %1259 = vmatpush1.msra.mxu0 0.0
      %1260 = vmatprep.subr.mxu0 0.0
      %1261 = vmatpush1.msra.mxu0 0.0
      %1262 = vmatprep.subr.mxu0 0.0
      %1263 = vmatpush1.msra.mxu0 0.0
      %1264 = vmatprep.subr.mxu0 0.0
      %1265 = vmatpush1.msra.mxu0 0.0
      %1266 = vmatprep.subr.mxu0 0.0
      %1267 = vmatpush1.msra.mxu0 0.0
      %1268 = vmatprep.subr.mxu0 0.0
      %1269 = vmatpush1.msra.mxu0 0.0
      %1270 = vmatprep.subr.mxu0 0.0
      %1271 = vmatpush1.msra.mxu0 0.0
      %1272 = vmatprep.subr.mxu0 0.0
      %1273 = vmatpush1.msra.mxu0 0.0
      %1274 = vmatprep.subr.mxu0 0.0
      %1275 = vmatpush1.msra.mxu0 0.0
      %1276 = vmatprep.subr.mxu0 0.0
      %1277 = vmatpush1.msra.mxu0 0.0
      %1278 = vmatprep.subr.mxu0 0.0
      %1279 = vmatpush1.msra.mxu0 0.0
      %1280 = vmatprep.subr.mxu0 0.0
      %1281 = vmatpush1.msra.mxu0 0.0
      %1282 = vmatprep.subr.mxu0 0.0
      %1283 = vmatpush1.msra.mxu0 0.0
      %1284 = vmatprep.subr.mxu0 0.0
      %1285 = vmatpush1.msra.mxu0 0.0
      %1286 = vmatprep.subr.mxu0 0.0
      %1287 = vmatpush1.msra.mxu0 0.0
      %1288 = vmatprep.subr.mxu0 0.0
      %1289 = vmatpush1.msra.mxu0 0.0
      %1290 = vmatprep.subr.mxu0 0.0
      %1291 = vmatpush1.msra.mxu0 0.0
      %1292 = vmatprep.subr.mxu0 0.0
      %1293 = vmatpush1.msra.mxu0 0.0
      %1294 = vmatprep.subr.mxu0 0.0
      %1295 = vmatpush1.msra.mxu0 0.0
      %1296 = vmatprep.subr.mxu0 0.0
      %1297 = vmatpush1.msra.mxu0 0.0
      %1298 = vmatprep.subr.mxu0 0.0
      %1299 = vmatpush1.msra.mxu0 0.0
      %1300 = vmatprep.subr.mxu0 0.0
      %1301 = vmatpush1.msra.mxu0 0.0
      %1302 = vmatprep.subr.mxu0 0.0
      %1303 = vmatpush1.msra.mxu0 0.0
      %1304 = vmatprep.subr.mxu0 0.0
      %1305 = vmatpush1.msra.mxu0 0.0
      %1306 = vmatprep.subr.mxu0 0.0
      %1307 = vmatpush1.msra.mxu0 0.0
      %1308 = vmatprep.subr.mxu0 0.0
      %1309 = vmatpush1.msra.mxu0 0.0
      %1310 = vmatprep.subr.mxu0 0.0
      %1311 = vmatpush1.msra.mxu0 0.0
      %1312 = vmatprep.subr.mxu0 0.0
      %1313 = vmatpush1.msra.mxu0 0.0
      %1314 = vmatprep.mubr.f32.mxu0 0.0
      %1315 = vmatmul.mubr.f32.gmra.mrb[0].mxu0 %v1248
      %v1316 = vpop.f32.mrb[0].mxu0
      %v1317 = vadd.f32 1e-05, %v1316
      %v1318 = vpop.f32.mrb[0].mxu0
      %1319 = vdwg.mxu0
      %v1320 = vrsqrt.pop %v1317
      %v1321 = vmul.f32 %v1241, %v1320
      %v1322 = vld [vmem:[%s17] sm:$0x1]
      %v1324 = vlaneseq
      %v1325 = vshrl.u32 %v1324, 7
      %v1326 = vsub.s32 0, %v1325
      %v1327 = vrot.slane %v1322, %v1326
      %v1329 = vmul.f32 %v1321, %v1327
      %v1330 = vpack.c.bf16 %v1329, %v1329
      %vm1331 = vcmask 256000
      %vm1332 = vsmask.f32 2304
      %vm1333 = vmand %vm1331, %vm1332
      %v1334 = vld [vmem:[#allocation5] sm:$0x7]
      %v1335 = vsel %vm1333, %v1330, %v1334
      %1336 = vst [vmem:[#allocation5] sm:$0x7] %v1335
      %v1337 = vpack.c.bf16 %v1241, %v1241
      %v1339 = vunpack.c.l.b16 %v1337
      %v1340 = vpack.c.b16 %v1339, %v1339
      %1341 = vrot.lane.b32.xlu0 %v1340, 96
      %v1342 = vpop.permute.xlu0 %1341
      %v1344 = vld [vmem:[#allocation6] sm:$0x7]
      %v1345 = vsel %vm1333, %v1342, %v1344
      %1346 = vst [vmem:[#allocation6] sm:$0x7] %v1345
      %v1347 = vld [vmem:[%s700] sm:$0x1]
      %v1348 = vld [vmem:[%s707] sm:$0x1]
      %v1349 = vld [vmem:[%s18] sm:$0x1]
      %v1350 = vld [vmem:[#allocation2] sm:$0xf]
      %v1351 = vld [vmem:[#allocation3] sm:$0xf]
      %v1352 = vld [vmem:[#allocation4] sm:$0xf]
      %vm1353 = vcmask 64512
      %v1355 = vsel %vm1353, %v1350, 0
      %v1358 = vsel %vm1353, %v1351, 0
      %1360 = vmatprep.subr.bf16.mxu0 0
      %1361 = vmatpush1.bf16.xpose.msra.mxu0 %v1358
      %1362 = vmatprep.subr.bf16.mxu0 0
      %1363 = vmatpush1.bf16.xpose.msra.mxu0 0
      %1364 = vmatprep.subr.bf16.mxu0 0
      %1365 = vmatpush1.bf16.xpose.msra.mxu0 0
      %1366 = vmatprep.subr.bf16.mxu0 0
      %1367 = vmatpush1.bf16.xpose.msra.mxu0 0
      %1368 = vmatprep.subr.bf16.mxu0 0
      %1369 = vmatpush1.bf16.xpose.msra.mxu0 0
      %1370 = vmatprep.subr.bf16.mxu0 0
      %1371 = vmatpush1.bf16.xpose.msra.mxu0 0
      %1372 = vmatprep.subr.bf16.mxu0 0
      %1373 = vmatpush1.bf16.xpose.msra.mxu0 0
      %1374 = vmatprep.subr.bf16.mxu0 0
      %1375 = vmatpush1.bf16.xpose.msra.mxu0 0
      %1376 = vmatprep.subr.bf16.mxu0 0
      %1377 = vmatpush1.bf16.xpose.msra.mxu0 0
      %1378 = vmatprep.subr.bf16.mxu0 0
      %1379 = vmatpush1.bf16.xpose.msra.mxu0 0
      %1380 = vmatprep.subr.bf16.mxu0 0
      %1381 = vmatpush1.bf16.xpose.msra.mxu0 0
      %1382 = vmatprep.subr.bf16.mxu0 0
      %1383 = vmatpush1.bf16.xpose.msra.mxu0 0
      %1384 = vmatprep.subr.bf16.mxu0 0
      %1385 = vmatpush1.bf16.xpose.msra.mxu0 0
      %1386 = vmatprep.subr.bf16.mxu0 0
      %1387 = vmatpush1.bf16.xpose.msra.mxu0 0
      %1388 = vmatprep.subr.bf16.mxu0 0
      %1389 = vmatpush1.bf16.xpose.msra.mxu0 0
      %1390 = vmatprep.subr.bf16.mxu0 0
      %1391 = vmatpush1.bf16.xpose.msra.mxu0 0
      %1392 = vmatprep.mubr.bf16.mxu0 0
      %1393 = vmatmul.mubr.bf16.gmra.mrb[0].mxu0 %v1355
      %v1394 = vpop.f32.mrb[0].mxu0
      %v1395 = vadd.f32 0.0, %v1394
      %v1396 = vpop.f32.mrb[0].mxu0
      %v1397 = vpop.f32.mrb[0].mxu0
      %v1398 = vpop.f32.mrb[0].mxu0
      %1399 = vdwg.mxu0
      %v1400 = vmul.f32 %v1395, 0.35355338
      %v1402 = vlaneseq
      %v1403 = vshrl.u32 %v1402, 7
      %v1404 = vsub.s32 0, %v1403
      %v1405 = vrot.slane %v1347, %v1404
      %v1407 = vadd.f32 %v1400, %v1405
      %v1408 = vsel %vm1353, %v1407, -inf
      %1409 = vmax.xlane.f32.xlu0 %v1408
      %v1410 = vpop.xlane.xlu0 %1409
      %v1411 = vsub.f32 %v1407, %v1410
      %v1412 = vmul.f32 %v1411, 1.442695
      %v1413 = vpow.pop %v1412
      %v1414 = vsel %vm1353, %v1413, 0.0
      %1415 = vadd.xlane.f32.xlu0 %v1414
      %v1416 = vpop.xlane.xlu0 %1415
      %v1417 = vrcp.pop %v1416
      %v1418 = vmul.f32 %v1413, %v1417
      %v1419 = vpack.c.bf16 %v1418, %v1418
      %v1420 = vld [vmem:[#allocation5] sm:$0x7]
      %v1421 = vld [vmem:[#allocation6] sm:$0x7]
      %v1423 = vsel %vm1353, %v1420, 0
      %1425 = vmatprep.subr.bf16.mxu0 0
      %1426 = vmatpush1.bf16.xpose.msra.mxu0 %v1423
      %1427 = vmatprep.subr.bf16.mxu0 0
      %1428 = vmatpush1.bf16.xpose.msra.mxu0 0
      %1429 = vmatprep.subr.bf16.mxu0 0
      %1430 = vmatpush1.bf16.xpose.msra.mxu0 0
      %1431 = vmatprep.subr.bf16.mxu0 0
      %1432 = vmatpush1.bf16.xpose.msra.mxu0 0
      %1433 = vmatprep.subr.bf16.mxu0 0
      %1434 = vmatpush1.bf16.xpose.msra.mxu0 0
      %1435 = vmatprep.subr.bf16.mxu0 0
      %1436 = vmatpush1.bf16.xpose.msra.mxu0 0
      %1437 = vmatprep.subr.bf16.mxu0 0
      %1438 = vmatpush1.bf16.xpose.msra.mxu0 0
      %1439 = vmatprep.subr.bf16.mxu0 0
      %1440 = vmatpush1.bf16.xpose.msra.mxu0 0
      %1441 = vmatprep.subr.bf16.mxu0 0
      %1442 = vmatpush1.bf16.xpose.msra.mxu0 0
      %1443 = vmatprep.subr.bf16.mxu0 0
      %1444 = vmatpush1.bf16.xpose.msra.mxu0 0
      %1445 = vmatprep.subr.bf16.mxu0 0
      %1446 = vmatpush1.bf16.xpose.msra.mxu0 0
      %1447 = vmatprep.subr.bf16.mxu0 0
      %1448 = vmatpush1.bf16.xpose.msra.mxu0 0
      %1449 = vmatprep.subr.bf16.mxu0 0
      %1450 = vmatpush1.bf16.xpose.msra.mxu0 0
      %1451 = vmatprep.subr.bf16.mxu0 0
      %1452 = vmatpush1.bf16.xpose.msra.mxu0 0
      %1453 = vmatprep.subr.bf16.mxu0 0
      %1454 = vmatpush1.bf16.xpose.msra.mxu0 0
      %1455 = vmatprep.subr.bf16.mxu0 0
      %1456 = vmatpush1.bf16.xpose.msra.mxu0 0
      %1457 = vmatprep.mubr.bf16.mxu0 0
      %1458 = vmatmul.mubr.bf16.gmra.mrb[0].mxu0 %v1355
      %v1459 = vpop.f32.mrb[0].mxu0
      %v1460 = vadd.f32 0.0, %v1459
      %v1461 = vpop.f32.mrb[0].mxu0
      %v1462 = vpop.f32.mrb[0].mxu0
      %v1463 = vpop.f32.mrb[0].mxu0
      %1464 = vdwg.mxu0
      %v1465 = vmul.f32 %v1460, 0.35355338
      %v1467 = vlaneseq
      %v1468 = vshrl.u32 %v1467, 7
      %v1469 = vsub.s32 0, %v1468
      %v1470 = vrot.slane %v1348, %v1469
      %v1472 = vadd.f32 %v1465, %v1470
      %vm1473 = vcmask 39936
      %v1474 = vsel %vm1473, %v1472, -inf
      %1475 = vmax.xlane.f32.xlu0 %v1474
      %v1476 = vpop.xlane.xlu0 %1475
      %v1477 = vsub.f32 %v1472, %v1476
      %v1478 = vmul.f32 %v1477, 1.442695
      %v1479 = vpow.pop %v1478
      %v1480 = vsel %vm1473, %v1479, 0.0
      %1481 = vadd.xlane.f32.xlu0 %v1480
      %v1482 = vpop.xlane.xlu0 %1481
      %v1483 = vrcp.pop %v1482
      %v1484 = vmul.f32 %v1479, %v1483
      %v1485 = vpack.c.bf16 %v1484, %v1484
      %v1487 = vsel %vm1473, %v1485, 0
      %vm1489 = vcmask 1041408
      %vm1490 = vcmask 1042432
      %v1491 = vsel %vm1489, 4294967295, 65535
      %v1492 = vsel %vm1490, %v1491, 0
      %v1494 = vand.u32 %v1421, %v1492
      %1496 = vmatprep.subr.bf16.mxu0 0
      %1497 = vmatpush1.bf16.msra.mxu0 %v1494
      %1498 = vmatprep.subr.bf16.mxu0 0
      %1499 = vmatpush1.bf16.msra.mxu0 0
      %1500 = vmatprep.subr.bf16.mxu0 0
      %1501 = vmatpush1.bf16.msra.mxu0 0
      %1502 = vmatprep.subr.bf16.mxu0 0
      %1503 = vmatpush1.bf16.msra.mxu0 0
      %1504 = vmatprep.subr.bf16.mxu0 0
      %1505 = vmatpush1.bf16.msra.mxu0 0
      %1506 = vmatprep.subr.bf16.mxu0 0
      %1507 = vmatpush1.bf16.msra.mxu0 0
      %1508 = vmatprep.subr.bf16.mxu0 0
      %1509 = vmatpush1.bf16.msra.mxu0 0
      %1510 = vmatprep.subr.bf16.mxu0 0
      %1511 = vmatpush1.bf16.msra.mxu0 0
      %1512 = vmatprep.subr.bf16.mxu0 0
      %1513 = vmatpush1.bf16.msra.mxu0 0
      %1514 = vmatprep.subr.bf16.mxu0 0
      %1515 = vmatpush1.bf16.msra.mxu0 0
      %1516 = vmatprep.subr.bf16.mxu0 0
      %1517 = vmatpush1.bf16.msra.mxu0 0
      %1518 = vmatprep.subr.bf16.mxu0 0
      %1519 = vmatpush1.bf16.msra.mxu0 0
      %1520 = vmatprep.subr.bf16.mxu0 0
      %1521 = vmatpush1.bf16.msra.mxu0 0
      %1522 = vmatprep.subr.bf16.mxu0 0
      %1523 = vmatpush1.bf16.msra.mxu0 0
      %1524 = vmatprep.subr.bf16.mxu0 0
      %1525 = vmatpush1.bf16.msra.mxu0 0
      %1526 = vmatprep.subr.bf16.mxu0 0
      %1527 = vmatpush1.bf16.msra.mxu0 0
      %1528 = vmatprep.mubr.bf16.mxu0 0
      %1529 = vmatmul.mubr.bf16.gmra.mrb[0].mxu0 %v1487
      %v1530 = vpop.f32.mrb[0].mxu0
      %v1531 = vadd.f32 0.0, %v1530
      %v1532 = vpop.f32.mrb[0].mxu0
      %v1533 = vpop.f32.mrb[0].mxu0
      %v1534 = vpop.f32.mrb[0].mxu0
      %1535 = vdwg.mxu0
      %v1537 = vlaneseq
      %v1538 = vshrl.u32 %v1537, 7
      %v1539 = vsub.s32 0, %v1538
      %v1540 = vrot.slane %v1349, %v1539
      %v1542 = vmul.f32 %v1540, %v1531
      %v1544 = vsel %vm1353, %v1419, 0
      %vm1546 = vcmask 1043456
      %v1548 = vsel %vm1546, %v1352, 0
      %1550 = vmatprep.subr.bf16.mxu0 0
      %1551 = vmatpush1.bf16.msra.mxu0 %v1548
      %1552 = vmatprep.subr.bf16.mxu0 0
      %1553 = vmatpush1.bf16.msra.mxu0 0
      %1554 = vmatprep.subr.bf16.mxu0 0
      %1555 = vmatpush1.bf16.msra.mxu0 0
      %1556 = vmatprep.subr.bf16.mxu0 0
      %1557 = vmatpush1.bf16.msra.mxu0 0
      %1558 = vmatprep.subr.bf16.mxu0 0
      %1559 = vmatpush1.bf16.msra.mxu0 0
      %1560 = vmatprep.subr.bf16.mxu0 0
      %1561 = vmatpush1.bf16.msra.mxu0 0
      %1562 = vmatprep.subr.bf16.mxu0 0
      %1563 = vmatpush1.bf16.msra.mxu0 0
      %1564 = vmatprep.subr.bf16.mxu0 0
      %1565 = vmatpush1.bf16.msra.mxu0 0
      %1566 = vmatprep.subr.bf16.mxu0 0
      %1567 = vmatpush1.bf16.msra.mxu0 0
      %1568 = vmatprep.subr.bf16.mxu0 0
      %1569 = vmatpush1.bf16.msra.mxu0 0
      %1570 = vmatprep.subr.bf16.mxu0 0
      %1571 = vmatpush1.bf16.msra.mxu0 0
      %1572 = vmatprep.subr.bf16.mxu0 0
      %1573 = vmatpush1.bf16.msra.mxu0 0
      %1574 = vmatprep.subr.bf16.mxu0 0
      %1575 = vmatpush1.bf16.msra.mxu0 0
      %1576 = vmatprep.subr.bf16.mxu0 0
      %1577 = vmatpush1.bf16.msra.mxu0 0
      %1578 = vmatprep.subr.bf16.mxu0 0
      %1579 = vmatpush1.bf16.msra.mxu0 0
      %1580 = vmatprep.subr.bf16.mxu0 0
      %1581 = vmatpush1.bf16.msra.mxu0 0
      %1582 = vmatprep.mubr.bf16.mxu0 0
      %1583 = vmatmul.mubr.bf16.gmra.mrb[0].mxu0 %v1544
      %v1584 = vpop.f32.mrb[0].mxu0
      %v1585 = vadd.f32 %v1542, %v1584
      %v1586 = vpop.f32.mrb[0].mxu0
      %v1587 = vpop.f32.mrb[0].mxu0
      %v1588 = vpop.f32.mrb[0].mxu0
      %1589 = vdwg.mxu0
      %1590 = vst.msk [vmem:[#allocation7] sm:$0xff] %vm1353, %v1585
      %v1591 = vld [vmem:[#allocation2] sm:$0xf]
      %v1592 = vld [vmem:[#allocation3] sm:$0xf]
      %v1593 = vld [vmem:[#allocation4] sm:$0xf]
      %v1595 = vunpack.c.l.b16 %v1591
      %v1596 = vpack.c.b16 %v1595, %v1595
      %1597 = vrot.lane.b32.xlu0 %v1596, 120
      %v1598 = vpop.permute.xlu0 %1597
      %v1600 = vunpack.c.l.b16 %v1592
      %v1601 = vpack.c.b16 %v1600, %v1600
      %1602 = vrot.lane.b32.xlu0 %v1601, 120
      %v1603 = vpop.permute.xlu0 %1602
      %v1605 = vsel %vm1353, %v1598, 0
      %v1608 = vsel %vm1353, %v1603, 0
      %1610 = vmatprep.subr.bf16.mxu0 0
      %1611 = vmatpush1.bf16.xpose.msra.mxu0 %v1608
      %1612 = vmatprep.subr.bf16.mxu0 0
      %1613 = vmatpush1.bf16.xpose.msra.mxu0 0
      %1614 = vmatprep.subr.bf16.mxu0 0
      %1615 = vmatpush1.bf16.xpose.msra.mxu0 0
      %1616 = vmatprep.subr.bf16.mxu0 0
      %1617 = vmatpush1.bf16.xpose.msra.mxu0 0
      %1618 = vmatprep.subr.bf16.mxu0 0
      %1619 = vmatpush1.bf16.xpose.msra.mxu0 0
      %1620 = vmatprep.subr.bf16.mxu0 0
      %1621 = vmatpush1.bf16.xpose.msra.mxu0 0
      %1622 = vmatprep.subr.bf16.mxu0 0
      %1623 = vmatpush1.bf16.xpose.msra.mxu0 0
      %1624 = vmatprep.subr.bf16.mxu0 0
      %1625 = vmatpush1.bf16.xpose.msra.mxu0 0
      %1626 = vmatprep.subr.bf16.mxu0 0
      %1627 = vmatpush1.bf16.xpose.msra.mxu0 0
      %1628 = vmatprep.subr.bf16.mxu0 0
      %1629 = vmatpush1.bf16.xpose.msra.mxu0 0
      %1630 = vmatprep.subr.bf16.mxu0 0
      %1631 = vmatpush1.bf16.xpose.msra.mxu0 0
      %1632 = vmatprep.subr.bf16.mxu0 0
      %1633 = vmatpush1.bf16.xpose.msra.mxu0 0
      %1634 = vmatprep.subr.bf16.mxu0 0
      %1635 = vmatpush1.bf16.xpose.msra.mxu0 0
      %1636 = vmatprep.subr.bf16.mxu0 0
      %1637 = vmatpush1.bf16.xpose.msra.mxu0 0
      %1638 = vmatprep.subr.bf16.mxu0 0
      %1639 = vmatpush1.bf16.xpose.msra.mxu0 0
      %1640 = vmatprep.subr.bf16.mxu0 0
      %1641 = vmatpush1.bf16.xpose.msra.mxu0 0
      %1642 = vmatprep.mubr.bf16.mxu0 0
      %1643 = vmatmul.mubr.bf16.gmra.mrb[0].mxu0 %v1605
      %v1644 = vpop.f32.mrb[0].mxu0
      %v1645 = vadd.f32 0.0, %v1644
      %v1646 = vpop.f32.mrb[0].mxu0
      %v1647 = vpop.f32.mrb[0].mxu0
      %v1648 = vpop.f32.mrb[0].mxu0
      %1649 = vdwg.mxu0
      %v1650 = vmul.f32 %v1645, 0.35355338
      %v1651 = vadd.f32 %v1650, %v1405
      %v1652 = vsel %vm1353, %v1651, -inf
      %1653 = vmax.xlane.f32.xlu0 %v1652
      %v1654 = vpop.xlane.xlu0 %1653
      %v1655 = vsub.f32 %v1651, %v1654
      %v1656 = vmul.f32 %v1655, 1.442695
      %v1657 = vpow.pop %v1656
      %v1658 = vsel %vm1353, %v1657, 0.0
      %1659 = vadd.xlane.f32.xlu0 %v1658
      %v1660 = vpop.xlane.xlu0 %1659
      %v1661 = vrcp.pop %v1660
      %v1662 = vmul.f32 %v1657, %v1661
      %v1663 = vpack.c.bf16 %v1662, %v1662
      %v1664 = vld [vmem:[#allocation5] sm:$0x7]
      %v1665 = vld [vmem:[#allocation6] sm:$0x7]
      %v1667 = vunpack.c.l.b16 %v1664
      %v1668 = vpack.c.b16 %v1667, %v1667
      %1669 = vrot.lane.b32.xlu0 %v1668, 120
      %v1670 = vpop.permute.xlu0 %1669
      %v1672 = vsel %vm1353, %v1670, 0
      %1674 = vmatprep.subr.bf16.mxu0 0
      %1675 = vmatpush1.bf16.xpose.msra.mxu0 %v1672
      %1676 = vmatprep.subr.bf16.mxu0 0
      %1677 = vmatpush1.bf16.xpose.msra.mxu0 0
      %1678 = vmatprep.subr.bf16.mxu0 0
      %1679 = vmatpush1.bf16.xpose.msra.mxu0 0
      %1680 = vmatprep.subr.bf16.mxu0 0
      %1681 = vmatpush1.bf16.xpose.msra.mxu0 0
      %1682 = vmatprep.subr.bf16.mxu0 0
      %1683 = vmatpush1.bf16.xpose.msra.mxu0 0
      %1684 = vmatprep.subr.bf16.mxu0 0
      %1685 = vmatpush1.bf16.xpose.msra.mxu0 0
      %1686 = vmatprep.subr.bf16.mxu0 0
      %1687 = vmatpush1.bf16.xpose.msra.mxu0 0
      %1688 = vmatprep.subr.bf16.mxu0 0
      %1689 = vmatpush1.bf16.xpose.msra.mxu0 0
      %1690 = vmatprep.subr.bf16.mxu0 0
      %1691 = vmatpush1.bf16.xpose.msra.mxu0 0
      %1692 = vmatprep.subr.bf16.mxu0 0
      %1693 = vmatpush1.bf16.xpose.msra.mxu0 0
      %1694 = vmatprep.subr.bf16.mxu0 0
      %1695 = vmatpush1.bf16.xpose.msra.mxu0 0
      %1696 = vmatprep.subr.bf16.mxu0 0
      %1697 = vmatpush1.bf16.xpose.msra.mxu0 0
      %1698 = vmatprep.subr.bf16.mxu0 0
      %1699 = vmatpush1.bf16.xpose.msra.mxu0 0
      %1700 = vmatprep.subr.bf16.mxu0 0
      %1701 = vmatpush1.bf16.xpose.msra.mxu0 0
      %1702 = vmatprep.subr.bf16.mxu0 0
      %1703 = vmatpush1.bf16.xpose.msra.mxu0 0
      %1704 = vmatprep.subr.bf16.mxu0 0
      %1705 = vmatpush1.bf16.xpose.msra.mxu0 0
      %1706 = vmatprep.mubr.bf16.mxu0 0
      %1707 = vmatmul.mubr.bf16.gmra.mrb[0].mxu0 %v1605
      %v1708 = vpop.f32.mrb[0].mxu0
      %v1709 = vadd.f32 0.0, %v1708
      %v1710 = vpop.f32.mrb[0].mxu0
      %v1711 = vpop.f32.mrb[0].mxu0
      %v1712 = vpop.f32.mrb[0].mxu0
      %1713 = vdwg.mxu0
      %v1714 = vmul.f32 %v1709, 0.35355338
      %v1715 = vadd.f32 %v1714, %v1470
      %v1716 = vsel %vm1473, %v1715, -inf
      %1717 = vmax.xlane.f32.xlu0 %v1716
      %v1718 = vpop.xlane.xlu0 %1717
      %v1719 = vsub.f32 %v1715, %v1718
      %v1720 = vmul.f32 %v1719, 1.442695
      %v1721 = vpow.pop %v1720
      %v1722 = vsel %vm1473, %v1721, 0.0
      %1723 = vadd.xlane.f32.xlu0 %v1722
      %v1724 = vpop.xlane.xlu0 %1723
      %v1725 = vrcp.pop %v1724
      %v1726 = vmul.f32 %v1721, %v1725
      %v1727 = vpack.c.bf16 %v1726, %v1726
      %v1729 = vunpack.c.l.b16 %v1665
      %v1730 = vpack.c.b16 %v1729, %v1729
      %1731 = vrot.lane.b32.xlu0 %v1730, 120
      %v1732 = vpop.permute.xlu0 %1731
      %v1734 = vsel %vm1473, %v1727, 0
      %v1737 = vand.u32 %v1732, %v1492
      %1739 = vmatprep.subr.bf16.mxu0 0
      %1740 = vmatpush1.bf16.msra.mxu0 %v1737
      %1741 = vmatprep.subr.bf16.mxu0 0
      %1742 = vmatpush1.bf16.msra.mxu0 0
      %1743 = vmatprep.subr.bf16.mxu0 0
      %1744 = vmatpush1.bf16.msra.mxu0 0
      %1745 = vmatprep.subr.bf16.mxu0 0
      %1746 = vmatpush1.bf16.msra.mxu0 0
      %1747 = vmatprep.subr.bf16.mxu0 0
      %1748 = vmatpush1.bf16.msra.mxu0 0
      %1749 = vmatprep.subr.bf16.mxu0 0
      %1750 = vmatpush1.bf16.msra.mxu0 0
      %1751 = vmatprep.subr.bf16.mxu0 0
      %1752 = vmatpush1.bf16.msra.mxu0 0
      %1753 = vmatprep.subr.bf16.mxu0 0
      %1754 = vmatpush1.bf16.msra.mxu0 0
      %1755 = vmatprep.subr.bf16.mxu0 0
      %1756 = vmatpush1.bf16.msra.mxu0 0
      %1757 = vmatprep.subr.bf16.mxu0 0
      %1758 = vmatpush1.bf16.msra.mxu0 0
      %1759 = vmatprep.subr.bf16.mxu0 0
      %1760 = vmatpush1.bf16.msra.mxu0 0
      %1761 = vmatprep.subr.bf16.mxu0 0
      %1762 = vmatpush1.bf16.msra.mxu0 0
      %1763 = vmatprep.subr.bf16.mxu0 0
      %1764 = vmatpush1.bf16.msra.mxu0 0
      %1765 = vmatprep.subr.bf16.mxu0 0
      %1766 = vmatpush1.bf16.msra.mxu0 0
      %1767 = vmatprep.subr.bf16.mxu0 0
      %1768 = vmatpush1.bf16.msra.mxu0 0
      %1769 = vmatprep.subr.bf16.mxu0 0
      %1770 = vmatpush1.bf16.msra.mxu0 0
      %1771 = vmatprep.mubr.bf16.mxu0 0
      %1772 = vmatmul.mubr.bf16.gmra.mrb[0].mxu0 %v1734
      %v1773 = vpop.f32.mrb[0].mxu0
      %v1774 = vadd.f32 0.0, %v1773
      %v1775 = vpop.f32.mrb[0].mxu0
      %v1776 = vpop.f32.mrb[0].mxu0
      %v1777 = vpop.f32.mrb[0].mxu0
      %1778 = vdwg.mxu0
      %1780 = vrot.lane.b32.xlu0 %v1774, 8
      %v1781 = vpop.permute.xlu0 %1780
      %v1783 = vmul.f32 %v1540, %v1781
      %v1785 = vunpack.c.l.b16 %v1593
      %v1786 = vpack.c.b16 %v1785, %v1785
      %1787 = vrot.lane.b32.xlu0 %v1786, 120
      %v1788 = vpop.permute.xlu0 %1787
      %1790 = vrot.lane.b32.xlu0 %v1783, 120
      %v1791 = vpop.permute.xlu0 %1790
      %v1794 = vsel %vm1353, %v1663, 0
      %v1797 = vsel %vm1546, %v1788, 0
      %1799 = vmatprep.subr.bf16.mxu0 0
      %1800 = vmatpush1.bf16.msra.mxu0 %v1797
      %1801 = vmatprep.subr.bf16.mxu0 0
      %1802 = vmatpush1.bf16.msra.mxu0 0
      %1803 = vmatprep.subr.bf16.mxu0 0
      %1804 = vmatpush1.bf16.msra.mxu0 0
      %1805 = vmatprep.subr.bf16.mxu0 0
      %1806 = vmatpush1.bf16.msra.mxu0 0
      %1807 = vmatprep.subr.bf16.mxu0 0
      %1808 = vmatpush1.bf16.msra.mxu0 0
      %1809 = vmatprep.subr.bf16.mxu0 0
      %1810 = vmatpush1.bf16.msra.mxu0 0
      %1811 = vmatprep.subr.bf16.mxu0 0
      %1812 = vmatpush1.bf16.msra.mxu0 0
      %1813 = vmatprep.subr.bf16.mxu0 0
      %1814 = vmatpush1.bf16.msra.mxu0 0
      %1815 = vmatprep.subr.bf16.mxu0 0
      %1816 = vmatpush1.bf16.msra.mxu0 0
      %1817 = vmatprep.subr.bf16.mxu0 0
      %1818 = vmatpush1.bf16.msra.mxu0 0
      %1819 = vmatprep.subr.bf16.mxu0 0
      %1820 = vmatpush1.bf16.msra.mxu0 0
      %1821 = vmatprep.subr.bf16.mxu0 0
      %1822 = vmatpush1.bf16.msra.mxu0 0
      %1823 = vmatprep.subr.bf16.mxu0 0
      %1824 = vmatpush1.bf16.msra.mxu0 0
      %1825 = vmatprep.subr.bf16.mxu0 0
      %1826 = vmatpush1.bf16.msra.mxu0 0
      %1827 = vmatprep.subr.bf16.mxu0 0
      %1828 = vmatpush1.bf16.msra.mxu0 0
      %1829 = vmatprep.subr.bf16.mxu0 0
      %1830 = vmatpush1.bf16.msra.mxu0 0
      %1831 = vmatprep.mubr.bf16.mxu0 0
      %1832 = vmatmul.mubr.bf16.gmra.mrb[0].mxu0 %v1794
      %v1833 = vpop.f32.mrb[0].mxu0
      %v1834 = vadd.f32 %v1791, %v1833
      %v1835 = vpop.f32.mrb[0].mxu0
      %v1836 = vpop.f32.mrb[0].mxu0
      %v1837 = vpop.f32.mrb[0].mxu0
      %1838 = vdwg.mxu0
      %1840 = vrot.lane.b32.xlu0 %v1834, 8
      %v1841 = vpop.permute.xlu0 %1840
      %vm1843 = vcmask 130112
      %1844 = vst.msk [vmem:[#allocation7] sm:$0xff] %vm1843, %v1841
      %v1845 = vld [vmem:[#allocation2] sm:$0xf]
      %v1846 = vld [vmem:[#allocation3] sm:$0xf]
      %v1847 = vld [vmem:[#allocation4] sm:$0xf]
      %v1849 = vunpack.c.l.b16 %v1845
      %v1850 = vpack.c.b16 %v1849, %v1849
      %1851 = vrot.lane.b32.xlu0 %v1850, 112
      %v1852 = vpop.permute.xlu0 %1851
      %v1854 = vunpack.c.l.b16 %v1846
      %v1855 = vpack.c.b16 %v1854, %v1854
      %1856 = vrot.lane.b32.xlu0 %v1855, 112
      %v1857 = vpop.permute.xlu0 %1856
      %v1859 = vsel %vm1353, %v1852, 0
      %v1862 = vsel %vm1353, %v1857, 0
      %1864 = vmatprep.subr.bf16.mxu0 0
      %1865 = vmatpush1.bf16.xpose.msra.mxu0 %v1862
      %1866 = vmatprep.subr.bf16.mxu0 0
      %1867 = vmatpush1.bf16.xpose.msra.mxu0 0
      %1868 = vmatprep.subr.bf16.mxu0 0
      %1869 = vmatpush1.bf16.xpose.msra.mxu0 0
      %1870 = vmatprep.subr.bf16.mxu0 0
      %1871 = vmatpush1.bf16.xpose.msra.mxu0 0
      %1872 = vmatprep.subr.bf16.mxu0 0
      %1873 = vmatpush1.bf16.xpose.msra.mxu0 0
      %1874 = vmatprep.subr.bf16.mxu0 0
      %1875 = vmatpush1.bf16.xpose.msra.mxu0 0
      %1876 = vmatprep.subr.bf16.mxu0 0
      %1877 = vmatpush1.bf16.xpose.msra.mxu0 0
      %1878 = vmatprep.subr.bf16.mxu0 0
      %1879 = vmatpush1.bf16.xpose.msra.mxu0 0
      %1880 = vmatprep.subr.bf16.mxu0 0
      %1881 = vmatpush1.bf16.xpose.msra.mxu0 0
      %1882 = vmatprep.subr.bf16.mxu0 0
      %1883 = vmatpush1.bf16.xpose.msra.mxu0 0
      %1884 = vmatprep.subr.bf16.mxu0 0
      %1885 = vmatpush1.bf16.xpose.msra.mxu0 0
      %1886 = vmatprep.subr.bf16.mxu0 0
      %1887 = vmatpush1.bf16.xpose.msra.mxu0 0
      %1888 = vmatprep.subr.bf16.mxu0 0
      %1889 = vmatpush1.bf16.xpose.msra.mxu0 0
      %1890 = vmatprep.subr.bf16.mxu0 0
      %1891 = vmatpush1.bf16.xpose.msra.mxu0 0
      %1892 = vmatprep.subr.bf16.mxu0 0
      %1893 = vmatpush1.bf16.xpose.msra.mxu0 0
      %1894 = vmatprep.subr.bf16.mxu0 0
      %1895 = vmatpush1.bf16.xpose.msra.mxu0 0
      %1896 = vmatprep.mubr.bf16.mxu0 0
      %1897 = vmatmul.mubr.bf16.gmra.mrb[0].mxu0 %v1859
      %v1898 = vpop.f32.mrb[0].mxu0
      %v1899 = vadd.f32 0.0, %v1898
      %v1900 = vpop.f32.mrb[0].mxu0
      %v1901 = vpop.f32.mrb[0].mxu0
      %v1902 = vpop.f32.mrb[0].mxu0
      %1903 = vdwg.mxu0
      %v1904 = vmul.f32 %v1899, 0.35355338
      %v1905 = vadd.f32 %v1904, %v1405
      %v1906 = vsel %vm1353, %v1905, -inf
      %1907 = vmax.xlane.f32.xlu0 %v1906
      %v1908 = vpop.xlane.xlu0 %1907
      %v1909 = vsub.f32 %v1905, %v1908
      %v1910 = vmul.f32 %v1909, 1.442695
      %v1911 = vpow.pop %v1910
      %v1912 = vsel %vm1353, %v1911, 0.0
      %1913 = vadd.xlane.f32.xlu0 %v1912
      %v1914 = vpop.xlane.xlu0 %1913
      %v1915 = vrcp.pop %v1914
      %v1916 = vmul.f32 %v1911, %v1915
      %v1917 = vpack.c.bf16 %v1916, %v1916
      %v1918 = vld [vmem:[#allocation5] sm:$0x7]
      %v1919 = vld [vmem:[#allocation6] sm:$0x7]
      %v1921 = vunpack.c.l.b16 %v1918
      %v1922 = vpack.c.b16 %v1921, %v1921
      %1923 = vrot.lane.b32.xlu0 %v1922, 112
      %v1924 = vpop.permute.xlu0 %1923
      %v1926 = vsel %vm1353, %v1924, 0
      %1928 = vmatprep.subr.bf16.mxu0 0
      %1929 = vmatpush1.bf16.xpose.msra.mxu0 %v1926
      %1930 = vmatprep.subr.bf16.mxu0 0
      %1931 = vmatpush1.bf16.xpose.msra.mxu0 0
      %1932 = vmatprep.subr.bf16.mxu0 0
      %1933 = vmatpush1.bf16.xpose.msra.mxu0 0
      %1934 = vmatprep.subr.bf16.mxu0 0
      %1935 = vmatpush1.bf16.xpose.msra.mxu0 0
      %1936 = vmatprep.subr.bf16.mxu0 0
      %1937 = vmatpush1.bf16.xpose.msra.mxu0 0
      %1938 = vmatprep.subr.bf16.mxu0 0
      %1939 = vmatpush1.bf16.xpose.msra.mxu0 0
      %1940 = vmatprep.subr.bf16.mxu0 0
      %1941 = vmatpush1.bf16.xpose.msra.mxu0 0
      %1942 = vmatprep.subr.bf16.mxu0 0
      %1943 = vmatpush1.bf16.xpose.msra.mxu0 0
      %1944 = vmatprep.subr.bf16.mxu0 0
      %1945 = vmatpush1.bf16.xpose.msra.mxu0 0
      %1946 = vmatprep.subr.bf16.mxu0 0
      %1947 = vmatpush1.bf16.xpose.msra.mxu0 0
      %1948 = vmatprep.subr.bf16.mxu0 0
      %1949 = vmatpush1.bf16.xpose.msra.mxu0 0
      %1950 = vmatprep.subr.bf16.mxu0 0
      %1951 = vmatpush1.bf16.xpose.msra.mxu0 0
      %1952 = vmatprep.subr.bf16.mxu0 0
      %1953 = vmatpush1.bf16.xpose.msra.mxu0 0
      %1954 = vmatprep.subr.bf16.mxu0 0
      %1955 = vmatpush1.bf16.xpose.msra.mxu0 0
      %1956 = vmatprep.subr.bf16.mxu0 0
      %1957 = vmatpush1.bf16.xpose.msra.mxu0 0
      %1958 = vmatprep.subr.bf16.mxu0 0
      %1959 = vmatpush1.bf16.xpose.msra.mxu0 0
      %1960 = vmatprep.mubr.bf16.mxu0 0
      %1961 = vmatmul.mubr.bf16.gmra.mrb[0].mxu0 %v1859
      %v1962 = vpop.f32.mrb[0].mxu0
      %v1963 = vadd.f32 0.0, %v1962
      %v1964 = vpop.f32.mrb[0].mxu0
      %v1965 = vpop.f32.mrb[0].mxu0
      %v1966 = vpop.f32.mrb[0].mxu0
      %1967 = vdwg.mxu0
      %v1968 = vmul.f32 %v1963, 0.35355338
      %v1969 = vadd.f32 %v1968, %v1470
      %v1970 = vsel %vm1473, %v1969, -inf
      %1971 = vmax.xlane.f32.xlu0 %v1970
      %v1972 = vpop.xlane.xlu0 %1971
      %v1973 = vsub.f32 %v1969, %v1972
      %v1974 = vmul.f32 %v1973, 1.442695
      %v1975 = vpow.pop %v1974
      %v1976 = vsel %vm1473, %v1975, 0.0
      %1977 = vadd.xlane.f32.xlu0 %v1976
      %v1978 = vpop.xlane.xlu0 %1977
      %v1979 = vrcp.pop %v1978
      %v1980 = vmul.f32 %v1975, %v1979
      %v1981 = vpack.c.bf16 %v1980, %v1980
      %v1983 = vunpack.c.l.b16 %v1919
      %v1984 = vpack.c.b16 %v1983, %v1983
      %1985 = vrot.lane.b32.xlu0 %v1984, 112
      %v1986 = vpop.permute.xlu0 %1985
      %v1988 = vsel %vm1473, %v1981, 0
      %v1991 = vand.u32 %v1986, %v1492
      %1993 = vmatprep.subr.bf16.mxu0 0
      %1994 = vmatpush1.bf16.msra.mxu0 %v1991
      %1995 = vmatprep.subr.bf16.mxu0 0
      %1996 = vmatpush1.bf16.msra.mxu0 0
      %1997 = vmatprep.subr.bf16.mxu0 0
      %1998 = vmatpush1.bf16.msra.mxu0 0
      %1999 = vmatprep.subr.bf16.mxu0 0
      %2000 = vmatpush1.bf16.msra.mxu0 0
      %2001 = vmatprep.subr.bf16.mxu0 0
      %2002 = vmatpush1.bf16.msra.mxu0 0
      %2003 = vmatprep.subr.bf16.mxu0 0
      %2004 = vmatpush1.bf16.msra.mxu0 0
      %2005 = vmatprep.subr.bf16.mxu0 0
      %2006 = vmatpush1.bf16.msra.mxu0 0
      %2007 = vmatprep.subr.bf16.mxu0 0
      %2008 = vmatpush1.bf16.msra.mxu0 0
      %2009 = vmatprep.subr.bf16.mxu0 0
      %2010 = vmatpush1.bf16.msra.mxu0 0
      %2011 = vmatprep.subr.bf16.mxu0 0
      %2012 = vmatpush1.bf16.msra.mxu0 0
      %2013 = vmatprep.subr.bf16.mxu0 0
      %2014 = vmatpush1.bf16.msra.mxu0 0
      %2015 = vmatprep.subr.bf16.mxu0 0
      %2016 = vmatpush1.bf16.msra.mxu0 0
      %2017 = vmatprep.subr.bf16.mxu0 0
      %2018 = vmatpush1.bf16.msra.mxu0 0
      %2019 = vmatprep.subr.bf16.mxu0 0
      %2020 = vmatpush1.bf16.msra.mxu0 0
      %2021 = vmatprep.subr.bf16.mxu0 0
      %2022 = vmatpush1.bf16.msra.mxu0 0
      %2023 = vmatprep.subr.bf16.mxu0 0
      %2024 = vmatpush1.bf16.msra.mxu0 0
      %2025 = vmatprep.mubr.bf16.mxu0 0
      %2026 = vmatmul.mubr.bf16.gmra.mrb[0].mxu0 %v1988
      %v2027 = vpop.f32.mrb[0].mxu0
      %v2028 = vadd.f32 0.0, %v2027
      %v2029 = vpop.f32.mrb[0].mxu0
      %v2030 = vpop.f32.mrb[0].mxu0
      %v2031 = vpop.f32.mrb[0].mxu0
      %2032 = vdwg.mxu0
      %2034 = vrot.lane.b32.xlu0 %v2028, 16
      %v2035 = vpop.permute.xlu0 %2034
      %v2037 = vmul.f32 %v1540, %v2035
      %v2039 = vunpack.c.l.b16 %v1847
      %v2040 = vpack.c.b16 %v2039, %v2039
      %2041 = vrot.lane.b32.xlu0 %v2040, 112
      %v2042 = vpop.permute.xlu0 %2041
      %2044 = vrot.lane.b32.xlu0 %v2037, 112
      %v2045 = vpop.permute.xlu0 %2044
      %v2048 = vsel %vm1353, %v1917, 0
      %v2051 = vsel %vm1546, %v2042, 0
      %2053 = vmatprep.subr.bf16.mxu0 0
      %2054 = vmatpush1.bf16.msra.mxu0 %v2051
      %2055 = vmatprep.subr.bf16.mxu0 0
      %2056 = vmatpush1.bf16.msra.mxu0 0
      %2057 = vmatprep.subr.bf16.mxu0 0
      %2058 = vmatpush1.bf16.msra.mxu0 0
      %2059 = vmatprep.subr.bf16.mxu0 0
      %2060 = vmatpush1.bf16.msra.mxu0 0
      %2061 = vmatprep.subr.bf16.mxu0 0
      %2062 = vmatpush1.bf16.msra.mxu0 0
      %2063 = vmatprep.subr.bf16.mxu0 0
      %2064 = vmatpush1.bf16.msra.mxu0 0
      %2065 = vmatprep.subr.bf16.mxu0 0
      %2066 = vmatpush1.bf16.msra.mxu0 0
      %2067 = vmatprep.subr.bf16.mxu0 0
      %2068 = vmatpush1.bf16.msra.mxu0 0
      %2069 = vmatprep.subr.bf16.mxu0 0
      %2070 = vmatpush1.bf16.msra.mxu0 0
      %2071 = vmatprep.subr.bf16.mxu0 0
      %2072 = vmatpush1.bf16.msra.mxu0 0
      %2073 = vmatprep.subr.bf16.mxu0 0
      %2074 = vmatpush1.bf16.msra.mxu0 0
      %2075 = vmatprep.subr.bf16.mxu0 0
      %2076 = vmatpush1.bf16.msra.mxu0 0
      %2077 = vmatprep.subr.bf16.mxu0 0
      %2078 = vmatpush1.bf16.msra.mxu0 0
      %2079 = vmatprep.subr.bf16.mxu0 0
      %2080 = vmatpush1.bf16.msra.mxu0 0
      %2081 = vmatprep.subr.bf16.mxu0 0
      %2082 = vmatpush1.bf16.msra.mxu0 0
      %2083 = vmatprep.subr.bf16.mxu0 0
      %2084 = vmatpush1.bf16.msra.mxu0 0
      %2085 = vmatprep.mubr.bf16.mxu0 0
      %2086 = vmatmul.mubr.bf16.gmra.mrb[0].mxu0 %v2048
      %v2087 = vpop.f32.mrb[0].mxu0
      %v2088 = vadd.f32 %v2045, %v2087
      %v2089 = vpop.f32.mrb[0].mxu0
      %v2090 = vpop.f32.mrb[0].mxu0
      %v2091 = vpop.f32.mrb[0].mxu0
      %2092 = vdwg.mxu0
      %2094 = vrot.lane.b32.xlu0 %v2088, 16
      %v2095 = vpop.permute.xlu0 %2094
      %vm2097 = vcmask 195712
      %2098 = vst.msk [vmem:[#allocation7] sm:$0xff] %vm2097, %v2095
      %v2099 = vld [vmem:[#allocation2] sm:$0xf]
      %v2100 = vld [vmem:[#allocation3] sm:$0xf]
      %v2101 = vld [vmem:[#allocation4] sm:$0xf]
      %v2103 = vunpack.c.l.b16 %v2099
      %v2104 = vpack.c.b16 %v2103, %v2103
      %2105 = vrot.lane.b32.xlu0 %v2104, 104
      %v2106 = vpop.permute.xlu0 %2105
      %v2108 = vunpack.c.l.b16 %v2100
      %v2109 = vpack.c.b16 %v2108, %v2108
      %2110 = vrot.lane.b32.xlu0 %v2109, 104
      %v2111 = vpop.permute.xlu0 %2110
      %v2113 = vsel %vm1353, %v2106, 0
      %v2116 = vsel %vm1353, %v2111, 0
      %2118 = vmatprep.subr.bf16.mxu0 0
      %2119 = vmatpush1.bf16.xpose.msra.mxu0 %v2116
      %2120 = vmatprep.subr.bf16.mxu0 0
      %2121 = vmatpush1.bf16.xpose.msra.mxu0 0
      %2122 = vmatprep.subr.bf16.mxu0 0
      %2123 = vmatpush1.bf16.xpose.msra.mxu0 0
      %2124 = vmatprep.subr.bf16.mxu0 0
      %2125 = vmatpush1.bf16.xpose.msra.mxu0 0
      %2126 = vmatprep.subr.bf16.mxu0 0
      %2127 = vmatpush1.bf16.xpose.msra.mxu0 0
      %2128 = vmatprep.subr.bf16.mxu0 0
      %2129 = vmatpush1.bf16.xpose.msra.mxu0 0
      %2130 = vmatprep.subr.bf16.mxu0 0
      %2131 = vmatpush1.bf16.xpose.msra.mxu0 0
      %2132 = vmatprep.subr.bf16.mxu0 0
      %2133 = vmatpush1.bf16.xpose.msra.mxu0 0
      %2134 = vmatprep.subr.bf16.mxu0 0
      %2135 = vmatpush1.bf16.xpose.msra.mxu0 0
      %2136 = vmatprep.subr.bf16.mxu0 0
      %2137 = vmatpush1.bf16.xpose.msra.mxu0 0
      %2138 = vmatprep.subr.bf16.mxu0 0
      %2139 = vmatpush1.bf16.xpose.msra.mxu0 0
      %2140 = vmatprep.subr.bf16.mxu0 0
      %2141 = vmatpush1.bf16.xpose.msra.mxu0 0
      %2142 = vmatprep.subr.bf16.mxu0 0
      %2143 = vmatpush1.bf16.xpose.msra.mxu0 0
      %2144 = vmatprep.subr.bf16.mxu0 0
      %2145 = vmatpush1.bf16.xpose.msra.mxu0 0
      %2146 = vmatprep.subr.bf16.mxu0 0
      %2147 = vmatpush1.bf16.xpose.msra.mxu0 0
      %2148 = vmatprep.subr.bf16.mxu0 0
      %2149 = vmatpush1.bf16.xpose.msra.mxu0 0
      %2150 = vmatprep.mubr.bf16.mxu0 0
      %2151 = vmatmul.mubr.bf16.gmra.mrb[0].mxu0 %v2113
      %v2152 = vpop.f32.mrb[0].mxu0
      %v2153 = vadd.f32 0.0, %v2152
      %v2154 = vpop.f32.mrb[0].mxu0
      %v2155 = vpop.f32.mrb[0].mxu0
      %v2156 = vpop.f32.mrb[0].mxu0
      %2157 = vdwg.mxu0
      %v2158 = vmul.f32 %v2153, 0.35355338
      %v2159 = vadd.f32 %v2158, %v1405
      %v2160 = vsel %vm1353, %v2159, -inf
      %2161 = vmax.xlane.f32.xlu0 %v2160
      %v2162 = vpop.xlane.xlu0 %2161
      %v2163 = vsub.f32 %v2159, %v2162
      %v2164 = vmul.f32 %v2163, 1.442695
      %v2165 = vpow.pop %v2164
      %v2166 = vsel %vm1353, %v2165, 0.0
      %2167 = vadd.xlane.f32.xlu0 %v2166
      %v2168 = vpop.xlane.xlu0 %2167
      %v2169 = vrcp.pop %v2168
      %v2170 = vmul.f32 %v2165, %v2169
      %v2171 = vpack.c.bf16 %v2170, %v2170
      %v2172 = vld [vmem:[#allocation5] sm:$0x7]
      %v2173 = vld [vmem:[#allocation6] sm:$0x7]
      %v2175 = vunpack.c.l.b16 %v2172
      %v2176 = vpack.c.b16 %v2175, %v2175
      %2177 = vrot.lane.b32.xlu0 %v2176, 104
      %v2178 = vpop.permute.xlu0 %2177
      %v2180 = vsel %vm1353, %v2178, 0
      %2182 = vmatprep.subr.bf16.mxu0 0
      %2183 = vmatpush1.bf16.xpose.msra.mxu0 %v2180
      %2184 = vmatprep.subr.bf16.mxu0 0
      %2185 = vmatpush1.bf16.xpose.msra.mxu0 0
      %2186 = vmatprep.subr.bf16.mxu0 0
      %2187 = vmatpush1.bf16.xpose.msra.mxu0 0
      %2188 = vmatprep.subr.bf16.mxu0 0
      %2189 = vmatpush1.bf16.xpose.msra.mxu0 0
      %2190 = vmatprep.subr.bf16.mxu0 0
      %2191 = vmatpush1.bf16.xpose.msra.mxu0 0
      %2192 = vmatprep.subr.bf16.mxu0 0
      %2193 = vmatpush1.bf16.xpose.msra.mxu0 0
      %2194 = vmatprep.subr.bf16.mxu0 0
      %2195 = vmatpush1.bf16.xpose.msra.mxu0 0
      %2196 = vmatprep.subr.bf16.mxu0 0
      %2197 = vmatpush1.bf16.xpose.msra.mxu0 0
      %2198 = vmatprep.subr.bf16.mxu0 0
      %2199 = vmatpush1.bf16.xpose.msra.mxu0 0
      %2200 = vmatprep.subr.bf16.mxu0 0
      %2201 = vmatpush1.bf16.xpose.msra.mxu0 0
      %2202 = vmatprep.subr.bf16.mxu0 0
      %2203 = vmatpush1.bf16.xpose.msra.mxu0 0
      %2204 = vmatprep.subr.bf16.mxu0 0
      %2205 = vmatpush1.bf16.xpose.msra.mxu0 0
      %2206 = vmatprep.subr.bf16.mxu0 0
      %2207 = vmatpush1.bf16.xpose.msra.mxu0 0
      %2208 = vmatprep.subr.bf16.mxu0 0
      %2209 = vmatpush1.bf16.xpose.msra.mxu0 0
      %2210 = vmatprep.subr.bf16.mxu0 0
      %2211 = vmatpush1.bf16.xpose.msra.mxu0 0
      %2212 = vmatprep.subr.bf16.mxu0 0
      %2213 = vmatpush1.bf16.xpose.msra.mxu0 0
      %2214 = vmatprep.mubr.bf16.mxu0 0
      %2215 = vmatmul.mubr.bf16.gmra.mrb[0].mxu0 %v2113
      %v2216 = vpop.f32.mrb[0].mxu0
      %v2217 = vadd.f32 0.0, %v2216
      %v2218 = vpop.f32.mrb[0].mxu0
      %v2219 = vpop.f32.mrb[0].mxu0
      %v2220 = vpop.f32.mrb[0].mxu0
      %2221 = vdwg.mxu0
      %v2222 = vmul.f32 %v2217, 0.35355338
      %v2223 = vadd.f32 %v2222, %v1470
      %v2224 = vsel %vm1473, %v2223, -inf
      %2225 = vmax.xlane.f32.xlu0 %v2224
      %v2226 = vpop.xlane.xlu0 %2225
      %v2227 = vsub.f32 %v2223, %v2226
      %v2228 = vmul.f32 %v2227, 1.442695
      %v2229 = vpow.pop %v2228
      %v2230 = vsel %vm1473, %v2229, 0.0
      %2231 = vadd.xlane.f32.xlu0 %v2230
      %v2232 = vpop.xlane.xlu0 %2231
      %v2233 = vrcp.pop %v2232
      %v2234 = vmul.f32 %v2229, %v2233
      %v2235 = vpack.c.bf16 %v2234, %v2234
      %v2237 = vunpack.c.l.b16 %v2173
      %v2238 = vpack.c.b16 %v2237, %v2237
      %2239 = vrot.lane.b32.xlu0 %v2238, 104
      %v2240 = vpop.permute.xlu0 %2239
      %v2242 = vsel %vm1473, %v2235, 0
      %v2245 = vand.u32 %v2240, %v1492
      %2247 = vmatprep.subr.bf16.mxu0 0
      %2248 = vmatpush1.bf16.msra.mxu0 %v2245
      %2249 = vmatprep.subr.bf16.mxu0 0
      %2250 = vmatpush1.bf16.msra.mxu0 0
      %2251 = vmatprep.subr.bf16.mxu0 0
      %2252 = vmatpush1.bf16.msra.mxu0 0
      %2253 = vmatprep.subr.bf16.mxu0 0
      %2254 = vmatpush1.bf16.msra.mxu0 0
      %2255 = vmatprep.subr.bf16.mxu0 0
      %2256 = vmatpush1.bf16.msra.mxu0 0
      %2257 = vmatprep.subr.bf16.mxu0 0
      %2258 = vmatpush1.bf16.msra.mxu0 0
      %2259 = vmatprep.subr.bf16.mxu0 0
      %2260 = vmatpush1.bf16.msra.mxu0 0
      %2261 = vmatprep.subr.bf16.mxu0 0
      %2262 = vmatpush1.bf16.msra.mxu0 0
      %2263 = vmatprep.subr.bf16.mxu0 0
      %2264 = vmatpush1.bf16.msra.mxu0 0
      %2265 = vmatprep.subr.bf16.mxu0 0
      %2266 = vmatpush1.bf16.msra.mxu0 0
      %2267 = vmatprep.subr.bf16.mxu0 0
      %2268 = vmatpush1.bf16.msra.mxu0 0
      %2269 = vmatprep.subr.bf16.mxu0 0
      %2270 = vmatpush1.bf16.msra.mxu0 0
      %2271 = vmatprep.subr.bf16.mxu0 0
      %2272 = vmatpush1.bf16.msra.mxu0 0
      %2273 = vmatprep.subr.bf16.mxu0 0
      %2274 = vmatpush1.bf16.msra.mxu0 0
      %2275 = vmatprep.subr.bf16.mxu0 0
      %2276 = vmatpush1.bf16.msra.mxu0 0
      %2277 = vmatprep.subr.bf16.mxu0 0
      %2278 = vmatpush1.bf16.msra.mxu0 0
      %2279 = vmatprep.mubr.bf16.mxu0 0
      %2280 = vmatmul.mubr.bf16.gmra.mrb[0].mxu0 %v2242
      %v2281 = vpop.f32.mrb[0].mxu0
      %v2282 = vadd.f32 0.0, %v2281
      %v2283 = vpop.f32.mrb[0].mxu0
      %v2284 = vpop.f32.mrb[0].mxu0
      %v2285 = vpop.f32.mrb[0].mxu0
      %2286 = vdwg.mxu0
      %2288 = vrot.lane.b32.xlu0 %v2282, 24
      %v2289 = vpop.permute.xlu0 %2288
      %v2291 = vmul.f32 %v1540, %v2289
      %v2293 = vunpack.c.l.b16 %v2101
      %v2294 = vpack.c.b16 %v2293, %v2293
      %2295 = vrot.lane.b32.xlu0 %v2294, 104
      %v2296 = vpop.permute.xlu0 %2295
      %2298 = vrot.lane.b32.xlu0 %v2291, 104
      %v2299 = vpop.permute.xlu0 %2298
      %v2302 = vsel %vm1353, %v2171, 0
      %v2305 = vsel %vm1546, %v2296, 0
      %2307 = vmatprep.subr.bf16.mxu0 0
      %2308 = vmatpush1.bf16.msra.mxu0 %v2305
      %2309 = vmatprep.subr.bf16.mxu0 0
      %2310 = vmatpush1.bf16.msra.mxu0 0
      %2311 = vmatprep.subr.bf16.mxu0 0
      %2312 = vmatpush1.bf16.msra.mxu0 0
      %2313 = vmatprep.subr.bf16.mxu0 0
      %2314 = vmatpush1.bf16.msra.mxu0 0
      %2315 = vmatprep.subr.bf16.mxu0 0
      %2316 = vmatpush1.bf16.msra.mxu0 0
      %2317 = vmatprep.subr.bf16.mxu0 0
      %2318 = vmatpush1.bf16.msra.mxu0 0
      %2319 = vmatprep.subr.bf16.mxu0 0
      %2320 = vmatpush1.bf16.msra.mxu0 0
      %2321 = vmatprep.subr.bf16.mxu0 0
      %2322 = vmatpush1.bf16.msra.mxu0 0
      %2323 = vmatprep.subr.bf16.mxu0 0
      %2324 = vmatpush1.bf16.msra.mxu0 0
      %2325 = vmatprep.subr.bf16.mxu0 0
      %2326 = vmatpush1.bf16.msra.mxu0 0
      %2327 = vmatprep.subr.bf16.mxu0 0
      %2328 = vmatpush1.bf16.msra.mxu0 0
      %2329 = vmatprep.subr.bf16.mxu0 0
      %2330 = vmatpush1.bf16.msra.mxu0 0
      %2331 = vmatprep.subr.bf16.mxu0 0
      %2332 = vmatpush1.bf16.msra.mxu0 0
      %2333 = vmatprep.subr.bf16.mxu0 0
      %2334 = vmatpush1.bf16.msra.mxu0 0
      %2335 = vmatprep.subr.bf16.mxu0 0
      %2336 = vmatpush1.bf16.msra.mxu0 0
      %2337 = vmatprep.subr.bf16.mxu0 0
      %2338 = vmatpush1.bf16.msra.mxu0 0
      %2339 = vmatprep.mubr.bf16.mxu0 0
      %2340 = vmatmul.mubr.bf16.gmra.mrb[0].mxu0 %v2302
      %v2341 = vpop.f32.mrb[0].mxu0
      %v2342 = vadd.f32 %v2299, %v2341
      %v2343 = vpop.f32.mrb[0].mxu0
      %v2344 = vpop.f32.mrb[0].mxu0
      %v2345 = vpop.f32.mrb[0].mxu0
      %2346 = vdwg.mxu0
      %2348 = vrot.lane.b32.xlu0 %v2342, 24
      %v2349 = vpop.permute.xlu0 %2348
      %vm2351 = vcmask 261312
      %2352 = vst.msk [vmem:[#allocation7] sm:$0xff] %vm2351, %v2349
      %v2353 = vld [vmem:[#allocation7] sm:$0xff]
      %v2354 = vpack.c.bf16 %v2353, %v2353
      %v2355 = vld [vmem:[%s19] sm:$0xf]
      %v2356 = vld [vmem:[%s19 + $0x4] sm:$0xf]
      %v2357 = vld [vmem:[%s19 + $0x8] sm:$0xf]
      %v2358 = vld [vmem:[%s19 + $0xc] sm:$0xf]
      %v2363 = vunpack.c.l.b16 %v2355
      %v2364 = vunpack.c.l.b16 %v2356
      %v2365 = vunpack.c.l.b16 %v2357
      %v2366 = vunpack.c.l.b16 %v2358
      %v2367 = vpack.c.b16 %v2364, %v2363
      %v2368 = vpack.c.b16 %v2366, %v2365
      %v2372 = vsel %vm715, %v2354, 0
      %2374 = vmatprep.subr.bf16.mxu0 0
      %2375 = vmatpush1.bf16.msra.mxu0 %v2367
      %2376 = vmatprep.subr.bf16.mxu0 0
      %2377 = vmatpush1.bf16.msra.mxu0 %v2368
      %2378 = vmatprep.subr.bf16.mxu0 0
      %2379 = vmatpush1.bf16.msra.mxu0 0
      %2380 = vmatprep.subr.bf16.mxu0 0
      %2381 = vmatpush1.bf16.msra.mxu0 0
      %2382 = vmatprep.subr.bf16.mxu0 0
      %2383 = vmatpush1.bf16.msra.mxu0 0
      %2384 = vmatprep.subr.bf16.mxu0 0
      %2385 = vmatpush1.bf16.msra.mxu0 0
      %2386 = vmatprep.subr.bf16.mxu0 0
      %2387 = vmatpush1.bf16.msra.mxu0 0
      %2388 = vmatprep.subr.bf16.mxu0 0
      %2389 = vmatpush1.bf16.msra.mxu0 0
      %2390 = vmatprep.subr.bf16.mxu0 0
      %2391 = vmatpush1.bf16.msra.mxu0 0
      %2392 = vmatprep.subr.bf16.mxu0 0
      %2393 = vmatpush1.bf16.msra.mxu0 0
      %2394 = vmatprep.subr.bf16.mxu0 0
      %2395 = vmatpush1.bf16.msra.mxu0 0
      %2396 = vmatprep.subr.bf16.mxu0 0
      %2397 = vmatpush1.bf16.msra.mxu0 0
      %2398 = vmatprep.subr.bf16.mxu0 0
      %2399 = vmatpush1.bf16.msra.mxu0 0
      %2400 = vmatprep.subr.bf16.mxu0 0
      %2401 = vmatpush1.bf16.msra.mxu0 0
      %2402 = vmatprep.subr.bf16.mxu0 0
      %2403 = vmatpush1.bf16.msra.mxu0 0
      %2404 = vmatprep.subr.bf16.mxu0 0
      %2405 = vmatpush1.bf16.msra.mxu0 0
      %2406 = vmatprep.mubr.bf16.mxu0 0
      %2407 = vmatmul.mubr.bf16.gmra.mrb[0].mxu0 %v2372
      %v2408 = vpop.f32.mrb[0].mxu0
      %v2409 = vadd.f32 0.0, %v2408
      %v2410 = vpop.f32.mrb[0].mxu0
      %v2411 = vpop.f32.mrb[0].mxu0
      %v2412 = vpop.f32.mrb[0].mxu0
      %2413 = vdwg.mxu0
      %v2414 = vld [vmem:[%s697] sm:$0x1]
      %v2416 = vlaneseq
      %v2417 = vshrl.u32 %v2416, 7
      %v2418 = vsub.s32 0, %v2417
      %v2419 = vrot.slane %v2414, %v2418
      %v2421 = vmul.f32 %v2419, %v2409
      %v2422 = vadd.f32 %v713, %v2421
      %2423 = vst.msk [vmem:[%s711] sm:$0xff] %vm715, %v2422
      %p2424 = scmp.lt.s32.totalorder %s31, 1
      %s2425 = scalar_select %p2424, %s31, 1
      %s2426 = smul.addr %s2425, 8
      %s2427 = scalar_lea.vmem %s20, %s2426
      // Predicated region
      $region101: #{transformer_block_forward.8} parent=99 // pred_check
        %p2428 = pneg %p504
      $region102: #{transformer_block_forward.8} parent=99 // pred_check_branch
        %2430 = sbr.rel (%p2428) target = $region104
      $region103: #{transformer_block_forward.8} parent=99 // pred_region
        _
      $region104: #{transformer_block_forward.8} parent=99 // pred_fallthru
        _
    $region100: #{transformer_block_forward.8} parent=5 // pred_fallthru
      _
    %p2431 = scmp.le.s32.totalorder 2, %s26
    // Predicated region
    $region105: #{transformer_block_forward.8} parent=5 // pred_check
      %p2432 = pneg %p2431
    $region106: #{transformer_block_forward.8} parent=5 // pred_check_branch
      %2434 = sbr.rel (%p2432) target = $region108
    $region107: #{transformer_block_forward.8} parent=5 // pred_region
      %s2435 = ssub.s32 %s26, 2
      // Predicated region
      $region109: #{transformer_block_forward.8} parent=107 // pred_check
        %p2436 = pneg %p510
      $region110: #{transformer_block_forward.8} parent=107 // pred_check_branch
        %2438 = sbr.rel (%p2436) target = $region112
      $region111: #{transformer_block_forward.8} parent=107 // pred_region
        %p2439 = scmp.lt.s32.totalorder %s32, 1
        %s2440 = scalar_select %p2439, %s32, 1
        %s2441 = smul.addr %s2440, 8
        %s2442 = scalar_lea.vmem %s20, %s2441
      $region112: #{transformer_block_forward.8} parent=107 // pred_fallthru
        _
    $region108: #{transformer_block_forward.8} parent=5 // pred_fallthru
      _
  $region6: #{transformer_block_forward.8} parent=0 // loop_footer
    %s30 = sadd.s32 1, %s26
  $region7: #{transformer_block_forward.8} parent=0 // loop_footer_branch
    %25 = sbr.rel target = $region3
  $region8: #{transformer_block_forward.8} parent=0 // loop_exit
    _

</llo_original>
